<compile_context>
chip_gen: v7x
topology: tpu7x:2x2x1
jax: 0.10.0
libtpu: 0.0.40
codegen_flags: <defaults>
</compile_context>

<pallas_src>
import functools

import jax
import jax.numpy as jnp
from jax.experimental import pallas as pl
from jax.experimental.pallas import tpu as pltpu

EPS = 1e-5
LANE = 128
_VMEM_LIMIT = 32 * 1024 * 1024


def _round_up(x, m):
    return (x + m - 1) // m * m


def _tile_rows(m_true):
    """Pick an M tile (<=512 rows) and the padded row count."""
    tile = 512 if m_true >= 512 else _round_up(m_true, 16)
    return tile, _round_up(m_true, tile)


def _pad_rows_to(x, rows):
    if x.shape[0] < rows:
        x = jnp.pad(x, ((0, rows - x.shape[0]), (0, 0)))
    return x


def _pad_vec(v, cp):
    return jnp.pad(v, (0, cp - v.shape[0]))


def _compiler_params():
    return pltpu.CompilerParams(dimension_semantics=("parallel",),
                                vmem_limit_bytes=_VMEM_LIMIT)


# ----------------------------------------------------------------------------
# Pallas kernels
# ----------------------------------------------------------------------------
def _make_conv_stats_kernel(cp_out, *, fused_cp_in=None, mask_rows=False,
                            m_true=0, tile_m=0):
    """Complex conv (4 bf16 matmuls, f32 accumulate) + per-tile BN partial stats.

    Non-fused variant : refs = (xr, xi, wa, wb, y_out, stats_out)
    Fused variant     : refs = (y_prev, scale, shift, wa, wb, y_out, stats_out)
                        (applies previous-stage BN + ReLU in-kernel first)
    """

    def kernel(*refs):
        if fused_cp_in is None:
            xr_ref, xi_ref, wa_ref, wb_ref, yo_ref, st_ref = refs
            xr = xr_ref[...]
            xi = xi_ref[...]
        else:
            yp_ref, sc_ref, sh_ref, wa_ref, wb_ref, yo_ref, st_ref = refs
            a = jnp.maximum(yp_ref[...] * sc_ref[...] + sh_ref[...], 0.0)
            if mask_rows:
                rows = (pl.program_id(0) * tile_m
                        + jax.lax.broadcasted_iota(jnp.int32, a.shape, 0))
                a = jnp.where(rows < m_true, a, 0.0)
            xr = a[:, :fused_cp_in].astype(jnp.bfloat16)
            xi = a[:, fused_cp_in:].astype(jnp.bfloat16)

        wa = wa_ref[...]
        wb = wb_ref[...]
        yr = (jnp.dot(xr, wa, preferred_element_type=jnp.float32)
              - jnp.dot(xi, wb, preferred_element_type=jnp.float32))
        yi = (jnp.dot(xi, wa, preferred_element_type=jnp.float32)
              + jnp.dot(xr, wb, preferred_element_type=jnp.float32))

        yo_ref[:, :cp_out] = yr
        yo_ref[:, cp_out:] = yi

        rows8 = jax.lax.broadcasted_iota(jnp.int32, (8, cp_out), 0)

        def tile_stats(z):
            s = jnp.sum(z, axis=0, keepdims=True)
            q = jnp.sum(z * z, axis=0, keepdims=True)
            return jnp.where(rows8 == 0, s, jnp.where(rows8 == 1, q, 0.0))

        st_ref[:, :cp_out] = tile_stats(yr)
        st_ref[:, cp_out:] = tile_stats(yi)

    return kernel


def _bn_relu_kernel(y_ref, s_ref, b_ref, o_ref):
    o_ref[...] = jnp.maximum(y_ref[...] * s_ref[...] + b_ref[...],
                             0.0).astype(o_ref.dtype)


def _bn_add_relu_kernel(y_ref, s_ref, b_ref, r_ref, rs_ref, rb_ref, o_ref):
    main = y_ref[...] * s_ref[...] + b_ref[...]
    res = r_ref[...] * rs_ref[...] + rb_ref[...]
    o_ref[...] = jnp.maximum(main + res, 0.0).astype(o_ref.dtype)


# ----------------------------------------------------------------------------
# pallas_call wrappers
# ----------------------------------------------------------------------------
def conv_stats_call(xr, xi, wa, wb, m_true):
    """xr/xi: (M, K) bf16, wa/wb: (K, Cp) bf16 -> y (Mpad, 2Cp) f32, partial stats."""
    k, cp_out = wa.shape
    tile_m, m_pad = _tile_rows(m_true)
    n_tiles = m_pad // tile_m
    two_out = 2 * cp_out
    xr = _pad_rows_to(xr, m_pad)
    xi = _pad_rows_to(xi, m_pad)
    kernel = _make_conv_stats_kernel(cp_out)
    return pl.pallas_call(
        kernel,
        out_shape=(jax.ShapeDtypeStruct((m_pad, two_out), jnp.float32),
                   jax.ShapeDtypeStruct((n_tiles * 8, two_out), jnp.float32)),
        grid_spec=pltpu.PrefetchScalarGridSpec(
            num_scalar_prefetch=0,
            grid=(n_tiles,),
            in_specs=[pl.BlockSpec((tile_m, k), lambda m: (m, 0)),
                      pl.BlockSpec((tile_m, k), lambda m: (m, 0)),
                      pl.BlockSpec((k, cp_out), lambda m: (0, 0)),
                      pl.BlockSpec((k, cp_out), lambda m: (0, 0))],
            out_specs=(pl.BlockSpec((tile_m, two_out), lambda m: (m, 0)),
                       pl.BlockSpec((8, two_out), lambda m: (m, 0))),
        ),
        compiler_params=_compiler_params(),
    )(xr, xi, wa, wb)


def bn_relu_conv_stats_call(y_prev, scale, shift, wa, wb, m_true):
    """Fused: BN+ReLU of previous stage (f32) -> bf16 complex conv + stats."""
    k, cp_out = wa.shape          # k == per-part input channels of this conv
    cp_in = k
    tile_m, m_pad = _tile_rows(m_true)
    n_tiles = m_pad // tile_m
    two_in = 2 * cp_in
    two_out = 2 * cp_out
    y_prev = _pad_rows_to(y_prev, m_pad)
    kernel = _make_conv_stats_kernel(cp_out, fused_cp_in=cp_in,
                                     mask_rows=(m_pad != m_true),
                                     m_true=m_true, tile_m=tile_m)
    return pl.pallas_call(
        kernel,
        out_shape=(jax.ShapeDtypeStruct((m_pad, two_out), jnp.float32),
                   jax.ShapeDtypeStruct((n_tiles * 8, two_out), jnp.float32)),
        grid_spec=pltpu.PrefetchScalarGridSpec(
            num_scalar_prefetch=0,
            grid=(n_tiles,),
            in_specs=[pl.BlockSpec((tile_m, two_in), lambda m: (m, 0)),
                      pl.BlockSpec((1, two_in), lambda m: (0, 0)),
                      pl.BlockSpec((1, two_in), lambda m: (0, 0)),
                      pl.BlockSpec((k, cp_out), lambda m: (0, 0)),
                      pl.BlockSpec((k, cp_out), lambda m: (0, 0))],
            out_specs=(pl.BlockSpec((tile_m, two_out), lambda m: (m, 0)),
                       pl.BlockSpec((8, two_out), lambda m: (m, 0))),
        ),
        compiler_params=_compiler_params(),
    )(y_prev, scale, shift, wa, wb)


def bn_relu_apply(y, scale, shift, m_true, out_dtype=jnp.bfloat16):
    tile_m, m_pad = _tile_rows(m_true)
    n_tiles = m_pad // tile_m
    two = y.shape[1]
    y = _pad_rows_to(y, m_pad)
    return pl.pallas_call(
        _bn_relu_kernel,
        out_shape=jax.ShapeDtypeStruct((m_pad, two), out_dtype),
        grid_spec=pltpu.PrefetchScalarGridSpec(
            num_scalar_prefetch=0,
            grid=(n_tiles,),
            in_specs=[pl.BlockSpec((tile_m, two), lambda m: (m, 0)),
                      pl.BlockSpec((1, two), lambda m: (0, 0)),
                      pl.BlockSpec((1, two), lambda m: (0, 0))],
            out_specs=pl.BlockSpec((tile_m, two), lambda m: (m, 0)),
        ),
        compiler_params=_compiler_params(),
    )(y, scale, shift)


def bn_add_relu_apply(y, scale, shift, res, res_scale, res_shift, m_true):
    tile_m, m_pad = _tile_rows(m_true)
    n_tiles = m_pad // tile_m
    two = y.shape[1]
    y = _pad_rows_to(y, m_pad)
    res = _pad_rows_to(res, m_pad)
    return pl.pallas_call(
        _bn_add_relu_kernel,
        out_shape=jax.ShapeDtypeStruct((m_pad, two), jnp.float32),
        grid_spec=pltpu.PrefetchScalarGridSpec(
            num_scalar_prefetch=0,
            grid=(n_tiles,),
            in_specs=[pl.BlockSpec((tile_m, two), lambda m: (m, 0)),
                      pl.BlockSpec((1, two), lambda m: (0, 0)),
                      pl.BlockSpec((1, two), lambda m: (0, 0)),
                      pl.BlockSpec((tile_m, two), lambda m: (m, 0)),
                      pl.BlockSpec((1, two), lambda m: (0, 0)),
                      pl.BlockSpec((1, two), lambda m: (0, 0))],
            out_specs=pl.BlockSpec((tile_m, two), lambda m: (m, 0)),
        ),
        compiler_params=_compiler_params(),
    )(y, scale, shift, res, res_scale, res_shift)


# ----------------------------------------------------------------------------
# Plain-JAX glue: stats -> scale/shift, weight/BN packing, im2col
# ----------------------------------------------------------------------------
def _bn_scale_shift(stats, m_true, gamma, beta):
    st = stats.reshape(-1, 8, stats.shape[-1])
    s = jnp.sum(st[:, 0, :], axis=0)
    q = jnp.sum(st[:, 1, :], axis=0)
    mean = s / m_true
    var = jnp.maximum(q / m_true - mean * mean, 0.0)
    scale = gamma * jax.lax.rsqrt(var + EPS)
    shift = beta - mean * scale
    return scale.reshape(1, -1), shift.reshape(1, -1)


def _pack_conv(w, ci_p, co_p):
    kh, kw, ci, co = w.shape
    w = jnp.pad(w, ((0, 0), (0, 0), (0, ci_p - ci), (0, co_p - co)))
    return w.reshape(kh * kw * ci_p, co_p).astype(jnp.bfloat16)


def _pack_bn(bn, cp):
    g = jnp.concatenate([_pad_vec(bn["gamma_r"], cp), _pad_vec(bn["gamma_i"], cp)])
    b = jnp.concatenate([_pad_vec(bn["beta_r"], cp), _pad_vec(bn["beta_i"], cp)])
    return g.astype(jnp.float32), b.astype(jnp.float32)


def im2col(x, kh, kw, stride, pad):
    """x: (N, H, W, C) -> ((N*Ho*Wo, kh*kw*C), (N, Ho, Wo))."""
    N, H, W, C = x.shape
    xp = jnp.pad(x, ((0, 0), (pad, pad), (pad, pad), (0, 0)))
    Ho = (H + 2 * pad - kh) // stride + 1
    Wo = (W + 2 * pad - kw) // stride + 1
    cols = []
    for dy in range(kh):
        for dx in range(kw):
            cols.append(
                xp[:, dy: dy + (Ho - 1) * stride + 1: stride,
                   dx: dx + (Wo - 1) * stride + 1: stride, :])
    patches = jnp.concatenate(cols, axis=-1)
    return patches.reshape(N * Ho * Wo, kh * kw * C), (N, Ho, Wo)


# ----------------------------------------------------------------------------
# BottleNeck forward (Pallas path)
# ----------------------------------------------------------------------------
def bottleneck_forward(x1, x2, params, stride):
    # x1, x2: (N, Cin, H, W) real / imaginary parts (NCHW like PyTorch)
    N, Cin, H, W = x1.shape
    Cmid = params["conv1"]["A"].shape[-1]
    Cout = params["conv3"]["A"].shape[-1]
    cin_p = _round_up(Cin, LANE)
    cmid_p = _round_up(Cmid, LANE)
    cout_p = _round_up(Cout, LANE)

    xr = jnp.transpose(x1, (0, 2, 3, 1)).astype(jnp.float32)
    xi = jnp.transpose(x2, (0, 2, 3, 1)).astype(jnp.float32)
    xr = jnp.pad(xr, ((0, 0), (0, 0), (0, 0), (0, cin_p - Cin)))
    xi = jnp.pad(xi, ((0, 0), (0, 0), (0, 0), (0, cin_p - Cin)))

    M1 = N * H * W
    xr_flat = xr.reshape(M1, cin_p)
    xi_flat = xi.reshape(M1, cin_p)
    xr_bf = xr_flat.astype(jnp.bfloat16)
    xi_bf = xi_flat.astype(jnp.bfloat16)

    # ---- conv1 (1x1) + batch stats ------------------------------------------
    y1, st1 = conv_stats_call(
        xr_bf, xi_bf,
        _pack_conv(params["conv1"]["A"], cin_p, cmid_p),
        _pack_conv(params["conv1"]["B"], cin_p, cmid_p), M1)
    sc1, sh1 = _bn_scale_shift(st1, M1, *_pack_bn(params["bn1"], cmid_p))

    # ---- bn1 + relu (materialized bf16, needed for the 3x3 im2col) ----------
    a1 = bn_relu_apply(y1, sc1, sh1, M1)[:M1]

    # ---- conv2 (3x3, stride) + batch stats -----------------------------------
    a1r = a1[:, :cmid_p].reshape(N, H, W, cmid_p)
    a1i = a1[:, cmid_p:].reshape(N, H, W, cmid_p)
    pr, (n2, Ho, Wo) = im2col(a1r, 3, 3, stride, 1)
    pi, _ = im2col(a1i, 3, 3, stride, 1)
    M2 = n2 * Ho * Wo
    y2, st2 = conv_stats_call(
        pr, pi,
        _pack_conv(params["conv2"]["A"], cmid_p, cmid_p),
        _pack_conv(params["conv2"]["B"], cmid_p, cmid_p), M2)
    sc2, sh2 = _bn_scale_shift(st2, M2, *_pack_bn(params["bn2"], cmid_p))

    # ---- conv3 (1x1) with bn2+relu fused into the matmul kernel --------------
    y3, st3 = bn_relu_conv_stats_call(
        y2, sc2, sh2,
        _pack_conv(params["conv3"]["A"], cmid_p, cout_p),
        _pack_conv(params["conv3"]["B"], cmid_p, cout_p), M2)
    sc3, sh3 = _bn_scale_shift(st3, M2, *_pack_bn(params["bn3"], cout_p))

    # ---- shortcut -------------------------------------------------------------
    if stride != 1 or Cin != Cout:
        xs_r = xr[:, ::stride, ::stride, :].reshape(M2, cin_p).astype(jnp.bfloat16)
        xs_i = xi[:, ::stride, ::stride, :].reshape(M2, cin_p).astype(jnp.bfloat16)
        ys, sts = conv_stats_call(
            xs_r, xs_i,
            _pack_conv(params["conv_sc"]["A"], cin_p, cout_p),
            _pack_conv(params["conv_sc"]["B"], cin_p, cout_p), M2)
        scs, shs = _bn_scale_shift(sts, M2, *_pack_bn(params["bn_sc"], cout_p))
    else:
        ys = jnp.concatenate([xr_flat, xi_flat], axis=1)
        scs = jnp.ones((1, 2 * cout_p), jnp.float32)
        shs = jnp.zeros((1, 2 * cout_p), jnp.float32)

    # ---- bn3 + shortcut-bn + add + complex relu (single fused kernel) --------
    out = bn_add_relu_apply(y3, sc3, sh3, ys, scs, shs, M2)[:M2]

    out_r = out[:, :Cout].reshape(n2, Ho, Wo, Cout)
    out_i = out[:, cout_p:cout_p + Cout].reshape(n2, Ho, Wo, Cout)
    return (jnp.transpose(out_r, (0, 3, 1, 2)),
            jnp.transpose(out_i, (0, 3, 1, 2)))


# ----------------------------------------------------------------------------
# Pure-JAX f32 reference (lax.conv based) for verification
# ----------------------------------------------------------------------------
def conv2d_ref(x, w, stride, pad):
    return jax.lax.conv_general_dilated(
        x, w, (stride, stride), [(pad, pad), (pad, pad)],
        dimension_numbers=("NHWC", "HWIO", "NHWC"))


def bn_ref(x, gamma, beta):
    mean = x.mean(axis=(0, 1, 2), keepdims=True)
    var = ((x - mean) ** 2).mean(axis=(0, 1, 2), keepdims=True)
    return (x - mean) * jax.lax.rsqrt(var + EPS) * gamma + beta


def bottleneck_ref(x1, x2, params, stride):
    xr = jnp.transpose(x1, (0, 2, 3, 1)).astype(jnp.float32)
    xi = jnp.transpose(x2, (0, 2, 3, 1)).astype(jnp.float32)

    def cconv(xr, xi, c, s, p):
        yr = conv2d_ref(xr, c["A"], s, p) - conv2d_ref(xi, c["B"], s, p)
        yi = conv2d_ref(xi, c["A"], s, p) + conv2d_ref(xr, c["B"], s, p)
        return yr, yi

    def cbn(xr, xi, b):
        return (bn_ref(xr, b["gamma_r"], b["beta_r"]),
                bn_ref(xi, b["gamma_i"], b["beta_i"]))

    def crelu(xr, xi):
        return jnp.maximum(xr, 0.0), jnp.maximum(xi, 0.0)

    yr, yi = crelu(*cbn(*cconv(xr, xi, params["conv1"], 1, 0), params["bn1"]))
    yr, yi = crelu(*cbn(*cconv(yr, yi, params["conv2"], stride, 1), params["bn2"]))
    yr, yi = cbn(*cconv(yr, yi, params["conv3"], 1, 0), params["bn3"])

    cin = xr.shape[-1]
    cout = yr.shape[-1]
    if stride != 1 or cin != cout:
        sr, si = cbn(*cconv(xr, xi, params["conv_sc"], stride, 0), params["bn_sc"])
    else:
        sr, si = xr, xi

    or_, oi_ = crelu(yr + sr, yi + si)
    return (jnp.transpose(or_, (0, 3, 1, 2)),
            jnp.transpose(oi_, (0, 3, 1, 2)))


# ----------------------------------------------------------------------------
# Deterministic parameter init
# ----------------------------------------------------------------------------
def init_params(key, cin, cmid, stride):
    cout = cmid * 4
    ks = jax.random.split(key, 8)

    def conv(k, kh, kw, ci, co):
        k1, k2 = jax.random.split(k)
        a = 0.1 * jax.random.normal(k1, (kh, kw, ci, co), jnp.float32)
        b = 0.1 * jax.random.normal(k2, (kh, kw, ci, co), jnp.float32)
        # keep weights bf16-representable so the bf16-MXU kernel path and the
        # f32 reference see identical operand values
        return {"A": a.astype(jnp.bfloat16).astype(jnp.float32),
                "B": b.astype(jnp.bfloat16).astype(jnp.float32)}

    def bn(k, c):
        k1, k2, k3, k4 = jax.random.split(k, 4)
        return {"gamma_r": 1.0 + 0.1 * jax.random.normal(k1, (c,), jnp.float32),
                "gamma_i": 1.0 + 0.1 * jax.random.normal(k2, (c,), jnp.float32),
                "beta_r": 0.1 * jax.random.normal(k3, (c,), jnp.float32),
                "beta_i": 0.1 * jax.random.normal(k4, (c,), jnp.float32)}

    return {
        "conv1": conv(ks[0], 1, 1, cin, cmid),  "bn1": bn(ks[1], cmid),
        "conv2": conv(ks[2], 3, 3, cmid, cmid), "bn2": bn(ks[3], cmid),
        "conv3": conv(ks[4], 1, 1, cmid, cout), "bn3": bn(ks[5], cout),
        "conv_sc": conv(ks[6], 1, 1, cin, cout), "bn_sc": bn(ks[7], cout),
    }


if __name__ == "__main__":
    key = jax.random.PRNGKey(0)

    configs = [
        # (N, Cin, H, W, Cmid, stride)
        (2, 8, 8, 8, 4, 1),    # conv shortcut (Cin != 4*Cmid)
        (2, 8, 8, 8, 4, 2),    # strided block, conv shortcut
        (2, 16, 8, 8, 4, 1),   # identity shortcut (Cin == 4*Cmid, stride 1)
    ]

    for idx, (N, Cin, H, W, Cmid, stride) in enumerate(configs):
        k_x1, k_x2, k_p = jax.random.split(jax.random.fold_in(key, idx), 3)
        # round inputs to bf16-representable values (see init_params comment)
        x1 = jax.random.normal(k_x1, (N, Cin, H, W), jnp.float32)
        x2 = jax.random.normal(k_x2, (N, Cin, H, W), jnp.float32)
        x1 = x1.astype(jnp.bfloat16).astype(jnp.float32)
        x2 = x2.astype(jnp.bfloat16).astype(jnp.float32)
        params = init_params(k_p, Cin, Cmid, stride)

        fwd = jax.jit(functools.partial(bottleneck_forward, stride=stride))
        out_r, out_i = jax.block_until_ready(fwd(x1, x2, params))

        ref_r, ref_i = bottleneck_ref(x1, x2, params, stride)
        Ho = (H - 1) // stride + 1
        Wo = (W - 1) // stride + 1
        assert out_r.shape == (N, Cmid * 4, Ho, Wo), out_r.shape
        assert out_i.shape == (N, Cmid * 4, Ho, Wo), out_i.shape
        # tolerance accommodates bf16 storage of intermediate activations
        assert jnp.allclose(out_r, ref_r, atol=5e-2, rtol=5e-2), \
            f"real part mismatch (config {idx})"
        assert jnp.allclose(out_i, ref_i, atol=5e-2, rtol=5e-2), \
            f"imag part mismatch (config {idx})"

    print("KERNEL_OK")
</pallas_src>

<mosaic_0001>
module attributes {stable_mosaic.version = 11 : i64} {
  func.func @kernel(%arg0: i32, %arg1: memref<128x128xbf16, #tpu.memory_space<vmem>>, %arg2: memref<128x128xbf16, #tpu.memory_space<vmem>>, %arg3: memref<128x128xbf16, #tpu.memory_space<vmem>>, %arg4: memref<128x128xbf16, #tpu.memory_space<vmem>>, %arg5: memref<128x256xf32, #tpu.memory_space<vmem>>, %arg6: memref<8x256xf32, #tpu.memory_space<vmem>>) attributes {dimension_semantics = [#tpu.dimension_semantics<parallel>], iteration_bounds = array<i64: 1>, scalar_prefetch = 0 : i64, scratch_operands = 0 : i64, tpu.core_type = #tpu.core_type<tc>, window_params = [{transform_indices = @transform_0, window_bounds = array<i64: 128, 128>}, {transform_indices = @transform_1, window_bounds = array<i64: 128, 128>}, {pipeline_mode = #tpu.pipeline_mode<synchronous>, transform_indices = @transform_2, window_bounds = array<i64: 128, 128>}, {pipeline_mode = #tpu.pipeline_mode<synchronous>, transform_indices = @transform_3, window_bounds = array<i64: 128, 128>}, {transform_indices = @transform_4, window_bounds = array<i64: 128, 256>}, {transform_indices = @transform_5, window_bounds = array<i64: 8, 256>}]} {
    %c0 = arith.constant 0 : index
    %c0_0 = arith.constant 0 : index
    %0 = vector.load %arg1[%c0, %c0_0] : memref<128x128xbf16, #tpu.memory_space<vmem>>, vector<128x128xbf16>
    %c0_1 = arith.constant 0 : index
    %c0_2 = arith.constant 0 : index
    %1 = vector.load %arg2[%c0_1, %c0_2] : memref<128x128xbf16, #tpu.memory_space<vmem>>, vector<128x128xbf16>
    %c0_3 = arith.constant 0 : index
    %c0_4 = arith.constant 0 : index
    %2 = vector.load %arg3[%c0_3, %c0_4] : memref<128x128xbf16, #tpu.memory_space<vmem>>, vector<128x128xbf16>
    %c0_5 = arith.constant 0 : index
    %c0_6 = arith.constant 0 : index
    %3 = vector.load %arg4[%c0_5, %c0_6] : memref<128x128xbf16, #tpu.memory_space<vmem>>, vector<128x128xbf16>
    %cst = arith.constant dense<0.000000e+00> : vector<128x128xf32>
    %4 = tpu.matmul %0, %2, %cst {dimension_numbers = #tpu.dot_dimension_numbers<[1], [0], [0], [1], [0, 0, 1, 1], [], []>} : vector<128x128xbf16>, vector<128x128xbf16>, vector<128x128xf32> -> vector<128x128xf32>
    %cst_7 = arith.constant dense<0.000000e+00> : vector<128x128xf32>
    %5 = tpu.matmul %1, %3, %cst_7 {dimension_numbers = #tpu.dot_dimension_numbers<[1], [0], [0], [1], [0, 0, 1, 1], [], []>} : vector<128x128xbf16>, vector<128x128xbf16>, vector<128x128xf32> -> vector<128x128xf32>
    %6 = arith.subf %4, %5 : vector<128x128xf32>
    %cst_8 = arith.constant dense<0.000000e+00> : vector<128x128xf32>
    %7 = tpu.matmul %1, %2, %cst_8 {dimension_numbers = #tpu.dot_dimension_numbers<[1], [0], [0], [1], [0, 0, 1, 1], [], []>} : vector<128x128xbf16>, vector<128x128xbf16>, vector<128x128xf32> -> vector<128x128xf32>
    %cst_9 = arith.constant dense<0.000000e+00> : vector<128x128xf32>
    %8 = tpu.matmul %0, %3, %cst_9 {dimension_numbers = #tpu.dot_dimension_numbers<[1], [0], [0], [1], [0, 0, 1, 1], [], []>} : vector<128x128xbf16>, vector<128x128xbf16>, vector<128x128xf32> -> vector<128x128xf32>
    %9 = arith.addf %7, %8 : vector<128x128xf32>
    %c0_10 = arith.constant 0 : index
    %c0_11 = arith.constant 0 : index
    %10 = vector.load %arg5[%c0_10, %c0_11] : memref<128x256xf32, #tpu.memory_space<vmem>>, vector<128x128xf32>
    tpu.vector_store %arg5[%c0_10, %c0_11], %6 {strides = array<i32>} : memref<128x256xf32, #tpu.memory_space<vmem>>, vector<128x128xf32>,
    %c0_12 = arith.constant 0 : index
    %c128 = arith.constant 128 : index
    %11 = vector.load %arg5[%c0_12, %c128] : memref<128x256xf32, #tpu.memory_space<vmem>>, vector<128x128xf32>
    tpu.vector_store %arg5[%c0_12, %c128], %9 {strides = array<i32>} : memref<128x256xf32, #tpu.memory_space<vmem>>, vector<128x128xf32>,
    %12 = tpu.iota {dimensions = array<i32: 0>} : vector<8x128xi32>
    %cst_13 = arith.constant dense<0.000000e+00> : vector<128xf32>
    %13 = vector.multi_reduction <add>, %6, %cst_13 [0] : vector<128x128xf32> to vector<128xf32>
    %14 = vector.shape_cast %13 : vector<128xf32> to vector<1x128xf32>
    %15 = arith.mulf %6, %6 : vector<128x128xf32>
    %cst_14 = arith.constant dense<0.000000e+00> : vector<128xf32>
    %16 = vector.multi_reduction <add>, %15, %cst_14 [0] : vector<128x128xf32> to vector<128xf32>
    %17 = vector.shape_cast %16 : vector<128xf32> to vector<1x128xf32>
    %c0_i32 = arith.constant 0 : i32
    %18 = vector.broadcast %c0_i32 : i32 to vector<8x128xi32>
    %19 = arith.cmpi eq, %12, %18 : vector<8x128xi32>
    %c1_i32 = arith.constant 1 : i32
    %20 = vector.broadcast %c1_i32 : i32 to vector<8x128xi32>
    %21 = arith.cmpi eq, %12, %20 : vector<8x128xi32>
    %cst_15 = arith.constant 0.000000e+00 : f32
    %22 = vector.shape_cast %17 : vector<1x128xf32> to vector<1x128xf32>
    %23 = vector.broadcast %22 : vector<1x128xf32> to vector<8x128xf32>
    %24 = vector.broadcast %cst_15 : f32 to vector<8x128xf32>
    %25 = arith.select %21, %23, %24 : vector<8x128xi1>, vector<8x128xf32>
    %26 = vector.shape_cast %14 : vector<1x128xf32> to vector<1x128xf32>
    %27 = vector.broadcast %26 : vector<1x128xf32> to vector<8x128xf32>
    %28 = arith.select %19, %27, %25 : vector<8x128xi1>, vector<8x128xf32>
    %c0_16 = arith.constant 0 : index
    %c0_17 = arith.constant 0 : index
    %29 = vector.load %arg6[%c0_16, %c0_17] : memref<8x256xf32, #tpu.memory_space<vmem>>, vector<8x128xf32>
    tpu.vector_store %arg6[%c0_16, %c0_17], %28 {strides = array<i32>} : memref<8x256xf32, #tpu.memory_space<vmem>>, vector<8x128xf32>,
    %cst_18 = arith.constant dense<0.000000e+00> : vector<128xf32>
    %30 = vector.multi_reduction <add>, %9, %cst_18 [0] : vector<128x128xf32> to vector<128xf32>
    %31 = vector.shape_cast %30 : vector<128xf32> to vector<1x128xf32>
    %32 = arith.mulf %9, %9 : vector<128x128xf32>
    %cst_19 = arith.constant dense<0.000000e+00> : vector<128xf32>
    %33 = vector.multi_reduction <add>, %32, %cst_19 [0] : vector<128x128xf32> to vector<128xf32>
    %34 = vector.shape_cast %33 : vector<128xf32> to vector<1x128xf32>
    %c0_i32_20 = arith.constant 0 : i32
    %35 = vector.broadcast %c0_i32_20 : i32 to vector<8x128xi32>
    %36 = arith.cmpi eq, %12, %35 : vector<8x128xi32>
    %c1_i32_21 = arith.constant 1 : i32
    %37 = vector.broadcast %c1_i32_21 : i32 to vector<8x128xi32>
    %38 = arith.cmpi eq, %12, %37 : vector<8x128xi32>
    %cst_22 = arith.constant 0.000000e+00 : f32
    %39 = vector.shape_cast %34 : vector<1x128xf32> to vector<1x128xf32>
    %40 = vector.broadcast %39 : vector<1x128xf32> to vector<8x128xf32>
    %41 = vector.broadcast %cst_22 : f32 to vector<8x128xf32>
    %42 = arith.select %38, %40, %41 : vector<8x128xi1>, vector<8x128xf32>
    %43 = vector.shape_cast %31 : vector<1x128xf32> to vector<1x128xf32>
    %44 = vector.broadcast %43 : vector<1x128xf32> to vector<8x128xf32>
    %45 = arith.select %36, %44, %42 : vector<8x128xi1>, vector<8x128xf32>
    %c0_23 = arith.constant 0 : index
    %c128_24 = arith.constant 128 : index
    %46 = vector.load %arg6[%c0_23, %c128_24] : memref<8x256xf32, #tpu.memory_space<vmem>>, vector<8x128xf32>
    tpu.vector_store %arg6[%c0_23, %c128_24], %45 {strides = array<i32>} : memref<8x256xf32, #tpu.memory_space<vmem>>, vector<8x128xf32>,
    return
  }
  func.func @transform_0(%arg0: i32) -> (i32, i32) {
    %c0_i32 = arith.constant 0 : i32
    %c0_i32_0 = arith.constant 0 : i32
    return %arg0, %c0_i32 : i32, i32
  }
  func.func @transform_1(%arg0: i32) -> (i32, i32) {
    %c0_i32 = arith.constant 0 : i32
    %c0_i32_0 = arith.constant 0 : i32
    return %arg0, %c0_i32 : i32, i32
  }
  func.func @transform_2(%arg0: i32) -> (i32, i32) {
    %c0_i32 = arith.constant 0 : i32
    %c0_i32_0 = arith.constant 0 : i32
    %c0_i32_1 = arith.constant 0 : i32
    return %c0_i32, %c0_i32_0 : i32, i32
  }
  func.func @transform_3(%arg0: i32) -> (i32, i32) {
    %c0_i32 = arith.constant 0 : i32
    %c0_i32_0 = arith.constant 0 : i32
    %c0_i32_1 = arith.constant 0 : i32
    return %c0_i32, %c0_i32_0 : i32, i32
  }
  func.func @transform_4(%arg0: i32) -> (i32, i32) {
    %c0_i32 = arith.constant 0 : i32
    %c0_i32_0 = arith.constant 0 : i32
    return %arg0, %c0_i32 : i32, i32
  }
  func.func @transform_5(%arg0: i32) -> (i32, i32) {
    %c0_i32 = arith.constant 0 : i32
    %c0_i32_0 = arith.constant 0 : i32
    return %arg0, %c0_i32 : i32, i32
  }
}

module attributes {stable_mosaic.version = 11 : i64} {
  func.func @_bn_relu_kernel(%arg0: i32, %arg1: memref<128x256xf32, #tpu.memory_space<vmem>>, %arg2: memref<1x256xf32, #tpu.memory_space<vmem>>, %arg3: memref<1x256xf32, #tpu.memory_space<vmem>>, %arg4: memref<128x256xbf16, #tpu.memory_space<vmem>>) attributes {dimension_semantics = [#tpu.dimension_semantics<parallel>], iteration_bounds = array<i64: 1>, scalar_prefetch = 0 : i64, scratch_operands = 0 : i64, tpu.core_type = #tpu.core_type<tc>, window_params = [{transform_indices = @transform_0, window_bounds = array<i64: 128, 256>}, {pipeline_mode = #tpu.pipeline_mode<synchronous>, transform_indices = @transform_1, window_bounds = array<i64: 1, 256>}, {pipeline_mode = #tpu.pipeline_mode<synchronous>, transform_indices = @transform_2, window_bounds = array<i64: 1, 256>}, {transform_indices = @transform_3, window_bounds = array<i64: 128, 256>}]} {
    %c0 = arith.constant 0 : index
    %c0_0 = arith.constant 0 : index
    %0 = vector.load %arg1[%c0, %c0_0] : memref<128x256xf32, #tpu.memory_space<vmem>>, vector<128x256xf32>
    %c0_1 = arith.constant 0 : index
    %c0_2 = arith.constant 0 : index
    %1 = vector.load %arg2[%c0_1, %c0_2] : memref<1x256xf32, #tpu.memory_space<vmem>>, vector<1x256xf32>
    %2 = vector.broadcast %1 : vector<1x256xf32> to vector<128x256xf32>
    %3 = arith.mulf %0, %2 : vector<128x256xf32>
    %c0_3 = arith.constant 0 : index
    %c0_4 = arith.constant 0 : index
    %4 = vector.load %arg3[%c0_3, %c0_4] : memref<1x256xf32, #tpu.memory_space<vmem>>, vector<1x256xf32>
    %5 = vector.broadcast %4 : vector<1x256xf32> to vector<128x256xf32>
    %6 = arith.addf %3, %5 : vector<128x256xf32>
    %cst = arith.constant 0.000000e+00 : f32
    %7 = vector.broadcast %cst : f32 to vector<128x256xf32>
    %8 = arith.maximumf %6, %7 : vector<128x256xf32>
    %9 = arith.truncf %8 : vector<128x256xf32> to vector<128x256xbf16>
    %c0_5 = arith.constant 0 : index
    %c0_6 = arith.constant 0 : index
    %10 = vector.load %arg4[%c0_5, %c0_6] : memref<128x256xbf16, #tpu.memory_space<vmem>>, vector<128x256xbf16>
    tpu.vector_store %arg4[%c0_5, %c0_6], %9 {strides = array<i32>} : memref<128x256xbf16, #tpu.memory_space<vmem>>, vector<128x256xbf16>,
    return
  }
  func.func @transform_0(%arg0: i32) -> (i32, i32) {
    %c0_i32 = arith.constant 0 : i32
    %c0_i32_0 = arith.constant 0 : i32
    return %arg0, %c0_i32 : i32, i32
  }
  func.func @transform_1(%arg0: i32) -> (i32, i32) {
    %c0_i32 = arith.constant 0 : i32
    %c0_i32_0 = arith.constant 0 : i32
    %c0_i32_1 = arith.constant 0 : i32
    return %c0_i32, %c0_i32_0 : i32, i32
  }
  func.func @transform_2(%arg0: i32) -> (i32, i32) {
    %c0_i32 = arith.constant 0 : i32
    %c0_i32_0 = arith.constant 0 : i32
    %c0_i32_1 = arith.constant 0 : i32
    return %c0_i32, %c0_i32_0 : i32, i32
  }
  func.func @transform_3(%arg0: i32) -> (i32, i32) {
    %c0_i32 = arith.constant 0 : i32
    %c0_i32_0 = arith.constant 0 : i32
    return %arg0, %c0_i32 : i32, i32
  }
}

module attributes {stable_mosaic.version = 11 : i64} {
  func.func @kernel(%arg0: i32, %arg1: memref<128x1152xbf16, #tpu.memory_space<vmem>>, %arg2: memref<128x1152xbf16, #tpu.memory_space<vmem>>, %arg3: memref<1152x128xbf16, #tpu.memory_space<vmem>>, %arg4: memref<1152x128xbf16, #tpu.memory_space<vmem>>, %arg5: memref<128x256xf32, #tpu.memory_space<vmem>>, %arg6: memref<8x256xf32, #tpu.memory_space<vmem>>) attributes {dimension_semantics = [#tpu.dimension_semantics<parallel>], iteration_bounds = array<i64: 1>, scalar_prefetch = 0 : i64, scratch_operands = 0 : i64, tpu.core_type = #tpu.core_type<tc>, window_params = [{transform_indices = @transform_0, window_bounds = array<i64: 128, 1152>}, {transform_indices = @transform_1, window_bounds = array<i64: 128, 1152>}, {pipeline_mode = #tpu.pipeline_mode<synchronous>, transform_indices = @transform_2, window_bounds = array<i64: 1152, 128>}, {pipeline_mode = #tpu.pipeline_mode<synchronous>, transform_indices = @transform_3, window_bounds = array<i64: 1152, 128>}, {transform_indices = @transform_4, window_bounds = array<i64: 128, 256>}, {transform_indices = @transform_5, window_bounds = array<i64: 8, 256>}]} {
    %c0 = arith.constant 0 : index
    %c0_0 = arith.constant 0 : index
    %0 = vector.load %arg1[%c0, %c0_0] : memref<128x1152xbf16, #tpu.memory_space<vmem>>, vector<128x1152xbf16>
    %c0_1 = arith.constant 0 : index
    %c0_2 = arith.constant 0 : index
    %1 = vector.load %arg2[%c0_1, %c0_2] : memref<128x1152xbf16, #tpu.memory_space<vmem>>, vector<128x1152xbf16>
    %c0_3 = arith.constant 0 : index
    %c0_4 = arith.constant 0 : index
    %2 = vector.load %arg3[%c0_3, %c0_4] : memref<1152x128xbf16, #tpu.memory_space<vmem>>, vector<1152x128xbf16>
    %c0_5 = arith.constant 0 : index
    %c0_6 = arith.constant 0 : index
    %3 = vector.load %arg4[%c0_5, %c0_6] : memref<1152x128xbf16, #tpu.memory_space<vmem>>, vector<1152x128xbf16>
    %cst = arith.constant dense<0.000000e+00> : vector<128x128xf32>
    %4 = tpu.matmul %0, %2, %cst {dimension_numbers = #tpu.dot_dimension_numbers<[1], [0], [0], [1], [0, 0, 1, 1], [], []>} : vector<128x1152xbf16>, vector<1152x128xbf16>, vector<128x128xf32> -> vector<128x128xf32>
    %cst_7 = arith.constant dense<0.000000e+00> : vector<128x128xf32>
    %5 = tpu.matmul %1, %3, %cst_7 {dimension_numbers = #tpu.dot_dimension_numbers<[1], [0], [0], [1], [0, 0, 1, 1], [], []>} : vector<128x1152xbf16>, vector<1152x128xbf16>, vector<128x128xf32> -> vector<128x128xf32>
    %6 = arith.subf %4, %5 : vector<128x128xf32>
    %cst_8 = arith.constant dense<0.000000e+00> : vector<128x128xf32>
    %7 = tpu.matmul %1, %2, %cst_8 {dimension_numbers = #tpu.dot_dimension_numbers<[1], [0], [0], [1], [0, 0, 1, 1], [], []>} : vector<128x1152xbf16>, vector<1152x128xbf16>, vector<128x128xf32> -> vector<128x128xf32>
    %cst_9 = arith.constant dense<0.000000e+00> : vector<128x128xf32>
    %8 = tpu.matmul %0, %3, %cst_9 {dimension_numbers = #tpu.dot_dimension_numbers<[1], [0], [0], [1], [0, 0, 1, 1], [], []>} : vector<128x1152xbf16>, vector<1152x128xbf16>, vector<128x128xf32> -> vector<128x128xf32>
    %9 = arith.addf %7, %8 : vector<128x128xf32>
    %c0_10 = arith.constant 0 : index
    %c0_11 = arith.constant 0 : index
    %10 = vector.load %arg5[%c0_10, %c0_11] : memref<128x256xf32, #tpu.memory_space<vmem>>, vector<128x128xf32>
    tpu.vector_store %arg5[%c0_10, %c0_11], %6 {strides = array<i32>} : memref<128x256xf32, #tpu.memory_space<vmem>>, vector<128x128xf32>,
    %c0_12 = arith.constant 0 : index
    %c128 = arith.constant 128 : index
    %11 = vector.load %arg5[%c0_12, %c128] : memref<128x256xf32, #tpu.memory_space<vmem>>, vector<128x128xf32>
    tpu.vector_store %arg5[%c0_12, %c128], %9 {strides = array<i32>} : memref<128x256xf32, #tpu.memory_space<vmem>>, vector<128x128xf32>,
    %12 = tpu.iota {dimensions = array<i32: 0>} : vector<8x128xi32>
    %cst_13 = arith.constant dense<0.000000e+00> : vector<128xf32>
    %13 = vector.multi_reduction <add>, %6, %cst_13 [0] : vector<128x128xf32> to vector<128xf32>
    %14 = vector.shape_cast %13 : vector<128xf32> to vector<1x128xf32>
    %15 = arith.mulf %6, %6 : vector<128x128xf32>
    %cst_14 = arith.constant dense<0.000000e+00> : vector<128xf32>
    %16 = vector.multi_reduction <add>, %15, %cst_14 [0] : vector<128x128xf32> to vector<128xf32>
    %17 = vector.shape_cast %16 : vector<128xf32> to vector<1x128xf32>
    %c0_i32 = arith.constant 0 : i32
    %18 = vector.broadcast %c0_i32 : i32 to vector<8x128xi32>
    %19 = arith.cmpi eq, %12, %18 : vector<8x128xi32>
    %c1_i32 = arith.constant 1 : i32
    %20 = vector.broadcast %c1_i32 : i32 to vector<8x128xi32>
    %21 = arith.cmpi eq, %12, %20 : vector<8x128xi32>
    %cst_15 = arith.constant 0.000000e+00 : f32
    %22 = vector.shape_cast %17 : vector<1x128xf32> to vector<1x128xf32>
    %23 = vector.broadcast %22 : vector<1x128xf32> to vector<8x128xf32>
    %24 = vector.broadcast %cst_15 : f32 to vector<8x128xf32>
    %25 = arith.select %21, %23, %24 : vector<8x128xi1>, vector<8x128xf32>
    %26 = vector.shape_cast %14 : vector<1x128xf32> to vector<1x128xf32>
    %27 = vector.broadcast %26 : vector<1x128xf32> to vector<8x128xf32>
    %28 = arith.select %19, %27, %25 : vector<8x128xi1>, vector<8x128xf32>
    %c0_16 = arith.constant 0 : index
    %c0_17 = arith.constant 0 : index
    %29 = vector.load %arg6[%c0_16, %c0_17] : memref<8x256xf32, #tpu.memory_space<vmem>>, vector<8x128xf32>
    tpu.vector_store %arg6[%c0_16, %c0_17], %28 {strides = array<i32>} : memref<8x256xf32, #tpu.memory_space<vmem>>, vector<8x128xf32>,
    %cst_18 = arith.constant dense<0.000000e+00> : vector<128xf32>
    %30 = vector.multi_reduction <add>, %9, %cst_18 [0] : vector<128x128xf32> to vector<128xf32>
    %31 = vector.shape_cast %30 : vector<128xf32> to vector<1x128xf32>
    %32 = arith.mulf %9, %9 : vector<128x128xf32>
    %cst_19 = arith.constant dense<0.000000e+00> : vector<128xf32>
    %33 = vector.multi_reduction <add>, %32, %cst_19 [0] : vector<128x128xf32> to vector<128xf32>
    %34 = vector.shape_cast %33 : vector<128xf32> to vector<1x128xf32>
    %c0_i32_20 = arith.constant 0 : i32
    %35 = vector.broadcast %c0_i32_20 : i32 to vector<8x128xi32>
    %36 = arith.cmpi eq, %12, %35 : vector<8x128xi32>
    %c1_i32_21 = arith.constant 1 : i32
    %37 = vector.broadcast %c1_i32_21 : i32 to vector<8x128xi32>
    %38 = arith.cmpi eq, %12, %37 : vector<8x128xi32>
    %cst_22 = arith.constant 0.000000e+00 : f32
    %39 = vector.shape_cast %34 : vector<1x128xf32> to vector<1x128xf32>
    %40 = vector.broadcast %39 : vector<1x128xf32> to vector<8x128xf32>
    %41 = vector.broadcast %cst_22 : f32 to vector<8x128xf32>
    %42 = arith.select %38, %40, %41 : vector<8x128xi1>, vector<8x128xf32>
    %43 = vector.shape_cast %31 : vector<1x128xf32> to vector<1x128xf32>
    %44 = vector.broadcast %43 : vector<1x128xf32> to vector<8x128xf32>
    %45 = arith.select %36, %44, %42 : vector<8x128xi1>, vector<8x128xf32>
    %c0_23 = arith.constant 0 : index
    %c128_24 = arith.constant 128 : index
    %46 = vector.load %arg6[%c0_23, %c128_24] : memref<8x256xf32, #tpu.memory_space<vmem>>, vector<8x128xf32>
    tpu.vector_store %arg6[%c0_23, %c128_24], %45 {strides = array<i32>} : memref<8x256xf32, #tpu.memory_space<vmem>>, vector<8x128xf32>,
    return
  }
  func.func @transform_0(%arg0: i32) -> (i32, i32) {
    %c0_i32 = arith.constant 0 : i32
    %c0_i32_0 = arith.constant 0 : i32
    return %arg0, %c0_i32 : i32, i32
  }
  func.func @transform_1(%arg0: i32) -> (i32, i32) {
    %c0_i32 = arith.constant 0 : i32
    %c0_i32_0 = arith.constant 0 : i32
    return %arg0, %c0_i32 : i32, i32
  }
  func.func @transform_2(%arg0: i32) -> (i32, i32) {
    %c0_i32 = arith.constant 0 : i32
    %c0_i32_0 = arith.constant 0 : i32
    %c0_i32_1 = arith.constant 0 : i32
    return %c0_i32, %c0_i32_0 : i32, i32
  }
  func.func @transform_3(%arg0: i32) -> (i32, i32) {
    %c0_i32 = arith.constant 0 : i32
    %c0_i32_0 = arith.constant 0 : i32
    %c0_i32_1 = arith.constant 0 : i32
    return %c0_i32, %c0_i32_0 : i32, i32
  }
  func.func @transform_4(%arg0: i32) -> (i32, i32) {
    %c0_i32 = arith.constant 0 : i32
    %c0_i32_0 = arith.constant 0 : i32
    return %arg0, %c0_i32 : i32, i32
  }
  func.func @transform_5(%arg0: i32) -> (i32, i32) {
    %c0_i32 = arith.constant 0 : i32
    %c0_i32_0 = arith.constant 0 : i32
    return %arg0, %c0_i32 : i32, i32
  }
}

module attributes {stable_mosaic.version = 11 : i64} {
  func.func @kernel(%arg0: i32, %arg1: memref<128x256xf32, #tpu.memory_space<vmem>>, %arg2: memref<1x256xf32, #tpu.memory_space<vmem>>, %arg3: memref<1x256xf32, #tpu.memory_space<vmem>>, %arg4: memref<128x128xbf16, #tpu.memory_space<vmem>>, %arg5: memref<128x128xbf16, #tpu.memory_space<vmem>>, %arg6: memref<128x256xf32, #tpu.memory_space<vmem>>, %arg7: memref<8x256xf32, #tpu.memory_space<vmem>>) attributes {dimension_semantics = [#tpu.dimension_semantics<parallel>], iteration_bounds = array<i64: 1>, scalar_prefetch = 0 : i64, scratch_operands = 0 : i64, tpu.core_type = #tpu.core_type<tc>, window_params = [{transform_indices = @transform_0, window_bounds = array<i64: 128, 256>}, {pipeline_mode = #tpu.pipeline_mode<synchronous>, transform_indices = @transform_1, window_bounds = array<i64: 1, 256>}, {pipeline_mode = #tpu.pipeline_mode<synchronous>, transform_indices = @transform_2, window_bounds = array<i64: 1, 256>}, {pipeline_mode = #tpu.pipeline_mode<synchronous>, transform_indices = @transform_3, window_bounds = array<i64: 128, 128>}, {pipeline_mode = #tpu.pipeline_mode<synchronous>, transform_indices = @transform_4, window_bounds = array<i64: 128, 128>}, {transform_indices = @transform_5, window_bounds = array<i64: 128, 256>}, {transform_indices = @transform_6, window_bounds = array<i64: 8, 256>}]} {
    %c0 = arith.constant 0 : index
    %c0_0 = arith.constant 0 : index
    %0 = vector.load %arg1[%c0, %c0_0] : memref<128x256xf32, #tpu.memory_space<vmem>>, vector<128x256xf32>
    %c0_1 = arith.constant 0 : index
    %c0_2 = arith.constant 0 : index
    %1 = vector.load %arg2[%c0_1, %c0_2] : memref<1x256xf32, #tpu.memory_space<vmem>>, vector<1x256xf32>
    %2 = vector.broadcast %1 : vector<1x256xf32> to vector<128x256xf32>
    %3 = arith.mulf %0, %2 : vector<128x256xf32>
    %c0_3 = arith.constant 0 : index
    %c0_4 = arith.constant 0 : index
    %4 = vector.load %arg3[%c0_3, %c0_4] : memref<1x256xf32, #tpu.memory_space<vmem>>, vector<1x256xf32>
    %5 = vector.broadcast %4 : vector<1x256xf32> to vector<128x256xf32>
    %6 = arith.addf %3, %5 : vector<128x256xf32>
    %cst = arith.constant 0.000000e+00 : f32
    %7 = vector.broadcast %cst : f32 to vector<128x256xf32>
    %8 = arith.maximumf %6, %7 : vector<128x256xf32>
    %9 = vector.extract_strided_slice %8 {offsets = [0, 0], sizes = [128, 128], strides = [1, 1]} : vector<128x256xf32> to vector<128x128xf32>
    %10 = arith.truncf %9 : vector<128x128xf32> to vector<128x128xbf16>
    %11 = vector.extract_strided_slice %8 {offsets = [0, 128], sizes = [128, 128], strides = [1, 1]} : vector<128x256xf32> to vector<128x128xf32>
    %12 = arith.truncf %11 : vector<128x128xf32> to vector<128x128xbf16>
    %c0_5 = arith.constant 0 : index
    %c0_6 = arith.constant 0 : index
    %13 = vector.load %arg4[%c0_5, %c0_6] : memref<128x128xbf16, #tpu.memory_space<vmem>>, vector<128x128xbf16>
    %c0_7 = arith.constant 0 : index
    %c0_8 = arith.constant 0 : index
    %14 = vector.load %arg5[%c0_7, %c0_8] : memref<128x128xbf16, #tpu.memory_space<vmem>>, vector<128x128xbf16>
    %cst_9 = arith.constant dense<0.000000e+00> : vector<128x128xf32>
    %15 = tpu.matmul %10, %13, %cst_9 {dimension_numbers = #tpu.dot_dimension_numbers<[1], [0], [0], [1], [0, 0, 1, 1], [], []>} : vector<128x128xbf16>, vector<128x128xbf16>, vector<128x128xf32> -> vector<128x128xf32>
    %cst_10 = arith.constant dense<0.000000e+00> : vector<128x128xf32>
    %16 = tpu.matmul %12, %14, %cst_10 {dimension_numbers = #tpu.dot_dimension_numbers<[1], [0], [0], [1], [0, 0, 1, 1], [], []>} : vector<128x128xbf16>, vector<128x128xbf16>, vector<128x128xf32> -> vector<128x128xf32>
    %17 = arith.subf %15, %16 : vector<128x128xf32>
    %cst_11 = arith.constant dense<0.000000e+00> : vector<128x128xf32>
    %18 = tpu.matmul %12, %13, %cst_11 {dimension_numbers = #tpu.dot_dimension_numbers<[1], [0], [0], [1], [0, 0, 1, 1], [], []>} : vector<128x128xbf16>, vector<128x128xbf16>, vector<128x128xf32> -> vector<128x128xf32>
    %cst_12 = arith.constant dense<0.000000e+00> : vector<128x128xf32>
    %19 = tpu.matmul %10, %14, %cst_12 {dimension_numbers = #tpu.dot_dimension_numbers<[1], [0], [0], [1], [0, 0, 1, 1], [], []>} : vector<128x128xbf16>, vector<128x128xbf16>, vector<128x128xf32> -> vector<128x128xf32>
    %20 = arith.addf %18, %19 : vector<128x128xf32>
    %c0_13 = arith.constant 0 : index
    %c0_14 = arith.constant 0 : index
    %21 = vector.load %arg6[%c0_13, %c0_14] : memref<128x256xf32, #tpu.memory_space<vmem>>, vector<128x128xf32>
    tpu.vector_store %arg6[%c0_13, %c0_14], %17 {strides = array<i32>} : memref<128x256xf32, #tpu.memory_space<vmem>>, vector<128x128xf32>,
    %c0_15 = arith.constant 0 : index
    %c128 = arith.constant 128 : index
    %22 = vector.load %arg6[%c0_15, %c128] : memref<128x256xf32, #tpu.memory_space<vmem>>, vector<128x128xf32>
    tpu.vector_store %arg6[%c0_15, %c128], %20 {strides = array<i32>} : memref<128x256xf32, #tpu.memory_space<vmem>>, vector<128x128xf32>,
    %23 = tpu.iota {dimensions = array<i32: 0>} : vector<8x128xi32>
    %cst_16 = arith.constant dense<0.000000e+00> : vector<128xf32>
    %24 = vector.multi_reduction <add>, %17, %cst_16 [0] : vector<128x128xf32> to vector<128xf32>
    %25 = vector.shape_cast %24 : vector<128xf32> to vector<1x128xf32>
    %26 = arith.mulf %17, %17 : vector<128x128xf32>
    %cst_17 = arith.constant dense<0.000000e+00> : vector<128xf32>
    %27 = vector.multi_reduction <add>, %26, %cst_17 [0] : vector<128x128xf32> to vector<128xf32>
    %28 = vector.shape_cast %27 : vector<128xf32> to vector<1x128xf32>
    %c0_i32 = arith.constant 0 : i32
    %29 = vector.broadcast %c0_i32 : i32 to vector<8x128xi32>
    %30 = arith.cmpi eq, %23, %29 : vector<8x128xi32>
    %c1_i32 = arith.constant 1 : i32
    %31 = vector.broadcast %c1_i32 : i32 to vector<8x128xi32>
    %32 = arith.cmpi eq, %23, %31 : vector<8x128xi32>
    %cst_18 = arith.constant 0.000000e+00 : f32
    %33 = vector.shape_cast %28 : vector<1x128xf32> to vector<1x128xf32>
    %34 = vector.broadcast %33 : vector<1x128xf32> to vector<8x128xf32>
    %35 = vector.broadcast %cst_18 : f32 to vector<8x128xf32>
    %36 = arith.select %32, %34, %35 : vector<8x128xi1>, vector<8x128xf32>
    %37 = vector.shape_cast %25 : vector<1x128xf32> to vector<1x128xf32>
    %38 = vector.broadcast %37 : vector<1x128xf32> to vector<8x128xf32>
    %39 = arith.select %30, %38, %36 : vector<8x128xi1>, vector<8x128xf32>
    %c0_19 = arith.constant 0 : index
    %c0_20 = arith.constant 0 : index
    %40 = vector.load %arg7[%c0_19, %c0_20] : memref<8x256xf32, #tpu.memory_space<vmem>>, vector<8x128xf32>
    tpu.vector_store %arg7[%c0_19, %c0_20], %39 {strides = array<i32>} : memref<8x256xf32, #tpu.memory_space<vmem>>, vector<8x128xf32>,
    %cst_21 = arith.constant dense<0.000000e+00> : vector<128xf32>
    %41 = vector.multi_reduction <add>, %20, %cst_21 [0] : vector<128x128xf32> to vector<128xf32>
    %42 = vector.shape_cast %41 : vector<128xf32> to vector<1x128xf32>
    %43 = arith.mulf %20, %20 : vector<128x128xf32>
    %cst_22 = arith.constant dense<0.000000e+00> : vector<128xf32>
    %44 = vector.multi_reduction <add>, %43, %cst_22 [0] : vector<128x128xf32> to vector<128xf32>
    %45 = vector.shape_cast %44 : vector<128xf32> to vector<1x128xf32>
    %c0_i32_23 = arith.constant 0 : i32
    %46 = vector.broadcast %c0_i32_23 : i32 to vector<8x128xi32>
    %47 = arith.cmpi eq, %23, %46 : vector<8x128xi32>
    %c1_i32_24 = arith.constant 1 : i32
    %48 = vector.broadcast %c1_i32_24 : i32 to vector<8x128xi32>
    %49 = arith.cmpi eq, %23, %48 : vector<8x128xi32>
    %cst_25 = arith.constant 0.000000e+00 : f32
    %50 = vector.shape_cast %45 : vector<1x128xf32> to vector<1x128xf32>
    %51 = vector.broadcast %50 : vector<1x128xf32> to vector<8x128xf32>
    %52 = vector.broadcast %cst_25 : f32 to vector<8x128xf32>
    %53 = arith.select %49, %51, %52 : vector<8x128xi1>, vector<8x128xf32>
    %54 = vector.shape_cast %42 : vector<1x128xf32> to vector<1x128xf32>
    %55 = vector.broadcast %54 : vector<1x128xf32> to vector<8x128xf32>
    %56 = arith.select %47, %55, %53 : vector<8x128xi1>, vector<8x128xf32>
    %c0_26 = arith.constant 0 : index
    %c128_27 = arith.constant 128 : index
    %57 = vector.load %arg7[%c0_26, %c128_27] : memref<8x256xf32, #tpu.memory_space<vmem>>, vector<8x128xf32>
    tpu.vector_store %arg7[%c0_26, %c128_27], %56 {strides = array<i32>} : memref<8x256xf32, #tpu.memory_space<vmem>>, vector<8x128xf32>,
    return
  }
  func.func @transform_0(%arg0: i32) -> (i32, i32) {
    %c0_i32 = arith.constant 0 : i32
    %c0_i32_0 = arith.constant 0 : i32
    return %arg0, %c0_i32 : i32, i32
  }
  func.func @transform_1(%arg0: i32) -> (i32, i32) {
    %c0_i32 = arith.constant 0 : i32
    %c0_i32_0 = arith.constant 0 : i32
    %c0_i32_1 = arith.constant 0 : i32
    return %c0_i32, %c0_i32_0 : i32, i32
  }
  func.func @transform_2(%arg0: i32) -> (i32, i32) {
    %c0_i32 = arith.constant 0 : i32
    %c0_i32_0 = arith.constant 0 : i32
    %c0_i32_1 = arith.constant 0 : i32
    return %c0_i32, %c0_i32_0 : i32, i32
  }
  func.func @transform_3(%arg0: i32) -> (i32, i32) {
    %c0_i32 = arith.constant 0 : i32
    %c0_i32_0 = arith.constant 0 : i32
    %c0_i32_1 = arith.constant 0 : i32
    return %c0_i32, %c0_i32_0 : i32, i32
  }
  func.func @transform_4(%arg0: i32) -> (i32, i32) {
    %c0_i32 = arith.constant 0 : i32
    %c0_i32_0 = arith.constant 0 : i32
    %c0_i32_1 = arith.constant 0 : i32
    return %c0_i32, %c0_i32_0 : i32, i32
  }
  func.func @transform_5(%arg0: i32) -> (i32, i32) {
    %c0_i32 = arith.constant 0 : i32
    %c0_i32_0 = arith.constant 0 : i32
    return %arg0, %c0_i32 : i32, i32
  }
  func.func @transform_6(%arg0: i32) -> (i32, i32) {
    %c0_i32 = arith.constant 0 : i32
    %c0_i32_0 = arith.constant 0 : i32
    return %arg0, %c0_i32 : i32, i32
  }
}

module attributes {stable_mosaic.version = 11 : i64} {
  func.func @_bn_add_relu_kernel(%arg0: i32, %arg1: memref<128x256xf32, #tpu.memory_space<vmem>>, %arg2: memref<1x256xf32, #tpu.memory_space<vmem>>, %arg3: memref<1x256xf32, #tpu.memory_space<vmem>>, %arg4: memref<128x256xf32, #tpu.memory_space<vmem>>, %arg5: memref<1x256xf32, #tpu.memory_space<vmem>>, %arg6: memref<1x256xf32, #tpu.memory_space<vmem>>, %arg7: memref<128x256xf32, #tpu.memory_space<vmem>>) attributes {dimension_semantics = [#tpu.dimension_semantics<parallel>], iteration_bounds = array<i64: 1>, scalar_prefetch = 0 : i64, scratch_operands = 0 : i64, tpu.core_type = #tpu.core_type<tc>, window_params = [{transform_indices = @transform_0, window_bounds = array<i64: 128, 256>}, {pipeline_mode = #tpu.pipeline_mode<synchronous>, transform_indices = @transform_1, window_bounds = array<i64: 1, 256>}, {pipeline_mode = #tpu.pipeline_mode<synchronous>, transform_indices = @transform_2, window_bounds = array<i64: 1, 256>}, {transform_indices = @transform_3, window_bounds = array<i64: 128, 256>}, {pipeline_mode = #tpu.pipeline_mode<synchronous>, transform_indices = @transform_4, window_bounds = array<i64: 1, 256>}, {pipeline_mode = #tpu.pipeline_mode<synchronous>, transform_indices = @transform_5, window_bounds = array<i64: 1, 256>}, {transform_indices = @transform_6, window_bounds = array<i64: 128, 256>}]} {
    %c0 = arith.constant 0 : index
    %c0_0 = arith.constant 0 : index
    %0 = vector.load %arg1[%c0, %c0_0] : memref<128x256xf32, #tpu.memory_space<vmem>>, vector<128x256xf32>
    %c0_1 = arith.constant 0 : index
    %c0_2 = arith.constant 0 : index
    %1 = vector.load %arg2[%c0_1, %c0_2] : memref<1x256xf32, #tpu.memory_space<vmem>>, vector<1x256xf32>
    %2 = vector.broadcast %1 : vector<1x256xf32> to vector<128x256xf32>
    %3 = arith.mulf %0, %2 : vector<128x256xf32>
    %c0_3 = arith.constant 0 : index
    %c0_4 = arith.constant 0 : index
    %4 = vector.load %arg3[%c0_3, %c0_4] : memref<1x256xf32, #tpu.memory_space<vmem>>, vector<1x256xf32>
    %5 = vector.broadcast %4 : vector<1x256xf32> to vector<128x256xf32>
    %6 = arith.addf %3, %5 : vector<128x256xf32>
    %c0_5 = arith.constant 0 : index
    %c0_6 = arith.constant 0 : index
    %7 = vector.load %arg4[%c0_5, %c0_6] : memref<128x256xf32, #tpu.memory_space<vmem>>, vector<128x256xf32>
    %c0_7 = arith.constant 0 : index
    %c0_8 = arith.constant 0 : index
    %8 = vector.load %arg5[%c0_7, %c0_8] : memref<1x256xf32, #tpu.memory_space<vmem>>, vector<1x256xf32>
    %9 = vector.broadcast %8 : vector<1x256xf32> to vector<128x256xf32>
    %10 = arith.mulf %7, %9 : vector<128x256xf32>
    %c0_9 = arith.constant 0 : index
    %c0_10 = arith.constant 0 : index
    %11 = vector.load %arg6[%c0_9, %c0_10] : memref<1x256xf32, #tpu.memory_space<vmem>>, vector<1x256xf32>
    %12 = vector.broadcast %11 : vector<1x256xf32> to vector<128x256xf32>
    %13 = arith.addf %10, %12 : vector<128x256xf32>
    %14 = arith.addf %6, %13 : vector<128x256xf32>
    %cst = arith.constant 0.000000e+00 : f32
    %15 = vector.broadcast %cst : f32 to vector<128x256xf32>
    %16 = arith.maximumf %14, %15 : vector<128x256xf32>
    %c0_11 = arith.constant 0 : index
    %c0_12 = arith.constant 0 : index
    %17 = vector.load %arg7[%c0_11, %c0_12] : memref<128x256xf32, #tpu.memory_space<vmem>>, vector<128x256xf32>
    tpu.vector_store %arg7[%c0_11, %c0_12], %16 {strides = array<i32>} : memref<128x256xf32, #tpu.memory_space<vmem>>, vector<128x256xf32>,
    return
  }
  func.func @transform_0(%arg0: i32) -> (i32, i32) {
    %c0_i32 = arith.constant 0 : i32
    %c0_i32_0 = arith.constant 0 : i32
    return %arg0, %c0_i32 : i32, i32
  }
  func.func @transform_1(%arg0: i32) -> (i32, i32) {
    %c0_i32 = arith.constant 0 : i32
    %c0_i32_0 = arith.constant 0 : i32
    %c0_i32_1 = arith.constant 0 : i32
    return %c0_i32, %c0_i32_0 : i32, i32
  }
  func.func @transform_2(%arg0: i32) -> (i32, i32) {
    %c0_i32 = arith.constant 0 : i32
    %c0_i32_0 = arith.constant 0 : i32
    %c0_i32_1 = arith.constant 0 : i32
    return %c0_i32, %c0_i32_0 : i32, i32
  }
  func.func @transform_3(%arg0: i32) -> (i32, i32) {
    %c0_i32 = arith.constant 0 : i32
    %c0_i32_0 = arith.constant 0 : i32
    return %arg0, %c0_i32 : i32, i32
  }
  func.func @transform_4(%arg0: i32) -> (i32, i32) {
    %c0_i32 = arith.constant 0 : i32
    %c0_i32_0 = arith.constant 0 : i32
    %c0_i32_1 = arith.constant 0 : i32
    return %c0_i32, %c0_i32_0 : i32, i32
  }
  func.func @transform_5(%arg0: i32) -> (i32, i32) {
    %c0_i32 = arith.constant 0 : i32
    %c0_i32_0 = arith.constant 0 : i32
    %c0_i32_1 = arith.constant 0 : i32
    return %c0_i32, %c0_i32_0 : i32, i32
  }
  func.func @transform_6(%arg0: i32) -> (i32, i32) {
    %c0_i32 = arith.constant 0 : i32
    %c0_i32_0 = arith.constant 0 : i32
    return %arg0, %c0_i32 : i32, i32
  }
}

</mosaic_0001>

<llo_original>
// kernel: bottleneck_forward.7
$region0: #{bottleneck_forward.7}
  #allocation0 [shape = 'u32[]', space=smem, size = 0x4, offset = 0x4, fixed_abs, tag = 'smem constant byte address 0x4 - core index']
  #allocation1 [shape = 'u32[144,128]{1,0:T(1,128)}', space=vmem, size = 0x12000, scoped, tag = 'internal scratch']
  %s0 = inlined_call_operand.vmem [shape: f32[128,256], index: 0, kind: input, shape index: {}]
  %s1 = inlined_call_operand.vmem [shape: f32[1,256], index: 1, kind: input, shape index: {}]
  %s2 = inlined_call_operand.vmem [shape: f32[1,256], index: 2, kind: input, shape index: {}]
  %s3 = inlined_call_operand.vmem [shape: bf16[128,256], index: 3, kind: output, shape index: {}]
  %s4 = sld [smem:[#allocation0]]
  $region22: #{bottleneck_forward.7} parent=0
    _
  %s6 = ssub.s32 1, %s4
  %s7 = scalar_select 0, %s6, %s4
  // Predicated region
  $region2: #{bottleneck_forward.7} parent=0 // pred_check
    _
  $region3: #{bottleneck_forward.7} parent=0 // pred_check_branch
    %9 = sbr.rel (0) target = $region5
  $region4: #{bottleneck_forward.7} parent=0 // pred_region
    _
  $region5: #{bottleneck_forward.7} parent=0 // pred_fallthru
    _
  // Predicated region
  $region6: #{bottleneck_forward.7} parent=0 // pred_check
    _
  $region7: #{bottleneck_forward.7} parent=0 // pred_check_branch
    %11 = sbr.rel (0) target = $region9
  $region8: #{bottleneck_forward.7} parent=0 // pred_region
    _
  $region9: #{bottleneck_forward.7} parent=0 // pred_fallthru
    _
  // Predicated region
  $region10: #{bottleneck_forward.7} parent=0 // pred_check
    _
  $region11: #{bottleneck_forward.7} parent=0 // pred_check_branch
    %13 = sbr.rel (0) target = $region13
  $region12: #{bottleneck_forward.7} parent=0 // pred_region
    _
  $region13: #{bottleneck_forward.7} parent=0 // pred_fallthru
    _
  %v14 = vld [vmem:[%s0] sm:$0xff]
  %v15 = vld [vmem:[%s0 + $0x8] sm:$0xff]
  %v16 = vld [vmem:[%s0 + $0x10] sm:$0xff]
  %v17 = vld [vmem:[%s0 + $0x18] sm:$0xff]
  %v18 = vld [vmem:[%s0 + $0x20] sm:$0xff]
  %v19 = vld [vmem:[%s0 + $0x28] sm:$0xff]
  %v20 = vld [vmem:[%s0 + $0x30] sm:$0xff]
  %v21 = vld [vmem:[%s0 + $0x38] sm:$0xff]
  %v22 = vld [vmem:[%s0 + $0x40] sm:$0xff]
  %v23 = vld [vmem:[%s0 + $0x48] sm:$0xff]
  %v24 = vld [vmem:[%s0 + $0x50] sm:$0xff]
  %v25 = vld [vmem:[%s0 + $0x58] sm:$0xff]
  %v26 = vld [vmem:[%s0 + $0x60] sm:$0xff]
  %v27 = vld [vmem:[%s0 + $0x68] sm:$0xff]
  %v28 = vld [vmem:[%s0 + $0x70] sm:$0xff]
  %v29 = vld [vmem:[%s0 + $0x78] sm:$0xff]
  %v30 = vld [vmem:[%s0 + $0x80] sm:$0xff]
  %v31 = vld [vmem:[%s0 + $0x88] sm:$0xff]
  %v32 = vld [vmem:[%s0 + $0x90] sm:$0xff]
  %v33 = vld [vmem:[%s0 + $0x98] sm:$0xff]
  %v34 = vld [vmem:[%s0 + $0xa0] sm:$0xff]
  %v35 = vld [vmem:[%s0 + $0xa8] sm:$0xff]
  %v36 = vld [vmem:[%s0 + $0xb0] sm:$0xff]
  %v37 = vld [vmem:[%s0 + $0xb8] sm:$0xff]
  %v38 = vld [vmem:[%s0 + $0xc0] sm:$0xff]
  %v39 = vld [vmem:[%s0 + $0xc8] sm:$0xff]
  %v40 = vld [vmem:[%s0 + $0xd0] sm:$0xff]
  %v41 = vld [vmem:[%s0 + $0xd8] sm:$0xff]
  %v42 = vld [vmem:[%s0 + $0xe0] sm:$0xff]
  %v43 = vld [vmem:[%s0 + $0xe8] sm:$0xff]
  %v44 = vld [vmem:[%s0 + $0xf0] sm:$0xff]
  %v45 = vld [vmem:[%s0 + $0xf8] sm:$0xff]
  %v46 = vld [vmem:[%s1] sm:$0x3]
  %v48 = vlaneseq
  %v49 = vshrl.u32 %v48, 7
  %v50 = vsub.s32 0, %v49
  %v51 = vrot.slane %v46, %v50
  %v52 = vlaneseq
  %v53 = vshrl.u32 %v52, 7
  %v54 = vsub.s32 1, %v53
  %v55 = vrot.slane %v46, %v54
  %v58 = vmul.f32 %v14, %v51
  %v59 = vmul.f32 %v15, %v55
  %v60 = vmul.f32 %v16, %v51
  %v61 = vmul.f32 %v17, %v55
  %v62 = vmul.f32 %v18, %v51
  %v63 = vmul.f32 %v19, %v55
  %v64 = vmul.f32 %v20, %v51
  %v65 = vmul.f32 %v21, %v55
  %v66 = vmul.f32 %v22, %v51
  %v67 = vmul.f32 %v23, %v55
  %v68 = vmul.f32 %v24, %v51
  %v69 = vmul.f32 %v25, %v55
  %v70 = vmul.f32 %v26, %v51
  %v71 = vmul.f32 %v27, %v55
  %v72 = vmul.f32 %v28, %v51
  %v73 = vmul.f32 %v29, %v55
  %v74 = vmul.f32 %v30, %v51
  %v75 = vmul.f32 %v31, %v55
  %v76 = vmul.f32 %v32, %v51
  %v77 = vmul.f32 %v33, %v55
  %v78 = vmul.f32 %v34, %v51
  %v79 = vmul.f32 %v35, %v55
  %v80 = vmul.f32 %v36, %v51
  %v81 = vmul.f32 %v37, %v55
  %v82 = vmul.f32 %v38, %v51
  %v83 = vmul.f32 %v39, %v55
  %v84 = vmul.f32 %v40, %v51
  %v85 = vmul.f32 %v41, %v55
  %v86 = vmul.f32 %v42, %v51
  %v87 = vmul.f32 %v43, %v55
  %v88 = vmul.f32 %v44, %v51
  %v89 = vmul.f32 %v45, %v55
  %v90 = vld [vmem:[%s2] sm:$0x3]
  %v92 = vlaneseq
  %v93 = vshrl.u32 %v92, 7
  %v94 = vsub.s32 0, %v93
  %v95 = vrot.slane %v90, %v94
  %v96 = vlaneseq
  %v97 = vshrl.u32 %v96, 7
  %v98 = vsub.s32 1, %v97
  %v99 = vrot.slane %v90, %v98
  %v102 = vadd.f32 %v58, %v95
  %v103 = vadd.f32 %v59, %v99
  %v104 = vadd.f32 %v60, %v95
  %v105 = vadd.f32 %v61, %v99
  %v106 = vadd.f32 %v62, %v95
  %v107 = vadd.f32 %v63, %v99
  %v108 = vadd.f32 %v64, %v95
  %v109 = vadd.f32 %v65, %v99
  %v110 = vadd.f32 %v66, %v95
  %v111 = vadd.f32 %v67, %v99
  %v112 = vadd.f32 %v68, %v95
  %v113 = vadd.f32 %v69, %v99
  %v114 = vadd.f32 %v70, %v95
  %v115 = vadd.f32 %v71, %v99
  %v116 = vadd.f32 %v72, %v95
  %v117 = vadd.f32 %v73, %v99
  %v118 = vadd.f32 %v74, %v95
  %v119 = vadd.f32 %v75, %v99
  %v120 = vadd.f32 %v76, %v95
  %v121 = vadd.f32 %v77, %v99
  %v122 = vadd.f32 %v78, %v95
  %v123 = vadd.f32 %v79, %v99
  %v124 = vadd.f32 %v80, %v95
  %v125 = vadd.f32 %v81, %v99
  %v126 = vadd.f32 %v82, %v95
  %v127 = vadd.f32 %v83, %v99
  %v128 = vadd.f32 %v84, %v95
  %v129 = vadd.f32 %v85, %v99
  %v130 = vadd.f32 %v86, %v95
  %v131 = vadd.f32 %v87, %v99
  %v132 = vadd.f32 %v88, %v95
  %v133 = vadd.f32 %v89, %v99
  %v134 = vmax.f32 %v102, 0.0
  %v135 = vmax.f32 %v103, 0.0
  %v136 = vmax.f32 %v104, 0.0
  %v137 = vmax.f32 %v105, 0.0
  %v138 = vmax.f32 %v106, 0.0
  %v139 = vmax.f32 %v107, 0.0
  %v140 = vmax.f32 %v108, 0.0
  %v141 = vmax.f32 %v109, 0.0
  %v142 = vmax.f32 %v110, 0.0
  %v143 = vmax.f32 %v111, 0.0
  %v144 = vmax.f32 %v112, 0.0
  %v145 = vmax.f32 %v113, 0.0
  %v146 = vmax.f32 %v114, 0.0
  %v147 = vmax.f32 %v115, 0.0
  %v148 = vmax.f32 %v116, 0.0
  %v149 = vmax.f32 %v117, 0.0
  %v150 = vmax.f32 %v118, 0.0
  %v151 = vmax.f32 %v119, 0.0
  %v152 = vmax.f32 %v120, 0.0
  %v153 = vmax.f32 %v121, 0.0
  %v154 = vmax.f32 %v122, 0.0
  %v155 = vmax.f32 %v123, 0.0
  %v156 = vmax.f32 %v124, 0.0
  %v157 = vmax.f32 %v125, 0.0
  %v158 = vmax.f32 %v126, 0.0
  %v159 = vmax.f32 %v127, 0.0
  %v160 = vmax.f32 %v128, 0.0
  %v161 = vmax.f32 %v129, 0.0
  %v162 = vmax.f32 %v130, 0.0
  %v163 = vmax.f32 %v131, 0.0
  %v164 = vmax.f32 %v132, 0.0
  %v165 = vmax.f32 %v133, 0.0
  %v166 = vpack.c.bf16 %v136, %v134
  %v167 = vpack.c.bf16 %v137, %v135
  %v168 = vpack.c.bf16 %v140, %v138
  %v169 = vpack.c.bf16 %v141, %v139
  %v170 = vpack.c.bf16 %v144, %v142
  %v171 = vpack.c.bf16 %v145, %v143
  %v172 = vpack.c.bf16 %v148, %v146
  %v173 = vpack.c.bf16 %v149, %v147
  %v174 = vpack.c.bf16 %v152, %v150
  %v175 = vpack.c.bf16 %v153, %v151
  %v176 = vpack.c.bf16 %v156, %v154
  %v177 = vpack.c.bf16 %v157, %v155
  %v178 = vpack.c.bf16 %v160, %v158
  %v179 = vpack.c.bf16 %v161, %v159
  %v180 = vpack.c.bf16 %v164, %v162
  %v181 = vpack.c.bf16 %v165, %v163
  %v198 = vunpack.c.l.b16 %v166
  %v199 = vunpack.c.l.b16 %v167
  %v200 = vunpack.c.h.b16 %v166
  %v201 = vunpack.c.h.b16 %v167
  %v202 = vunpack.c.l.b16 %v168
  %v203 = vunpack.c.l.b16 %v169
  %v204 = vunpack.c.h.b16 %v168
  %v205 = vunpack.c.h.b16 %v169
  %v206 = vunpack.c.l.b16 %v170
  %v207 = vunpack.c.l.b16 %v171
  %v208 = vunpack.c.h.b16 %v170
  %v209 = vunpack.c.h.b16 %v171
  %v210 = vunpack.c.l.b16 %v172
  %v211 = vunpack.c.l.b16 %v173
  %v212 = vunpack.c.h.b16 %v172
  %v213 = vunpack.c.h.b16 %v173
  %v214 = vunpack.c.l.b16 %v174
  %v215 = vunpack.c.l.b16 %v175
  %v216 = vunpack.c.h.b16 %v174
  %v217 = vunpack.c.h.b16 %v175
  %v218 = vunpack.c.l.b16 %v176
  %v219 = vunpack.c.l.b16 %v177
  %v220 = vunpack.c.h.b16 %v176
  %v221 = vunpack.c.h.b16 %v177
  %v222 = vunpack.c.l.b16 %v178
  %v223 = vunpack.c.l.b16 %v179
  %v224 = vunpack.c.h.b16 %v178
  %v225 = vunpack.c.h.b16 %v179
  %v226 = vunpack.c.l.b16 %v180
  %v227 = vunpack.c.l.b16 %v181
  %v228 = vunpack.c.h.b16 %v180
  %v229 = vunpack.c.h.b16 %v181
  %v230 = vpack.c.b16 %v199, %v198
  %v231 = vpack.c.b16 %v201, %v200
  %v232 = vpack.c.b16 %v203, %v202
  %v233 = vpack.c.b16 %v205, %v204
  %v234 = vpack.c.b16 %v207, %v206
  %v235 = vpack.c.b16 %v209, %v208
  %v236 = vpack.c.b16 %v211, %v210
  %v237 = vpack.c.b16 %v213, %v212
  %v238 = vpack.c.b16 %v215, %v214
  %v239 = vpack.c.b16 %v217, %v216
  %v240 = vpack.c.b16 %v219, %v218
  %v241 = vpack.c.b16 %v221, %v220
  %v242 = vpack.c.b16 %v223, %v222
  %v243 = vpack.c.b16 %v225, %v224
  %v244 = vpack.c.b16 %v227, %v226
  %v245 = vpack.c.b16 %v229, %v228
  %262 = vst [vmem:[%s3] sm:$0xff] %v230
  %263 = vst [vmem:[%s3 + $0x8] sm:$0xff] %v231
  %264 = vst [vmem:[%s3 + $0x10] sm:$0xff] %v232
  %265 = vst [vmem:[%s3 + $0x18] sm:$0xff] %v233
  %266 = vst [vmem:[%s3 + $0x20] sm:$0xff] %v234
  %267 = vst [vmem:[%s3 + $0x28] sm:$0xff] %v235
  %268 = vst [vmem:[%s3 + $0x30] sm:$0xff] %v236
  %269 = vst [vmem:[%s3 + $0x38] sm:$0xff] %v237
  %270 = vst [vmem:[%s3 + $0x40] sm:$0xff] %v238
  %271 = vst [vmem:[%s3 + $0x48] sm:$0xff] %v239
  %272 = vst [vmem:[%s3 + $0x50] sm:$0xff] %v240
  %273 = vst [vmem:[%s3 + $0x58] sm:$0xff] %v241
  %274 = vst [vmem:[%s3 + $0x60] sm:$0xff] %v242
  %275 = vst [vmem:[%s3 + $0x68] sm:$0xff] %v243
  %276 = vst [vmem:[%s3 + $0x70] sm:$0xff] %v244
  %277 = vst [vmem:[%s3 + $0x78] sm:$0xff] %v245
  // Predicated region
  $region14: #{bottleneck_forward.7} parent=0 // pred_check
    _
  $region15: #{bottleneck_forward.7} parent=0 // pred_check_branch
    %279 = sbr.rel (0) target = $region17
  $region16: #{bottleneck_forward.7} parent=0 // pred_region
    _
  $region17: #{bottleneck_forward.7} parent=0 // pred_fallthru
    _
  // Predicated region
  $region18: #{bottleneck_forward.7} parent=0 // pred_check
    _
  $region19: #{bottleneck_forward.7} parent=0 // pred_check_branch
    %281 = sbr.rel (0) target = $region21
  $region20: #{bottleneck_forward.7} parent=0 // pred_region
    _
  $region21: #{bottleneck_forward.7} parent=0 // pred_fallthru
    _

// kernel: bottleneck_forward.6
$region0: #{bottleneck_forward.6}
  #allocation0 [shape = 'u32[]', space=smem, size = 0x4, offset = 0x4, fixed_abs, tag = 'smem constant byte address 0x4 - core index']
  #allocation1 [shape = 'u32[144,128]{1,0:T(1,128)}', space=vmem, size = 0x12000, scoped, tag = 'internal scratch']
  %s0 = inlined_call_operand.vmem [shape: bf16[128,128], index: 0, kind: input, shape index: {}]
  %s1 = inlined_call_operand.vmem [shape: bf16[128,128], index: 1, kind: input, shape index: {}]
  %s2 = inlined_call_operand.vmem [shape: bf16[128,128], index: 2, kind: input, shape index: {}]
  %s3 = inlined_call_operand.vmem [shape: bf16[128,128], index: 3, kind: input, shape index: {}]
  %s4 = inlined_call_operand.vmem [shape: f32[128,256], index: 4, kind: output, shape index: {0}]
  %s5 = inlined_call_operand.vmem [shape: f32[8,256], index: 5, kind: output, shape index: {1}]
  %6 = xla_tuple %s4, %s5
  %s7 = sld [smem:[#allocation0]]
  $region34: #{bottleneck_forward.6} parent=0
    _
  %s9 = ssub.s32 1, %s7
  %s10 = scalar_select 0, %s9, %s7
  // Predicated region
  $region2: #{bottleneck_forward.6} parent=0 // pred_check
    _
  $region3: #{bottleneck_forward.6} parent=0 // pred_check_branch
    %12 = sbr.rel (0) target = $region5
  $region4: #{bottleneck_forward.6} parent=0 // pred_region
    _
  $region5: #{bottleneck_forward.6} parent=0 // pred_fallthru
    _
  // Predicated region
  $region6: #{bottleneck_forward.6} parent=0 // pred_check
    _
  $region7: #{bottleneck_forward.6} parent=0 // pred_check_branch
    %14 = sbr.rel (0) target = $region9
  $region8: #{bottleneck_forward.6} parent=0 // pred_region
    _
  $region9: #{bottleneck_forward.6} parent=0 // pred_fallthru
    _
  // Predicated region
  $region10: #{bottleneck_forward.6} parent=0 // pred_check
    _
  $region11: #{bottleneck_forward.6} parent=0 // pred_check_branch
    %16 = sbr.rel (0) target = $region13
  $region12: #{bottleneck_forward.6} parent=0 // pred_region
    _
  $region13: #{bottleneck_forward.6} parent=0 // pred_fallthru
    _
  // Predicated region
  $region14: #{bottleneck_forward.6} parent=0 // pred_check
    _
  $region15: #{bottleneck_forward.6} parent=0 // pred_check_branch
    %18 = sbr.rel (0) target = $region17
  $region16: #{bottleneck_forward.6} parent=0 // pred_region
    _
  $region17: #{bottleneck_forward.6} parent=0 // pred_fallthru
    _
  %v20 = vld [vmem:[%s0] sm:$0xf]
  %v21 = vld [vmem:[%s0 + $0x4] sm:$0xf]
  %v22 = vld [vmem:[%s0 + $0x8] sm:$0xf]
  %v23 = vld [vmem:[%s0 + $0xc] sm:$0xf]
  %v24 = vld [vmem:[%s0 + $0x10] sm:$0xf]
  %v25 = vld [vmem:[%s0 + $0x14] sm:$0xf]
  %v26 = vld [vmem:[%s0 + $0x18] sm:$0xf]
  %v27 = vld [vmem:[%s0 + $0x1c] sm:$0xf]
  %v28 = vld [vmem:[%s0 + $0x20] sm:$0xf]
  %v29 = vld [vmem:[%s0 + $0x24] sm:$0xf]
  %v30 = vld [vmem:[%s0 + $0x28] sm:$0xf]
  %v31 = vld [vmem:[%s0 + $0x2c] sm:$0xf]
  %v32 = vld [vmem:[%s0 + $0x30] sm:$0xf]
  %v33 = vld [vmem:[%s0 + $0x34] sm:$0xf]
  %v34 = vld [vmem:[%s0 + $0x38] sm:$0xf]
  %v35 = vld [vmem:[%s0 + $0x3c] sm:$0xf]
  %v36 = vld [vmem:[%s1] sm:$0xf]
  %v37 = vld [vmem:[%s1 + $0x4] sm:$0xf]
  %v38 = vld [vmem:[%s1 + $0x8] sm:$0xf]
  %v39 = vld [vmem:[%s1 + $0xc] sm:$0xf]
  %v40 = vld [vmem:[%s1 + $0x10] sm:$0xf]
  %v41 = vld [vmem:[%s1 + $0x14] sm:$0xf]
  %v42 = vld [vmem:[%s1 + $0x18] sm:$0xf]
  %v43 = vld [vmem:[%s1 + $0x1c] sm:$0xf]
  %v44 = vld [vmem:[%s1 + $0x20] sm:$0xf]
  %v45 = vld [vmem:[%s1 + $0x24] sm:$0xf]
  %v46 = vld [vmem:[%s1 + $0x28] sm:$0xf]
  %v47 = vld [vmem:[%s1 + $0x2c] sm:$0xf]
  %v48 = vld [vmem:[%s1 + $0x30] sm:$0xf]
  %v49 = vld [vmem:[%s1 + $0x34] sm:$0xf]
  %v50 = vld [vmem:[%s1 + $0x38] sm:$0xf]
  %v51 = vld [vmem:[%s1 + $0x3c] sm:$0xf]
  %v52 = vld [vmem:[%s2] sm:$0xf]
  %v53 = vld [vmem:[%s2 + $0x4] sm:$0xf]
  %v54 = vld [vmem:[%s2 + $0x8] sm:$0xf]
  %v55 = vld [vmem:[%s2 + $0xc] sm:$0xf]
  %v56 = vld [vmem:[%s2 + $0x10] sm:$0xf]
  %v57 = vld [vmem:[%s2 + $0x14] sm:$0xf]
  %v58 = vld [vmem:[%s2 + $0x18] sm:$0xf]
  %v59 = vld [vmem:[%s2 + $0x1c] sm:$0xf]
  %v60 = vld [vmem:[%s2 + $0x20] sm:$0xf]
  %v61 = vld [vmem:[%s2 + $0x24] sm:$0xf]
  %v62 = vld [vmem:[%s2 + $0x28] sm:$0xf]
  %v63 = vld [vmem:[%s2 + $0x2c] sm:$0xf]
  %v64 = vld [vmem:[%s2 + $0x30] sm:$0xf]
  %v65 = vld [vmem:[%s2 + $0x34] sm:$0xf]
  %v66 = vld [vmem:[%s2 + $0x38] sm:$0xf]
  %v67 = vld [vmem:[%s2 + $0x3c] sm:$0xf]
  %v68 = vld [vmem:[%s3] sm:$0xf]
  %v69 = vld [vmem:[%s3 + $0x4] sm:$0xf]
  %v70 = vld [vmem:[%s3 + $0x8] sm:$0xf]
  %v71 = vld [vmem:[%s3 + $0xc] sm:$0xf]
  %v72 = vld [vmem:[%s3 + $0x10] sm:$0xf]
  %v73 = vld [vmem:[%s3 + $0x14] sm:$0xf]
  %v74 = vld [vmem:[%s3 + $0x18] sm:$0xf]
  %v75 = vld [vmem:[%s3 + $0x1c] sm:$0xf]
  %v76 = vld [vmem:[%s3 + $0x20] sm:$0xf]
  %v77 = vld [vmem:[%s3 + $0x24] sm:$0xf]
  %v78 = vld [vmem:[%s3 + $0x28] sm:$0xf]
  %v79 = vld [vmem:[%s3 + $0x2c] sm:$0xf]
  %v80 = vld [vmem:[%s3 + $0x30] sm:$0xf]
  %v81 = vld [vmem:[%s3 + $0x34] sm:$0xf]
  %v82 = vld [vmem:[%s3 + $0x38] sm:$0xf]
  %v83 = vld [vmem:[%s3 + $0x3c] sm:$0xf]
  %v100 = vunpack.c.l.b16 %v20
  %v101 = vunpack.c.l.b16 %v21
  %v102 = vunpack.c.l.b16 %v22
  %v103 = vunpack.c.l.b16 %v23
  %v104 = vunpack.c.l.b16 %v24
  %v105 = vunpack.c.l.b16 %v25
  %v106 = vunpack.c.l.b16 %v26
  %v107 = vunpack.c.l.b16 %v27
  %v108 = vunpack.c.l.b16 %v28
  %v109 = vunpack.c.l.b16 %v29
  %v110 = vunpack.c.l.b16 %v30
  %v111 = vunpack.c.l.b16 %v31
  %v112 = vunpack.c.l.b16 %v32
  %v113 = vunpack.c.l.b16 %v33
  %v114 = vunpack.c.l.b16 %v34
  %v115 = vunpack.c.l.b16 %v35
  %v116 = vpack.c.b16 %v101, %v100
  %v117 = vpack.c.b16 %v103, %v102
  %v118 = vpack.c.b16 %v105, %v104
  %v119 = vpack.c.b16 %v107, %v106
  %v120 = vpack.c.b16 %v109, %v108
  %v121 = vpack.c.b16 %v111, %v110
  %v122 = vpack.c.b16 %v113, %v112
  %v123 = vpack.c.b16 %v115, %v114
  %v148 = vunpack.c.l.b16 %v52
  %v149 = vunpack.c.l.b16 %v53
  %v150 = vunpack.c.l.b16 %v54
  %v151 = vunpack.c.l.b16 %v55
  %v152 = vunpack.c.l.b16 %v56
  %v153 = vunpack.c.l.b16 %v57
  %v154 = vunpack.c.l.b16 %v58
  %v155 = vunpack.c.l.b16 %v59
  %v156 = vunpack.c.l.b16 %v60
  %v157 = vunpack.c.l.b16 %v61
  %v158 = vunpack.c.l.b16 %v62
  %v159 = vunpack.c.l.b16 %v63
  %v160 = vunpack.c.l.b16 %v64
  %v161 = vunpack.c.l.b16 %v65
  %v162 = vunpack.c.l.b16 %v66
  %v163 = vunpack.c.l.b16 %v67
  %v164 = vpack.c.b16 %v149, %v148
  %v165 = vpack.c.b16 %v151, %v150
  %v166 = vpack.c.b16 %v153, %v152
  %v167 = vpack.c.b16 %v155, %v154
  %v168 = vpack.c.b16 %v157, %v156
  %v169 = vpack.c.b16 %v159, %v158
  %v170 = vpack.c.b16 %v161, %v160
  %v171 = vpack.c.b16 %v163, %v162
  %180 = vmatprep.subr.bf16.mxu0 0
  %181 = vmatpush1.bf16.msra.mxu0 %v164
  %182 = vmatprep.subr.bf16.mxu0 0
  %183 = vmatpush1.bf16.msra.mxu0 %v165
  %184 = vmatprep.subr.bf16.mxu0 0
  %185 = vmatpush1.bf16.msra.mxu0 %v166
  %186 = vmatprep.subr.bf16.mxu0 0
  %187 = vmatpush1.bf16.msra.mxu0 %v167
  %188 = vmatprep.subr.bf16.mxu0 0
  %189 = vmatpush1.bf16.msra.mxu0 %v168
  %190 = vmatprep.subr.bf16.mxu0 0
  %191 = vmatpush1.bf16.msra.mxu0 %v169
  %192 = vmatprep.subr.bf16.mxu0 0
  %193 = vmatpush1.bf16.msra.mxu0 %v170
  %194 = vmatprep.subr.bf16.mxu0 0
  %195 = vmatpush1.bf16.msra.mxu0 %v171
  %196 = vmatprep.subr.bf16.mxu0 0
  %197 = vmatpush1.bf16.msra.mxu0 0
  %198 = vmatprep.subr.bf16.mxu0 0
  %199 = vmatpush1.bf16.msra.mxu0 0
  %200 = vmatprep.subr.bf16.mxu0 0
  %201 = vmatpush1.bf16.msra.mxu0 0
  %202 = vmatprep.subr.bf16.mxu0 0
  %203 = vmatpush1.bf16.msra.mxu0 0
  %204 = vmatprep.subr.bf16.mxu0 0
  %205 = vmatpush1.bf16.msra.mxu0 0
  %206 = vmatprep.subr.bf16.mxu0 0
  %207 = vmatpush1.bf16.msra.mxu0 0
  %208 = vmatprep.subr.bf16.mxu0 0
  %209 = vmatpush1.bf16.msra.mxu0 0
  %210 = vmatprep.subr.bf16.mxu0 0
  %211 = vmatpush1.bf16.msra.mxu0 0
  %212 = vmatprep.mubr.bf16.mxu0 0
  %213 = vmatmul.mubr.bf16.gmra.mrb[0].mxu0 %v116
  %v214 = vpop.f32.mrb[0].mxu0
  %v215 = vadd.f32 0.0, %v214
  %v216 = vpop.f32.mrb[0].mxu0
  %v217 = vpop.f32.mrb[0].mxu0
  %v218 = vadd.f32 0.0, %v217
  %v219 = vpop.f32.mrb[0].mxu0
  %220 = vmatprep.mubr.bf16.mxu0 0
  %221 = vmatmul.mubr.bf16.gmra.mrb[0].mxu0 %v117
  %v222 = vpop.f32.mrb[0].mxu0
  %v223 = vadd.f32 0.0, %v222
  %v224 = vpop.f32.mrb[0].mxu0
  %v225 = vpop.f32.mrb[0].mxu0
  %v226 = vadd.f32 0.0, %v225
  %v227 = vpop.f32.mrb[0].mxu0
  %228 = vmatprep.mubr.bf16.mxu0 0
  %229 = vmatmul.mubr.bf16.gmra.mrb[0].mxu0 %v118
  %v230 = vpop.f32.mrb[0].mxu0
  %v231 = vadd.f32 0.0, %v230
  %v232 = vpop.f32.mrb[0].mxu0
  %v233 = vpop.f32.mrb[0].mxu0
  %v234 = vadd.f32 0.0, %v233
  %v235 = vpop.f32.mrb[0].mxu0
  %236 = vmatprep.mubr.bf16.mxu0 0
  %237 = vmatmul.mubr.bf16.gmra.mrb[0].mxu0 %v119
  %v238 = vpop.f32.mrb[0].mxu0
  %v239 = vadd.f32 0.0, %v238
  %v240 = vpop.f32.mrb[0].mxu0
  %v241 = vpop.f32.mrb[0].mxu0
  %v242 = vadd.f32 0.0, %v241
  %v243 = vpop.f32.mrb[0].mxu0
  %244 = vmatprep.mubr.bf16.mxu0 0
  %245 = vmatmul.mubr.bf16.gmra.mrb[0].mxu0 %v120
  %v246 = vpop.f32.mrb[0].mxu0
  %v247 = vadd.f32 0.0, %v246
  %v248 = vpop.f32.mrb[0].mxu0
  %v249 = vpop.f32.mrb[0].mxu0
  %v250 = vadd.f32 0.0, %v249
  %v251 = vpop.f32.mrb[0].mxu0
  %252 = vmatprep.mubr.bf16.mxu0 0
  %253 = vmatmul.mubr.bf16.gmra.mrb[0].mxu0 %v121
  %v254 = vpop.f32.mrb[0].mxu0
  %v255 = vadd.f32 0.0, %v254
  %v256 = vpop.f32.mrb[0].mxu0
  %v257 = vpop.f32.mrb[0].mxu0
  %v258 = vadd.f32 0.0, %v257
  %v259 = vpop.f32.mrb[0].mxu0
  %260 = vmatprep.mubr.bf16.mxu0 0
  %261 = vmatmul.mubr.bf16.gmra.mrb[0].mxu0 %v122
  %v262 = vpop.f32.mrb[0].mxu0
  %v263 = vadd.f32 0.0, %v262
  %v264 = vpop.f32.mrb[0].mxu0
  %v265 = vpop.f32.mrb[0].mxu0
  %v266 = vadd.f32 0.0, %v265
  %v267 = vpop.f32.mrb[0].mxu0
  %268 = vmatprep.mubr.bf16.mxu0 0
  %269 = vmatmul.mubr.bf16.gmra.mrb[0].mxu0 %v123
  %v270 = vpop.f32.mrb[0].mxu0
  %v271 = vadd.f32 0.0, %v270
  %v272 = vpop.f32.mrb[0].mxu0
  %v273 = vpop.f32.mrb[0].mxu0
  %v274 = vadd.f32 0.0, %v273
  %v275 = vpop.f32.mrb[0].mxu0
  %276 = vdwg.mxu0
  %v293 = vunpack.c.l.b16 %v36
  %v294 = vunpack.c.l.b16 %v37
  %v295 = vunpack.c.l.b16 %v38
  %v296 = vunpack.c.l.b16 %v39
  %v297 = vunpack.c.l.b16 %v40
  %v298 = vunpack.c.l.b16 %v41
  %v299 = vunpack.c.l.b16 %v42
  %v300 = vunpack.c.l.b16 %v43
  %v301 = vunpack.c.l.b16 %v44
  %v302 = vunpack.c.l.b16 %v45
  %v303 = vunpack.c.l.b16 %v46
  %v304 = vunpack.c.l.b16 %v47
  %v305 = vunpack.c.l.b16 %v48
  %v306 = vunpack.c.l.b16 %v49
  %v307 = vunpack.c.l.b16 %v50
  %v308 = vunpack.c.l.b16 %v51
  %v309 = vpack.c.b16 %v294, %v293
  %v310 = vpack.c.b16 %v296, %v295
  %v311 = vpack.c.b16 %v298, %v297
  %v312 = vpack.c.b16 %v300, %v299
  %v313 = vpack.c.b16 %v302, %v301
  %v314 = vpack.c.b16 %v304, %v303
  %v315 = vpack.c.b16 %v306, %v305
  %v316 = vpack.c.b16 %v308, %v307
  %v341 = vunpack.c.l.b16 %v68
  %v342 = vunpack.c.l.b16 %v69
  %v343 = vunpack.c.l.b16 %v70
  %v344 = vunpack.c.l.b16 %v71
  %v345 = vunpack.c.l.b16 %v72
  %v346 = vunpack.c.l.b16 %v73
  %v347 = vunpack.c.l.b16 %v74
  %v348 = vunpack.c.l.b16 %v75
  %v349 = vunpack.c.l.b16 %v76
  %v350 = vunpack.c.l.b16 %v77
  %v351 = vunpack.c.l.b16 %v78
  %v352 = vunpack.c.l.b16 %v79
  %v353 = vunpack.c.l.b16 %v80
  %v354 = vunpack.c.l.b16 %v81
  %v355 = vunpack.c.l.b16 %v82
  %v356 = vunpack.c.l.b16 %v83
  %v357 = vpack.c.b16 %v342, %v341
  %v358 = vpack.c.b16 %v344, %v343
  %v359 = vpack.c.b16 %v346, %v345
  %v360 = vpack.c.b16 %v348, %v347
  %v361 = vpack.c.b16 %v350, %v349
  %v362 = vpack.c.b16 %v352, %v351
  %v363 = vpack.c.b16 %v354, %v353
  %v364 = vpack.c.b16 %v356, %v355
  %373 = vmatprep.subr.bf16.mxu0 0
  %374 = vmatpush1.bf16.msra.mxu0 %v357
  %375 = vmatprep.subr.bf16.mxu0 0
  %376 = vmatpush1.bf16.msra.mxu0 %v358
  %377 = vmatprep.subr.bf16.mxu0 0
  %378 = vmatpush1.bf16.msra.mxu0 %v359
  %379 = vmatprep.subr.bf16.mxu0 0
  %380 = vmatpush1.bf16.msra.mxu0 %v360
  %381 = vmatprep.subr.bf16.mxu0 0
  %382 = vmatpush1.bf16.msra.mxu0 %v361
  %383 = vmatprep.subr.bf16.mxu0 0
  %384 = vmatpush1.bf16.msra.mxu0 %v362
  %385 = vmatprep.subr.bf16.mxu0 0
  %386 = vmatpush1.bf16.msra.mxu0 %v363
  %387 = vmatprep.subr.bf16.mxu0 0
  %388 = vmatpush1.bf16.msra.mxu0 %v364
  %389 = vmatprep.subr.bf16.mxu0 0
  %390 = vmatpush1.bf16.msra.mxu0 0
  %391 = vmatprep.subr.bf16.mxu0 0
  %392 = vmatpush1.bf16.msra.mxu0 0
  %393 = vmatprep.subr.bf16.mxu0 0
  %394 = vmatpush1.bf16.msra.mxu0 0
  %395 = vmatprep.subr.bf16.mxu0 0
  %396 = vmatpush1.bf16.msra.mxu0 0
  %397 = vmatprep.subr.bf16.mxu0 0
  %398 = vmatpush1.bf16.msra.mxu0 0
  %399 = vmatprep.subr.bf16.mxu0 0
  %400 = vmatpush1.bf16.msra.mxu0 0
  %401 = vmatprep.subr.bf16.mxu0 0
  %402 = vmatpush1.bf16.msra.mxu0 0
  %403 = vmatprep.subr.bf16.mxu0 0
  %404 = vmatpush1.bf16.msra.mxu0 0
  %405 = vmatprep.mubr.bf16.mxu0 0
  %406 = vmatmul.mubr.bf16.gmra.mrb[0].mxu0 %v309
  %v407 = vpop.f32.mrb[0].mxu0
  %v408 = vadd.f32 0.0, %v407
  %v409 = vpop.f32.mrb[0].mxu0
  %v410 = vpop.f32.mrb[0].mxu0
  %v411 = vadd.f32 0.0, %v410
  %v412 = vpop.f32.mrb[0].mxu0
  %413 = vmatprep.mubr.bf16.mxu0 0
  %414 = vmatmul.mubr.bf16.gmra.mrb[0].mxu0 %v310
  %v415 = vpop.f32.mrb[0].mxu0
  %v416 = vadd.f32 0.0, %v415
  %v417 = vpop.f32.mrb[0].mxu0
  %v418 = vpop.f32.mrb[0].mxu0
  %v419 = vadd.f32 0.0, %v418
  %v420 = vpop.f32.mrb[0].mxu0
  %421 = vmatprep.mubr.bf16.mxu0 0
  %422 = vmatmul.mubr.bf16.gmra.mrb[0].mxu0 %v311
  %v423 = vpop.f32.mrb[0].mxu0
  %v424 = vadd.f32 0.0, %v423
  %v425 = vpop.f32.mrb[0].mxu0
  %v426 = vpop.f32.mrb[0].mxu0
  %v427 = vadd.f32 0.0, %v426
  %v428 = vpop.f32.mrb[0].mxu0
  %429 = vmatprep.mubr.bf16.mxu0 0
  %430 = vmatmul.mubr.bf16.gmra.mrb[0].mxu0 %v312
  %v431 = vpop.f32.mrb[0].mxu0
  %v432 = vadd.f32 0.0, %v431
  %v433 = vpop.f32.mrb[0].mxu0
  %v434 = vpop.f32.mrb[0].mxu0
  %v435 = vadd.f32 0.0, %v434
  %v436 = vpop.f32.mrb[0].mxu0
  %437 = vmatprep.mubr.bf16.mxu0 0
  %438 = vmatmul.mubr.bf16.gmra.mrb[0].mxu0 %v313
  %v439 = vpop.f32.mrb[0].mxu0
  %v440 = vadd.f32 0.0, %v439
  %v441 = vpop.f32.mrb[0].mxu0
  %v442 = vpop.f32.mrb[0].mxu0
  %v443 = vadd.f32 0.0, %v442
  %v444 = vpop.f32.mrb[0].mxu0
  %445 = vmatprep.mubr.bf16.mxu0 0
  %446 = vmatmul.mubr.bf16.gmra.mrb[0].mxu0 %v314
  %v447 = vpop.f32.mrb[0].mxu0
  %v448 = vadd.f32 0.0, %v447
  %v449 = vpop.f32.mrb[0].mxu0
  %v450 = vpop.f32.mrb[0].mxu0
  %v451 = vadd.f32 0.0, %v450
  %v452 = vpop.f32.mrb[0].mxu0
  %453 = vmatprep.mubr.bf16.mxu0 0
  %454 = vmatmul.mubr.bf16.gmra.mrb[0].mxu0 %v315
  %v455 = vpop.f32.mrb[0].mxu0
  %v456 = vadd.f32 0.0, %v455
  %v457 = vpop.f32.mrb[0].mxu0
  %v458 = vpop.f32.mrb[0].mxu0
  %v459 = vadd.f32 0.0, %v458
  %v460 = vpop.f32.mrb[0].mxu0
  %461 = vmatprep.mubr.bf16.mxu0 0
  %462 = vmatmul.mubr.bf16.gmra.mrb[0].mxu0 %v316
  %v463 = vpop.f32.mrb[0].mxu0
  %v464 = vadd.f32 0.0, %v463
  %v465 = vpop.f32.mrb[0].mxu0
  %v466 = vpop.f32.mrb[0].mxu0
  %v467 = vadd.f32 0.0, %v466
  %v468 = vpop.f32.mrb[0].mxu0
  %469 = vdwg.mxu0
  %v470 = vsub.f32 %v215, %v408
  %v471 = vsub.f32 %v218, %v411
  %v472 = vsub.f32 %v223, %v416
  %v473 = vsub.f32 %v226, %v419
  %v474 = vsub.f32 %v231, %v424
  %v475 = vsub.f32 %v234, %v427
  %v476 = vsub.f32 %v239, %v432
  %v477 = vsub.f32 %v242, %v435
  %v478 = vsub.f32 %v247, %v440
  %v479 = vsub.f32 %v250, %v443
  %v480 = vsub.f32 %v255, %v448
  %v481 = vsub.f32 %v258, %v451
  %v482 = vsub.f32 %v263, %v456
  %v483 = vsub.f32 %v266, %v459
  %v484 = vsub.f32 %v271, %v464
  %v485 = vsub.f32 %v274, %v467
  %486 = vmatprep.subr.bf16.mxu0 0
  %487 = vmatpush1.bf16.msra.mxu0 %v357
  %488 = vmatprep.subr.bf16.mxu0 0
  %489 = vmatpush1.bf16.msra.mxu0 %v358
  %490 = vmatprep.subr.bf16.mxu0 0
  %491 = vmatpush1.bf16.msra.mxu0 %v359
  %492 = vmatprep.subr.bf16.mxu0 0
  %493 = vmatpush1.bf16.msra.mxu0 %v360
  %494 = vmatprep.subr.bf16.mxu0 0
  %495 = vmatpush1.bf16.msra.mxu0 %v361
  %496 = vmatprep.subr.bf16.mxu0 0
  %497 = vmatpush1.bf16.msra.mxu0 %v362
  %498 = vmatprep.subr.bf16.mxu0 0
  %499 = vmatpush1.bf16.msra.mxu0 %v363
  %500 = vmatprep.subr.bf16.mxu0 0
  %501 = vmatpush1.bf16.msra.mxu0 %v364
  %502 = vmatprep.subr.bf16.mxu0 0
  %503 = vmatpush1.bf16.msra.mxu0 0
  %504 = vmatprep.subr.bf16.mxu0 0
  %505 = vmatpush1.bf16.msra.mxu0 0
  %506 = vmatprep.subr.bf16.mxu0 0
  %507 = vmatpush1.bf16.msra.mxu0 0
  %508 = vmatprep.subr.bf16.mxu0 0
  %509 = vmatpush1.bf16.msra.mxu0 0
  %510 = vmatprep.subr.bf16.mxu0 0
  %511 = vmatpush1.bf16.msra.mxu0 0
  %512 = vmatprep.subr.bf16.mxu0 0
  %513 = vmatpush1.bf16.msra.mxu0 0
  %514 = vmatprep.subr.bf16.mxu0 0
  %515 = vmatpush1.bf16.msra.mxu0 0
  %516 = vmatprep.subr.bf16.mxu0 0
  %517 = vmatpush1.bf16.msra.mxu0 0
  %518 = vmatprep.mubr.bf16.mxu0 0
  %519 = vmatmul.mubr.bf16.gmra.mrb[0].mxu0 %v116
  %v520 = vpop.f32.mrb[0].mxu0
  %v521 = vadd.f32 0.0, %v520
  %v522 = vpop.f32.mrb[0].mxu0
  %v523 = vpop.f32.mrb[0].mxu0
  %v524 = vadd.f32 0.0, %v523
  %v525 = vpop.f32.mrb[0].mxu0
  %526 = vmatprep.mubr.bf16.mxu0 0
  %527 = vmatmul.mubr.bf16.gmra.mrb[0].mxu0 %v117
  %v528 = vpop.f32.mrb[0].mxu0
  %v529 = vadd.f32 0.0, %v528
  %v530 = vpop.f32.mrb[0].mxu0
  %v531 = vpop.f32.mrb[0].mxu0
  %v532 = vadd.f32 0.0, %v531
  %v533 = vpop.f32.mrb[0].mxu0
  %534 = vmatprep.mubr.bf16.mxu0 0
  %535 = vmatmul.mubr.bf16.gmra.mrb[0].mxu0 %v118
  %v536 = vpop.f32.mrb[0].mxu0
  %v537 = vadd.f32 0.0, %v536
  %v538 = vpop.f32.mrb[0].mxu0
  %v539 = vpop.f32.mrb[0].mxu0
  %v540 = vadd.f32 0.0, %v539
  %v541 = vpop.f32.mrb[0].mxu0
  %542 = vmatprep.mubr.bf16.mxu0 0
  %543 = vmatmul.mubr.bf16.gmra.mrb[0].mxu0 %v119
  %v544 = vpop.f32.mrb[0].mxu0
  %v545 = vadd.f32 0.0, %v544
  %v546 = vpop.f32.mrb[0].mxu0
  %v547 = vpop.f32.mrb[0].mxu0
  %v548 = vadd.f32 0.0, %v547
  %v549 = vpop.f32.mrb[0].mxu0
  %550 = vmatprep.mubr.bf16.mxu0 0
  %551 = vmatmul.mubr.bf16.gmra.mrb[0].mxu0 %v120
  %v552 = vpop.f32.mrb[0].mxu0
  %v553 = vadd.f32 0.0, %v552
  %v554 = vpop.f32.mrb[0].mxu0
  %v555 = vpop.f32.mrb[0].mxu0
  %v556 = vadd.f32 0.0, %v555
  %v557 = vpop.f32.mrb[0].mxu0
  %558 = vmatprep.mubr.bf16.mxu0 0
  %559 = vmatmul.mubr.bf16.gmra.mrb[0].mxu0 %v121
  %v560 = vpop.f32.mrb[0].mxu0
  %v561 = vadd.f32 0.0, %v560
  %v562 = vpop.f32.mrb[0].mxu0
  %v563 = vpop.f32.mrb[0].mxu0
  %v564 = vadd.f32 0.0, %v563
  %v565 = vpop.f32.mrb[0].mxu0
  %566 = vmatprep.mubr.bf16.mxu0 0
  %567 = vmatmul.mubr.bf16.gmra.mrb[0].mxu0 %v122
  %v568 = vpop.f32.mrb[0].mxu0
  %v569 = vadd.f32 0.0, %v568
  %v570 = vpop.f32.mrb[0].mxu0
  %v571 = vpop.f32.mrb[0].mxu0
  %v572 = vadd.f32 0.0, %v571
  %v573 = vpop.f32.mrb[0].mxu0
  %574 = vmatprep.mubr.bf16.mxu0 0
  %575 = vmatmul.mubr.bf16.gmra.mrb[0].mxu0 %v123
  %v576 = vpop.f32.mrb[0].mxu0
  %v577 = vadd.f32 0.0, %v576
  %v578 = vpop.f32.mrb[0].mxu0
  %v579 = vpop.f32.mrb[0].mxu0
  %v580 = vadd.f32 0.0, %v579
  %v581 = vpop.f32.mrb[0].mxu0
  %582 = vdwg.mxu0
  %583 = vmatprep.subr.bf16.mxu0 0
  %584 = vmatpush1.bf16.msra.mxu0 %v164
  %585 = vmatprep.subr.bf16.mxu0 0
  %586 = vmatpush1.bf16.msra.mxu0 %v165
  %587 = vmatprep.subr.bf16.mxu0 0
  %588 = vmatpush1.bf16.msra.mxu0 %v166
  %589 = vmatprep.subr.bf16.mxu0 0
  %590 = vmatpush1.bf16.msra.mxu0 %v167
  %591 = vmatprep.subr.bf16.mxu0 0
  %592 = vmatpush1.bf16.msra.mxu0 %v168
  %593 = vmatprep.subr.bf16.mxu0 0
  %594 = vmatpush1.bf16.msra.mxu0 %v169
  %595 = vmatprep.subr.bf16.mxu0 0
  %596 = vmatpush1.bf16.msra.mxu0 %v170
  %597 = vmatprep.subr.bf16.mxu0 0
  %598 = vmatpush1.bf16.msra.mxu0 %v171
  %599 = vmatprep.subr.bf16.mxu0 0
  %600 = vmatpush1.bf16.msra.mxu0 0
  %601 = vmatprep.subr.bf16.mxu0 0
  %602 = vmatpush1.bf16.msra.mxu0 0
  %603 = vmatprep.subr.bf16.mxu0 0
  %604 = vmatpush1.bf16.msra.mxu0 0
  %605 = vmatprep.subr.bf16.mxu0 0
  %606 = vmatpush1.bf16.msra.mxu0 0
  %607 = vmatprep.subr.bf16.mxu0 0
  %608 = vmatpush1.bf16.msra.mxu0 0
  %609 = vmatprep.subr.bf16.mxu0 0
  %610 = vmatpush1.bf16.msra.mxu0 0
  %611 = vmatprep.subr.bf16.mxu0 0
  %612 = vmatpush1.bf16.msra.mxu0 0
  %613 = vmatprep.subr.bf16.mxu0 0
  %614 = vmatpush1.bf16.msra.mxu0 0
  %615 = vmatprep.mubr.bf16.mxu0 0
  %616 = vmatmul.mubr.bf16.gmra.mrb[0].mxu0 %v309
  %v617 = vpop.f32.mrb[0].mxu0
  %v618 = vadd.f32 %v521, %v617
  %v619 = vpop.f32.mrb[0].mxu0
  %v620 = vpop.f32.mrb[0].mxu0
  %v621 = vadd.f32 %v524, %v620
  %v622 = vpop.f32.mrb[0].mxu0
  %623 = vmatprep.mubr.bf16.mxu0 0
  %624 = vmatmul.mubr.bf16.gmra.mrb[0].mxu0 %v310
  %v625 = vpop.f32.mrb[0].mxu0
  %v626 = vadd.f32 %v529, %v625
  %v627 = vpop.f32.mrb[0].mxu0
  %v628 = vpop.f32.mrb[0].mxu0
  %v629 = vadd.f32 %v532, %v628
  %v630 = vpop.f32.mrb[0].mxu0
  %631 = vmatprep.mubr.bf16.mxu0 0
  %632 = vmatmul.mubr.bf16.gmra.mrb[0].mxu0 %v311
  %v633 = vpop.f32.mrb[0].mxu0
  %v634 = vadd.f32 %v537, %v633
  %v635 = vpop.f32.mrb[0].mxu0
  %v636 = vpop.f32.mrb[0].mxu0
  %v637 = vadd.f32 %v540, %v636
  %v638 = vpop.f32.mrb[0].mxu0
  %639 = vmatprep.mubr.bf16.mxu0 0
  %640 = vmatmul.mubr.bf16.gmra.mrb[0].mxu0 %v312
  %v641 = vpop.f32.mrb[0].mxu0
  %v642 = vadd.f32 %v545, %v641
  %v643 = vpop.f32.mrb[0].mxu0
  %v644 = vpop.f32.mrb[0].mxu0
  %v645 = vadd.f32 %v548, %v644
  %v646 = vpop.f32.mrb[0].mxu0
  %647 = vmatprep.mubr.bf16.mxu0 0
  %648 = vmatmul.mubr.bf16.gmra.mrb[0].mxu0 %v313
  %v649 = vpop.f32.mrb[0].mxu0
  %v650 = vadd.f32 %v553, %v649
  %v651 = vpop.f32.mrb[0].mxu0
  %v652 = vpop.f32.mrb[0].mxu0
  %v653 = vadd.f32 %v556, %v652
  %v654 = vpop.f32.mrb[0].mxu0
  %655 = vmatprep.mubr.bf16.mxu0 0
  %656 = vmatmul.mubr.bf16.gmra.mrb[0].mxu0 %v314
  %v657 = vpop.f32.mrb[0].mxu0
  %v658 = vadd.f32 %v561, %v657
  %v659 = vpop.f32.mrb[0].mxu0
  %v660 = vpop.f32.mrb[0].mxu0
  %v661 = vadd.f32 %v564, %v660
  %v662 = vpop.f32.mrb[0].mxu0
  %663 = vmatprep.mubr.bf16.mxu0 0
  %664 = vmatmul.mubr.bf16.gmra.mrb[0].mxu0 %v315
  %v665 = vpop.f32.mrb[0].mxu0
  %v666 = vadd.f32 %v569, %v665
  %v667 = vpop.f32.mrb[0].mxu0
  %v668 = vpop.f32.mrb[0].mxu0
  %v669 = vadd.f32 %v572, %v668
  %v670 = vpop.f32.mrb[0].mxu0
  %671 = vmatprep.mubr.bf16.mxu0 0
  %672 = vmatmul.mubr.bf16.gmra.mrb[0].mxu0 %v316
  %v673 = vpop.f32.mrb[0].mxu0
  %v674 = vadd.f32 %v577, %v673
  %v675 = vpop.f32.mrb[0].mxu0
  %v676 = vpop.f32.mrb[0].mxu0
  %v677 = vadd.f32 %v580, %v676
  %v678 = vpop.f32.mrb[0].mxu0
  %679 = vdwg.mxu0
  %680 = vst [vmem:[%s4] sm:$0xff] %v470
  %681 = vst [vmem:[%s4 + $0x10] sm:$0xff] %v471
  %682 = vst [vmem:[%s4 + $0x20] sm:$0xff] %v472
  %683 = vst [vmem:[%s4 + $0x30] sm:$0xff] %v473
  %684 = vst [vmem:[%s4 + $0x40] sm:$0xff] %v474
  %685 = vst [vmem:[%s4 + $0x50] sm:$0xff] %v475
  %686 = vst [vmem:[%s4 + $0x60] sm:$0xff] %v476
  %687 = vst [vmem:[%s4 + $0x70] sm:$0xff] %v477
  %688 = vst [vmem:[%s4 + $0x80] sm:$0xff] %v478
  %689 = vst [vmem:[%s4 + $0x90] sm:$0xff] %v479
  %690 = vst [vmem:[%s4 + $0xa0] sm:$0xff] %v480
  %691 = vst [vmem:[%s4 + $0xb0] sm:$0xff] %v481
  %692 = vst [vmem:[%s4 + $0xc0] sm:$0xff] %v482
  %693 = vst [vmem:[%s4 + $0xd0] sm:$0xff] %v483
  %694 = vst [vmem:[%s4 + $0xe0] sm:$0xff] %v484
  %695 = vst [vmem:[%s4 + $0xf0] sm:$0xff] %v485
  %696 = vst [vmem:[%s4 + $0x8] sm:$0xff] %v618
  %697 = vst [vmem:[%s4 + $0x18] sm:$0xff] %v621
  %698 = vst [vmem:[%s4 + $0x28] sm:$0xff] %v626
  %699 = vst [vmem:[%s4 + $0x38] sm:$0xff] %v629
  %700 = vst [vmem:[%s4 + $0x48] sm:$0xff] %v634
  %701 = vst [vmem:[%s4 + $0x58] sm:$0xff] %v637
  %702 = vst [vmem:[%s4 + $0x68] sm:$0xff] %v642
  %703 = vst [vmem:[%s4 + $0x78] sm:$0xff] %v645
  %704 = vst [vmem:[%s4 + $0x88] sm:$0xff] %v650
  %705 = vst [vmem:[%s4 + $0x98] sm:$0xff] %v653
  %706 = vst [vmem:[%s4 + $0xa8] sm:$0xff] %v658
  %707 = vst [vmem:[%s4 + $0xb8] sm:$0xff] %v661
  %708 = vst [vmem:[%s4 + $0xc8] sm:$0xff] %v666
  %709 = vst [vmem:[%s4 + $0xd8] sm:$0xff] %v669
  %710 = vst [vmem:[%s4 + $0xe8] sm:$0xff] %v674
  %711 = vst [vmem:[%s4 + $0xf8] sm:$0xff] %v677
  %v712 = vlaneseq
  %v713 = vshrl.u32 %v712, 7
  %v714 = vadd.f32 %v470, %v471
  %v715 = vadd.f32 %v714, %v472
  %v716 = vadd.f32 %v715, %v473
  %v717 = vadd.f32 %v716, %v474
  %v718 = vadd.f32 %v717, %v475
  %v719 = vadd.f32 %v718, %v476
  %v720 = vadd.f32 %v719, %v477
  %v721 = vadd.f32 %v720, %v478
  %v722 = vadd.f32 %v721, %v479
  %v723 = vadd.f32 %v722, %v480
  %v724 = vadd.f32 %v723, %v481
  %v725 = vadd.f32 %v724, %v482
  %v726 = vadd.f32 %v725, %v483
  %v727 = vadd.f32 %v726, %v484
  %v728 = vadd.f32 %v727, %v485
  %v729 = vrot.slane %v728, 4
  %v730 = vadd.f32 %v728, %v729
  %v731 = vrot.slane %v730, 2
  %v732 = vadd.f32 %v730, %v731
  %v733 = vrot.slane %v732, 1
  %v734 = vadd.f32 %v732, %v733
  %v735 = vmul.f32 %v470, %v470
  %v736 = vmul.f32 %v471, %v471
  %v737 = vmul.f32 %v472, %v472
  %v738 = vmul.f32 %v473, %v473
  %v739 = vmul.f32 %v474, %v474
  %v740 = vmul.f32 %v475, %v475
  %v741 = vmul.f32 %v476, %v476
  %v742 = vmul.f32 %v477, %v477
  %v743 = vmul.f32 %v478, %v478
  %v744 = vmul.f32 %v479, %v479
  %v745 = vmul.f32 %v480, %v480
  %v746 = vmul.f32 %v481, %v481
  %v747 = vmul.f32 %v482, %v482
  %v748 = vmul.f32 %v483, %v483
  %v749 = vmul.f32 %v484, %v484
  %v750 = vmul.f32 %v485, %v485
  %v751 = vadd.f32 %v735, %v736
  %v752 = vadd.f32 %v751, %v737
  %v753 = vadd.f32 %v752, %v738
  %v754 = vadd.f32 %v753, %v739
  %v755 = vadd.f32 %v754, %v740
  %v756 = vadd.f32 %v755, %v741
  %v757 = vadd.f32 %v756, %v742
  %v758 = vadd.f32 %v757, %v743
  %v759 = vadd.f32 %v758, %v744
  %v760 = vadd.f32 %v759, %v745
  %v761 = vadd.f32 %v760, %v746
  %v762 = vadd.f32 %v761, %v747
  %v763 = vadd.f32 %v762, %v748
  %v764 = vadd.f32 %v763, %v749
  %v765 = vadd.f32 %v764, %v750
  %v766 = vrot.slane %v765, 4
  %v767 = vadd.f32 %v765, %v766
  %v768 = vrot.slane %v767, 2
  %v769 = vadd.f32 %v767, %v768
  %v770 = vrot.slane %v769, 1
  %v771 = vadd.f32 %v769, %v770
  %vm772 = vcmp.eq.s32.totalorder %v713, 0
  %vm773 = vcmp.eq.s32.totalorder %v713, 1
  %v774 = vsel %vm773, %v771, 0.0
  %v775 = vsel %vm772, %v734, %v774
  %776 = vst [vmem:[%s5] sm:$0xff] %v775
  %v777 = vadd.f32 %v618, %v621
  %v778 = vadd.f32 %v777, %v626
  %v779 = vadd.f32 %v778, %v629
  %v780 = vadd.f32 %v779, %v634
  %v781 = vadd.f32 %v780, %v637
  %v782 = vadd.f32 %v781, %v642
  %v783 = vadd.f32 %v782, %v645
  %v784 = vadd.f32 %v783, %v650
  %v785 = vadd.f32 %v784, %v653
  %v786 = vadd.f32 %v785, %v658
  %v787 = vadd.f32 %v786, %v661
  %v788 = vadd.f32 %v787, %v666
  %v789 = vadd.f32 %v788, %v669
  %v790 = vadd.f32 %v789, %v674
  %v791 = vadd.f32 %v790, %v677
  %v792 = vrot.slane %v791, 4
  %v793 = vadd.f32 %v791, %v792
  %v794 = vrot.slane %v793, 2
  %v795 = vadd.f32 %v793, %v794
  %v796 = vrot.slane %v795, 1
  %v797 = vadd.f32 %v795, %v796
  %v798 = vmul.f32 %v618, %v618
  %v799 = vmul.f32 %v621, %v621
  %v800 = vmul.f32 %v626, %v626
  %v801 = vmul.f32 %v629, %v629
  %v802 = vmul.f32 %v634, %v634
  %v803 = vmul.f32 %v637, %v637
  %v804 = vmul.f32 %v642, %v642
  %v805 = vmul.f32 %v645, %v645
  %v806 = vmul.f32 %v650, %v650
  %v807 = vmul.f32 %v653, %v653
  %v808 = vmul.f32 %v658, %v658
  %v809 = vmul.f32 %v661, %v661
  %v810 = vmul.f32 %v666, %v666
  %v811 = vmul.f32 %v669, %v669
  %v812 = vmul.f32 %v674, %v674
  %v813 = vmul.f32 %v677, %v677
  %v814 = vadd.f32 %v798, %v799
  %v815 = vadd.f32 %v814, %v800
  %v816 = vadd.f32 %v815, %v801
  %v817 = vadd.f32 %v816, %v802
  %v818 = vadd.f32 %v817, %v803
  %v819 = vadd.f32 %v818, %v804
  %v820 = vadd.f32 %v819, %v805
  %v821 = vadd.f32 %v820, %v806
  %v822 = vadd.f32 %v821, %v807
  %v823 = vadd.f32 %v822, %v808
  %v824 = vadd.f32 %v823, %v809
  %v825 = vadd.f32 %v824, %v810
  %v826 = vadd.f32 %v825, %v811
  %v827 = vadd.f32 %v826, %v812
  %v828 = vadd.f32 %v827, %v813
  %v829 = vrot.slane %v828, 4
  %v830 = vadd.f32 %v828, %v829
  %v831 = vrot.slane %v830, 2
  %v832 = vadd.f32 %v830, %v831
  %v833 = vrot.slane %v832, 1
  %v834 = vadd.f32 %v832, %v833
  %v835 = vsel %vm773, %v834, 0.0
  %v836 = vsel %vm772, %v797, %v835
  %837 = vst [vmem:[%s5 + $0x8] sm:$0xff] %v836
  // Predicated region
  $region18: #{bottleneck_forward.6} parent=0 // pred_check
    _
  $region19: #{bottleneck_forward.6} parent=0 // pred_check_branch
    %839 = sbr.rel (0) target = $region21
  $region20: #{bottleneck_forward.6} parent=0 // pred_region
    _
  $region21: #{bottleneck_forward.6} parent=0 // pred_fallthru
    _
  // Predicated region
  $region22: #{bottleneck_forward.6} parent=0 // pred_check
    _
  $region23: #{bottleneck_forward.6} parent=0 // pred_check_branch
    %841 = sbr.rel (0) target = $region25
  $region24: #{bottleneck_forward.6} parent=0 // pred_region
    _
  $region25: #{bottleneck_forward.6} parent=0 // pred_fallthru
    _
  // Predicated region
  $region26: #{bottleneck_forward.6} parent=0 // pred_check
    _
  $region27: #{bottleneck_forward.6} parent=0 // pred_check_branch
    %843 = sbr.rel (0) target = $region29
  $region28: #{bottleneck_forward.6} parent=0 // pred_region
    _
  $region29: #{bottleneck_forward.6} parent=0 // pred_fallthru
    _
  // Predicated region
  $region30: #{bottleneck_forward.6} parent=0 // pred_check
    _
  $region31: #{bottleneck_forward.6} parent=0 // pred_check_branch
    %845 = sbr.rel (0) target = $region33
  $region32: #{bottleneck_forward.6} parent=0 // pred_region
    _
  $region33: #{bottleneck_forward.6} parent=0 // pred_fallthru
    _

// kernel: bottleneck_forward.9
$region0: #{bottleneck_forward.9}
  #allocation0 [shape = 'u32[]', space=smem, size = 0x4, offset = 0x4, fixed_abs, tag = 'smem constant byte address 0x4 - core index']
  #allocation1 [shape = 'u32[144,128]{1,0:T(1,128)}', space=vmem, size = 0x12000, scoped, tag = 'internal scratch']
  %s0 = inlined_call_operand.vmem [shape: f32[128,256], index: 0, kind: input, shape index: {}]
  %s1 = inlined_call_operand.vmem [shape: f32[1,256], index: 1, kind: input, shape index: {}]
  %s2 = inlined_call_operand.vmem [shape: f32[1,256], index: 2, kind: input, shape index: {}]
  %s3 = inlined_call_operand.vmem [shape: bf16[128,128], index: 3, kind: input, shape index: {}]
  %s4 = inlined_call_operand.vmem [shape: bf16[128,128], index: 4, kind: input, shape index: {}]
  %s5 = inlined_call_operand.vmem [shape: f32[128,256], index: 5, kind: output, shape index: {0}]
  %s6 = inlined_call_operand.vmem [shape: f32[8,256], index: 6, kind: output, shape index: {1}]
  %7 = xla_tuple %s5, %s6
  %s8 = sld [smem:[#allocation0]]
  $region38: #{bottleneck_forward.9} parent=0
    _
  %s10 = ssub.s32 1, %s8
  %s11 = scalar_select 0, %s10, %s8
  // Predicated region
  $region2: #{bottleneck_forward.9} parent=0 // pred_check
    _
  $region3: #{bottleneck_forward.9} parent=0 // pred_check_branch
    %13 = sbr.rel (0) target = $region5
  $region4: #{bottleneck_forward.9} parent=0 // pred_region
    _
  $region5: #{bottleneck_forward.9} parent=0 // pred_fallthru
    _
  // Predicated region
  $region6: #{bottleneck_forward.9} parent=0 // pred_check
    _
  $region7: #{bottleneck_forward.9} parent=0 // pred_check_branch
    %15 = sbr.rel (0) target = $region9
  $region8: #{bottleneck_forward.9} parent=0 // pred_region
    _
  $region9: #{bottleneck_forward.9} parent=0 // pred_fallthru
    _
  // Predicated region
  $region10: #{bottleneck_forward.9} parent=0 // pred_check
    _
  $region11: #{bottleneck_forward.9} parent=0 // pred_check_branch
    %17 = sbr.rel (0) target = $region13
  $region12: #{bottleneck_forward.9} parent=0 // pred_region
    _
  $region13: #{bottleneck_forward.9} parent=0 // pred_fallthru
    _
  // Predicated region
  $region14: #{bottleneck_forward.9} parent=0 // pred_check
    _
  $region15: #{bottleneck_forward.9} parent=0 // pred_check_branch
    %19 = sbr.rel (0) target = $region17
  $region16: #{bottleneck_forward.9} parent=0 // pred_region
    _
  $region17: #{bottleneck_forward.9} parent=0 // pred_fallthru
    _
  // Predicated region
  $region18: #{bottleneck_forward.9} parent=0 // pred_check
    _
  $region19: #{bottleneck_forward.9} parent=0 // pred_check_branch
    %21 = sbr.rel (0) target = $region21
  $region20: #{bottleneck_forward.9} parent=0 // pred_region
    _
  $region21: #{bottleneck_forward.9} parent=0 // pred_fallthru
    _
  %v23 = vld [vmem:[%s0] sm:$0xff]
  %v24 = vld [vmem:[%s0 + $0x8] sm:$0xff]
  %v25 = vld [vmem:[%s0 + $0x10] sm:$0xff]
  %v26 = vld [vmem:[%s0 + $0x18] sm:$0xff]
  %v27 = vld [vmem:[%s0 + $0x20] sm:$0xff]
  %v28 = vld [vmem:[%s0 + $0x28] sm:$0xff]
  %v29 = vld [vmem:[%s0 + $0x30] sm:$0xff]
  %v30 = vld [vmem:[%s0 + $0x38] sm:$0xff]
  %v31 = vld [vmem:[%s0 + $0x40] sm:$0xff]
  %v32 = vld [vmem:[%s0 + $0x48] sm:$0xff]
  %v33 = vld [vmem:[%s0 + $0x50] sm:$0xff]
  %v34 = vld [vmem:[%s0 + $0x58] sm:$0xff]
  %v35 = vld [vmem:[%s0 + $0x60] sm:$0xff]
  %v36 = vld [vmem:[%s0 + $0x68] sm:$0xff]
  %v37 = vld [vmem:[%s0 + $0x70] sm:$0xff]
  %v38 = vld [vmem:[%s0 + $0x78] sm:$0xff]
  %v39 = vld [vmem:[%s0 + $0x80] sm:$0xff]
  %v40 = vld [vmem:[%s0 + $0x88] sm:$0xff]
  %v41 = vld [vmem:[%s0 + $0x90] sm:$0xff]
  %v42 = vld [vmem:[%s0 + $0x98] sm:$0xff]
  %v43 = vld [vmem:[%s0 + $0xa0] sm:$0xff]
  %v44 = vld [vmem:[%s0 + $0xa8] sm:$0xff]
  %v45 = vld [vmem:[%s0 + $0xb0] sm:$0xff]
  %v46 = vld [vmem:[%s0 + $0xb8] sm:$0xff]
  %v47 = vld [vmem:[%s0 + $0xc0] sm:$0xff]
  %v48 = vld [vmem:[%s0 + $0xc8] sm:$0xff]
  %v49 = vld [vmem:[%s0 + $0xd0] sm:$0xff]
  %v50 = vld [vmem:[%s0 + $0xd8] sm:$0xff]
  %v51 = vld [vmem:[%s0 + $0xe0] sm:$0xff]
  %v52 = vld [vmem:[%s0 + $0xe8] sm:$0xff]
  %v53 = vld [vmem:[%s0 + $0xf0] sm:$0xff]
  %v54 = vld [vmem:[%s0 + $0xf8] sm:$0xff]
  %v55 = vld [vmem:[%s1] sm:$0x3]
  %v57 = vlaneseq
  %v58 = vshrl.u32 %v57, 7
  %v59 = vsub.s32 0, %v58
  %v60 = vrot.slane %v55, %v59
  %v61 = vlaneseq
  %v62 = vshrl.u32 %v61, 7
  %v63 = vsub.s32 1, %v62
  %v64 = vrot.slane %v55, %v63
  %v67 = vmul.f32 %v23, %v60
  %v68 = vmul.f32 %v24, %v64
  %v69 = vmul.f32 %v25, %v60
  %v70 = vmul.f32 %v26, %v64
  %v71 = vmul.f32 %v27, %v60
  %v72 = vmul.f32 %v28, %v64
  %v73 = vmul.f32 %v29, %v60
  %v74 = vmul.f32 %v30, %v64
  %v75 = vmul.f32 %v31, %v60
  %v76 = vmul.f32 %v32, %v64
  %v77 = vmul.f32 %v33, %v60
  %v78 = vmul.f32 %v34, %v64
  %v79 = vmul.f32 %v35, %v60
  %v80 = vmul.f32 %v36, %v64
  %v81 = vmul.f32 %v37, %v60
  %v82 = vmul.f32 %v38, %v64
  %v83 = vmul.f32 %v39, %v60
  %v84 = vmul.f32 %v40, %v64
  %v85 = vmul.f32 %v41, %v60
  %v86 = vmul.f32 %v42, %v64
  %v87 = vmul.f32 %v43, %v60
  %v88 = vmul.f32 %v44, %v64
  %v89 = vmul.f32 %v45, %v60
  %v90 = vmul.f32 %v46, %v64
  %v91 = vmul.f32 %v47, %v60
  %v92 = vmul.f32 %v48, %v64
  %v93 = vmul.f32 %v49, %v60
  %v94 = vmul.f32 %v50, %v64
  %v95 = vmul.f32 %v51, %v60
  %v96 = vmul.f32 %v52, %v64
  %v97 = vmul.f32 %v53, %v60
  %v98 = vmul.f32 %v54, %v64
  %v99 = vld [vmem:[%s2] sm:$0x3]
  %v101 = vlaneseq
  %v102 = vshrl.u32 %v101, 7
  %v103 = vsub.s32 0, %v102
  %v104 = vrot.slane %v99, %v103
  %v105 = vlaneseq
  %v106 = vshrl.u32 %v105, 7
  %v107 = vsub.s32 1, %v106
  %v108 = vrot.slane %v99, %v107
  %v111 = vadd.f32 %v67, %v104
  %v112 = vadd.f32 %v68, %v108
  %v113 = vadd.f32 %v69, %v104
  %v114 = vadd.f32 %v70, %v108
  %v115 = vadd.f32 %v71, %v104
  %v116 = vadd.f32 %v72, %v108
  %v117 = vadd.f32 %v73, %v104
  %v118 = vadd.f32 %v74, %v108
  %v119 = vadd.f32 %v75, %v104
  %v120 = vadd.f32 %v76, %v108
  %v121 = vadd.f32 %v77, %v104
  %v122 = vadd.f32 %v78, %v108
  %v123 = vadd.f32 %v79, %v104
  %v124 = vadd.f32 %v80, %v108
  %v125 = vadd.f32 %v81, %v104
  %v126 = vadd.f32 %v82, %v108
  %v127 = vadd.f32 %v83, %v104
  %v128 = vadd.f32 %v84, %v108
  %v129 = vadd.f32 %v85, %v104
  %v130 = vadd.f32 %v86, %v108
  %v131 = vadd.f32 %v87, %v104
  %v132 = vadd.f32 %v88, %v108
  %v133 = vadd.f32 %v89, %v104
  %v134 = vadd.f32 %v90, %v108
  %v135 = vadd.f32 %v91, %v104
  %v136 = vadd.f32 %v92, %v108
  %v137 = vadd.f32 %v93, %v104
  %v138 = vadd.f32 %v94, %v108
  %v139 = vadd.f32 %v95, %v104
  %v140 = vadd.f32 %v96, %v108
  %v141 = vadd.f32 %v97, %v104
  %v142 = vadd.f32 %v98, %v108
  %v143 = vmax.f32 %v111, 0.0
  %v144 = vmax.f32 %v112, 0.0
  %v145 = vmax.f32 %v113, 0.0
  %v146 = vmax.f32 %v114, 0.0
  %v147 = vmax.f32 %v115, 0.0
  %v148 = vmax.f32 %v116, 0.0
  %v149 = vmax.f32 %v117, 0.0
  %v150 = vmax.f32 %v118, 0.0
  %v151 = vmax.f32 %v119, 0.0
  %v152 = vmax.f32 %v120, 0.0
  %v153 = vmax.f32 %v121, 0.0
  %v154 = vmax.f32 %v122, 0.0
  %v155 = vmax.f32 %v123, 0.0
  %v156 = vmax.f32 %v124, 0.0
  %v157 = vmax.f32 %v125, 0.0
  %v158 = vmax.f32 %v126, 0.0
  %v159 = vmax.f32 %v127, 0.0
  %v160 = vmax.f32 %v128, 0.0
  %v161 = vmax.f32 %v129, 0.0
  %v162 = vmax.f32 %v130, 0.0
  %v163 = vmax.f32 %v131, 0.0
  %v164 = vmax.f32 %v132, 0.0
  %v165 = vmax.f32 %v133, 0.0
  %v166 = vmax.f32 %v134, 0.0
  %v167 = vmax.f32 %v135, 0.0
  %v168 = vmax.f32 %v136, 0.0
  %v169 = vmax.f32 %v137, 0.0
  %v170 = vmax.f32 %v138, 0.0
  %v171 = vmax.f32 %v139, 0.0
  %v172 = vmax.f32 %v140, 0.0
  %v173 = vmax.f32 %v141, 0.0
  %v174 = vmax.f32 %v142, 0.0
  %v175 = vpack.c.bf16 %v145, %v143
  %v176 = vpack.c.bf16 %v149, %v147
  %v177 = vpack.c.bf16 %v153, %v151
  %v178 = vpack.c.bf16 %v157, %v155
  %v179 = vpack.c.bf16 %v161, %v159
  %v180 = vpack.c.bf16 %v165, %v163
  %v181 = vpack.c.bf16 %v169, %v167
  %v182 = vpack.c.bf16 %v173, %v171
  %v183 = vpack.c.bf16 %v146, %v144
  %v184 = vpack.c.bf16 %v150, %v148
  %v185 = vpack.c.bf16 %v154, %v152
  %v186 = vpack.c.bf16 %v158, %v156
  %v187 = vpack.c.bf16 %v162, %v160
  %v188 = vpack.c.bf16 %v166, %v164
  %v189 = vpack.c.bf16 %v170, %v168
  %v190 = vpack.c.bf16 %v174, %v172
  %v191 = vld [vmem:[%s3] sm:$0xf]
  %v192 = vld [vmem:[%s3 + $0x4] sm:$0xf]
  %v193 = vld [vmem:[%s3 + $0x8] sm:$0xf]
  %v194 = vld [vmem:[%s3 + $0xc] sm:$0xf]
  %v195 = vld [vmem:[%s3 + $0x10] sm:$0xf]
  %v196 = vld [vmem:[%s3 + $0x14] sm:$0xf]
  %v197 = vld [vmem:[%s3 + $0x18] sm:$0xf]
  %v198 = vld [vmem:[%s3 + $0x1c] sm:$0xf]
  %v199 = vld [vmem:[%s3 + $0x20] sm:$0xf]
  %v200 = vld [vmem:[%s3 + $0x24] sm:$0xf]
  %v201 = vld [vmem:[%s3 + $0x28] sm:$0xf]
  %v202 = vld [vmem:[%s3 + $0x2c] sm:$0xf]
  %v203 = vld [vmem:[%s3 + $0x30] sm:$0xf]
  %v204 = vld [vmem:[%s3 + $0x34] sm:$0xf]
  %v205 = vld [vmem:[%s3 + $0x38] sm:$0xf]
  %v206 = vld [vmem:[%s3 + $0x3c] sm:$0xf]
  %v207 = vld [vmem:[%s4] sm:$0xf]
  %v208 = vld [vmem:[%s4 + $0x4] sm:$0xf]
  %v209 = vld [vmem:[%s4 + $0x8] sm:$0xf]
  %v210 = vld [vmem:[%s4 + $0xc] sm:$0xf]
  %v211 = vld [vmem:[%s4 + $0x10] sm:$0xf]
  %v212 = vld [vmem:[%s4 + $0x14] sm:$0xf]
  %v213 = vld [vmem:[%s4 + $0x18] sm:$0xf]
  %v214 = vld [vmem:[%s4 + $0x1c] sm:$0xf]
  %v215 = vld [vmem:[%s4 + $0x20] sm:$0xf]
  %v216 = vld [vmem:[%s4 + $0x24] sm:$0xf]
  %v217 = vld [vmem:[%s4 + $0x28] sm:$0xf]
  %v218 = vld [vmem:[%s4 + $0x2c] sm:$0xf]
  %v219 = vld [vmem:[%s4 + $0x30] sm:$0xf]
  %v220 = vld [vmem:[%s4 + $0x34] sm:$0xf]
  %v221 = vld [vmem:[%s4 + $0x38] sm:$0xf]
  %v222 = vld [vmem:[%s4 + $0x3c] sm:$0xf]
  %v239 = vunpack.c.l.b16 %v191
  %v240 = vunpack.c.l.b16 %v192
  %v241 = vunpack.c.l.b16 %v193
  %v242 = vunpack.c.l.b16 %v194
  %v243 = vunpack.c.l.b16 %v195
  %v244 = vunpack.c.l.b16 %v196
  %v245 = vunpack.c.l.b16 %v197
  %v246 = vunpack.c.l.b16 %v198
  %v247 = vunpack.c.l.b16 %v199
  %v248 = vunpack.c.l.b16 %v200
  %v249 = vunpack.c.l.b16 %v201
  %v250 = vunpack.c.l.b16 %v202
  %v251 = vunpack.c.l.b16 %v203
  %v252 = vunpack.c.l.b16 %v204
  %v253 = vunpack.c.l.b16 %v205
  %v254 = vunpack.c.l.b16 %v206
  %v255 = vpack.c.b16 %v240, %v239
  %v256 = vpack.c.b16 %v242, %v241
  %v257 = vpack.c.b16 %v244, %v243
  %v258 = vpack.c.b16 %v246, %v245
  %v259 = vpack.c.b16 %v248, %v247
  %v260 = vpack.c.b16 %v250, %v249
  %v261 = vpack.c.b16 %v252, %v251
  %v262 = vpack.c.b16 %v254, %v253
  %271 = vmatprep.subr.bf16.mxu0 0
  %272 = vmatpush1.bf16.msra.mxu0 %v255
  %273 = vmatprep.subr.bf16.mxu0 0
  %274 = vmatpush1.bf16.msra.mxu0 %v256
  %275 = vmatprep.subr.bf16.mxu0 0
  %276 = vmatpush1.bf16.msra.mxu0 %v257
  %277 = vmatprep.subr.bf16.mxu0 0
  %278 = vmatpush1.bf16.msra.mxu0 %v258
  %279 = vmatprep.subr.bf16.mxu0 0
  %280 = vmatpush1.bf16.msra.mxu0 %v259
  %281 = vmatprep.subr.bf16.mxu0 0
  %282 = vmatpush1.bf16.msra.mxu0 %v260
  %283 = vmatprep.subr.bf16.mxu0 0
  %284 = vmatpush1.bf16.msra.mxu0 %v261
  %285 = vmatprep.subr.bf16.mxu0 0
  %286 = vmatpush1.bf16.msra.mxu0 %v262
  %287 = vmatprep.subr.bf16.mxu0 0
  %288 = vmatpush1.bf16.msra.mxu0 0
  %289 = vmatprep.subr.bf16.mxu0 0
  %290 = vmatpush1.bf16.msra.mxu0 0
  %291 = vmatprep.subr.bf16.mxu0 0
  %292 = vmatpush1.bf16.msra.mxu0 0
  %293 = vmatprep.subr.bf16.mxu0 0
  %294 = vmatpush1.bf16.msra.mxu0 0
  %295 = vmatprep.subr.bf16.mxu0 0
  %296 = vmatpush1.bf16.msra.mxu0 0
  %297 = vmatprep.subr.bf16.mxu0 0
  %298 = vmatpush1.bf16.msra.mxu0 0
  %299 = vmatprep.subr.bf16.mxu0 0
  %300 = vmatpush1.bf16.msra.mxu0 0
  %301 = vmatprep.subr.bf16.mxu0 0
  %302 = vmatpush1.bf16.msra.mxu0 0
  %303 = vmatprep.mubr.bf16.mxu0 0
  %304 = vmatmul.mubr.bf16.gmra.mrb[0].mxu0 %v175
  %v305 = vpop.f32.mrb[0].mxu0
  %v306 = vadd.f32 0.0, %v305
  %v307 = vpop.f32.mrb[0].mxu0
  %v308 = vpop.f32.mrb[0].mxu0
  %v309 = vadd.f32 0.0, %v308
  %v310 = vpop.f32.mrb[0].mxu0
  %311 = vmatprep.mubr.bf16.mxu0 0
  %312 = vmatmul.mubr.bf16.gmra.mrb[0].mxu0 %v176
  %v313 = vpop.f32.mrb[0].mxu0
  %v314 = vadd.f32 0.0, %v313
  %v315 = vpop.f32.mrb[0].mxu0
  %v316 = vpop.f32.mrb[0].mxu0
  %v317 = vadd.f32 0.0, %v316
  %v318 = vpop.f32.mrb[0].mxu0
  %319 = vmatprep.mubr.bf16.mxu0 0
  %320 = vmatmul.mubr.bf16.gmra.mrb[0].mxu0 %v177
  %v321 = vpop.f32.mrb[0].mxu0
  %v322 = vadd.f32 0.0, %v321
  %v323 = vpop.f32.mrb[0].mxu0
  %v324 = vpop.f32.mrb[0].mxu0
  %v325 = vadd.f32 0.0, %v324
  %v326 = vpop.f32.mrb[0].mxu0
  %327 = vmatprep.mubr.bf16.mxu0 0
  %328 = vmatmul.mubr.bf16.gmra.mrb[0].mxu0 %v178
  %v329 = vpop.f32.mrb[0].mxu0
  %v330 = vadd.f32 0.0, %v329
  %v331 = vpop.f32.mrb[0].mxu0
  %v332 = vpop.f32.mrb[0].mxu0
  %v333 = vadd.f32 0.0, %v332
  %v334 = vpop.f32.mrb[0].mxu0
  %335 = vmatprep.mubr.bf16.mxu0 0
  %336 = vmatmul.mubr.bf16.gmra.mrb[0].mxu0 %v179
  %v337 = vpop.f32.mrb[0].mxu0
  %v338 = vadd.f32 0.0, %v337
  %v339 = vpop.f32.mrb[0].mxu0
  %v340 = vpop.f32.mrb[0].mxu0
  %v341 = vadd.f32 0.0, %v340
  %v342 = vpop.f32.mrb[0].mxu0
  %343 = vmatprep.mubr.bf16.mxu0 0
  %344 = vmatmul.mubr.bf16.gmra.mrb[0].mxu0 %v180
  %v345 = vpop.f32.mrb[0].mxu0
  %v346 = vadd.f32 0.0, %v345
  %v347 = vpop.f32.mrb[0].mxu0
  %v348 = vpop.f32.mrb[0].mxu0
  %v349 = vadd.f32 0.0, %v348
  %v350 = vpop.f32.mrb[0].mxu0
  %351 = vmatprep.mubr.bf16.mxu0 0
  %352 = vmatmul.mubr.bf16.gmra.mrb[0].mxu0 %v181
  %v353 = vpop.f32.mrb[0].mxu0
  %v354 = vadd.f32 0.0, %v353
  %v355 = vpop.f32.mrb[0].mxu0
  %v356 = vpop.f32.mrb[0].mxu0
  %v357 = vadd.f32 0.0, %v356
  %v358 = vpop.f32.mrb[0].mxu0
  %359 = vmatprep.mubr.bf16.mxu0 0
  %360 = vmatmul.mubr.bf16.gmra.mrb[0].mxu0 %v182
  %v361 = vpop.f32.mrb[0].mxu0
  %v362 = vadd.f32 0.0, %v361
  %v363 = vpop.f32.mrb[0].mxu0
  %v364 = vpop.f32.mrb[0].mxu0
  %v365 = vadd.f32 0.0, %v364
  %v366 = vpop.f32.mrb[0].mxu0
  %367 = vdwg.mxu0
  %v384 = vunpack.c.l.b16 %v207
  %v385 = vunpack.c.l.b16 %v208
  %v386 = vunpack.c.l.b16 %v209
  %v387 = vunpack.c.l.b16 %v210
  %v388 = vunpack.c.l.b16 %v211
  %v389 = vunpack.c.l.b16 %v212
  %v390 = vunpack.c.l.b16 %v213
  %v391 = vunpack.c.l.b16 %v214
  %v392 = vunpack.c.l.b16 %v215
  %v393 = vunpack.c.l.b16 %v216
  %v394 = vunpack.c.l.b16 %v217
  %v395 = vunpack.c.l.b16 %v218
  %v396 = vunpack.c.l.b16 %v219
  %v397 = vunpack.c.l.b16 %v220
  %v398 = vunpack.c.l.b16 %v221
  %v399 = vunpack.c.l.b16 %v222
  %v400 = vpack.c.b16 %v385, %v384
  %v401 = vpack.c.b16 %v387, %v386
  %v402 = vpack.c.b16 %v389, %v388
  %v403 = vpack.c.b16 %v391, %v390
  %v404 = vpack.c.b16 %v393, %v392
  %v405 = vpack.c.b16 %v395, %v394
  %v406 = vpack.c.b16 %v397, %v396
  %v407 = vpack.c.b16 %v399, %v398
  %416 = vmatprep.subr.bf16.mxu0 0
  %417 = vmatpush1.bf16.msra.mxu0 %v400
  %418 = vmatprep.subr.bf16.mxu0 0
  %419 = vmatpush1.bf16.msra.mxu0 %v401
  %420 = vmatprep.subr.bf16.mxu0 0
  %421 = vmatpush1.bf16.msra.mxu0 %v402
  %422 = vmatprep.subr.bf16.mxu0 0
  %423 = vmatpush1.bf16.msra.mxu0 %v403
  %424 = vmatprep.subr.bf16.mxu0 0
  %425 = vmatpush1.bf16.msra.mxu0 %v404
  %426 = vmatprep.subr.bf16.mxu0 0
  %427 = vmatpush1.bf16.msra.mxu0 %v405
  %428 = vmatprep.subr.bf16.mxu0 0
  %429 = vmatpush1.bf16.msra.mxu0 %v406
  %430 = vmatprep.subr.bf16.mxu0 0
  %431 = vmatpush1.bf16.msra.mxu0 %v407
  %432 = vmatprep.subr.bf16.mxu0 0
  %433 = vmatpush1.bf16.msra.mxu0 0
  %434 = vmatprep.subr.bf16.mxu0 0
  %435 = vmatpush1.bf16.msra.mxu0 0
  %436 = vmatprep.subr.bf16.mxu0 0
  %437 = vmatpush1.bf16.msra.mxu0 0
  %438 = vmatprep.subr.bf16.mxu0 0
  %439 = vmatpush1.bf16.msra.mxu0 0
  %440 = vmatprep.subr.bf16.mxu0 0
  %441 = vmatpush1.bf16.msra.mxu0 0
  %442 = vmatprep.subr.bf16.mxu0 0
  %443 = vmatpush1.bf16.msra.mxu0 0
  %444 = vmatprep.subr.bf16.mxu0 0
  %445 = vmatpush1.bf16.msra.mxu0 0
  %446 = vmatprep.subr.bf16.mxu0 0
  %447 = vmatpush1.bf16.msra.mxu0 0
  %448 = vmatprep.mubr.bf16.mxu0 0
  %449 = vmatmul.mubr.bf16.gmra.mrb[0].mxu0 %v183
  %v450 = vpop.f32.mrb[0].mxu0
  %v451 = vadd.f32 0.0, %v450
  %v452 = vpop.f32.mrb[0].mxu0
  %v453 = vpop.f32.mrb[0].mxu0
  %v454 = vadd.f32 0.0, %v453
  %v455 = vpop.f32.mrb[0].mxu0
  %456 = vmatprep.mubr.bf16.mxu0 0
  %457 = vmatmul.mubr.bf16.gmra.mrb[0].mxu0 %v184
  %v458 = vpop.f32.mrb[0].mxu0
  %v459 = vadd.f32 0.0, %v458
  %v460 = vpop.f32.mrb[0].mxu0
  %v461 = vpop.f32.mrb[0].mxu0
  %v462 = vadd.f32 0.0, %v461
  %v463 = vpop.f32.mrb[0].mxu0
  %464 = vmatprep.mubr.bf16.mxu0 0
  %465 = vmatmul.mubr.bf16.gmra.mrb[0].mxu0 %v185
  %v466 = vpop.f32.mrb[0].mxu0
  %v467 = vadd.f32 0.0, %v466
  %v468 = vpop.f32.mrb[0].mxu0
  %v469 = vpop.f32.mrb[0].mxu0
  %v470 = vadd.f32 0.0, %v469
  %v471 = vpop.f32.mrb[0].mxu0
  %472 = vmatprep.mubr.bf16.mxu0 0
  %473 = vmatmul.mubr.bf16.gmra.mrb[0].mxu0 %v186
  %v474 = vpop.f32.mrb[0].mxu0
  %v475 = vadd.f32 0.0, %v474
  %v476 = vpop.f32.mrb[0].mxu0
  %v477 = vpop.f32.mrb[0].mxu0
  %v478 = vadd.f32 0.0, %v477
  %v479 = vpop.f32.mrb[0].mxu0
  %480 = vmatprep.mubr.bf16.mxu0 0
  %481 = vmatmul.mubr.bf16.gmra.mrb[0].mxu0 %v187
  %v482 = vpop.f32.mrb[0].mxu0
  %v483 = vadd.f32 0.0, %v482
  %v484 = vpop.f32.mrb[0].mxu0
  %v485 = vpop.f32.mrb[0].mxu0
  %v486 = vadd.f32 0.0, %v485
  %v487 = vpop.f32.mrb[0].mxu0
  %488 = vmatprep.mubr.bf16.mxu0 0
  %489 = vmatmul.mubr.bf16.gmra.mrb[0].mxu0 %v188
  %v490 = vpop.f32.mrb[0].mxu0
  %v491 = vadd.f32 0.0, %v490
  %v492 = vpop.f32.mrb[0].mxu0
  %v493 = vpop.f32.mrb[0].mxu0
  %v494 = vadd.f32 0.0, %v493
  %v495 = vpop.f32.mrb[0].mxu0
  %496 = vmatprep.mubr.bf16.mxu0 0
  %497 = vmatmul.mubr.bf16.gmra.mrb[0].mxu0 %v189
  %v498 = vpop.f32.mrb[0].mxu0
  %v499 = vadd.f32 0.0, %v498
  %v500 = vpop.f32.mrb[0].mxu0
  %v501 = vpop.f32.mrb[0].mxu0
  %v502 = vadd.f32 0.0, %v501
  %v503 = vpop.f32.mrb[0].mxu0
  %504 = vmatprep.mubr.bf16.mxu0 0
  %505 = vmatmul.mubr.bf16.gmra.mrb[0].mxu0 %v190
  %v506 = vpop.f32.mrb[0].mxu0
  %v507 = vadd.f32 0.0, %v506
  %v508 = vpop.f32.mrb[0].mxu0
  %v509 = vpop.f32.mrb[0].mxu0
  %v510 = vadd.f32 0.0, %v509
  %v511 = vpop.f32.mrb[0].mxu0
  %512 = vdwg.mxu0
  %v513 = vsub.f32 %v306, %v451
  %v514 = vsub.f32 %v309, %v454
  %v515 = vsub.f32 %v314, %v459
  %v516 = vsub.f32 %v317, %v462
  %v517 = vsub.f32 %v322, %v467
  %v518 = vsub.f32 %v325, %v470
  %v519 = vsub.f32 %v330, %v475
  %v520 = vsub.f32 %v333, %v478
  %v521 = vsub.f32 %v338, %v483
  %v522 = vsub.f32 %v341, %v486
  %v523 = vsub.f32 %v346, %v491
  %v524 = vsub.f32 %v349, %v494
  %v525 = vsub.f32 %v354, %v499
  %v526 = vsub.f32 %v357, %v502
  %v527 = vsub.f32 %v362, %v507
  %v528 = vsub.f32 %v365, %v510
  %529 = vmatprep.subr.bf16.mxu0 0
  %530 = vmatpush1.bf16.msra.mxu0 %v400
  %531 = vmatprep.subr.bf16.mxu0 0
  %532 = vmatpush1.bf16.msra.mxu0 %v401
  %533 = vmatprep.subr.bf16.mxu0 0
  %534 = vmatpush1.bf16.msra.mxu0 %v402
  %535 = vmatprep.subr.bf16.mxu0 0
  %536 = vmatpush1.bf16.msra.mxu0 %v403
  %537 = vmatprep.subr.bf16.mxu0 0
  %538 = vmatpush1.bf16.msra.mxu0 %v404
  %539 = vmatprep.subr.bf16.mxu0 0
  %540 = vmatpush1.bf16.msra.mxu0 %v405
  %541 = vmatprep.subr.bf16.mxu0 0
  %542 = vmatpush1.bf16.msra.mxu0 %v406
  %543 = vmatprep.subr.bf16.mxu0 0
  %544 = vmatpush1.bf16.msra.mxu0 %v407
  %545 = vmatprep.subr.bf16.mxu0 0
  %546 = vmatpush1.bf16.msra.mxu0 0
  %547 = vmatprep.subr.bf16.mxu0 0
  %548 = vmatpush1.bf16.msra.mxu0 0
  %549 = vmatprep.subr.bf16.mxu0 0
  %550 = vmatpush1.bf16.msra.mxu0 0
  %551 = vmatprep.subr.bf16.mxu0 0
  %552 = vmatpush1.bf16.msra.mxu0 0
  %553 = vmatprep.subr.bf16.mxu0 0
  %554 = vmatpush1.bf16.msra.mxu0 0
  %555 = vmatprep.subr.bf16.mxu0 0
  %556 = vmatpush1.bf16.msra.mxu0 0
  %557 = vmatprep.subr.bf16.mxu0 0
  %558 = vmatpush1.bf16.msra.mxu0 0
  %559 = vmatprep.subr.bf16.mxu0 0
  %560 = vmatpush1.bf16.msra.mxu0 0
  %561 = vmatprep.mubr.bf16.mxu0 0
  %562 = vmatmul.mubr.bf16.gmra.mrb[0].mxu0 %v175
  %v563 = vpop.f32.mrb[0].mxu0
  %v564 = vadd.f32 0.0, %v563
  %v565 = vpop.f32.mrb[0].mxu0
  %v566 = vpop.f32.mrb[0].mxu0
  %v567 = vadd.f32 0.0, %v566
  %v568 = vpop.f32.mrb[0].mxu0
  %569 = vmatprep.mubr.bf16.mxu0 0
  %570 = vmatmul.mubr.bf16.gmra.mrb[0].mxu0 %v176
  %v571 = vpop.f32.mrb[0].mxu0
  %v572 = vadd.f32 0.0, %v571
  %v573 = vpop.f32.mrb[0].mxu0
  %v574 = vpop.f32.mrb[0].mxu0
  %v575 = vadd.f32 0.0, %v574
  %v576 = vpop.f32.mrb[0].mxu0
  %577 = vmatprep.mubr.bf16.mxu0 0
  %578 = vmatmul.mubr.bf16.gmra.mrb[0].mxu0 %v177
  %v579 = vpop.f32.mrb[0].mxu0
  %v580 = vadd.f32 0.0, %v579
  %v581 = vpop.f32.mrb[0].mxu0
  %v582 = vpop.f32.mrb[0].mxu0
  %v583 = vadd.f32 0.0, %v582
  %v584 = vpop.f32.mrb[0].mxu0
  %585 = vmatprep.mubr.bf16.mxu0 0
  %586 = vmatmul.mubr.bf16.gmra.mrb[0].mxu0 %v178
  %v587 = vpop.f32.mrb[0].mxu0
  %v588 = vadd.f32 0.0, %v587
  %v589 = vpop.f32.mrb[0].mxu0
  %v590 = vpop.f32.mrb[0].mxu0
  %v591 = vadd.f32 0.0, %v590
  %v592 = vpop.f32.mrb[0].mxu0
  %593 = vmatprep.mubr.bf16.mxu0 0
  %594 = vmatmul.mubr.bf16.gmra.mrb[0].mxu0 %v179
  %v595 = vpop.f32.mrb[0].mxu0
  %v596 = vadd.f32 0.0, %v595
  %v597 = vpop.f32.mrb[0].mxu0
  %v598 = vpop.f32.mrb[0].mxu0
  %v599 = vadd.f32 0.0, %v598
  %v600 = vpop.f32.mrb[0].mxu0
  %601 = vmatprep.mubr.bf16.mxu0 0
  %602 = vmatmul.mubr.bf16.gmra.mrb[0].mxu0 %v180
  %v603 = vpop.f32.mrb[0].mxu0
  %v604 = vadd.f32 0.0, %v603
  %v605 = vpop.f32.mrb[0].mxu0
  %v606 = vpop.f32.mrb[0].mxu0
  %v607 = vadd.f32 0.0, %v606
  %v608 = vpop.f32.mrb[0].mxu0
  %609 = vmatprep.mubr.bf16.mxu0 0
  %610 = vmatmul.mubr.bf16.gmra.mrb[0].mxu0 %v181
  %v611 = vpop.f32.mrb[0].mxu0
  %v612 = vadd.f32 0.0, %v611
  %v613 = vpop.f32.mrb[0].mxu0
  %v614 = vpop.f32.mrb[0].mxu0
  %v615 = vadd.f32 0.0, %v614
  %v616 = vpop.f32.mrb[0].mxu0
  %617 = vmatprep.mubr.bf16.mxu0 0
  %618 = vmatmul.mubr.bf16.gmra.mrb[0].mxu0 %v182
  %v619 = vpop.f32.mrb[0].mxu0
  %v620 = vadd.f32 0.0, %v619
  %v621 = vpop.f32.mrb[0].mxu0
  %v622 = vpop.f32.mrb[0].mxu0
  %v623 = vadd.f32 0.0, %v622
  %v624 = vpop.f32.mrb[0].mxu0
  %625 = vdwg.mxu0
  %626 = vmatprep.subr.bf16.mxu0 0
  %627 = vmatpush1.bf16.msra.mxu0 %v255
  %628 = vmatprep.subr.bf16.mxu0 0
  %629 = vmatpush1.bf16.msra.mxu0 %v256
  %630 = vmatprep.subr.bf16.mxu0 0
  %631 = vmatpush1.bf16.msra.mxu0 %v257
  %632 = vmatprep.subr.bf16.mxu0 0
  %633 = vmatpush1.bf16.msra.mxu0 %v258
  %634 = vmatprep.subr.bf16.mxu0 0
  %635 = vmatpush1.bf16.msra.mxu0 %v259
  %636 = vmatprep.subr.bf16.mxu0 0
  %637 = vmatpush1.bf16.msra.mxu0 %v260
  %638 = vmatprep.subr.bf16.mxu0 0
  %639 = vmatpush1.bf16.msra.mxu0 %v261
  %640 = vmatprep.subr.bf16.mxu0 0
  %641 = vmatpush1.bf16.msra.mxu0 %v262
  %642 = vmatprep.subr.bf16.mxu0 0
  %643 = vmatpush1.bf16.msra.mxu0 0
  %644 = vmatprep.subr.bf16.mxu0 0
  %645 = vmatpush1.bf16.msra.mxu0 0
  %646 = vmatprep.subr.bf16.mxu0 0
  %647 = vmatpush1.bf16.msra.mxu0 0
  %648 = vmatprep.subr.bf16.mxu0 0
  %649 = vmatpush1.bf16.msra.mxu0 0
  %650 = vmatprep.subr.bf16.mxu0 0
  %651 = vmatpush1.bf16.msra.mxu0 0
  %652 = vmatprep.subr.bf16.mxu0 0
  %653 = vmatpush1.bf16.msra.mxu0 0
  %654 = vmatprep.subr.bf16.mxu0 0
  %655 = vmatpush1.bf16.msra.mxu0 0
  %656 = vmatprep.subr.bf16.mxu0 0
  %657 = vmatpush1.bf16.msra.mxu0 0
  %658 = vmatprep.mubr.bf16.mxu0 0
  %659 = vmatmul.mubr.bf16.gmra.mrb[0].mxu0 %v183
  %v660 = vpop.f32.mrb[0].mxu0
  %v661 = vadd.f32 %v564, %v660
  %v662 = vpop.f32.mrb[0].mxu0
  %v663 = vpop.f32.mrb[0].mxu0
  %v664 = vadd.f32 %v567, %v663
  %v665 = vpop.f32.mrb[0].mxu0
  %666 = vmatprep.mubr.bf16.mxu0 0
  %667 = vmatmul.mubr.bf16.gmra.mrb[0].mxu0 %v184
  %v668 = vpop.f32.mrb[0].mxu0
  %v669 = vadd.f32 %v572, %v668
  %v670 = vpop.f32.mrb[0].mxu0
  %v671 = vpop.f32.mrb[0].mxu0
  %v672 = vadd.f32 %v575, %v671
  %v673 = vpop.f32.mrb[0].mxu0
  %674 = vmatprep.mubr.bf16.mxu0 0
  %675 = vmatmul.mubr.bf16.gmra.mrb[0].mxu0 %v185
  %v676 = vpop.f32.mrb[0].mxu0
  %v677 = vadd.f32 %v580, %v676
  %v678 = vpop.f32.mrb[0].mxu0
  %v679 = vpop.f32.mrb[0].mxu0
  %v680 = vadd.f32 %v583, %v679
  %v681 = vpop.f32.mrb[0].mxu0
  %682 = vmatprep.mubr.bf16.mxu0 0
  %683 = vmatmul.mubr.bf16.gmra.mrb[0].mxu0 %v186
  %v684 = vpop.f32.mrb[0].mxu0
  %v685 = vadd.f32 %v588, %v684
  %v686 = vpop.f32.mrb[0].mxu0
  %v687 = vpop.f32.mrb[0].mxu0
  %v688 = vadd.f32 %v591, %v687
  %v689 = vpop.f32.mrb[0].mxu0
  %690 = vmatprep.mubr.bf16.mxu0 0
  %691 = vmatmul.mubr.bf16.gmra.mrb[0].mxu0 %v187
  %v692 = vpop.f32.mrb[0].mxu0
  %v693 = vadd.f32 %v596, %v692
  %v694 = vpop.f32.mrb[0].mxu0
  %v695 = vpop.f32.mrb[0].mxu0
  %v696 = vadd.f32 %v599, %v695
  %v697 = vpop.f32.mrb[0].mxu0
  %698 = vmatprep.mubr.bf16.mxu0 0
  %699 = vmatmul.mubr.bf16.gmra.mrb[0].mxu0 %v188
  %v700 = vpop.f32.mrb[0].mxu0
  %v701 = vadd.f32 %v604, %v700
  %v702 = vpop.f32.mrb[0].mxu0
  %v703 = vpop.f32.mrb[0].mxu0
  %v704 = vadd.f32 %v607, %v703
  %v705 = vpop.f32.mrb[0].mxu0
  %706 = vmatprep.mubr.bf16.mxu0 0
  %707 = vmatmul.mubr.bf16.gmra.mrb[0].mxu0 %v189
  %v708 = vpop.f32.mrb[0].mxu0
  %v709 = vadd.f32 %v612, %v708
  %v710 = vpop.f32.mrb[0].mxu0
  %v711 = vpop.f32.mrb[0].mxu0
  %v712 = vadd.f32 %v615, %v711
  %v713 = vpop.f32.mrb[0].mxu0
  %714 = vmatprep.mubr.bf16.mxu0 0
  %715 = vmatmul.mubr.bf16.gmra.mrb[0].mxu0 %v190
  %v716 = vpop.f32.mrb[0].mxu0
  %v717 = vadd.f32 %v620, %v716
  %v718 = vpop.f32.mrb[0].mxu0
  %v719 = vpop.f32.mrb[0].mxu0
  %v720 = vadd.f32 %v623, %v719
  %v721 = vpop.f32.mrb[0].mxu0
  %722 = vdwg.mxu0
  %723 = vst [vmem:[%s5] sm:$0xff] %v513
  %724 = vst [vmem:[%s5 + $0x10] sm:$0xff] %v514
  %725 = vst [vmem:[%s5 + $0x20] sm:$0xff] %v515
  %726 = vst [vmem:[%s5 + $0x30] sm:$0xff] %v516
  %727 = vst [vmem:[%s5 + $0x40] sm:$0xff] %v517
  %728 = vst [vmem:[%s5 + $0x50] sm:$0xff] %v518
  %729 = vst [vmem:[%s5 + $0x60] sm:$0xff] %v519
  %730 = vst [vmem:[%s5 + $0x70] sm:$0xff] %v520
  %731 = vst [vmem:[%s5 + $0x80] sm:$0xff] %v521
  %732 = vst [vmem:[%s5 + $0x90] sm:$0xff] %v522
  %733 = vst [vmem:[%s5 + $0xa0] sm:$0xff] %v523
  %734 = vst [vmem:[%s5 + $0xb0] sm:$0xff] %v524
  %735 = vst [vmem:[%s5 + $0xc0] sm:$0xff] %v525
  %736 = vst [vmem:[%s5 + $0xd0] sm:$0xff] %v526
  %737 = vst [vmem:[%s5 + $0xe0] sm:$0xff] %v527
  %738 = vst [vmem:[%s5 + $0xf0] sm:$0xff] %v528
  %739 = vst [vmem:[%s5 + $0x8] sm:$0xff] %v661
  %740 = vst [vmem:[%s5 + $0x18] sm:$0xff] %v664
  %741 = vst [vmem:[%s5 + $0x28] sm:$0xff] %v669
  %742 = vst [vmem:[%s5 + $0x38] sm:$0xff] %v672
  %743 = vst [vmem:[%s5 + $0x48] sm:$0xff] %v677
  %744 = vst [vmem:[%s5 + $0x58] sm:$0xff] %v680
  %745 = vst [vmem:[%s5 + $0x68] sm:$0xff] %v685
  %746 = vst [vmem:[%s5 + $0x78] sm:$0xff] %v688
  %747 = vst [vmem:[%s5 + $0x88] sm:$0xff] %v693
  %748 = vst [vmem:[%s5 + $0x98] sm:$0xff] %v696
  %749 = vst [vmem:[%s5 + $0xa8] sm:$0xff] %v701
  %750 = vst [vmem:[%s5 + $0xb8] sm:$0xff] %v704
  %751 = vst [vmem:[%s5 + $0xc8] sm:$0xff] %v709
  %752 = vst [vmem:[%s5 + $0xd8] sm:$0xff] %v712
  %753 = vst [vmem:[%s5 + $0xe8] sm:$0xff] %v717
  %754 = vst [vmem:[%s5 + $0xf8] sm:$0xff] %v720
  %v755 = vlaneseq
  %v756 = vshrl.u32 %v755, 7
  %v757 = vadd.f32 %v513, %v514
  %v758 = vadd.f32 %v757, %v515
  %v759 = vadd.f32 %v758, %v516
  %v760 = vadd.f32 %v759, %v517
  %v761 = vadd.f32 %v760, %v518
  %v762 = vadd.f32 %v761, %v519
  %v763 = vadd.f32 %v762, %v520
  %v764 = vadd.f32 %v763, %v521
  %v765 = vadd.f32 %v764, %v522
  %v766 = vadd.f32 %v765, %v523
  %v767 = vadd.f32 %v766, %v524
  %v768 = vadd.f32 %v767, %v525
  %v769 = vadd.f32 %v768, %v526
  %v770 = vadd.f32 %v769, %v527
  %v771 = vadd.f32 %v770, %v528
  %v772 = vrot.slane %v771, 4
  %v773 = vadd.f32 %v771, %v772
  %v774 = vrot.slane %v773, 2
  %v775 = vadd.f32 %v773, %v774
  %v776 = vrot.slane %v775, 1
  %v777 = vadd.f32 %v775, %v776
  %v778 = vmul.f32 %v513, %v513
  %v779 = vmul.f32 %v514, %v514
  %v780 = vmul.f32 %v515, %v515
  %v781 = vmul.f32 %v516, %v516
  %v782 = vmul.f32 %v517, %v517
  %v783 = vmul.f32 %v518, %v518
  %v784 = vmul.f32 %v519, %v519
  %v785 = vmul.f32 %v520, %v520
  %v786 = vmul.f32 %v521, %v521
  %v787 = vmul.f32 %v522, %v522
  %v788 = vmul.f32 %v523, %v523
  %v789 = vmul.f32 %v524, %v524
  %v790 = vmul.f32 %v525, %v525
  %v791 = vmul.f32 %v526, %v526
  %v792 = vmul.f32 %v527, %v527
  %v793 = vmul.f32 %v528, %v528
  %v794 = vadd.f32 %v778, %v779
  %v795 = vadd.f32 %v794, %v780
  %v796 = vadd.f32 %v795, %v781
  %v797 = vadd.f32 %v796, %v782
  %v798 = vadd.f32 %v797, %v783
  %v799 = vadd.f32 %v798, %v784
  %v800 = vadd.f32 %v799, %v785
  %v801 = vadd.f32 %v800, %v786
  %v802 = vadd.f32 %v801, %v787
  %v803 = vadd.f32 %v802, %v788
  %v804 = vadd.f32 %v803, %v789
  %v805 = vadd.f32 %v804, %v790
  %v806 = vadd.f32 %v805, %v791
  %v807 = vadd.f32 %v806, %v792
  %v808 = vadd.f32 %v807, %v793
  %v809 = vrot.slane %v808, 4
  %v810 = vadd.f32 %v808, %v809
  %v811 = vrot.slane %v810, 2
  %v812 = vadd.f32 %v810, %v811
  %v813 = vrot.slane %v812, 1
  %v814 = vadd.f32 %v812, %v813
  %vm815 = vcmp.eq.s32.totalorder %v756, 0
  %vm816 = vcmp.eq.s32.totalorder %v756, 1
  %v817 = vsel %vm816, %v814, 0.0
  %v818 = vsel %vm815, %v777, %v817
  %819 = vst [vmem:[%s6] sm:$0xff] %v818
  %v820 = vadd.f32 %v661, %v664
  %v821 = vadd.f32 %v820, %v669
  %v822 = vadd.f32 %v821, %v672
  %v823 = vadd.f32 %v822, %v677
  %v824 = vadd.f32 %v823, %v680
  %v825 = vadd.f32 %v824, %v685
  %v826 = vadd.f32 %v825, %v688
  %v827 = vadd.f32 %v826, %v693
  %v828 = vadd.f32 %v827, %v696
  %v829 = vadd.f32 %v828, %v701
  %v830 = vadd.f32 %v829, %v704
  %v831 = vadd.f32 %v830, %v709
  %v832 = vadd.f32 %v831, %v712
  %v833 = vadd.f32 %v832, %v717
  %v834 = vadd.f32 %v833, %v720
  %v835 = vrot.slane %v834, 4
  %v836 = vadd.f32 %v834, %v835
  %v837 = vrot.slane %v836, 2
  %v838 = vadd.f32 %v836, %v837
  %v839 = vrot.slane %v838, 1
  %v840 = vadd.f32 %v838, %v839
  %v841 = vmul.f32 %v661, %v661
  %v842 = vmul.f32 %v664, %v664
  %v843 = vmul.f32 %v669, %v669
  %v844 = vmul.f32 %v672, %v672
  %v845 = vmul.f32 %v677, %v677
  %v846 = vmul.f32 %v680, %v680
  %v847 = vmul.f32 %v685, %v685
  %v848 = vmul.f32 %v688, %v688
  %v849 = vmul.f32 %v693, %v693
  %v850 = vmul.f32 %v696, %v696
  %v851 = vmul.f32 %v701, %v701
  %v852 = vmul.f32 %v704, %v704
  %v853 = vmul.f32 %v709, %v709
  %v854 = vmul.f32 %v712, %v712
  %v855 = vmul.f32 %v717, %v717
  %v856 = vmul.f32 %v720, %v720
  %v857 = vadd.f32 %v841, %v842
  %v858 = vadd.f32 %v857, %v843
  %v859 = vadd.f32 %v858, %v844
  %v860 = vadd.f32 %v859, %v845
  %v861 = vadd.f32 %v860, %v846
  %v862 = vadd.f32 %v861, %v847
  %v863 = vadd.f32 %v862, %v848
  %v864 = vadd.f32 %v863, %v849
  %v865 = vadd.f32 %v864, %v850
  %v866 = vadd.f32 %v865, %v851
  %v867 = vadd.f32 %v866, %v852
  %v868 = vadd.f32 %v867, %v853
  %v869 = vadd.f32 %v868, %v854
  %v870 = vadd.f32 %v869, %v855
  %v871 = vadd.f32 %v870, %v856
  %v872 = vrot.slane %v871, 4
  %v873 = vadd.f32 %v871, %v872
  %v874 = vrot.slane %v873, 2
  %v875 = vadd.f32 %v873, %v874
  %v876 = vrot.slane %v875, 1
  %v877 = vadd.f32 %v875, %v876
  %v878 = vsel %vm816, %v877, 0.0
  %v879 = vsel %vm815, %v840, %v878
  %880 = vst [vmem:[%s6 + $0x8] sm:$0xff] %v879
  // Predicated region
  $region22: #{bottleneck_forward.9} parent=0 // pred_check
    _
  $region23: #{bottleneck_forward.9} parent=0 // pred_check_branch
    %882 = sbr.rel (0) target = $region25
  $region24: #{bottleneck_forward.9} parent=0 // pred_region
    _
  $region25: #{bottleneck_forward.9} parent=0 // pred_fallthru
    _
  // Predicated region
  $region26: #{bottleneck_forward.9} parent=0 // pred_check
    _
  $region27: #{bottleneck_forward.9} parent=0 // pred_check_branch
    %884 = sbr.rel (0) target = $region29
  $region28: #{bottleneck_forward.9} parent=0 // pred_region
    _
  $region29: #{bottleneck_forward.9} parent=0 // pred_fallthru
    _
  // Predicated region
  $region30: #{bottleneck_forward.9} parent=0 // pred_check
    _
  $region31: #{bottleneck_forward.9} parent=0 // pred_check_branch
    %886 = sbr.rel (0) target = $region33
  $region32: #{bottleneck_forward.9} parent=0 // pred_region
    _
  $region33: #{bottleneck_forward.9} parent=0 // pred_fallthru
    _
  // Predicated region
  $region34: #{bottleneck_forward.9} parent=0 // pred_check
    _
  $region35: #{bottleneck_forward.9} parent=0 // pred_check_branch
    %888 = sbr.rel (0) target = $region37
  $region36: #{bottleneck_forward.9} parent=0 // pred_region
    _
  $region37: #{bottleneck_forward.9} parent=0 // pred_fallthru
    _

// kernel: bottleneck_forward.11
$region0: #{bottleneck_forward.11}
  #allocation0 [shape = 'u32[]', space=smem, size = 0x4, offset = 0x4, fixed_abs, tag = 'smem constant byte address 0x4 - core index']
  #allocation1 [shape = 'u32[144,128]{1,0:T(1,128)}', space=vmem, size = 0x12000, scoped, tag = 'internal scratch']
  %s0 = inlined_call_operand.vmem [shape: f32[128,256], index: 0, kind: input, shape index: {}]
  %s1 = inlined_call_operand.vmem [shape: f32[1,256], index: 1, kind: input, shape index: {}]
  %s2 = inlined_call_operand.vmem [shape: f32[1,256], index: 2, kind: input, shape index: {}]
  %s3 = inlined_call_operand.vmem [shape: f32[128,256], index: 3, kind: input, shape index: {}]
  %s4 = inlined_call_operand.vmem [shape: f32[1,256], index: 4, kind: input, shape index: {}]
  %s5 = inlined_call_operand.vmem [shape: f32[1,256], index: 5, kind: input, shape index: {}]
  %s6 = inlined_call_operand.vmem [shape: f32[128,256], index: 6, kind: output, shape index: {}]
  %s7 = sld [smem:[#allocation0]]
  $region34: #{bottleneck_forward.11} parent=0
    _
  %s9 = ssub.s32 1, %s7
  %s10 = scalar_select 0, %s9, %s7
  // Predicated region
  $region2: #{bottleneck_forward.11} parent=0 // pred_check
    _
  $region3: #{bottleneck_forward.11} parent=0 // pred_check_branch
    %12 = sbr.rel (0) target = $region5
  $region4: #{bottleneck_forward.11} parent=0 // pred_region
    _
  $region5: #{bottleneck_forward.11} parent=0 // pred_fallthru
    _
  // Predicated region
  $region6: #{bottleneck_forward.11} parent=0 // pred_check
    _
  $region7: #{bottleneck_forward.11} parent=0 // pred_check_branch
    %14 = sbr.rel (0) target = $region9
  $region8: #{bottleneck_forward.11} parent=0 // pred_region
    _
  $region9: #{bottleneck_forward.11} parent=0 // pred_fallthru
    _
  // Predicated region
  $region10: #{bottleneck_forward.11} parent=0 // pred_check
    _
  $region11: #{bottleneck_forward.11} parent=0 // pred_check_branch
    %16 = sbr.rel (0) target = $region13
  $region12: #{bottleneck_forward.11} parent=0 // pred_region
    _
  $region13: #{bottleneck_forward.11} parent=0 // pred_fallthru
    _
  // Predicated region
  $region14: #{bottleneck_forward.11} parent=0 // pred_check
    _
  $region15: #{bottleneck_forward.11} parent=0 // pred_check_branch
    %18 = sbr.rel (0) target = $region17
  $region16: #{bottleneck_forward.11} parent=0 // pred_region
    _
  $region17: #{bottleneck_forward.11} parent=0 // pred_fallthru
    _
  // Predicated region
  $region18: #{bottleneck_forward.11} parent=0 // pred_check
    _
  $region19: #{bottleneck_forward.11} parent=0 // pred_check_branch
    %20 = sbr.rel (0) target = $region21
  $region20: #{bottleneck_forward.11} parent=0 // pred_region
    _
  $region21: #{bottleneck_forward.11} parent=0 // pred_fallthru
    _
  // Predicated region
  $region22: #{bottleneck_forward.11} parent=0 // pred_check
    _
  $region23: #{bottleneck_forward.11} parent=0 // pred_check_branch
    %22 = sbr.rel (0) target = $region25
  $region24: #{bottleneck_forward.11} parent=0 // pred_region
    _
  $region25: #{bottleneck_forward.11} parent=0 // pred_fallthru
    _
  %v23 = vld [vmem:[%s0] sm:$0xff]
  %v24 = vld [vmem:[%s0 + $0x8] sm:$0xff]
  %v25 = vld [vmem:[%s0 + $0x10] sm:$0xff]
  %v26 = vld [vmem:[%s0 + $0x18] sm:$0xff]
  %v27 = vld [vmem:[%s0 + $0x20] sm:$0xff]
  %v28 = vld [vmem:[%s0 + $0x28] sm:$0xff]
  %v29 = vld [vmem:[%s0 + $0x30] sm:$0xff]
  %v30 = vld [vmem:[%s0 + $0x38] sm:$0xff]
  %v31 = vld [vmem:[%s0 + $0x40] sm:$0xff]
  %v32 = vld [vmem:[%s0 + $0x48] sm:$0xff]
  %v33 = vld [vmem:[%s0 + $0x50] sm:$0xff]
  %v34 = vld [vmem:[%s0 + $0x58] sm:$0xff]
  %v35 = vld [vmem:[%s0 + $0x60] sm:$0xff]
  %v36 = vld [vmem:[%s0 + $0x68] sm:$0xff]
  %v37 = vld [vmem:[%s0 + $0x70] sm:$0xff]
  %v38 = vld [vmem:[%s0 + $0x78] sm:$0xff]
  %v39 = vld [vmem:[%s0 + $0x80] sm:$0xff]
  %v40 = vld [vmem:[%s0 + $0x88] sm:$0xff]
  %v41 = vld [vmem:[%s0 + $0x90] sm:$0xff]
  %v42 = vld [vmem:[%s0 + $0x98] sm:$0xff]
  %v43 = vld [vmem:[%s0 + $0xa0] sm:$0xff]
  %v44 = vld [vmem:[%s0 + $0xa8] sm:$0xff]
  %v45 = vld [vmem:[%s0 + $0xb0] sm:$0xff]
  %v46 = vld [vmem:[%s0 + $0xb8] sm:$0xff]
  %v47 = vld [vmem:[%s0 + $0xc0] sm:$0xff]
  %v48 = vld [vmem:[%s0 + $0xc8] sm:$0xff]
  %v49 = vld [vmem:[%s0 + $0xd0] sm:$0xff]
  %v50 = vld [vmem:[%s0 + $0xd8] sm:$0xff]
  %v51 = vld [vmem:[%s0 + $0xe0] sm:$0xff]
  %v52 = vld [vmem:[%s0 + $0xe8] sm:$0xff]
  %v53 = vld [vmem:[%s0 + $0xf0] sm:$0xff]
  %v54 = vld [vmem:[%s0 + $0xf8] sm:$0xff]
  %v55 = vld [vmem:[%s1] sm:$0x3]
  %v57 = vlaneseq
  %v58 = vshrl.u32 %v57, 7
  %v59 = vsub.s32 0, %v58
  %v60 = vrot.slane %v55, %v59
  %v61 = vlaneseq
  %v62 = vshrl.u32 %v61, 7
  %v63 = vsub.s32 1, %v62
  %v64 = vrot.slane %v55, %v63
  %v67 = vmul.f32 %v23, %v60
  %v68 = vmul.f32 %v24, %v64
  %v69 = vmul.f32 %v25, %v60
  %v70 = vmul.f32 %v26, %v64
  %v71 = vmul.f32 %v27, %v60
  %v72 = vmul.f32 %v28, %v64
  %v73 = vmul.f32 %v29, %v60
  %v74 = vmul.f32 %v30, %v64
  %v75 = vmul.f32 %v31, %v60
  %v76 = vmul.f32 %v32, %v64
  %v77 = vmul.f32 %v33, %v60
  %v78 = vmul.f32 %v34, %v64
  %v79 = vmul.f32 %v35, %v60
  %v80 = vmul.f32 %v36, %v64
  %v81 = vmul.f32 %v37, %v60
  %v82 = vmul.f32 %v38, %v64
  %v83 = vmul.f32 %v39, %v60
  %v84 = vmul.f32 %v40, %v64
  %v85 = vmul.f32 %v41, %v60
  %v86 = vmul.f32 %v42, %v64
  %v87 = vmul.f32 %v43, %v60
  %v88 = vmul.f32 %v44, %v64
  %v89 = vmul.f32 %v45, %v60
  %v90 = vmul.f32 %v46, %v64
  %v91 = vmul.f32 %v47, %v60
  %v92 = vmul.f32 %v48, %v64
  %v93 = vmul.f32 %v49, %v60
  %v94 = vmul.f32 %v50, %v64
  %v95 = vmul.f32 %v51, %v60
  %v96 = vmul.f32 %v52, %v64
  %v97 = vmul.f32 %v53, %v60
  %v98 = vmul.f32 %v54, %v64
  %v99 = vld [vmem:[%s2] sm:$0x3]
  %v101 = vlaneseq
  %v102 = vshrl.u32 %v101, 7
  %v103 = vsub.s32 0, %v102
  %v104 = vrot.slane %v99, %v103
  %v105 = vlaneseq
  %v106 = vshrl.u32 %v105, 7
  %v107 = vsub.s32 1, %v106
  %v108 = vrot.slane %v99, %v107
  %v111 = vadd.f32 %v67, %v104
  %v112 = vadd.f32 %v68, %v108
  %v113 = vadd.f32 %v69, %v104
  %v114 = vadd.f32 %v70, %v108
  %v115 = vadd.f32 %v71, %v104
  %v116 = vadd.f32 %v72, %v108
  %v117 = vadd.f32 %v73, %v104
  %v118 = vadd.f32 %v74, %v108
  %v119 = vadd.f32 %v75, %v104
  %v120 = vadd.f32 %v76, %v108
  %v121 = vadd.f32 %v77, %v104
  %v122 = vadd.f32 %v78, %v108
  %v123 = vadd.f32 %v79, %v104
  %v124 = vadd.f32 %v80, %v108
  %v125 = vadd.f32 %v81, %v104
  %v126 = vadd.f32 %v82, %v108
  %v127 = vadd.f32 %v83, %v104
  %v128 = vadd.f32 %v84, %v108
  %v129 = vadd.f32 %v85, %v104
  %v130 = vadd.f32 %v86, %v108
  %v131 = vadd.f32 %v87, %v104
  %v132 = vadd.f32 %v88, %v108
  %v133 = vadd.f32 %v89, %v104
  %v134 = vadd.f32 %v90, %v108
  %v135 = vadd.f32 %v91, %v104
  %v136 = vadd.f32 %v92, %v108
  %v137 = vadd.f32 %v93, %v104
  %v138 = vadd.f32 %v94, %v108
  %v139 = vadd.f32 %v95, %v104
  %v140 = vadd.f32 %v96, %v108
  %v141 = vadd.f32 %v97, %v104
  %v142 = vadd.f32 %v98, %v108
  %v143 = vld [vmem:[%s3] sm:$0xff]
  %v144 = vld [vmem:[%s3 + $0x8] sm:$0xff]
  %v145 = vld [vmem:[%s3 + $0x10] sm:$0xff]
  %v146 = vld [vmem:[%s3 + $0x18] sm:$0xff]
  %v147 = vld [vmem:[%s3 + $0x20] sm:$0xff]
  %v148 = vld [vmem:[%s3 + $0x28] sm:$0xff]
  %v149 = vld [vmem:[%s3 + $0x30] sm:$0xff]
  %v150 = vld [vmem:[%s3 + $0x38] sm:$0xff]
  %v151 = vld [vmem:[%s3 + $0x40] sm:$0xff]
  %v152 = vld [vmem:[%s3 + $0x48] sm:$0xff]
  %v153 = vld [vmem:[%s3 + $0x50] sm:$0xff]
  %v154 = vld [vmem:[%s3 + $0x58] sm:$0xff]
  %v155 = vld [vmem:[%s3 + $0x60] sm:$0xff]
  %v156 = vld [vmem:[%s3 + $0x68] sm:$0xff]
  %v157 = vld [vmem:[%s3 + $0x70] sm:$0xff]
  %v158 = vld [vmem:[%s3 + $0x78] sm:$0xff]
  %v159 = vld [vmem:[%s3 + $0x80] sm:$0xff]
  %v160 = vld [vmem:[%s3 + $0x88] sm:$0xff]
  %v161 = vld [vmem:[%s3 + $0x90] sm:$0xff]
  %v162 = vld [vmem:[%s3 + $0x98] sm:$0xff]
  %v163 = vld [vmem:[%s3 + $0xa0] sm:$0xff]
  %v164 = vld [vmem:[%s3 + $0xa8] sm:$0xff]
  %v165 = vld [vmem:[%s3 + $0xb0] sm:$0xff]
  %v166 = vld [vmem:[%s3 + $0xb8] sm:$0xff]
  %v167 = vld [vmem:[%s3 + $0xc0] sm:$0xff]
  %v168 = vld [vmem:[%s3 + $0xc8] sm:$0xff]
  %v169 = vld [vmem:[%s3 + $0xd0] sm:$0xff]
  %v170 = vld [vmem:[%s3 + $0xd8] sm:$0xff]
  %v171 = vld [vmem:[%s3 + $0xe0] sm:$0xff]
  %v172 = vld [vmem:[%s3 + $0xe8] sm:$0xff]
  %v173 = vld [vmem:[%s3 + $0xf0] sm:$0xff]
  %v174 = vld [vmem:[%s3 + $0xf8] sm:$0xff]
  %v175 = vld [vmem:[%s4] sm:$0x3]
  %v177 = vlaneseq
  %v178 = vshrl.u32 %v177, 7
  %v179 = vsub.s32 0, %v178
  %v180 = vrot.slane %v175, %v179
  %v181 = vlaneseq
  %v182 = vshrl.u32 %v181, 7
  %v183 = vsub.s32 1, %v182
  %v184 = vrot.slane %v175, %v183
  %v187 = vmul.f32 %v143, %v180
  %v188 = vmul.f32 %v144, %v184
  %v189 = vmul.f32 %v145, %v180
  %v190 = vmul.f32 %v146, %v184
  %v191 = vmul.f32 %v147, %v180
  %v192 = vmul.f32 %v148, %v184
  %v193 = vmul.f32 %v149, %v180
  %v194 = vmul.f32 %v150, %v184
  %v195 = vmul.f32 %v151, %v180
  %v196 = vmul.f32 %v152, %v184
  %v197 = vmul.f32 %v153, %v180
  %v198 = vmul.f32 %v154, %v184
  %v199 = vmul.f32 %v155, %v180
  %v200 = vmul.f32 %v156, %v184
  %v201 = vmul.f32 %v157, %v180
  %v202 = vmul.f32 %v158, %v184
  %v203 = vmul.f32 %v159, %v180
  %v204 = vmul.f32 %v160, %v184
  %v205 = vmul.f32 %v161, %v180
  %v206 = vmul.f32 %v162, %v184
  %v207 = vmul.f32 %v163, %v180
  %v208 = vmul.f32 %v164, %v184
  %v209 = vmul.f32 %v165, %v180
  %v210 = vmul.f32 %v166, %v184
  %v211 = vmul.f32 %v167, %v180
  %v212 = vmul.f32 %v168, %v184
  %v213 = vmul.f32 %v169, %v180
  %v214 = vmul.f32 %v170, %v184
  %v215 = vmul.f32 %v171, %v180
  %v216 = vmul.f32 %v172, %v184
  %v217 = vmul.f32 %v173, %v180
  %v218 = vmul.f32 %v174, %v184
  %v219 = vld [vmem:[%s5] sm:$0x3]
  %v221 = vlaneseq
  %v222 = vshrl.u32 %v221, 7
  %v223 = vsub.s32 0, %v222
  %v224 = vrot.slane %v219, %v223
  %v225 = vlaneseq
  %v226 = vshrl.u32 %v225, 7
  %v227 = vsub.s32 1, %v226
  %v228 = vrot.slane %v219, %v227
  %v231 = vadd.f32 %v187, %v224
  %v232 = vadd.f32 %v188, %v228
  %v233 = vadd.f32 %v189, %v224
  %v234 = vadd.f32 %v190, %v228
  %v235 = vadd.f32 %v191, %v224
  %v236 = vadd.f32 %v192, %v228
  %v237 = vadd.f32 %v193, %v224
  %v238 = vadd.f32 %v194, %v228
  %v239 = vadd.f32 %v195, %v224
  %v240 = vadd.f32 %v196, %v228
  %v241 = vadd.f32 %v197, %v224
  %v242 = vadd.f32 %v198, %v228
  %v243 = vadd.f32 %v199, %v224
  %v244 = vadd.f32 %v200, %v228
  %v245 = vadd.f32 %v201, %v224
  %v246 = vadd.f32 %v202, %v228
  %v247 = vadd.f32 %v203, %v224
  %v248 = vadd.f32 %v204, %v228
  %v249 = vadd.f32 %v205, %v224
  %v250 = vadd.f32 %v206, %v228
  %v251 = vadd.f32 %v207, %v224
  %v252 = vadd.f32 %v208, %v228
  %v253 = vadd.f32 %v209, %v224
  %v254 = vadd.f32 %v210, %v228
  %v255 = vadd.f32 %v211, %v224
  %v256 = vadd.f32 %v212, %v228
  %v257 = vadd.f32 %v213, %v224
  %v258 = vadd.f32 %v214, %v228
  %v259 = vadd.f32 %v215, %v224
  %v260 = vadd.f32 %v216, %v228
  %v261 = vadd.f32 %v217, %v224
  %v262 = vadd.f32 %v218, %v228
  %v263 = vadd.f32 %v111, %v231
  %v264 = vadd.f32 %v112, %v232
  %v265 = vadd.f32 %v113, %v233
  %v266 = vadd.f32 %v114, %v234
  %v267 = vadd.f32 %v115, %v235
  %v268 = vadd.f32 %v116, %v236
  %v269 = vadd.f32 %v117, %v237
  %v270 = vadd.f32 %v118, %v238
  %v271 = vadd.f32 %v119, %v239
  %v272 = vadd.f32 %v120, %v240
  %v273 = vadd.f32 %v121, %v241
  %v274 = vadd.f32 %v122, %v242
  %v275 = vadd.f32 %v123, %v243
  %v276 = vadd.f32 %v124, %v244
  %v277 = vadd.f32 %v125, %v245
  %v278 = vadd.f32 %v126, %v246
  %v279 = vadd.f32 %v127, %v247
  %v280 = vadd.f32 %v128, %v248
  %v281 = vadd.f32 %v129, %v249
  %v282 = vadd.f32 %v130, %v250
  %v283 = vadd.f32 %v131, %v251
  %v284 = vadd.f32 %v132, %v252
  %v285 = vadd.f32 %v133, %v253
  %v286 = vadd.f32 %v134, %v254
  %v287 = vadd.f32 %v135, %v255
  %v288 = vadd.f32 %v136, %v256
  %v289 = vadd.f32 %v137, %v257
  %v290 = vadd.f32 %v138, %v258
  %v291 = vadd.f32 %v139, %v259
  %v292 = vadd.f32 %v140, %v260
  %v293 = vadd.f32 %v141, %v261
  %v294 = vadd.f32 %v142, %v262
  %v295 = vmax.f32 %v263, 0.0
  %v296 = vmax.f32 %v264, 0.0
  %v297 = vmax.f32 %v265, 0.0
  %v298 = vmax.f32 %v266, 0.0
  %v299 = vmax.f32 %v267, 0.0
  %v300 = vmax.f32 %v268, 0.0
  %v301 = vmax.f32 %v269, 0.0
  %v302 = vmax.f32 %v270, 0.0
  %v303 = vmax.f32 %v271, 0.0
  %v304 = vmax.f32 %v272, 0.0
  %v305 = vmax.f32 %v273, 0.0
  %v306 = vmax.f32 %v274, 0.0
  %v307 = vmax.f32 %v275, 0.0
  %v308 = vmax.f32 %v276, 0.0
  %v309 = vmax.f32 %v277, 0.0
  %v310 = vmax.f32 %v278, 0.0
  %v311 = vmax.f32 %v279, 0.0
  %v312 = vmax.f32 %v280, 0.0
  %v313 = vmax.f32 %v281, 0.0
  %v314 = vmax.f32 %v282, 0.0
  %v315 = vmax.f32 %v283, 0.0
  %v316 = vmax.f32 %v284, 0.0
  %v317 = vmax.f32 %v285, 0.0
  %v318 = vmax.f32 %v286, 0.0
  %v319 = vmax.f32 %v287, 0.0
  %v320 = vmax.f32 %v288, 0.0
  %v321 = vmax.f32 %v289, 0.0
  %v322 = vmax.f32 %v290, 0.0
  %v323 = vmax.f32 %v291, 0.0
  %v324 = vmax.f32 %v292, 0.0
  %v325 = vmax.f32 %v293, 0.0
  %v326 = vmax.f32 %v294, 0.0
  %327 = vst [vmem:[%s6] sm:$0xff] %v295
  %328 = vst [vmem:[%s6 + $0x8] sm:$0xff] %v296
  %329 = vst [vmem:[%s6 + $0x10] sm:$0xff] %v297
  %330 = vst [vmem:[%s6 + $0x18] sm:$0xff] %v298
  %331 = vst [vmem:[%s6 + $0x20] sm:$0xff] %v299
  %332 = vst [vmem:[%s6 + $0x28] sm:$0xff] %v300
  %333 = vst [vmem:[%s6 + $0x30] sm:$0xff] %v301
  %334 = vst [vmem:[%s6 + $0x38] sm:$0xff] %v302
  %335 = vst [vmem:[%s6 + $0x40] sm:$0xff] %v303
  %336 = vst [vmem:[%s6 + $0x48] sm:$0xff] %v304
  %337 = vst [vmem:[%s6 + $0x50] sm:$0xff] %v305
  %338 = vst [vmem:[%s6 + $0x58] sm:$0xff] %v306
  %339 = vst [vmem:[%s6 + $0x60] sm:$0xff] %v307
  %340 = vst [vmem:[%s6 + $0x68] sm:$0xff] %v308
  %341 = vst [vmem:[%s6 + $0x70] sm:$0xff] %v309
  %342 = vst [vmem:[%s6 + $0x78] sm:$0xff] %v310
  %343 = vst [vmem:[%s6 + $0x80] sm:$0xff] %v311
  %344 = vst [vmem:[%s6 + $0x88] sm:$0xff] %v312
  %345 = vst [vmem:[%s6 + $0x90] sm:$0xff] %v313
  %346 = vst [vmem:[%s6 + $0x98] sm:$0xff] %v314
  %347 = vst [vmem:[%s6 + $0xa0] sm:$0xff] %v315
  %348 = vst [vmem:[%s6 + $0xa8] sm:$0xff] %v316
  %349 = vst [vmem:[%s6 + $0xb0] sm:$0xff] %v317
  %350 = vst [vmem:[%s6 + $0xb8] sm:$0xff] %v318
  %351 = vst [vmem:[%s6 + $0xc0] sm:$0xff] %v319
  %352 = vst [vmem:[%s6 + $0xc8] sm:$0xff] %v320
  %353 = vst [vmem:[%s6 + $0xd0] sm:$0xff] %v321
  %354 = vst [vmem:[%s6 + $0xd8] sm:$0xff] %v322
  %355 = vst [vmem:[%s6 + $0xe0] sm:$0xff] %v323
  %356 = vst [vmem:[%s6 + $0xe8] sm:$0xff] %v324
  %357 = vst [vmem:[%s6 + $0xf0] sm:$0xff] %v325
  %358 = vst [vmem:[%s6 + $0xf8] sm:$0xff] %v326
  // Predicated region
  $region26: #{bottleneck_forward.11} parent=0 // pred_check
    _
  $region27: #{bottleneck_forward.11} parent=0 // pred_check_branch
    %360 = sbr.rel (0) target = $region29
  $region28: #{bottleneck_forward.11} parent=0 // pred_region
    _
  $region29: #{bottleneck_forward.11} parent=0 // pred_fallthru
    _
  // Predicated region
  $region30: #{bottleneck_forward.11} parent=0 // pred_check
    _
  $region31: #{bottleneck_forward.11} parent=0 // pred_check_branch
    %362 = sbr.rel (0) target = $region33
  $region32: #{bottleneck_forward.11} parent=0 // pred_region
    _
  $region33: #{bottleneck_forward.11} parent=0 // pred_fallthru
    _

// kernel: bottleneck_forward.8
$region0: #{bottleneck_forward.8}
  #allocation0 [shape = 'u32[]', space=smem, size = 0x4, offset = 0x4, fixed_abs, tag = 'smem constant byte address 0x4 - core index']
  #allocation1 [shape = 'u32[144,128]{1,0:T(1,128)}', space=vmem, size = 0x12000, scoped, tag = 'internal scratch']
  %s0 = inlined_call_operand.vmem [shape: bf16[128,1152], index: 0, kind: input, shape index: {}]
  %s1 = inlined_call_operand.vmem [shape: bf16[128,1152], index: 1, kind: input, shape index: {}]
  %s2 = inlined_call_operand.vmem [shape: bf16[1152,128], index: 2, kind: input, shape index: {}]
  %s3 = inlined_call_operand.vmem [shape: bf16[1152,128], index: 3, kind: input, shape index: {}]
  %s4 = inlined_call_operand.vmem [shape: f32[128,256], index: 4, kind: output, shape index: {0}]
  %s5 = inlined_call_operand.vmem [shape: f32[8,256], index: 5, kind: output, shape index: {1}]
  %6 = xla_tuple %s4, %s5
  %s7 = sld [smem:[#allocation0]]
  $region34: #{bottleneck_forward.8} parent=0
    _
  %s9 = ssub.s32 1, %s7
  %s10 = scalar_select 0, %s9, %s7
  // Predicated region
  $region2: #{bottleneck_forward.8} parent=0 // pred_check
    _
  $region3: #{bottleneck_forward.8} parent=0 // pred_check_branch
    %12 = sbr.rel (0) target = $region5
  $region4: #{bottleneck_forward.8} parent=0 // pred_region
    _
  $region5: #{bottleneck_forward.8} parent=0 // pred_fallthru
    _
  // Predicated region
  $region6: #{bottleneck_forward.8} parent=0 // pred_check
    _
  $region7: #{bottleneck_forward.8} parent=0 // pred_check_branch
    %14 = sbr.rel (0) target = $region9
  $region8: #{bottleneck_forward.8} parent=0 // pred_region
    _
  $region9: #{bottleneck_forward.8} parent=0 // pred_fallthru
    _
  // Predicated region
  $region10: #{bottleneck_forward.8} parent=0 // pred_check
    _
  $region11: #{bottleneck_forward.8} parent=0 // pred_check_branch
    %16 = sbr.rel (0) target = $region13
  $region12: #{bottleneck_forward.8} parent=0 // pred_region
    _
  $region13: #{bottleneck_forward.8} parent=0 // pred_fallthru
    _
  // Predicated region
  $region14: #{bottleneck_forward.8} parent=0 // pred_check
    _
  $region15: #{bottleneck_forward.8} parent=0 // pred_check_branch
    %18 = sbr.rel (0) target = $region17
  $region16: #{bottleneck_forward.8} parent=0 // pred_region
    _
  $region17: #{bottleneck_forward.8} parent=0 // pred_fallthru
    _
  %v20 = vld [vmem:[%s0] sm:$0xff]
  %v21 = vld [vmem:[%s0 + $0x8] sm:$0xff]
  %v22 = vld [vmem:[%s0 + $0x10] sm:$0xff]
  %v23 = vld [vmem:[%s0 + $0x18] sm:$0xff]
  %v24 = vld [vmem:[%s0 + $0x20] sm:$0xf]
  %v25 = vld [vmem:[%s0 + $0x24] sm:$0xff]
  %v26 = vld [vmem:[%s0 + $0x2c] sm:$0xff]
  %v27 = vld [vmem:[%s0 + $0x34] sm:$0xff]
  %v28 = vld [vmem:[%s0 + $0x3c] sm:$0xff]
  %v29 = vld [vmem:[%s0 + $0x44] sm:$0xf]
  %v30 = vld [vmem:[%s0 + $0x48] sm:$0xff]
  %v31 = vld [vmem:[%s0 + $0x50] sm:$0xff]
  %v32 = vld [vmem:[%s0 + $0x58] sm:$0xff]
  %v33 = vld [vmem:[%s0 + $0x60] sm:$0xff]
  %v34 = vld [vmem:[%s0 + $0x68] sm:$0xf]
  %v35 = vld [vmem:[%s0 + $0x6c] sm:$0xff]
  %v36 = vld [vmem:[%s0 + $0x74] sm:$0xff]
  %v37 = vld [vmem:[%s0 + $0x7c] sm:$0xff]
  %v38 = vld [vmem:[%s0 + $0x84] sm:$0xff]
  %v39 = vld [vmem:[%s0 + $0x8c] sm:$0xf]
  %v40 = vld [vmem:[%s0 + $0x90] sm:$0xff]
  %v41 = vld [vmem:[%s0 + $0x98] sm:$0xff]
  %v42 = vld [vmem:[%s0 + $0xa0] sm:$0xff]
  %v43 = vld [vmem:[%s0 + $0xa8] sm:$0xff]
  %v44 = vld [vmem:[%s0 + $0xb0] sm:$0xf]
  %v45 = vld [vmem:[%s0 + $0xb4] sm:$0xff]
  %v46 = vld [vmem:[%s0 + $0xbc] sm:$0xff]
  %v47 = vld [vmem:[%s0 + $0xc4] sm:$0xff]
  %v48 = vld [vmem:[%s0 + $0xcc] sm:$0xff]
  %v49 = vld [vmem:[%s0 + $0xd4] sm:$0xf]
  %v50 = vld [vmem:[%s0 + $0xd8] sm:$0xff]
  %v51 = vld [vmem:[%s0 + $0xe0] sm:$0xff]
  %v52 = vld [vmem:[%s0 + $0xe8] sm:$0xff]
  %v53 = vld [vmem:[%s0 + $0xf0] sm:$0xff]
  %v54 = vld [vmem:[%s0 + $0xf8] sm:$0xf]
  %v55 = vld [vmem:[%s0 + $0xfc] sm:$0xff]
  %v56 = vld [vmem:[%s0 + $0x104] sm:$0xff]
  %v57 = vld [vmem:[%s0 + $0x10c] sm:$0xff]
  %v58 = vld [vmem:[%s0 + $0x114] sm:$0xff]
  %v59 = vld [vmem:[%s0 + $0x11c] sm:$0xf]
  %v60 = vld [vmem:[%s0 + $0x120] sm:$0xff]
  %v61 = vld [vmem:[%s0 + $0x128] sm:$0xff]
  %v62 = vld [vmem:[%s0 + $0x130] sm:$0xff]
  %v63 = vld [vmem:[%s0 + $0x138] sm:$0xff]
  %v64 = vld [vmem:[%s0 + $0x140] sm:$0xf]
  %v65 = vld [vmem:[%s0 + $0x144] sm:$0xff]
  %v66 = vld [vmem:[%s0 + $0x14c] sm:$0xff]
  %v67 = vld [vmem:[%s0 + $0x154] sm:$0xff]
  %v68 = vld [vmem:[%s0 + $0x15c] sm:$0xff]
  %v69 = vld [vmem:[%s0 + $0x164] sm:$0xf]
  %v70 = vld [vmem:[%s0 + $0x168] sm:$0xff]
  %v71 = vld [vmem:[%s0 + $0x170] sm:$0xff]
  %v72 = vld [vmem:[%s0 + $0x178] sm:$0xff]
  %v73 = vld [vmem:[%s0 + $0x180] sm:$0xff]
  %v74 = vld [vmem:[%s0 + $0x188] sm:$0xf]
  %v75 = vld [vmem:[%s0 + $0x18c] sm:$0xff]
  %v76 = vld [vmem:[%s0 + $0x194] sm:$0xff]
  %v77 = vld [vmem:[%s0 + $0x19c] sm:$0xff]
  %v78 = vld [vmem:[%s0 + $0x1a4] sm:$0xff]
  %v79 = vld [vmem:[%s0 + $0x1ac] sm:$0xf]
  %v80 = vld [vmem:[%s0 + $0x1b0] sm:$0xff]
  %v81 = vld [vmem:[%s0 + $0x1b8] sm:$0xff]
  %v82 = vld [vmem:[%s0 + $0x1c0] sm:$0xff]
  %v83 = vld [vmem:[%s0 + $0x1c8] sm:$0xff]
  %v84 = vld [vmem:[%s0 + $0x1d0] sm:$0xf]
  %v85 = vld [vmem:[%s0 + $0x1d4] sm:$0xff]
  %v86 = vld [vmem:[%s0 + $0x1dc] sm:$0xff]
  %v87 = vld [vmem:[%s0 + $0x1e4] sm:$0xff]
  %v88 = vld [vmem:[%s0 + $0x1ec] sm:$0xff]
  %v89 = vld [vmem:[%s0 + $0x1f4] sm:$0xf]
  %v90 = vld [vmem:[%s0 + $0x1f8] sm:$0xff]
  %v91 = vld [vmem:[%s0 + $0x200] sm:$0xff]
  %v92 = vld [vmem:[%s0 + $0x208] sm:$0xff]
  %v93 = vld [vmem:[%s0 + $0x210] sm:$0xff]
  %v94 = vld [vmem:[%s0 + $0x218] sm:$0xf]
  %v95 = vld [vmem:[%s0 + $0x21c] sm:$0xff]
  %v96 = vld [vmem:[%s0 + $0x224] sm:$0xff]
  %v97 = vld [vmem:[%s0 + $0x22c] sm:$0xff]
  %v98 = vld [vmem:[%s0 + $0x234] sm:$0xff]
  %v99 = vld [vmem:[%s0 + $0x23c] sm:$0xf]
  %v100 = vld [vmem:[%s1] sm:$0xff]
  %v101 = vld [vmem:[%s1 + $0x8] sm:$0xff]
  %v102 = vld [vmem:[%s1 + $0x10] sm:$0xff]
  %v103 = vld [vmem:[%s1 + $0x18] sm:$0xff]
  %v104 = vld [vmem:[%s1 + $0x20] sm:$0xf]
  %v105 = vld [vmem:[%s1 + $0x24] sm:$0xff]
  %v106 = vld [vmem:[%s1 + $0x2c] sm:$0xff]
  %v107 = vld [vmem:[%s1 + $0x34] sm:$0xff]
  %v108 = vld [vmem:[%s1 + $0x3c] sm:$0xff]
  %v109 = vld [vmem:[%s1 + $0x44] sm:$0xf]
  %v110 = vld [vmem:[%s1 + $0x48] sm:$0xff]
  %v111 = vld [vmem:[%s1 + $0x50] sm:$0xff]
  %v112 = vld [vmem:[%s1 + $0x58] sm:$0xff]
  %v113 = vld [vmem:[%s1 + $0x60] sm:$0xff]
  %v114 = vld [vmem:[%s1 + $0x68] sm:$0xf]
  %v115 = vld [vmem:[%s1 + $0x6c] sm:$0xff]
  %v116 = vld [vmem:[%s1 + $0x74] sm:$0xff]
  %v117 = vld [vmem:[%s1 + $0x7c] sm:$0xff]
  %v118 = vld [vmem:[%s1 + $0x84] sm:$0xff]
  %v119 = vld [vmem:[%s1 + $0x8c] sm:$0xf]
  %v120 = vld [vmem:[%s1 + $0x90] sm:$0xff]
  %v121 = vld [vmem:[%s1 + $0x98] sm:$0xff]
  %v122 = vld [vmem:[%s1 + $0xa0] sm:$0xff]
  %v123 = vld [vmem:[%s1 + $0xa8] sm:$0xff]
  %v124 = vld [vmem:[%s1 + $0xb0] sm:$0xf]
  %v125 = vld [vmem:[%s1 + $0xb4] sm:$0xff]
  %v126 = vld [vmem:[%s1 + $0xbc] sm:$0xff]
  %v127 = vld [vmem:[%s1 + $0xc4] sm:$0xff]
  %v128 = vld [vmem:[%s1 + $0xcc] sm:$0xff]
  %v129 = vld [vmem:[%s1 + $0xd4] sm:$0xf]
  %v130 = vld [vmem:[%s1 + $0xd8] sm:$0xff]
  %v131 = vld [vmem:[%s1 + $0xe0] sm:$0xff]
  %v132 = vld [vmem:[%s1 + $0xe8] sm:$0xff]
  %v133 = vld [vmem:[%s1 + $0xf0] sm:$0xff]
  %v134 = vld [vmem:[%s1 + $0xf8] sm:$0xf]
  %v135 = vld [vmem:[%s1 + $0xfc] sm:$0xff]
  %v136 = vld [vmem:[%s1 + $0x104] sm:$0xff]
  %v137 = vld [vmem:[%s1 + $0x10c] sm:$0xff]
  %v138 = vld [vmem:[%s1 + $0x114] sm:$0xff]
  %v139 = vld [vmem:[%s1 + $0x11c] sm:$0xf]
  %v140 = vld [vmem:[%s1 + $0x120] sm:$0xff]
  %v141 = vld [vmem:[%s1 + $0x128] sm:$0xff]
  %v142 = vld [vmem:[%s1 + $0x130] sm:$0xff]
  %v143 = vld [vmem:[%s1 + $0x138] sm:$0xff]
  %v144 = vld [vmem:[%s1 + $0x140] sm:$0xf]
  %v145 = vld [vmem:[%s1 + $0x144] sm:$0xff]
  %v146 = vld [vmem:[%s1 + $0x14c] sm:$0xff]
  %v147 = vld [vmem:[%s1 + $0x154] sm:$0xff]
  %v148 = vld [vmem:[%s1 + $0x15c] sm:$0xff]
  %v149 = vld [vmem:[%s1 + $0x164] sm:$0xf]
  %v150 = vld [vmem:[%s1 + $0x168] sm:$0xff]
  %v151 = vld [vmem:[%s1 + $0x170] sm:$0xff]
  %v152 = vld [vmem:[%s1 + $0x178] sm:$0xff]
  %v153 = vld [vmem:[%s1 + $0x180] sm:$0xff]
  %v154 = vld [vmem:[%s1 + $0x188] sm:$0xf]
  %v155 = vld [vmem:[%s1 + $0x18c] sm:$0xff]
  %v156 = vld [vmem:[%s1 + $0x194] sm:$0xff]
  %v157 = vld [vmem:[%s1 + $0x19c] sm:$0xff]
  %v158 = vld [vmem:[%s1 + $0x1a4] sm:$0xff]
  %v159 = vld [vmem:[%s1 + $0x1ac] sm:$0xf]
  %v160 = vld [vmem:[%s1 + $0x1b0] sm:$0xff]
  %v161 = vld [vmem:[%s1 + $0x1b8] sm:$0xff]
  %v162 = vld [vmem:[%s1 + $0x1c0] sm:$0xff]
  %v163 = vld [vmem:[%s1 + $0x1c8] sm:$0xff]
  %v164 = vld [vmem:[%s1 + $0x1d0] sm:$0xf]
  %v165 = vld [vmem:[%s1 + $0x1d4] sm:$0xff]
  %v166 = vld [vmem:[%s1 + $0x1dc] sm:$0xff]
  %v167 = vld [vmem:[%s1 + $0x1e4] sm:$0xff]
  %v168 = vld [vmem:[%s1 + $0x1ec] sm:$0xff]
  %v169 = vld [vmem:[%s1 + $0x1f4] sm:$0xf]
  %v170 = vld [vmem:[%s1 + $0x1f8] sm:$0xff]
  %v171 = vld [vmem:[%s1 + $0x200] sm:$0xff]
  %v172 = vld [vmem:[%s1 + $0x208] sm:$0xff]
  %v173 = vld [vmem:[%s1 + $0x210] sm:$0xff]
  %v174 = vld [vmem:[%s1 + $0x218] sm:$0xf]
  %v175 = vld [vmem:[%s1 + $0x21c] sm:$0xff]
  %v176 = vld [vmem:[%s1 + $0x224] sm:$0xff]
  %v177 = vld [vmem:[%s1 + $0x22c] sm:$0xff]
  %v178 = vld [vmem:[%s1 + $0x234] sm:$0xff]
  %v179 = vld [vmem:[%s1 + $0x23c] sm:$0xf]
  %v180 = vld [vmem:[%s2] sm:$0xf]
  %v181 = vld [vmem:[%s2 + $0x4] sm:$0xf]
  %v182 = vld [vmem:[%s2 + $0x8] sm:$0xf]
  %v183 = vld [vmem:[%s2 + $0xc] sm:$0xf]
  %v184 = vld [vmem:[%s2 + $0x10] sm:$0xf]
  %v185 = vld [vmem:[%s2 + $0x14] sm:$0xf]
  %v186 = vld [vmem:[%s2 + $0x18] sm:$0xf]
  %v187 = vld [vmem:[%s2 + $0x1c] sm:$0xf]
  %v188 = vld [vmem:[%s2 + $0x20] sm:$0xf]
  %v189 = vld [vmem:[%s2 + $0x24] sm:$0xf]
  %v190 = vld [vmem:[%s2 + $0x28] sm:$0xf]
  %v191 = vld [vmem:[%s2 + $0x2c] sm:$0xf]
  %v192 = vld [vmem:[%s2 + $0x30] sm:$0xf]
  %v193 = vld [vmem:[%s2 + $0x34] sm:$0xf]
  %v194 = vld [vmem:[%s2 + $0x38] sm:$0xf]
  %v195 = vld [vmem:[%s2 + $0x3c] sm:$0xf]
  %v196 = vld [vmem:[%s2 + $0x40] sm:$0xf]
  %v197 = vld [vmem:[%s2 + $0x44] sm:$0xf]
  %v198 = vld [vmem:[%s2 + $0x48] sm:$0xf]
  %v199 = vld [vmem:[%s2 + $0x4c] sm:$0xf]
  %v200 = vld [vmem:[%s2 + $0x50] sm:$0xf]
  %v201 = vld [vmem:[%s2 + $0x54] sm:$0xf]
  %v202 = vld [vmem:[%s2 + $0x58] sm:$0xf]
  %v203 = vld [vmem:[%s2 + $0x5c] sm:$0xf]
  %v204 = vld [vmem:[%s2 + $0x60] sm:$0xf]
  %v205 = vld [vmem:[%s2 + $0x64] sm:$0xf]
  %v206 = vld [vmem:[%s2 + $0x68] sm:$0xf]
  %v207 = vld [vmem:[%s2 + $0x6c] sm:$0xf]
  %v208 = vld [vmem:[%s2 + $0x70] sm:$0xf]
  %v209 = vld [vmem:[%s2 + $0x74] sm:$0xf]
  %v210 = vld [vmem:[%s2 + $0x78] sm:$0xf]
  %v211 = vld [vmem:[%s2 + $0x7c] sm:$0xf]
  %v212 = vld [vmem:[%s2 + $0x80] sm:$0xf]
  %v213 = vld [vmem:[%s2 + $0x84] sm:$0xf]
  %v214 = vld [vmem:[%s2 + $0x88] sm:$0xf]
  %v215 = vld [vmem:[%s2 + $0x8c] sm:$0xf]
  %v216 = vld [vmem:[%s2 + $0x90] sm:$0xf]
  %v217 = vld [vmem:[%s2 + $0x94] sm:$0xf]
  %v218 = vld [vmem:[%s2 + $0x98] sm:$0xf]
  %v219 = vld [vmem:[%s2 + $0x9c] sm:$0xf]
  %v220 = vld [vmem:[%s2 + $0xa0] sm:$0xf]
  %v221 = vld [vmem:[%s2 + $0xa4] sm:$0xf]
  %v222 = vld [vmem:[%s2 + $0xa8] sm:$0xf]
  %v223 = vld [vmem:[%s2 + $0xac] sm:$0xf]
  %v224 = vld [vmem:[%s2 + $0xb0] sm:$0xf]
  %v225 = vld [vmem:[%s2 + $0xb4] sm:$0xf]
  %v226 = vld [vmem:[%s2 + $0xb8] sm:$0xf]
  %v227 = vld [vmem:[%s2 + $0xbc] sm:$0xf]
  %v228 = vld [vmem:[%s2 + $0xc0] sm:$0xf]
  %v229 = vld [vmem:[%s2 + $0xc4] sm:$0xf]
  %v230 = vld [vmem:[%s2 + $0xc8] sm:$0xf]
  %v231 = vld [vmem:[%s2 + $0xcc] sm:$0xf]
  %v232 = vld [vmem:[%s2 + $0xd0] sm:$0xf]
  %v233 = vld [vmem:[%s2 + $0xd4] sm:$0xf]
  %v234 = vld [vmem:[%s2 + $0xd8] sm:$0xf]
  %v235 = vld [vmem:[%s2 + $0xdc] sm:$0xf]
  %v236 = vld [vmem:[%s2 + $0xe0] sm:$0xf]
  %v237 = vld [vmem:[%s2 + $0xe4] sm:$0xf]
  %v238 = vld [vmem:[%s2 + $0xe8] sm:$0xf]
  %v239 = vld [vmem:[%s2 + $0xec] sm:$0xf]
  %v240 = vld [vmem:[%s2 + $0xf0] sm:$0xf]
  %v241 = vld [vmem:[%s2 + $0xf4] sm:$0xf]
  %v242 = vld [vmem:[%s2 + $0xf8] sm:$0xf]
  %v243 = vld [vmem:[%s2 + $0xfc] sm:$0xf]
  %v244 = vld [vmem:[%s2 + $0x100] sm:$0xf]
  %v245 = vld [vmem:[%s2 + $0x104] sm:$0xf]
  %v246 = vld [vmem:[%s2 + $0x108] sm:$0xf]
  %v247 = vld [vmem:[%s2 + $0x10c] sm:$0xf]
  %v248 = vld [vmem:[%s2 + $0x110] sm:$0xf]
  %v249 = vld [vmem:[%s2 + $0x114] sm:$0xf]
  %v250 = vld [vmem:[%s2 + $0x118] sm:$0xf]
  %v251 = vld [vmem:[%s2 + $0x11c] sm:$0xf]
  %v252 = vld [vmem:[%s2 + $0x120] sm:$0xf]
  %v253 = vld [vmem:[%s2 + $0x124] sm:$0xf]
  %v254 = vld [vmem:[%s2 + $0x128] sm:$0xf]
  %v255 = vld [vmem:[%s2 + $0x12c] sm:$0xf]
  %v256 = vld [vmem:[%s2 + $0x130] sm:$0xf]
  %v257 = vld [vmem:[%s2 + $0x134] sm:$0xf]
  %v258 = vld [vmem:[%s2 + $0x138] sm:$0xf]
  %v259 = vld [vmem:[%s2 + $0x13c] sm:$0xf]
  %v260 = vld [vmem:[%s2 + $0x140] sm:$0xf]
  %v261 = vld [vmem:[%s2 + $0x144] sm:$0xf]
  %v262 = vld [vmem:[%s2 + $0x148] sm:$0xf]
  %v263 = vld [vmem:[%s2 + $0x14c] sm:$0xf]
  %v264 = vld [vmem:[%s2 + $0x150] sm:$0xf]
  %v265 = vld [vmem:[%s2 + $0x154] sm:$0xf]
  %v266 = vld [vmem:[%s2 + $0x158] sm:$0xf]
  %v267 = vld [vmem:[%s2 + $0x15c] sm:$0xf]
  %v268 = vld [vmem:[%s2 + $0x160] sm:$0xf]
  %v269 = vld [vmem:[%s2 + $0x164] sm:$0xf]
  %v270 = vld [vmem:[%s2 + $0x168] sm:$0xf]
  %v271 = vld [vmem:[%s2 + $0x16c] sm:$0xf]
  %v272 = vld [vmem:[%s2 + $0x170] sm:$0xf]
  %v273 = vld [vmem:[%s2 + $0x174] sm:$0xf]
  %v274 = vld [vmem:[%s2 + $0x178] sm:$0xf]
  %v275 = vld [vmem:[%s2 + $0x17c] sm:$0xf]
  %v276 = vld [vmem:[%s2 + $0x180] sm:$0xf]
  %v277 = vld [vmem:[%s2 + $0x184] sm:$0xf]
  %v278 = vld [vmem:[%s2 + $0x188] sm:$0xf]
  %v279 = vld [vmem:[%s2 + $0x18c] sm:$0xf]
  %v280 = vld [vmem:[%s2 + $0x190] sm:$0xf]
  %v281 = vld [vmem:[%s2 + $0x194] sm:$0xf]
  %v282 = vld [vmem:[%s2 + $0x198] sm:$0xf]
  %v283 = vld [vmem:[%s2 + $0x19c] sm:$0xf]
  %v284 = vld [vmem:[%s2 + $0x1a0] sm:$0xf]
  %v285 = vld [vmem:[%s2 + $0x1a4] sm:$0xf]
  %v286 = vld [vmem:[%s2 + $0x1a8] sm:$0xf]
  %v287 = vld [vmem:[%s2 + $0x1ac] sm:$0xf]
  %v288 = vld [vmem:[%s2 + $0x1b0] sm:$0xf]
  %v289 = vld [vmem:[%s2 + $0x1b4] sm:$0xf]
  %v290 = vld [vmem:[%s2 + $0x1b8] sm:$0xf]
  %v291 = vld [vmem:[%s2 + $0x1bc] sm:$0xf]
  %v292 = vld [vmem:[%s2 + $0x1c0] sm:$0xf]
  %v293 = vld [vmem:[%s2 + $0x1c4] sm:$0xf]
  %v294 = vld [vmem:[%s2 + $0x1c8] sm:$0xf]
  %v295 = vld [vmem:[%s2 + $0x1cc] sm:$0xf]
  %v296 = vld [vmem:[%s2 + $0x1d0] sm:$0xf]
  %v297 = vld [vmem:[%s2 + $0x1d4] sm:$0xf]
  %v298 = vld [vmem:[%s2 + $0x1d8] sm:$0xf]
  %v299 = vld [vmem:[%s2 + $0x1dc] sm:$0xf]
  %v300 = vld [vmem:[%s2 + $0x1e0] sm:$0xf]
  %v301 = vld [vmem:[%s2 + $0x1e4] sm:$0xf]
  %v302 = vld [vmem:[%s2 + $0x1e8] sm:$0xf]
  %v303 = vld [vmem:[%s2 + $0x1ec] sm:$0xf]
  %v304 = vld [vmem:[%s2 + $0x1f0] sm:$0xf]
  %v305 = vld [vmem:[%s2 + $0x1f4] sm:$0xf]
  %v306 = vld [vmem:[%s2 + $0x1f8] sm:$0xf]
  %v307 = vld [vmem:[%s2 + $0x1fc] sm:$0xf]
  %v308 = vld [vmem:[%s2 + $0x200] sm:$0xf]
  %v309 = vld [vmem:[%s2 + $0x204] sm:$0xf]
  %v310 = vld [vmem:[%s2 + $0x208] sm:$0xf]
  %v311 = vld [vmem:[%s2 + $0x20c] sm:$0xf]
  %v312 = vld [vmem:[%s2 + $0x210] sm:$0xf]
  %v313 = vld [vmem:[%s2 + $0x214] sm:$0xf]
  %v314 = vld [vmem:[%s2 + $0x218] sm:$0xf]
  %v315 = vld [vmem:[%s2 + $0x21c] sm:$0xf]
  %v316 = vld [vmem:[%s2 + $0x220] sm:$0xf]
  %v317 = vld [vmem:[%s2 + $0x224] sm:$0xf]
  %v318 = vld [vmem:[%s2 + $0x228] sm:$0xf]
  %v319 = vld [vmem:[%s2 + $0x22c] sm:$0xf]
  %v320 = vld [vmem:[%s2 + $0x230] sm:$0xf]
  %v321 = vld [vmem:[%s2 + $0x234] sm:$0xf]
  %v322 = vld [vmem:[%s2 + $0x238] sm:$0xf]
  %v323 = vld [vmem:[%s2 + $0x23c] sm:$0xf]
  %v324 = vld [vmem:[%s3] sm:$0xf]
  %v325 = vld [vmem:[%s3 + $0x4] sm:$0xf]
  %v326 = vld [vmem:[%s3 + $0x8] sm:$0xf]
  %v327 = vld [vmem:[%s3 + $0xc] sm:$0xf]
  %v328 = vld [vmem:[%s3 + $0x10] sm:$0xf]
  %v329 = vld [vmem:[%s3 + $0x14] sm:$0xf]
  %v330 = vld [vmem:[%s3 + $0x18] sm:$0xf]
  %v331 = vld [vmem:[%s3 + $0x1c] sm:$0xf]
  %v332 = vld [vmem:[%s3 + $0x20] sm:$0xf]
  %v333 = vld [vmem:[%s3 + $0x24] sm:$0xf]
  %v334 = vld [vmem:[%s3 + $0x28] sm:$0xf]
  %v335 = vld [vmem:[%s3 + $0x2c] sm:$0xf]
  %v336 = vld [vmem:[%s3 + $0x30] sm:$0xf]
  %v337 = vld [vmem:[%s3 + $0x34] sm:$0xf]
  %v338 = vld [vmem:[%s3 + $0x38] sm:$0xf]
  %v339 = vld [vmem:[%s3 + $0x3c] sm:$0xf]
  %v340 = vld [vmem:[%s3 + $0x40] sm:$0xf]
  %v341 = vld [vmem:[%s3 + $0x44] sm:$0xf]
  %v342 = vld [vmem:[%s3 + $0x48] sm:$0xf]
  %v343 = vld [vmem:[%s3 + $0x4c] sm:$0xf]
  %v344 = vld [vmem:[%s3 + $0x50] sm:$0xf]
  %v345 = vld [vmem:[%s3 + $0x54] sm:$0xf]
  %v346 = vld [vmem:[%s3 + $0x58] sm:$0xf]
  %v347 = vld [vmem:[%s3 + $0x5c] sm:$0xf]
  %v348 = vld [vmem:[%s3 + $0x60] sm:$0xf]
  %v349 = vld [vmem:[%s3 + $0x64] sm:$0xf]
  %v350 = vld [vmem:[%s3 + $0x68] sm:$0xf]
  %v351 = vld [vmem:[%s3 + $0x6c] sm:$0xf]
  %v352 = vld [vmem:[%s3 + $0x70] sm:$0xf]
  %v353 = vld [vmem:[%s3 + $0x74] sm:$0xf]
  %v354 = vld [vmem:[%s3 + $0x78] sm:$0xf]
  %v355 = vld [vmem:[%s3 + $0x7c] sm:$0xf]
  %v356 = vld [vmem:[%s3 + $0x80] sm:$0xf]
  %v357 = vld [vmem:[%s3 + $0x84] sm:$0xf]
  %v358 = vld [vmem:[%s3 + $0x88] sm:$0xf]
  %v359 = vld [vmem:[%s3 + $0x8c] sm:$0xf]
  %v360 = vld [vmem:[%s3 + $0x90] sm:$0xf]
  %v361 = vld [vmem:[%s3 + $0x94] sm:$0xf]
  %v362 = vld [vmem:[%s3 + $0x98] sm:$0xf]
  %v363 = vld [vmem:[%s3 + $0x9c] sm:$0xf]
  %v364 = vld [vmem:[%s3 + $0xa0] sm:$0xf]
  %v365 = vld [vmem:[%s3 + $0xa4] sm:$0xf]
  %v366 = vld [vmem:[%s3 + $0xa8] sm:$0xf]
  %v367 = vld [vmem:[%s3 + $0xac] sm:$0xf]
  %v368 = vld [vmem:[%s3 + $0xb0] sm:$0xf]
  %v369 = vld [vmem:[%s3 + $0xb4] sm:$0xf]
  %v370 = vld [vmem:[%s3 + $0xb8] sm:$0xf]
  %v371 = vld [vmem:[%s3 + $0xbc] sm:$0xf]
  %v372 = vld [vmem:[%s3 + $0xc0] sm:$0xf]
  %v373 = vld [vmem:[%s3 + $0xc4] sm:$0xf]
  %v374 = vld [vmem:[%s3 + $0xc8] sm:$0xf]
  %v375 = vld [vmem:[%s3 + $0xcc] sm:$0xf]
  %v376 = vld [vmem:[%s3 + $0xd0] sm:$0xf]
  %v377 = vld [vmem:[%s3 + $0xd4] sm:$0xf]
  %v378 = vld [vmem:[%s3 + $0xd8] sm:$0xf]
  %v379 = vld [vmem:[%s3 + $0xdc] sm:$0xf]
  %v380 = vld [vmem:[%s3 + $0xe0] sm:$0xf]
  %v381 = vld [vmem:[%s3 + $0xe4] sm:$0xf]
  %v382 = vld [vmem:[%s3 + $0xe8] sm:$0xf]
  %v383 = vld [vmem:[%s3 + $0xec] sm:$0xf]
  %v384 = vld [vmem:[%s3 + $0xf0] sm:$0xf]
  %v385 = vld [vmem:[%s3 + $0xf4] sm:$0xf]
  %v386 = vld [vmem:[%s3 + $0xf8] sm:$0xf]
  %v387 = vld [vmem:[%s3 + $0xfc] sm:$0xf]
  %v388 = vld [vmem:[%s3 + $0x100] sm:$0xf]
  %v389 = vld [vmem:[%s3 + $0x104] sm:$0xf]
  %v390 = vld [vmem:[%s3 + $0x108] sm:$0xf]
  %v391 = vld [vmem:[%s3 + $0x10c] sm:$0xf]
  %v392 = vld [vmem:[%s3 + $0x110] sm:$0xf]
  %v393 = vld [vmem:[%s3 + $0x114] sm:$0xf]
  %v394 = vld [vmem:[%s3 + $0x118] sm:$0xf]
  %v395 = vld [vmem:[%s3 + $0x11c] sm:$0xf]
  %v396 = vld [vmem:[%s3 + $0x120] sm:$0xf]
  %v397 = vld [vmem:[%s3 + $0x124] sm:$0xf]
  %v398 = vld [vmem:[%s3 + $0x128] sm:$0xf]
  %v399 = vld [vmem:[%s3 + $0x12c] sm:$0xf]
  %v400 = vld [vmem:[%s3 + $0x130] sm:$0xf]
  %v401 = vld [vmem:[%s3 + $0x134] sm:$0xf]
  %v402 = vld [vmem:[%s3 + $0x138] sm:$0xf]
  %v403 = vld [vmem:[%s3 + $0x13c] sm:$0xf]
  %v404 = vld [vmem:[%s3 + $0x140] sm:$0xf]
  %v405 = vld [vmem:[%s3 + $0x144] sm:$0xf]
  %v406 = vld [vmem:[%s3 + $0x148] sm:$0xf]
  %v407 = vld [vmem:[%s3 + $0x14c] sm:$0xf]
  %v408 = vld [vmem:[%s3 + $0x150] sm:$0xf]
  %v409 = vld [vmem:[%s3 + $0x154] sm:$0xf]
  %v410 = vld [vmem:[%s3 + $0x158] sm:$0xf]
  %v411 = vld [vmem:[%s3 + $0x15c] sm:$0xf]
  %v412 = vld [vmem:[%s3 + $0x160] sm:$0xf]
  %v413 = vld [vmem:[%s3 + $0x164] sm:$0xf]
  %v414 = vld [vmem:[%s3 + $0x168] sm:$0xf]
  %v415 = vld [vmem:[%s3 + $0x16c] sm:$0xf]
  %v416 = vld [vmem:[%s3 + $0x170] sm:$0xf]
  %v417 = vld [vmem:[%s3 + $0x174] sm:$0xf]
  %v418 = vld [vmem:[%s3 + $0x178] sm:$0xf]
  %v419 = vld [vmem:[%s3 + $0x17c] sm:$0xf]
  %v420 = vld [vmem:[%s3 + $0x180] sm:$0xf]
  %v421 = vld [vmem:[%s3 + $0x184] sm:$0xf]
  %v422 = vld [vmem:[%s3 + $0x188] sm:$0xf]
  %v423 = vld [vmem:[%s3 + $0x18c] sm:$0xf]
  %v424 = vld [vmem:[%s3 + $0x190] sm:$0xf]
  %v425 = vld [vmem:[%s3 + $0x194] sm:$0xf]
  %v426 = vld [vmem:[%s3 + $0x198] sm:$0xf]
  %v427 = vld [vmem:[%s3 + $0x19c] sm:$0xf]
  %v428 = vld [vmem:[%s3 + $0x1a0] sm:$0xf]
  %v429 = vld [vmem:[%s3 + $0x1a4] sm:$0xf]
  %v430 = vld [vmem:[%s3 + $0x1a8] sm:$0xf]
  %v431 = vld [vmem:[%s3 + $0x1ac] sm:$0xf]
  %v432 = vld [vmem:[%s3 + $0x1b0] sm:$0xf]
  %v433 = vld [vmem:[%s3 + $0x1b4] sm:$0xf]
  %v434 = vld [vmem:[%s3 + $0x1b8] sm:$0xf]
  %v435 = vld [vmem:[%s3 + $0x1bc] sm:$0xf]
  %v436 = vld [vmem:[%s3 + $0x1c0] sm:$0xf]
  %v437 = vld [vmem:[%s3 + $0x1c4] sm:$0xf]
  %v438 = vld [vmem:[%s3 + $0x1c8] sm:$0xf]
  %v439 = vld [vmem:[%s3 + $0x1cc] sm:$0xf]
  %v440 = vld [vmem:[%s3 + $0x1d0] sm:$0xf]
  %v441 = vld [vmem:[%s3 + $0x1d4] sm:$0xf]
  %v442 = vld [vmem:[%s3 + $0x1d8] sm:$0xf]
  %v443 = vld [vmem:[%s3 + $0x1dc] sm:$0xf]
  %v444 = vld [vmem:[%s3 + $0x1e0] sm:$0xf]
  %v445 = vld [vmem:[%s3 + $0x1e4] sm:$0xf]
  %v446 = vld [vmem:[%s3 + $0x1e8] sm:$0xf]
  %v447 = vld [vmem:[%s3 + $0x1ec] sm:$0xf]
  %v448 = vld [vmem:[%s3 + $0x1f0] sm:$0xf]
  %v449 = vld [vmem:[%s3 + $0x1f4] sm:$0xf]
  %v450 = vld [vmem:[%s3 + $0x1f8] sm:$0xf]
  %v451 = vld [vmem:[%s3 + $0x1fc] sm:$0xf]
  %v452 = vld [vmem:[%s3 + $0x200] sm:$0xf]
  %v453 = vld [vmem:[%s3 + $0x204] sm:$0xf]
  %v454 = vld [vmem:[%s3 + $0x208] sm:$0xf]
  %v455 = vld [vmem:[%s3 + $0x20c] sm:$0xf]
  %v456 = vld [vmem:[%s3 + $0x210] sm:$0xf]
  %v457 = vld [vmem:[%s3 + $0x214] sm:$0xf]
  %v458 = vld [vmem:[%s3 + $0x218] sm:$0xf]
  %v459 = vld [vmem:[%s3 + $0x21c] sm:$0xf]
  %v460 = vld [vmem:[%s3 + $0x220] sm:$0xf]
  %v461 = vld [vmem:[%s3 + $0x224] sm:$0xf]
  %v462 = vld [vmem:[%s3 + $0x228] sm:$0xf]
  %v463 = vld [vmem:[%s3 + $0x22c] sm:$0xf]
  %v464 = vld [vmem:[%s3 + $0x230] sm:$0xf]
  %v465 = vld [vmem:[%s3 + $0x234] sm:$0xf]
  %v466 = vld [vmem:[%s3 + $0x238] sm:$0xf]
  %v467 = vld [vmem:[%s3 + $0x23c] sm:$0xf]
  %v548 = vunpack.c.l.b16 %v20
  %v549 = vunpack.c.h.b16 %v20
  %v550 = vunpack.c.l.b16 %v21
  %v551 = vunpack.c.h.b16 %v21
  %v552 = vunpack.c.l.b16 %v22
  %v553 = vunpack.c.h.b16 %v22
  %v554 = vunpack.c.l.b16 %v23
  %v555 = vunpack.c.h.b16 %v23
  %v556 = vunpack.c.l.b16 %v24
  %v557 = vunpack.c.l.b16 %v25
  %v558 = vunpack.c.h.b16 %v25
  %v559 = vunpack.c.l.b16 %v26
  %v560 = vunpack.c.h.b16 %v26
  %v561 = vunpack.c.l.b16 %v27
  %v562 = vunpack.c.h.b16 %v27
  %v563 = vunpack.c.l.b16 %v28
  %v564 = vunpack.c.h.b16 %v28
  %v565 = vunpack.c.l.b16 %v29
  %v566 = vunpack.c.l.b16 %v30
  %v567 = vunpack.c.h.b16 %v30
  %v568 = vunpack.c.l.b16 %v31
  %v569 = vunpack.c.h.b16 %v31
  %v570 = vunpack.c.l.b16 %v32
  %v571 = vunpack.c.h.b16 %v32
  %v572 = vunpack.c.l.b16 %v33
  %v573 = vunpack.c.h.b16 %v33
  %v574 = vunpack.c.l.b16 %v34
  %v575 = vunpack.c.l.b16 %v35
  %v576 = vunpack.c.h.b16 %v35
  %v577 = vunpack.c.l.b16 %v36
  %v578 = vunpack.c.h.b16 %v36
  %v579 = vunpack.c.l.b16 %v37
  %v580 = vunpack.c.h.b16 %v37
  %v581 = vunpack.c.l.b16 %v38
  %v582 = vunpack.c.h.b16 %v38
  %v583 = vunpack.c.l.b16 %v39
  %v584 = vunpack.c.l.b16 %v40
  %v585 = vunpack.c.h.b16 %v40
  %v586 = vunpack.c.l.b16 %v41
  %v587 = vunpack.c.h.b16 %v41
  %v588 = vunpack.c.l.b16 %v42
  %v589 = vunpack.c.h.b16 %v42
  %v590 = vunpack.c.l.b16 %v43
  %v591 = vunpack.c.h.b16 %v43
  %v592 = vunpack.c.l.b16 %v44
  %v593 = vunpack.c.l.b16 %v45
  %v594 = vunpack.c.h.b16 %v45
  %v595 = vunpack.c.l.b16 %v46
  %v596 = vunpack.c.h.b16 %v46
  %v597 = vunpack.c.l.b16 %v47
  %v598 = vunpack.c.h.b16 %v47
  %v599 = vunpack.c.l.b16 %v48
  %v600 = vunpack.c.h.b16 %v48
  %v601 = vunpack.c.l.b16 %v49
  %v602 = vunpack.c.l.b16 %v50
  %v603 = vunpack.c.h.b16 %v50
  %v604 = vunpack.c.l.b16 %v51
  %v605 = vunpack.c.h.b16 %v51
  %v606 = vunpack.c.l.b16 %v52
  %v607 = vunpack.c.h.b16 %v52
  %v608 = vunpack.c.l.b16 %v53
  %v609 = vunpack.c.h.b16 %v53
  %v610 = vunpack.c.l.b16 %v54
  %v611 = vunpack.c.l.b16 %v55
  %v612 = vunpack.c.h.b16 %v55
  %v613 = vunpack.c.l.b16 %v56
  %v614 = vunpack.c.h.b16 %v56
  %v615 = vunpack.c.l.b16 %v57
  %v616 = vunpack.c.h.b16 %v57
  %v617 = vunpack.c.l.b16 %v58
  %v618 = vunpack.c.h.b16 %v58
  %v619 = vunpack.c.l.b16 %v59
  %v620 = vunpack.c.l.b16 %v60
  %v621 = vunpack.c.h.b16 %v60
  %v622 = vunpack.c.l.b16 %v61
  %v623 = vunpack.c.h.b16 %v61
  %v624 = vunpack.c.l.b16 %v62
  %v625 = vunpack.c.h.b16 %v62
  %v626 = vunpack.c.l.b16 %v63
  %v627 = vunpack.c.h.b16 %v63
  %v628 = vunpack.c.l.b16 %v64
  %v629 = vunpack.c.l.b16 %v65
  %v630 = vunpack.c.h.b16 %v65
  %v631 = vunpack.c.l.b16 %v66
  %v632 = vunpack.c.h.b16 %v66
  %v633 = vunpack.c.l.b16 %v67
  %v634 = vunpack.c.h.b16 %v67
  %v635 = vunpack.c.l.b16 %v68
  %v636 = vunpack.c.h.b16 %v68
  %v637 = vunpack.c.l.b16 %v69
  %v638 = vunpack.c.l.b16 %v70
  %v639 = vunpack.c.h.b16 %v70
  %v640 = vunpack.c.l.b16 %v71
  %v641 = vunpack.c.h.b16 %v71
  %v642 = vunpack.c.l.b16 %v72
  %v643 = vunpack.c.h.b16 %v72
  %v644 = vunpack.c.l.b16 %v73
  %v645 = vunpack.c.h.b16 %v73
  %v646 = vunpack.c.l.b16 %v74
  %v647 = vunpack.c.l.b16 %v75
  %v648 = vunpack.c.h.b16 %v75
  %v649 = vunpack.c.l.b16 %v76
  %v650 = vunpack.c.h.b16 %v76
  %v651 = vunpack.c.l.b16 %v77
  %v652 = vunpack.c.h.b16 %v77
  %v653 = vunpack.c.l.b16 %v78
  %v654 = vunpack.c.h.b16 %v78
  %v655 = vunpack.c.l.b16 %v79
  %v656 = vunpack.c.l.b16 %v80
  %v657 = vunpack.c.h.b16 %v80
  %v658 = vunpack.c.l.b16 %v81
  %v659 = vunpack.c.h.b16 %v81
  %v660 = vunpack.c.l.b16 %v82
  %v661 = vunpack.c.h.b16 %v82
  %v662 = vunpack.c.l.b16 %v83
  %v663 = vunpack.c.h.b16 %v83
  %v664 = vunpack.c.l.b16 %v84
  %v665 = vunpack.c.l.b16 %v85
  %v666 = vunpack.c.h.b16 %v85
  %v667 = vunpack.c.l.b16 %v86
  %v668 = vunpack.c.h.b16 %v86
  %v669 = vunpack.c.l.b16 %v87
  %v670 = vunpack.c.h.b16 %v87
  %v671 = vunpack.c.l.b16 %v88
  %v672 = vunpack.c.h.b16 %v88
  %v673 = vunpack.c.l.b16 %v89
  %v674 = vunpack.c.l.b16 %v90
  %v675 = vunpack.c.h.b16 %v90
  %v676 = vunpack.c.l.b16 %v91
  %v677 = vunpack.c.h.b16 %v91
  %v678 = vunpack.c.l.b16 %v92
  %v679 = vunpack.c.h.b16 %v92
  %v680 = vunpack.c.l.b16 %v93
  %v681 = vunpack.c.h.b16 %v93
  %v682 = vunpack.c.l.b16 %v94
  %v683 = vunpack.c.l.b16 %v95
  %v684 = vunpack.c.h.b16 %v95
  %v685 = vunpack.c.l.b16 %v96
  %v686 = vunpack.c.h.b16 %v96
  %v687 = vunpack.c.l.b16 %v97
  %v688 = vunpack.c.h.b16 %v97
  %v689 = vunpack.c.l.b16 %v98
  %v690 = vunpack.c.h.b16 %v98
  %v691 = vunpack.c.l.b16 %v99
  %v692 = vpack.c.b16 %v557, %v548
  %v693 = vpack.c.b16 %v558, %v549
  %v694 = vpack.c.b16 %v559, %v550
  %v695 = vpack.c.b16 %v560, %v551
  %v696 = vpack.c.b16 %v561, %v552
  %v697 = vpack.c.b16 %v562, %v553
  %v698 = vpack.c.b16 %v563, %v554
  %v699 = vpack.c.b16 %v564, %v555
  %v700 = vpack.c.b16 %v565, %v556
  %v701 = vpack.c.b16 %v575, %v566
  %v702 = vpack.c.b16 %v576, %v567
  %v703 = vpack.c.b16 %v577, %v568
  %v704 = vpack.c.b16 %v578, %v569
  %v705 = vpack.c.b16 %v579, %v570
  %v706 = vpack.c.b16 %v580, %v571
  %v707 = vpack.c.b16 %v581, %v572
  %v708 = vpack.c.b16 %v582, %v573
  %v709 = vpack.c.b16 %v583, %v574
  %v710 = vpack.c.b16 %v593, %v584
  %v711 = vpack.c.b16 %v594, %v585
  %v712 = vpack.c.b16 %v595, %v586
  %v713 = vpack.c.b16 %v596, %v587
  %v714 = vpack.c.b16 %v597, %v588
  %v715 = vpack.c.b16 %v598, %v589
  %v716 = vpack.c.b16 %v599, %v590
  %v717 = vpack.c.b16 %v600, %v591
  %v718 = vpack.c.b16 %v601, %v592
  %v719 = vpack.c.b16 %v611, %v602
  %v720 = vpack.c.b16 %v612, %v603
  %v721 = vpack.c.b16 %v613, %v604
  %v722 = vpack.c.b16 %v614, %v605
  %v723 = vpack.c.b16 %v615, %v606
  %v724 = vpack.c.b16 %v616, %v607
  %v725 = vpack.c.b16 %v617, %v608
  %v726 = vpack.c.b16 %v618, %v609
  %v727 = vpack.c.b16 %v619, %v610
  %v728 = vpack.c.b16 %v629, %v620
  %v729 = vpack.c.b16 %v630, %v621
  %v730 = vpack.c.b16 %v631, %v622
  %v731 = vpack.c.b16 %v632, %v623
  %v732 = vpack.c.b16 %v633, %v624
  %v733 = vpack.c.b16 %v634, %v625
  %v734 = vpack.c.b16 %v635, %v626
  %v735 = vpack.c.b16 %v636, %v627
  %v736 = vpack.c.b16 %v637, %v628
  %v737 = vpack.c.b16 %v647, %v638
  %v738 = vpack.c.b16 %v648, %v639
  %v739 = vpack.c.b16 %v649, %v640
  %v740 = vpack.c.b16 %v650, %v641
  %v741 = vpack.c.b16 %v651, %v642
  %v742 = vpack.c.b16 %v652, %v643
  %v743 = vpack.c.b16 %v653, %v644
  %v744 = vpack.c.b16 %v654, %v645
  %v745 = vpack.c.b16 %v655, %v646
  %v746 = vpack.c.b16 %v665, %v656
  %v747 = vpack.c.b16 %v666, %v657
  %v748 = vpack.c.b16 %v667, %v658
  %v749 = vpack.c.b16 %v668, %v659
  %v750 = vpack.c.b16 %v669, %v660
  %v751 = vpack.c.b16 %v670, %v661
  %v752 = vpack.c.b16 %v671, %v662
  %v753 = vpack.c.b16 %v672, %v663
  %v754 = vpack.c.b16 %v673, %v664
  %v755 = vpack.c.b16 %v683, %v674
  %v756 = vpack.c.b16 %v684, %v675
  %v757 = vpack.c.b16 %v685, %v676
  %v758 = vpack.c.b16 %v686, %v677
  %v759 = vpack.c.b16 %v687, %v678
  %v760 = vpack.c.b16 %v688, %v679
  %v761 = vpack.c.b16 %v689, %v680
  %v762 = vpack.c.b16 %v690, %v681
  %v763 = vpack.c.b16 %v691, %v682
  %v980 = vunpack.c.l.b16 %v180
  %v981 = vunpack.c.l.b16 %v181
  %v982 = vunpack.c.l.b16 %v182
  %v983 = vunpack.c.l.b16 %v183
  %v984 = vunpack.c.l.b16 %v184
  %v985 = vunpack.c.l.b16 %v185
  %v986 = vunpack.c.l.b16 %v186
  %v987 = vunpack.c.l.b16 %v187
  %v988 = vunpack.c.l.b16 %v188
  %v989 = vunpack.c.l.b16 %v189
  %v990 = vunpack.c.l.b16 %v190
  %v991 = vunpack.c.l.b16 %v191
  %v992 = vunpack.c.l.b16 %v192
  %v993 = vunpack.c.l.b16 %v193
  %v994 = vunpack.c.l.b16 %v194
  %v995 = vunpack.c.l.b16 %v195
  %v996 = vunpack.c.l.b16 %v196
  %v997 = vunpack.c.l.b16 %v197
  %v998 = vunpack.c.l.b16 %v198
  %v999 = vunpack.c.l.b16 %v199
  %v1000 = vunpack.c.l.b16 %v200
  %v1001 = vunpack.c.l.b16 %v201
  %v1002 = vunpack.c.l.b16 %v202
  %v1003 = vunpack.c.l.b16 %v203
  %v1004 = vunpack.c.l.b16 %v204
  %v1005 = vunpack.c.l.b16 %v205
  %v1006 = vunpack.c.l.b16 %v206
  %v1007 = vunpack.c.l.b16 %v207
  %v1008 = vunpack.c.l.b16 %v208
  %v1009 = vunpack.c.l.b16 %v209
  %v1010 = vunpack.c.l.b16 %v210
  %v1011 = vunpack.c.l.b16 %v211
  %v1012 = vunpack.c.l.b16 %v212
  %v1013 = vunpack.c.l.b16 %v213
  %v1014 = vunpack.c.l.b16 %v214
  %v1015 = vunpack.c.l.b16 %v215
  %v1016 = vunpack.c.l.b16 %v216
  %v1017 = vunpack.c.l.b16 %v217
  %v1018 = vunpack.c.l.b16 %v218
  %v1019 = vunpack.c.l.b16 %v219
  %v1020 = vunpack.c.l.b16 %v220
  %v1021 = vunpack.c.l.b16 %v221
  %v1022 = vunpack.c.l.b16 %v222
  %v1023 = vunpack.c.l.b16 %v223
  %v1024 = vunpack.c.l.b16 %v224
  %v1025 = vunpack.c.l.b16 %v225
  %v1026 = vunpack.c.l.b16 %v226
  %v1027 = vunpack.c.l.b16 %v227
  %v1028 = vunpack.c.l.b16 %v228
  %v1029 = vunpack.c.l.b16 %v229
  %v1030 = vunpack.c.l.b16 %v230
  %v1031 = vunpack.c.l.b16 %v231
  %v1032 = vunpack.c.l.b16 %v232
  %v1033 = vunpack.c.l.b16 %v233
  %v1034 = vunpack.c.l.b16 %v234
  %v1035 = vunpack.c.l.b16 %v235
  %v1036 = vunpack.c.l.b16 %v236
  %v1037 = vunpack.c.l.b16 %v237
  %v1038 = vunpack.c.l.b16 %v238
  %v1039 = vunpack.c.l.b16 %v239
  %v1040 = vunpack.c.l.b16 %v240
  %v1041 = vunpack.c.l.b16 %v241
  %v1042 = vunpack.c.l.b16 %v242
  %v1043 = vunpack.c.l.b16 %v243
  %v1044 = vunpack.c.l.b16 %v244
  %v1045 = vunpack.c.l.b16 %v245
  %v1046 = vunpack.c.l.b16 %v246
  %v1047 = vunpack.c.l.b16 %v247
  %v1048 = vunpack.c.l.b16 %v248
  %v1049 = vunpack.c.l.b16 %v249
  %v1050 = vunpack.c.l.b16 %v250
  %v1051 = vunpack.c.l.b16 %v251
  %v1052 = vunpack.c.l.b16 %v252
  %v1053 = vunpack.c.l.b16 %v253
  %v1054 = vunpack.c.l.b16 %v254
  %v1055 = vunpack.c.l.b16 %v255
  %v1056 = vunpack.c.l.b16 %v256
  %v1057 = vunpack.c.l.b16 %v257
  %v1058 = vunpack.c.l.b16 %v258
  %v1059 = vunpack.c.l.b16 %v259
  %v1060 = vunpack.c.l.b16 %v260
  %v1061 = vunpack.c.l.b16 %v261
  %v1062 = vunpack.c.l.b16 %v262
  %v1063 = vunpack.c.l.b16 %v263
  %v1064 = vunpack.c.l.b16 %v264
  %v1065 = vunpack.c.l.b16 %v265
  %v1066 = vunpack.c.l.b16 %v266
  %v1067 = vunpack.c.l.b16 %v267
  %v1068 = vunpack.c.l.b16 %v268
  %v1069 = vunpack.c.l.b16 %v269
  %v1070 = vunpack.c.l.b16 %v270
  %v1071 = vunpack.c.l.b16 %v271
  %v1072 = vunpack.c.l.b16 %v272
  %v1073 = vunpack.c.l.b16 %v273
  %v1074 = vunpack.c.l.b16 %v274
  %v1075 = vunpack.c.l.b16 %v275
  %v1076 = vunpack.c.l.b16 %v276
  %v1077 = vunpack.c.l.b16 %v277
  %v1078 = vunpack.c.l.b16 %v278
  %v1079 = vunpack.c.l.b16 %v279
  %v1080 = vunpack.c.l.b16 %v280
  %v1081 = vunpack.c.l.b16 %v281
  %v1082 = vunpack.c.l.b16 %v282
  %v1083 = vunpack.c.l.b16 %v283
  %v1084 = vunpack.c.l.b16 %v284
  %v1085 = vunpack.c.l.b16 %v285
  %v1086 = vunpack.c.l.b16 %v286
  %v1087 = vunpack.c.l.b16 %v287
  %v1088 = vunpack.c.l.b16 %v288
  %v1089 = vunpack.c.l.b16 %v289
  %v1090 = vunpack.c.l.b16 %v290
  %v1091 = vunpack.c.l.b16 %v291
  %v1092 = vunpack.c.l.b16 %v292
  %v1093 = vunpack.c.l.b16 %v293
  %v1094 = vunpack.c.l.b16 %v294
  %v1095 = vunpack.c.l.b16 %v295
  %v1096 = vunpack.c.l.b16 %v296
  %v1097 = vunpack.c.l.b16 %v297
  %v1098 = vunpack.c.l.b16 %v298
  %v1099 = vunpack.c.l.b16 %v299
  %v1100 = vunpack.c.l.b16 %v300
  %v1101 = vunpack.c.l.b16 %v301
  %v1102 = vunpack.c.l.b16 %v302
  %v1103 = vunpack.c.l.b16 %v303
  %v1104 = vunpack.c.l.b16 %v304
  %v1105 = vunpack.c.l.b16 %v305
  %v1106 = vunpack.c.l.b16 %v306
  %v1107 = vunpack.c.l.b16 %v307
  %v1108 = vunpack.c.l.b16 %v308
  %v1109 = vunpack.c.l.b16 %v309
  %v1110 = vunpack.c.l.b16 %v310
  %v1111 = vunpack.c.l.b16 %v311
  %v1112 = vunpack.c.l.b16 %v312
  %v1113 = vunpack.c.l.b16 %v313
  %v1114 = vunpack.c.l.b16 %v314
  %v1115 = vunpack.c.l.b16 %v315
  %v1116 = vunpack.c.l.b16 %v316
  %v1117 = vunpack.c.l.b16 %v317
  %v1118 = vunpack.c.l.b16 %v318
  %v1119 = vunpack.c.l.b16 %v319
  %v1120 = vunpack.c.l.b16 %v320
  %v1121 = vunpack.c.l.b16 %v321
  %v1122 = vunpack.c.l.b16 %v322
  %v1123 = vunpack.c.l.b16 %v323
  %v1124 = vpack.c.b16 %v981, %v980
  %v1125 = vpack.c.b16 %v983, %v982
  %v1126 = vpack.c.b16 %v985, %v984
  %v1127 = vpack.c.b16 %v987, %v986
  %v1128 = vpack.c.b16 %v989, %v988
  %v1129 = vpack.c.b16 %v991, %v990
  %v1130 = vpack.c.b16 %v993, %v992
  %v1131 = vpack.c.b16 %v995, %v994
  %v1132 = vpack.c.b16 %v997, %v996
  %v1133 = vpack.c.b16 %v999, %v998
  %v1134 = vpack.c.b16 %v1001, %v1000
  %v1135 = vpack.c.b16 %v1003, %v1002
  %v1136 = vpack.c.b16 %v1005, %v1004
  %v1137 = vpack.c.b16 %v1007, %v1006
  %v1138 = vpack.c.b16 %v1009, %v1008
  %v1139 = vpack.c.b16 %v1011, %v1010
  %v1140 = vpack.c.b16 %v1013, %v1012
  %v1141 = vpack.c.b16 %v1015, %v1014
  %v1142 = vpack.c.b16 %v1017, %v1016
  %v1143 = vpack.c.b16 %v1019, %v1018
  %v1144 = vpack.c.b16 %v1021, %v1020
  %v1145 = vpack.c.b16 %v1023, %v1022
  %v1146 = vpack.c.b16 %v1025, %v1024
  %v1147 = vpack.c.b16 %v1027, %v1026
  %v1148 = vpack.c.b16 %v1029, %v1028
  %v1149 = vpack.c.b16 %v1031, %v1030
  %v1150 = vpack.c.b16 %v1033, %v1032
  %v1151 = vpack.c.b16 %v1035, %v1034
  %v1152 = vpack.c.b16 %v1037, %v1036
  %v1153 = vpack.c.b16 %v1039, %v1038
  %v1154 = vpack.c.b16 %v1041, %v1040
  %v1155 = vpack.c.b16 %v1043, %v1042
  %v1156 = vpack.c.b16 %v1045, %v1044
  %v1157 = vpack.c.b16 %v1047, %v1046
  %v1158 = vpack.c.b16 %v1049, %v1048
  %v1159 = vpack.c.b16 %v1051, %v1050
  %v1160 = vpack.c.b16 %v1053, %v1052
  %v1161 = vpack.c.b16 %v1055, %v1054
  %v1162 = vpack.c.b16 %v1057, %v1056
  %v1163 = vpack.c.b16 %v1059, %v1058
  %v1164 = vpack.c.b16 %v1061, %v1060
  %v1165 = vpack.c.b16 %v1063, %v1062
  %v1166 = vpack.c.b16 %v1065, %v1064
  %v1167 = vpack.c.b16 %v1067, %v1066
  %v1168 = vpack.c.b16 %v1069, %v1068
  %v1169 = vpack.c.b16 %v1071, %v1070
  %v1170 = vpack.c.b16 %v1073, %v1072
  %v1171 = vpack.c.b16 %v1075, %v1074
  %v1172 = vpack.c.b16 %v1077, %v1076
  %v1173 = vpack.c.b16 %v1079, %v1078
  %v1174 = vpack.c.b16 %v1081, %v1080
  %v1175 = vpack.c.b16 %v1083, %v1082
  %v1176 = vpack.c.b16 %v1085, %v1084
  %v1177 = vpack.c.b16 %v1087, %v1086
  %v1178 = vpack.c.b16 %v1089, %v1088
  %v1179 = vpack.c.b16 %v1091, %v1090
  %v1180 = vpack.c.b16 %v1093, %v1092
  %v1181 = vpack.c.b16 %v1095, %v1094
  %v1182 = vpack.c.b16 %v1097, %v1096
  %v1183 = vpack.c.b16 %v1099, %v1098
  %v1184 = vpack.c.b16 %v1101, %v1100
  %v1185 = vpack.c.b16 %v1103, %v1102
  %v1186 = vpack.c.b16 %v1105, %v1104
  %v1187 = vpack.c.b16 %v1107, %v1106
  %v1188 = vpack.c.b16 %v1109, %v1108
  %v1189 = vpack.c.b16 %v1111, %v1110
  %v1190 = vpack.c.b16 %v1113, %v1112
  %v1191 = vpack.c.b16 %v1115, %v1114
  %v1192 = vpack.c.b16 %v1117, %v1116
  %v1193 = vpack.c.b16 %v1119, %v1118
  %v1194 = vpack.c.b16 %v1121, %v1120
  %v1195 = vpack.c.b16 %v1123, %v1122
  %1268 = vmatprep.subr.bf16.mxu0 0
  %1269 = vmatpush1.bf16.msra.mxu0 %v1124
  %1270 = vmatprep.subr.bf16.mxu0 0
  %1271 = vmatpush1.bf16.msra.mxu0 %v1125
  %1272 = vmatprep.subr.bf16.mxu0 0
  %1273 = vmatpush1.bf16.msra.mxu0 %v1126
  %1274 = vmatprep.subr.bf16.mxu0 0
  %1275 = vmatpush1.bf16.msra.mxu0 %v1127
  %1276 = vmatprep.subr.bf16.mxu0 0
  %1277 = vmatpush1.bf16.msra.mxu0 %v1128
  %1278 = vmatprep.subr.bf16.mxu0 0
  %1279 = vmatpush1.bf16.msra.mxu0 %v1129
  %1280 = vmatprep.subr.bf16.mxu0 0
  %1281 = vmatpush1.bf16.msra.mxu0 %v1130
  %1282 = vmatprep.subr.bf16.mxu0 0
  %1283 = vmatpush1.bf16.msra.mxu0 %v1131
  %1284 = vmatprep.subr.bf16.mxu0 0
  %1285 = vmatpush1.bf16.msra.mxu0 %v1132
  %1286 = vmatprep.subr.bf16.mxu0 0
  %1287 = vmatpush1.bf16.msra.mxu0 %v1133
  %1288 = vmatprep.subr.bf16.mxu0 0
  %1289 = vmatpush1.bf16.msra.mxu0 %v1134
  %1290 = vmatprep.subr.bf16.mxu0 0
  %1291 = vmatpush1.bf16.msra.mxu0 %v1135
  %1292 = vmatprep.subr.bf16.mxu0 0
  %1293 = vmatpush1.bf16.msra.mxu0 %v1136
  %1294 = vmatprep.subr.bf16.mxu0 0
  %1295 = vmatpush1.bf16.msra.mxu0 %v1137
  %1296 = vmatprep.subr.bf16.mxu0 0
  %1297 = vmatpush1.bf16.msra.mxu0 %v1138
  %1298 = vmatprep.subr.bf16.mxu0 0
  %1299 = vmatpush1.bf16.msra.mxu0 %v1139
  %1300 = vmatprep.mubr.bf16.mxu0 %v693
  %1301 = vmatmul.mubr.bf16.gmra.mrb[0].mxu0 %v692
  %v1302 = vpop.f32.mrb[0].mxu0
  %v1303 = vadd.f32 0.0, %v1302
  %v1304 = vpop.f32.mrb[0].mxu0
  %v1305 = vpop.f32.mrb[0].mxu0
  %v1306 = vadd.f32 0.0, %v1305
  %v1307 = vpop.f32.mrb[0].mxu0
  %1308 = vmatprep.mubr.bf16.mxu0 %v702
  %1309 = vmatmul.mubr.bf16.gmra.mrb[0].mxu0 %v701
  %v1310 = vpop.f32.mrb[0].mxu0
  %v1311 = vadd.f32 0.0, %v1310
  %v1312 = vpop.f32.mrb[0].mxu0
  %v1313 = vpop.f32.mrb[0].mxu0
  %v1314 = vadd.f32 0.0, %v1313
  %v1315 = vpop.f32.mrb[0].mxu0
  %1316 = vmatprep.mubr.bf16.mxu0 %v711
  %1317 = vmatmul.mubr.bf16.gmra.mrb[0].mxu0 %v710
  %v1318 = vpop.f32.mrb[0].mxu0
  %v1319 = vadd.f32 0.0, %v1318
  %v1320 = vpop.f32.mrb[0].mxu0
  %v1321 = vpop.f32.mrb[0].mxu0
  %v1322 = vadd.f32 0.0, %v1321
  %v1323 = vpop.f32.mrb[0].mxu0
  %1324 = vmatprep.mubr.bf16.mxu0 %v720
  %1325 = vmatmul.mubr.bf16.gmra.mrb[0].mxu0 %v719
  %v1326 = vpop.f32.mrb[0].mxu0
  %v1327 = vadd.f32 0.0, %v1326
  %v1328 = vpop.f32.mrb[0].mxu0
  %v1329 = vpop.f32.mrb[0].mxu0
  %v1330 = vadd.f32 0.0, %v1329
  %v1331 = vpop.f32.mrb[0].mxu0
  %1332 = vmatprep.mubr.bf16.mxu0 %v729
  %1333 = vmatmul.mubr.bf16.gmra.mrb[0].mxu0 %v728
  %v1334 = vpop.f32.mrb[0].mxu0
  %v1335 = vadd.f32 0.0, %v1334
  %v1336 = vpop.f32.mrb[0].mxu0
  %v1337 = vpop.f32.mrb[0].mxu0
  %v1338 = vadd.f32 0.0, %v1337
  %v1339 = vpop.f32.mrb[0].mxu0
  %1340 = vmatprep.mubr.bf16.mxu0 %v738
  %1341 = vmatmul.mubr.bf16.gmra.mrb[0].mxu0 %v737
  %v1342 = vpop.f32.mrb[0].mxu0
  %v1343 = vadd.f32 0.0, %v1342
  %v1344 = vpop.f32.mrb[0].mxu0
  %v1345 = vpop.f32.mrb[0].mxu0
  %v1346 = vadd.f32 0.0, %v1345
  %v1347 = vpop.f32.mrb[0].mxu0
  %1348 = vmatprep.mubr.bf16.mxu0 %v747
  %1349 = vmatmul.mubr.bf16.gmra.mrb[0].mxu0 %v746
  %v1350 = vpop.f32.mrb[0].mxu0
  %v1351 = vadd.f32 0.0, %v1350
  %v1352 = vpop.f32.mrb[0].mxu0
  %v1353 = vpop.f32.mrb[0].mxu0
  %v1354 = vadd.f32 0.0, %v1353
  %v1355 = vpop.f32.mrb[0].mxu0
  %1356 = vmatprep.mubr.bf16.mxu0 %v756
  %1357 = vmatmul.mubr.bf16.gmra.mrb[0].mxu0 %v755
  %v1358 = vpop.f32.mrb[0].mxu0
  %v1359 = vadd.f32 0.0, %v1358
  %v1360 = vpop.f32.mrb[0].mxu0
  %v1361 = vpop.f32.mrb[0].mxu0
  %v1362 = vadd.f32 0.0, %v1361
  %v1363 = vpop.f32.mrb[0].mxu0
  %1364 = vdwg.mxu0
  %1365 = vmatprep.subr.bf16.mxu0 0
  %1366 = vmatpush1.bf16.msra.mxu0 %v1140
  %1367 = vmatprep.subr.bf16.mxu0 0
  %1368 = vmatpush1.bf16.msra.mxu0 %v1141
  %1369 = vmatprep.subr.bf16.mxu0 0
  %1370 = vmatpush1.bf16.msra.mxu0 %v1142
  %1371 = vmatprep.subr.bf16.mxu0 0
  %1372 = vmatpush1.bf16.msra.mxu0 %v1143
  %1373 = vmatprep.subr.bf16.mxu0 0
  %1374 = vmatpush1.bf16.msra.mxu0 %v1144
  %1375 = vmatprep.subr.bf16.mxu0 0
  %1376 = vmatpush1.bf16.msra.mxu0 %v1145
  %1377 = vmatprep.subr.bf16.mxu0 0
  %1378 = vmatpush1.bf16.msra.mxu0 %v1146
  %1379 = vmatprep.subr.bf16.mxu0 0
  %1380 = vmatpush1.bf16.msra.mxu0 %v1147
  %1381 = vmatprep.subr.bf16.mxu0 0
  %1382 = vmatpush1.bf16.msra.mxu0 %v1148
  %1383 = vmatprep.subr.bf16.mxu0 0
  %1384 = vmatpush1.bf16.msra.mxu0 %v1149
  %1385 = vmatprep.subr.bf16.mxu0 0
  %1386 = vmatpush1.bf16.msra.mxu0 %v1150
  %1387 = vmatprep.subr.bf16.mxu0 0
  %1388 = vmatpush1.bf16.msra.mxu0 %v1151
  %1389 = vmatprep.subr.bf16.mxu0 0
  %1390 = vmatpush1.bf16.msra.mxu0 %v1152
  %1391 = vmatprep.subr.bf16.mxu0 0
  %1392 = vmatpush1.bf16.msra.mxu0 %v1153
  %1393 = vmatprep.subr.bf16.mxu0 0
  %1394 = vmatpush1.bf16.msra.mxu0 %v1154
  %1395 = vmatprep.subr.bf16.mxu0 0
  %1396 = vmatpush1.bf16.msra.mxu0 %v1155
  %1397 = vmatprep.mubr.bf16.mxu0 %v695
  %1398 = vmatmul.mubr.bf16.gmra.mrb[0].mxu0 %v694
  %v1399 = vpop.f32.mrb[0].mxu0
  %v1400 = vadd.f32 %v1303, %v1399
  %v1401 = vpop.f32.mrb[0].mxu0
  %v1402 = vpop.f32.mrb[0].mxu0
  %v1403 = vadd.f32 %v1306, %v1402
  %v1404 = vpop.f32.mrb[0].mxu0
  %1405 = vmatprep.mubr.bf16.mxu0 %v704
  %1406 = vmatmul.mubr.bf16.gmra.mrb[0].mxu0 %v703
  %v1407 = vpop.f32.mrb[0].mxu0
  %v1408 = vadd.f32 %v1311, %v1407
  %v1409 = vpop.f32.mrb[0].mxu0
  %v1410 = vpop.f32.mrb[0].mxu0
  %v1411 = vadd.f32 %v1314, %v1410
  %v1412 = vpop.f32.mrb[0].mxu0
  %1413 = vmatprep.mubr.bf16.mxu0 %v713
  %1414 = vmatmul.mubr.bf16.gmra.mrb[0].mxu0 %v712
  %v1415 = vpop.f32.mrb[0].mxu0
  %v1416 = vadd.f32 %v1319, %v1415
  %v1417 = vpop.f32.mrb[0].mxu0
  %v1418 = vpop.f32.mrb[0].mxu0
  %v1419 = vadd.f32 %v1322, %v1418
  %v1420 = vpop.f32.mrb[0].mxu0
  %1421 = vmatprep.mubr.bf16.mxu0 %v722
  %1422 = vmatmul.mubr.bf16.gmra.mrb[0].mxu0 %v721
  %v1423 = vpop.f32.mrb[0].mxu0
  %v1424 = vadd.f32 %v1327, %v1423
  %v1425 = vpop.f32.mrb[0].mxu0
  %v1426 = vpop.f32.mrb[0].mxu0
  %v1427 = vadd.f32 %v1330, %v1426
  %v1428 = vpop.f32.mrb[0].mxu0
  %1429 = vmatprep.mubr.bf16.mxu0 %v731
  %1430 = vmatmul.mubr.bf16.gmra.mrb[0].mxu0 %v730
  %v1431 = vpop.f32.mrb[0].mxu0
  %v1432 = vadd.f32 %v1335, %v1431
  %v1433 = vpop.f32.mrb[0].mxu0
  %v1434 = vpop.f32.mrb[0].mxu0
  %v1435 = vadd.f32 %v1338, %v1434
  %v1436 = vpop.f32.mrb[0].mxu0
  %1437 = vmatprep.mubr.bf16.mxu0 %v740
  %1438 = vmatmul.mubr.bf16.gmra.mrb[0].mxu0 %v739
  %v1439 = vpop.f32.mrb[0].mxu0
  %v1440 = vadd.f32 %v1343, %v1439
  %v1441 = vpop.f32.mrb[0].mxu0
  %v1442 = vpop.f32.mrb[0].mxu0
  %v1443 = vadd.f32 %v1346, %v1442
  %v1444 = vpop.f32.mrb[0].mxu0
  %1445 = vmatprep.mubr.bf16.mxu0 %v749
  %1446 = vmatmul.mubr.bf16.gmra.mrb[0].mxu0 %v748
  %v1447 = vpop.f32.mrb[0].mxu0
  %v1448 = vadd.f32 %v1351, %v1447
  %v1449 = vpop.f32.mrb[0].mxu0
  %v1450 = vpop.f32.mrb[0].mxu0
  %v1451 = vadd.f32 %v1354, %v1450
  %v1452 = vpop.f32.mrb[0].mxu0
  %1453 = vmatprep.mubr.bf16.mxu0 %v758
  %1454 = vmatmul.mubr.bf16.gmra.mrb[0].mxu0 %v757
  %v1455 = vpop.f32.mrb[0].mxu0
  %v1456 = vadd.f32 %v1359, %v1455
  %v1457 = vpop.f32.mrb[0].mxu0
  %v1458 = vpop.f32.mrb[0].mxu0
  %v1459 = vadd.f32 %v1362, %v1458
  %v1460 = vpop.f32.mrb[0].mxu0
  %1461 = vdwg.mxu0
  %1462 = vmatprep.subr.bf16.mxu0 0
  %1463 = vmatpush1.bf16.msra.mxu0 %v1156
  %1464 = vmatprep.subr.bf16.mxu0 0
  %1465 = vmatpush1.bf16.msra.mxu0 %v1157
  %1466 = vmatprep.subr.bf16.mxu0 0
  %1467 = vmatpush1.bf16.msra.mxu0 %v1158
  %1468 = vmatprep.subr.bf16.mxu0 0
  %1469 = vmatpush1.bf16.msra.mxu0 %v1159
  %1470 = vmatprep.subr.bf16.mxu0 0
  %1471 = vmatpush1.bf16.msra.mxu0 %v1160
  %1472 = vmatprep.subr.bf16.mxu0 0
  %1473 = vmatpush1.bf16.msra.mxu0 %v1161
  %1474 = vmatprep.subr.bf16.mxu0 0
  %1475 = vmatpush1.bf16.msra.mxu0 %v1162
  %1476 = vmatprep.subr.bf16.mxu0 0
  %1477 = vmatpush1.bf16.msra.mxu0 %v1163
  %1478 = vmatprep.subr.bf16.mxu0 0
  %1479 = vmatpush1.bf16.msra.mxu0 %v1164
  %1480 = vmatprep.subr.bf16.mxu0 0
  %1481 = vmatpush1.bf16.msra.mxu0 %v1165
  %1482 = vmatprep.subr.bf16.mxu0 0
  %1483 = vmatpush1.bf16.msra.mxu0 %v1166
  %1484 = vmatprep.subr.bf16.mxu0 0
  %1485 = vmatpush1.bf16.msra.mxu0 %v1167
  %1486 = vmatprep.subr.bf16.mxu0 0
  %1487 = vmatpush1.bf16.msra.mxu0 %v1168
  %1488 = vmatprep.subr.bf16.mxu0 0
  %1489 = vmatpush1.bf16.msra.mxu0 %v1169
  %1490 = vmatprep.subr.bf16.mxu0 0
  %1491 = vmatpush1.bf16.msra.mxu0 %v1170
  %1492 = vmatprep.subr.bf16.mxu0 0
  %1493 = vmatpush1.bf16.msra.mxu0 %v1171
  %1494 = vmatprep.mubr.bf16.mxu0 %v697
  %1495 = vmatmul.mubr.bf16.gmra.mrb[0].mxu0 %v696
  %v1496 = vpop.f32.mrb[0].mxu0
  %v1497 = vadd.f32 %v1400, %v1496
  %v1498 = vpop.f32.mrb[0].mxu0
  %v1499 = vpop.f32.mrb[0].mxu0
  %v1500 = vadd.f32 %v1403, %v1499
  %v1501 = vpop.f32.mrb[0].mxu0
  %1502 = vmatprep.mubr.bf16.mxu0 %v706
  %1503 = vmatmul.mubr.bf16.gmra.mrb[0].mxu0 %v705
  %v1504 = vpop.f32.mrb[0].mxu0
  %v1505 = vadd.f32 %v1408, %v1504
  %v1506 = vpop.f32.mrb[0].mxu0
  %v1507 = vpop.f32.mrb[0].mxu0
  %v1508 = vadd.f32 %v1411, %v1507
  %v1509 = vpop.f32.mrb[0].mxu0
  %1510 = vmatprep.mubr.bf16.mxu0 %v715
  %1511 = vmatmul.mubr.bf16.gmra.mrb[0].mxu0 %v714
  %v1512 = vpop.f32.mrb[0].mxu0
  %v1513 = vadd.f32 %v1416, %v1512
  %v1514 = vpop.f32.mrb[0].mxu0
  %v1515 = vpop.f32.mrb[0].mxu0
  %v1516 = vadd.f32 %v1419, %v1515
  %v1517 = vpop.f32.mrb[0].mxu0
  %1518 = vmatprep.mubr.bf16.mxu0 %v724
  %1519 = vmatmul.mubr.bf16.gmra.mrb[0].mxu0 %v723
  %v1520 = vpop.f32.mrb[0].mxu0
  %v1521 = vadd.f32 %v1424, %v1520
  %v1522 = vpop.f32.mrb[0].mxu0
  %v1523 = vpop.f32.mrb[0].mxu0
  %v1524 = vadd.f32 %v1427, %v1523
  %v1525 = vpop.f32.mrb[0].mxu0
  %1526 = vmatprep.mubr.bf16.mxu0 %v733
  %1527 = vmatmul.mubr.bf16.gmra.mrb[0].mxu0 %v732
  %v1528 = vpop.f32.mrb[0].mxu0
  %v1529 = vadd.f32 %v1432, %v1528
  %v1530 = vpop.f32.mrb[0].mxu0
  %v1531 = vpop.f32.mrb[0].mxu0
  %v1532 = vadd.f32 %v1435, %v1531
  %v1533 = vpop.f32.mrb[0].mxu0
  %1534 = vmatprep.mubr.bf16.mxu0 %v742
  %1535 = vmatmul.mubr.bf16.gmra.mrb[0].mxu0 %v741
  %v1536 = vpop.f32.mrb[0].mxu0
  %v1537 = vadd.f32 %v1440, %v1536
  %v1538 = vpop.f32.mrb[0].mxu0
  %v1539 = vpop.f32.mrb[0].mxu0
  %v1540 = vadd.f32 %v1443, %v1539
  %v1541 = vpop.f32.mrb[0].mxu0
  %1542 = vmatprep.mubr.bf16.mxu0 %v751
  %1543 = vmatmul.mubr.bf16.gmra.mrb[0].mxu0 %v750
  %v1544 = vpop.f32.mrb[0].mxu0
  %v1545 = vadd.f32 %v1448, %v1544
  %v1546 = vpop.f32.mrb[0].mxu0
  %v1547 = vpop.f32.mrb[0].mxu0
  %v1548 = vadd.f32 %v1451, %v1547
  %v1549 = vpop.f32.mrb[0].mxu0
  %1550 = vmatprep.mubr.bf16.mxu0 %v760
  %1551 = vmatmul.mubr.bf16.gmra.mrb[0].mxu0 %v759
  %v1552 = vpop.f32.mrb[0].mxu0
  %v1553 = vadd.f32 %v1456, %v1552
  %v1554 = vpop.f32.mrb[0].mxu0
  %v1555 = vpop.f32.mrb[0].mxu0
  %v1556 = vadd.f32 %v1459, %v1555
  %v1557 = vpop.f32.mrb[0].mxu0
  %1558 = vdwg.mxu0
  %1559 = vmatprep.subr.bf16.mxu0 0
  %1560 = vmatpush1.bf16.msra.mxu0 %v1172
  %1561 = vmatprep.subr.bf16.mxu0 0
  %1562 = vmatpush1.bf16.msra.mxu0 %v1173
  %1563 = vmatprep.subr.bf16.mxu0 0
  %1564 = vmatpush1.bf16.msra.mxu0 %v1174
  %1565 = vmatprep.subr.bf16.mxu0 0
  %1566 = vmatpush1.bf16.msra.mxu0 %v1175
  %1567 = vmatprep.subr.bf16.mxu0 0
  %1568 = vmatpush1.bf16.msra.mxu0 %v1176
  %1569 = vmatprep.subr.bf16.mxu0 0
  %1570 = vmatpush1.bf16.msra.mxu0 %v1177
  %1571 = vmatprep.subr.bf16.mxu0 0
  %1572 = vmatpush1.bf16.msra.mxu0 %v1178
  %1573 = vmatprep.subr.bf16.mxu0 0
  %1574 = vmatpush1.bf16.msra.mxu0 %v1179
  %1575 = vmatprep.subr.bf16.mxu0 0
  %1576 = vmatpush1.bf16.msra.mxu0 %v1180
  %1577 = vmatprep.subr.bf16.mxu0 0
  %1578 = vmatpush1.bf16.msra.mxu0 %v1181
  %1579 = vmatprep.subr.bf16.mxu0 0
  %1580 = vmatpush1.bf16.msra.mxu0 %v1182
  %1581 = vmatprep.subr.bf16.mxu0 0
  %1582 = vmatpush1.bf16.msra.mxu0 %v1183
  %1583 = vmatprep.subr.bf16.mxu0 0
  %1584 = vmatpush1.bf16.msra.mxu0 %v1184
  %1585 = vmatprep.subr.bf16.mxu0 0
  %1586 = vmatpush1.bf16.msra.mxu0 %v1185
  %1587 = vmatprep.subr.bf16.mxu0 0
  %1588 = vmatpush1.bf16.msra.mxu0 %v1186
  %1589 = vmatprep.subr.bf16.mxu0 0
  %1590 = vmatpush1.bf16.msra.mxu0 %v1187
  %1591 = vmatprep.mubr.bf16.mxu0 %v699
  %1592 = vmatmul.mubr.bf16.gmra.mrb[0].mxu0 %v698
  %v1593 = vpop.f32.mrb[0].mxu0
  %v1594 = vadd.f32 %v1497, %v1593
  %v1595 = vpop.f32.mrb[0].mxu0
  %v1596 = vpop.f32.mrb[0].mxu0
  %v1597 = vadd.f32 %v1500, %v1596
  %v1598 = vpop.f32.mrb[0].mxu0
  %1599 = vmatprep.mubr.bf16.mxu0 %v708
  %1600 = vmatmul.mubr.bf16.gmra.mrb[0].mxu0 %v707
  %v1601 = vpop.f32.mrb[0].mxu0
  %v1602 = vadd.f32 %v1505, %v1601
  %v1603 = vpop.f32.mrb[0].mxu0
  %v1604 = vpop.f32.mrb[0].mxu0
  %v1605 = vadd.f32 %v1508, %v1604
  %v1606 = vpop.f32.mrb[0].mxu0
  %1607 = vmatprep.mubr.bf16.mxu0 %v717
  %1608 = vmatmul.mubr.bf16.gmra.mrb[0].mxu0 %v716
  %v1609 = vpop.f32.mrb[0].mxu0
  %v1610 = vadd.f32 %v1513, %v1609
  %v1611 = vpop.f32.mrb[0].mxu0
  %v1612 = vpop.f32.mrb[0].mxu0
  %v1613 = vadd.f32 %v1516, %v1612
  %v1614 = vpop.f32.mrb[0].mxu0
  %1615 = vmatprep.mubr.bf16.mxu0 %v726
  %1616 = vmatmul.mubr.bf16.gmra.mrb[0].mxu0 %v725
  %v1617 = vpop.f32.mrb[0].mxu0
  %v1618 = vadd.f32 %v1521, %v1617
  %v1619 = vpop.f32.mrb[0].mxu0
  %v1620 = vpop.f32.mrb[0].mxu0
  %v1621 = vadd.f32 %v1524, %v1620
  %v1622 = vpop.f32.mrb[0].mxu0
  %1623 = vmatprep.mubr.bf16.mxu0 %v735
  %1624 = vmatmul.mubr.bf16.gmra.mrb[0].mxu0 %v734
  %v1625 = vpop.f32.mrb[0].mxu0
  %v1626 = vadd.f32 %v1529, %v1625
  %v1627 = vpop.f32.mrb[0].mxu0
  %v1628 = vpop.f32.mrb[0].mxu0
  %v1629 = vadd.f32 %v1532, %v1628
  %v1630 = vpop.f32.mrb[0].mxu0
  %1631 = vmatprep.mubr.bf16.mxu0 %v744
  %1632 = vmatmul.mubr.bf16.gmra.mrb[0].mxu0 %v743
  %v1633 = vpop.f32.mrb[0].mxu0
  %v1634 = vadd.f32 %v1537, %v1633
  %v1635 = vpop.f32.mrb[0].mxu0
  %v1636 = vpop.f32.mrb[0].mxu0
  %v1637 = vadd.f32 %v1540, %v1636
  %v1638 = vpop.f32.mrb[0].mxu0
  %1639 = vmatprep.mubr.bf16.mxu0 %v753
  %1640 = vmatmul.mubr.bf16.gmra.mrb[0].mxu0 %v752
  %v1641 = vpop.f32.mrb[0].mxu0
  %v1642 = vadd.f32 %v1545, %v1641
  %v1643 = vpop.f32.mrb[0].mxu0
  %v1644 = vpop.f32.mrb[0].mxu0
  %v1645 = vadd.f32 %v1548, %v1644
  %v1646 = vpop.f32.mrb[0].mxu0
  %1647 = vmatprep.mubr.bf16.mxu0 %v762
  %1648 = vmatmul.mubr.bf16.gmra.mrb[0].mxu0 %v761
  %v1649 = vpop.f32.mrb[0].mxu0
  %v1650 = vadd.f32 %v1553, %v1649
  %v1651 = vpop.f32.mrb[0].mxu0
  %v1652 = vpop.f32.mrb[0].mxu0
  %v1653 = vadd.f32 %v1556, %v1652
  %v1654 = vpop.f32.mrb[0].mxu0
  %1655 = vdwg.mxu0
  %1656 = vmatprep.subr.bf16.mxu0 0
  %1657 = vmatpush1.bf16.msra.mxu0 %v1188
  %1658 = vmatprep.subr.bf16.mxu0 0
  %1659 = vmatpush1.bf16.msra.mxu0 %v1189
  %1660 = vmatprep.subr.bf16.mxu0 0
  %1661 = vmatpush1.bf16.msra.mxu0 %v1190
  %1662 = vmatprep.subr.bf16.mxu0 0
  %1663 = vmatpush1.bf16.msra.mxu0 %v1191
  %1664 = vmatprep.subr.bf16.mxu0 0
  %1665 = vmatpush1.bf16.msra.mxu0 %v1192
  %1666 = vmatprep.subr.bf16.mxu0 0
  %1667 = vmatpush1.bf16.msra.mxu0 %v1193
  %1668 = vmatprep.subr.bf16.mxu0 0
  %1669 = vmatpush1.bf16.msra.mxu0 %v1194
  %1670 = vmatprep.subr.bf16.mxu0 0
  %1671 = vmatpush1.bf16.msra.mxu0 %v1195
  %1672 = vmatprep.subr.bf16.mxu0 0
  %1673 = vmatpush1.bf16.msra.mxu0 0
  %1674 = vmatprep.subr.bf16.mxu0 0
  %1675 = vmatpush1.bf16.msra.mxu0 0
  %1676 = vmatprep.subr.bf16.mxu0 0
  %1677 = vmatpush1.bf16.msra.mxu0 0
  %1678 = vmatprep.subr.bf16.mxu0 0
  %1679 = vmatpush1.bf16.msra.mxu0 0
  %1680 = vmatprep.subr.bf16.mxu0 0
  %1681 = vmatpush1.bf16.msra.mxu0 0
  %1682 = vmatprep.subr.bf16.mxu0 0
  %1683 = vmatpush1.bf16.msra.mxu0 0
  %1684 = vmatprep.subr.bf16.mxu0 0
  %1685 = vmatpush1.bf16.msra.mxu0 0
  %1686 = vmatprep.subr.bf16.mxu0 0
  %1687 = vmatpush1.bf16.msra.mxu0 0
  %1688 = vmatprep.mubr.bf16.mxu0 0
  %1689 = vmatmul.mubr.bf16.gmra.mrb[0].mxu0 %v700
  %v1690 = vpop.f32.mrb[0].mxu0
  %v1691 = vadd.f32 %v1594, %v1690
  %v1692 = vpop.f32.mrb[0].mxu0
  %v1693 = vpop.f32.mrb[0].mxu0
  %v1694 = vadd.f32 %v1597, %v1693
  %v1695 = vpop.f32.mrb[0].mxu0
  %1696 = vmatprep.mubr.bf16.mxu0 0
  %1697 = vmatmul.mubr.bf16.gmra.mrb[0].mxu0 %v709
  %v1698 = vpop.f32.mrb[0].mxu0
  %v1699 = vadd.f32 %v1602, %v1698
  %v1700 = vpop.f32.mrb[0].mxu0
  %v1701 = vpop.f32.mrb[0].mxu0
  %v1702 = vadd.f32 %v1605, %v1701
  %v1703 = vpop.f32.mrb[0].mxu0
  %1704 = vmatprep.mubr.bf16.mxu0 0
  %1705 = vmatmul.mubr.bf16.gmra.mrb[0].mxu0 %v718
  %v1706 = vpop.f32.mrb[0].mxu0
  %v1707 = vadd.f32 %v1610, %v1706
  %v1708 = vpop.f32.mrb[0].mxu0
  %v1709 = vpop.f32.mrb[0].mxu0
  %v1710 = vadd.f32 %v1613, %v1709
  %v1711 = vpop.f32.mrb[0].mxu0
  %1712 = vmatprep.mubr.bf16.mxu0 0
  %1713 = vmatmul.mubr.bf16.gmra.mrb[0].mxu0 %v727
  %v1714 = vpop.f32.mrb[0].mxu0
  %v1715 = vadd.f32 %v1618, %v1714
  %v1716 = vpop.f32.mrb[0].mxu0
  %v1717 = vpop.f32.mrb[0].mxu0
  %v1718 = vadd.f32 %v1621, %v1717
  %v1719 = vpop.f32.mrb[0].mxu0
  %1720 = vmatprep.mubr.bf16.mxu0 0
  %1721 = vmatmul.mubr.bf16.gmra.mrb[0].mxu0 %v736
  %v1722 = vpop.f32.mrb[0].mxu0
  %v1723 = vadd.f32 %v1626, %v1722
  %v1724 = vpop.f32.mrb[0].mxu0
  %v1725 = vpop.f32.mrb[0].mxu0
  %v1726 = vadd.f32 %v1629, %v1725
  %v1727 = vpop.f32.mrb[0].mxu0
  %1728 = vmatprep.mubr.bf16.mxu0 0
  %1729 = vmatmul.mubr.bf16.gmra.mrb[0].mxu0 %v745
  %v1730 = vpop.f32.mrb[0].mxu0
  %v1731 = vadd.f32 %v1634, %v1730
  %v1732 = vpop.f32.mrb[0].mxu0
  %v1733 = vpop.f32.mrb[0].mxu0
  %v1734 = vadd.f32 %v1637, %v1733
  %v1735 = vpop.f32.mrb[0].mxu0
  %1736 = vmatprep.mubr.bf16.mxu0 0
  %1737 = vmatmul.mubr.bf16.gmra.mrb[0].mxu0 %v754
  %v1738 = vpop.f32.mrb[0].mxu0
  %v1739 = vadd.f32 %v1642, %v1738
  %v1740 = vpop.f32.mrb[0].mxu0
  %v1741 = vpop.f32.mrb[0].mxu0
  %v1742 = vadd.f32 %v1645, %v1741
  %v1743 = vpop.f32.mrb[0].mxu0
  %1744 = vmatprep.mubr.bf16.mxu0 0
  %1745 = vmatmul.mubr.bf16.gmra.mrb[0].mxu0 %v763
  %v1746 = vpop.f32.mrb[0].mxu0
  %v1747 = vadd.f32 %v1650, %v1746
  %v1748 = vpop.f32.mrb[0].mxu0
  %v1749 = vpop.f32.mrb[0].mxu0
  %v1750 = vadd.f32 %v1653, %v1749
  %v1751 = vpop.f32.mrb[0].mxu0
  %1752 = vdwg.mxu0
  %v1833 = vunpack.c.l.b16 %v100
  %v1834 = vunpack.c.h.b16 %v100
  %v1835 = vunpack.c.l.b16 %v101
  %v1836 = vunpack.c.h.b16 %v101
  %v1837 = vunpack.c.l.b16 %v102
  %v1838 = vunpack.c.h.b16 %v102
  %v1839 = vunpack.c.l.b16 %v103
  %v1840 = vunpack.c.h.b16 %v103
  %v1841 = vunpack.c.l.b16 %v104
  %v1842 = vunpack.c.l.b16 %v105
  %v1843 = vunpack.c.h.b16 %v105
  %v1844 = vunpack.c.l.b16 %v106
  %v1845 = vunpack.c.h.b16 %v106
  %v1846 = vunpack.c.l.b16 %v107
  %v1847 = vunpack.c.h.b16 %v107
  %v1848 = vunpack.c.l.b16 %v108
  %v1849 = vunpack.c.h.b16 %v108
  %v1850 = vunpack.c.l.b16 %v109
  %v1851 = vunpack.c.l.b16 %v110
  %v1852 = vunpack.c.h.b16 %v110
  %v1853 = vunpack.c.l.b16 %v111
  %v1854 = vunpack.c.h.b16 %v111
  %v1855 = vunpack.c.l.b16 %v112
  %v1856 = vunpack.c.h.b16 %v112
  %v1857 = vunpack.c.l.b16 %v113
  %v1858 = vunpack.c.h.b16 %v113
  %v1859 = vunpack.c.l.b16 %v114
  %v1860 = vunpack.c.l.b16 %v115
  %v1861 = vunpack.c.h.b16 %v115
  %v1862 = vunpack.c.l.b16 %v116
  %v1863 = vunpack.c.h.b16 %v116
  %v1864 = vunpack.c.l.b16 %v117
  %v1865 = vunpack.c.h.b16 %v117
  %v1866 = vunpack.c.l.b16 %v118
  %v1867 = vunpack.c.h.b16 %v118
  %v1868 = vunpack.c.l.b16 %v119
  %v1869 = vunpack.c.l.b16 %v120
  %v1870 = vunpack.c.h.b16 %v120
  %v1871 = vunpack.c.l.b16 %v121
  %v1872 = vunpack.c.h.b16 %v121
  %v1873 = vunpack.c.l.b16 %v122
  %v1874 = vunpack.c.h.b16 %v122
  %v1875 = vunpack.c.l.b16 %v123
  %v1876 = vunpack.c.h.b16 %v123
  %v1877 = vunpack.c.l.b16 %v124
  %v1878 = vunpack.c.l.b16 %v125
  %v1879 = vunpack.c.h.b16 %v125
  %v1880 = vunpack.c.l.b16 %v126
  %v1881 = vunpack.c.h.b16 %v126
  %v1882 = vunpack.c.l.b16 %v127
  %v1883 = vunpack.c.h.b16 %v127
  %v1884 = vunpack.c.l.b16 %v128
  %v1885 = vunpack.c.h.b16 %v128
  %v1886 = vunpack.c.l.b16 %v129
  %v1887 = vunpack.c.l.b16 %v130
  %v1888 = vunpack.c.h.b16 %v130
  %v1889 = vunpack.c.l.b16 %v131
  %v1890 = vunpack.c.h.b16 %v131
  %v1891 = vunpack.c.l.b16 %v132
  %v1892 = vunpack.c.h.b16 %v132
  %v1893 = vunpack.c.l.b16 %v133
  %v1894 = vunpack.c.h.b16 %v133
  %v1895 = vunpack.c.l.b16 %v134
  %v1896 = vunpack.c.l.b16 %v135
  %v1897 = vunpack.c.h.b16 %v135
  %v1898 = vunpack.c.l.b16 %v136
  %v1899 = vunpack.c.h.b16 %v136
  %v1900 = vunpack.c.l.b16 %v137
  %v1901 = vunpack.c.h.b16 %v137
  %v1902 = vunpack.c.l.b16 %v138
  %v1903 = vunpack.c.h.b16 %v138
  %v1904 = vunpack.c.l.b16 %v139
  %v1905 = vunpack.c.l.b16 %v140
  %v1906 = vunpack.c.h.b16 %v140
  %v1907 = vunpack.c.l.b16 %v141
  %v1908 = vunpack.c.h.b16 %v141
  %v1909 = vunpack.c.l.b16 %v142
  %v1910 = vunpack.c.h.b16 %v142
  %v1911 = vunpack.c.l.b16 %v143
  %v1912 = vunpack.c.h.b16 %v143
  %v1913 = vunpack.c.l.b16 %v144
  %v1914 = vunpack.c.l.b16 %v145
  %v1915 = vunpack.c.h.b16 %v145
  %v1916 = vunpack.c.l.b16 %v146
  %v1917 = vunpack.c.h.b16 %v146
  %v1918 = vunpack.c.l.b16 %v147
  %v1919 = vunpack.c.h.b16 %v147
  %v1920 = vunpack.c.l.b16 %v148
  %v1921 = vunpack.c.h.b16 %v148
  %v1922 = vunpack.c.l.b16 %v149
  %v1923 = vunpack.c.l.b16 %v150
  %v1924 = vunpack.c.h.b16 %v150
  %v1925 = vunpack.c.l.b16 %v151
  %v1926 = vunpack.c.h.b16 %v151
  %v1927 = vunpack.c.l.b16 %v152
  %v1928 = vunpack.c.h.b16 %v152
  %v1929 = vunpack.c.l.b16 %v153
  %v1930 = vunpack.c.h.b16 %v153
  %v1931 = vunpack.c.l.b16 %v154
  %v1932 = vunpack.c.l.b16 %v155
  %v1933 = vunpack.c.h.b16 %v155
  %v1934 = vunpack.c.l.b16 %v156
  %v1935 = vunpack.c.h.b16 %v156
  %v1936 = vunpack.c.l.b16 %v157
  %v1937 = vunpack.c.h.b16 %v157
  %v1938 = vunpack.c.l.b16 %v158
  %v1939 = vunpack.c.h.b16 %v158
  %v1940 = vunpack.c.l.b16 %v159
  %v1941 = vunpack.c.l.b16 %v160
  %v1942 = vunpack.c.h.b16 %v160
  %v1943 = vunpack.c.l.b16 %v161
  %v1944 = vunpack.c.h.b16 %v161
  %v1945 = vunpack.c.l.b16 %v162
  %v1946 = vunpack.c.h.b16 %v162
  %v1947 = vunpack.c.l.b16 %v163
  %v1948 = vunpack.c.h.b16 %v163
  %v1949 = vunpack.c.l.b16 %v164
  %v1950 = vunpack.c.l.b16 %v165
  %v1951 = vunpack.c.h.b16 %v165
  %v1952 = vunpack.c.l.b16 %v166
  %v1953 = vunpack.c.h.b16 %v166
  %v1954 = vunpack.c.l.b16 %v167
  %v1955 = vunpack.c.h.b16 %v167
  %v1956 = vunpack.c.l.b16 %v168
  %v1957 = vunpack.c.h.b16 %v168
  %v1958 = vunpack.c.l.b16 %v169
  %v1959 = vunpack.c.l.b16 %v170
  %v1960 = vunpack.c.h.b16 %v170
  %v1961 = vunpack.c.l.b16 %v171
  %v1962 = vunpack.c.h.b16 %v171
  %v1963 = vunpack.c.l.b16 %v172
  %v1964 = vunpack.c.h.b16 %v172
  %v1965 = vunpack.c.l.b16 %v173
  %v1966 = vunpack.c.h.b16 %v173
  %v1967 = vunpack.c.l.b16 %v174
  %v1968 = vunpack.c.l.b16 %v175
  %v1969 = vunpack.c.h.b16 %v175
  %v1970 = vunpack.c.l.b16 %v176
  %v1971 = vunpack.c.h.b16 %v176
  %v1972 = vunpack.c.l.b16 %v177
  %v1973 = vunpack.c.h.b16 %v177
  %v1974 = vunpack.c.l.b16 %v178
  %v1975 = vunpack.c.h.b16 %v178
  %v1976 = vunpack.c.l.b16 %v179
  %v1977 = vpack.c.b16 %v1842, %v1833
  %v1978 = vpack.c.b16 %v1843, %v1834
  %v1979 = vpack.c.b16 %v1844, %v1835
  %v1980 = vpack.c.b16 %v1845, %v1836
  %v1981 = vpack.c.b16 %v1846, %v1837
  %v1982 = vpack.c.b16 %v1847, %v1838
  %v1983 = vpack.c.b16 %v1848, %v1839
  %v1984 = vpack.c.b16 %v1849, %v1840
  %v1985 = vpack.c.b16 %v1850, %v1841
  %v1986 = vpack.c.b16 %v1860, %v1851
  %v1987 = vpack.c.b16 %v1861, %v1852
  %v1988 = vpack.c.b16 %v1862, %v1853
  %v1989 = vpack.c.b16 %v1863, %v1854
  %v1990 = vpack.c.b16 %v1864, %v1855
  %v1991 = vpack.c.b16 %v1865, %v1856
  %v1992 = vpack.c.b16 %v1866, %v1857
  %v1993 = vpack.c.b16 %v1867, %v1858
  %v1994 = vpack.c.b16 %v1868, %v1859
  %v1995 = vpack.c.b16 %v1878, %v1869
  %v1996 = vpack.c.b16 %v1879, %v1870
  %v1997 = vpack.c.b16 %v1880, %v1871
  %v1998 = vpack.c.b16 %v1881, %v1872
  %v1999 = vpack.c.b16 %v1882, %v1873
  %v2000 = vpack.c.b16 %v1883, %v1874
  %v2001 = vpack.c.b16 %v1884, %v1875
  %v2002 = vpack.c.b16 %v1885, %v1876
  %v2003 = vpack.c.b16 %v1886, %v1877
  %v2004 = vpack.c.b16 %v1896, %v1887
  %v2005 = vpack.c.b16 %v1897, %v1888
  %v2006 = vpack.c.b16 %v1898, %v1889
  %v2007 = vpack.c.b16 %v1899, %v1890
  %v2008 = vpack.c.b16 %v1900, %v1891
  %v2009 = vpack.c.b16 %v1901, %v1892
  %v2010 = vpack.c.b16 %v1902, %v1893
  %v2011 = vpack.c.b16 %v1903, %v1894
  %v2012 = vpack.c.b16 %v1904, %v1895
  %v2013 = vpack.c.b16 %v1914, %v1905
  %v2014 = vpack.c.b16 %v1915, %v1906
  %v2015 = vpack.c.b16 %v1916, %v1907
  %v2016 = vpack.c.b16 %v1917, %v1908
  %v2017 = vpack.c.b16 %v1918, %v1909
  %v2018 = vpack.c.b16 %v1919, %v1910
  %v2019 = vpack.c.b16 %v1920, %v1911
  %v2020 = vpack.c.b16 %v1921, %v1912
  %v2021 = vpack.c.b16 %v1922, %v1913
  %v2022 = vpack.c.b16 %v1932, %v1923
  %v2023 = vpack.c.b16 %v1933, %v1924
  %v2024 = vpack.c.b16 %v1934, %v1925
  %v2025 = vpack.c.b16 %v1935, %v1926
  %v2026 = vpack.c.b16 %v1936, %v1927
  %v2027 = vpack.c.b16 %v1937, %v1928
  %v2028 = vpack.c.b16 %v1938, %v1929
  %v2029 = vpack.c.b16 %v1939, %v1930
  %v2030 = vpack.c.b16 %v1940, %v1931
  %v2031 = vpack.c.b16 %v1950, %v1941
  %v2032 = vpack.c.b16 %v1951, %v1942
  %v2033 = vpack.c.b16 %v1952, %v1943
  %v2034 = vpack.c.b16 %v1953, %v1944
  %v2035 = vpack.c.b16 %v1954, %v1945
  %v2036 = vpack.c.b16 %v1955, %v1946
  %v2037 = vpack.c.b16 %v1956, %v1947
  %v2038 = vpack.c.b16 %v1957, %v1948
  %v2039 = vpack.c.b16 %v1958, %v1949
  %v2040 = vpack.c.b16 %v1968, %v1959
  %v2041 = vpack.c.b16 %v1969, %v1960
  %v2042 = vpack.c.b16 %v1970, %v1961
  %v2043 = vpack.c.b16 %v1971, %v1962
  %v2044 = vpack.c.b16 %v1972, %v1963
  %v2045 = vpack.c.b16 %v1973, %v1964
  %v2046 = vpack.c.b16 %v1974, %v1965
  %v2047 = vpack.c.b16 %v1975, %v1966
  %v2048 = vpack.c.b16 %v1976, %v1967
  %v2265 = vunpack.c.l.b16 %v324
  %v2266 = vunpack.c.l.b16 %v325
  %v2267 = vunpack.c.l.b16 %v326
  %v2268 = vunpack.c.l.b16 %v327
  %v2269 = vunpack.c.l.b16 %v328
  %v2270 = vunpack.c.l.b16 %v329
  %v2271 = vunpack.c.l.b16 %v330
  %v2272 = vunpack.c.l.b16 %v331
  %v2273 = vunpack.c.l.b16 %v332
  %v2274 = vunpack.c.l.b16 %v333
  %v2275 = vunpack.c.l.b16 %v334
  %v2276 = vunpack.c.l.b16 %v335
  %v2277 = vunpack.c.l.b16 %v336
  %v2278 = vunpack.c.l.b16 %v337
  %v2279 = vunpack.c.l.b16 %v338
  %v2280 = vunpack.c.l.b16 %v339
  %v2281 = vunpack.c.l.b16 %v340
  %v2282 = vunpack.c.l.b16 %v341
  %v2283 = vunpack.c.l.b16 %v342
  %v2284 = vunpack.c.l.b16 %v343
  %v2285 = vunpack.c.l.b16 %v344
  %v2286 = vunpack.c.l.b16 %v345
  %v2287 = vunpack.c.l.b16 %v346
  %v2288 = vunpack.c.l.b16 %v347
  %v2289 = vunpack.c.l.b16 %v348
  %v2290 = vunpack.c.l.b16 %v349
  %v2291 = vunpack.c.l.b16 %v350
  %v2292 = vunpack.c.l.b16 %v351
  %v2293 = vunpack.c.l.b16 %v352
  %v2294 = vunpack.c.l.b16 %v353
  %v2295 = vunpack.c.l.b16 %v354
  %v2296 = vunpack.c.l.b16 %v355
  %v2297 = vunpack.c.l.b16 %v356
  %v2298 = vunpack.c.l.b16 %v357
  %v2299 = vunpack.c.l.b16 %v358
  %v2300 = vunpack.c.l.b16 %v359
  %v2301 = vunpack.c.l.b16 %v360
  %v2302 = vunpack.c.l.b16 %v361
  %v2303 = vunpack.c.l.b16 %v362
  %v2304 = vunpack.c.l.b16 %v363
  %v2305 = vunpack.c.l.b16 %v364
  %v2306 = vunpack.c.l.b16 %v365
  %v2307 = vunpack.c.l.b16 %v366
  %v2308 = vunpack.c.l.b16 %v367
  %v2309 = vunpack.c.l.b16 %v368
  %v2310 = vunpack.c.l.b16 %v369
  %v2311 = vunpack.c.l.b16 %v370
  %v2312 = vunpack.c.l.b16 %v371
  %v2313 = vunpack.c.l.b16 %v372
  %v2314 = vunpack.c.l.b16 %v373
  %v2315 = vunpack.c.l.b16 %v374
  %v2316 = vunpack.c.l.b16 %v375
  %v2317 = vunpack.c.l.b16 %v376
  %v2318 = vunpack.c.l.b16 %v377
  %v2319 = vunpack.c.l.b16 %v378
  %v2320 = vunpack.c.l.b16 %v379
  %v2321 = vunpack.c.l.b16 %v380
  %v2322 = vunpack.c.l.b16 %v381
  %v2323 = vunpack.c.l.b16 %v382
  %v2324 = vunpack.c.l.b16 %v383
  %v2325 = vunpack.c.l.b16 %v384
  %v2326 = vunpack.c.l.b16 %v385
  %v2327 = vunpack.c.l.b16 %v386
  %v2328 = vunpack.c.l.b16 %v387
  %v2329 = vunpack.c.l.b16 %v388
  %v2330 = vunpack.c.l.b16 %v389
  %v2331 = vunpack.c.l.b16 %v390
  %v2332 = vunpack.c.l.b16 %v391
  %v2333 = vunpack.c.l.b16 %v392
  %v2334 = vunpack.c.l.b16 %v393
  %v2335 = vunpack.c.l.b16 %v394
  %v2336 = vunpack.c.l.b16 %v395
  %v2337 = vunpack.c.l.b16 %v396
  %v2338 = vunpack.c.l.b16 %v397
  %v2339 = vunpack.c.l.b16 %v398
  %v2340 = vunpack.c.l.b16 %v399
  %v2341 = vunpack.c.l.b16 %v400
  %v2342 = vunpack.c.l.b16 %v401
  %v2343 = vunpack.c.l.b16 %v402
  %v2344 = vunpack.c.l.b16 %v403
  %v2345 = vunpack.c.l.b16 %v404
  %v2346 = vunpack.c.l.b16 %v405
  %v2347 = vunpack.c.l.b16 %v406
  %v2348 = vunpack.c.l.b16 %v407
  %v2349 = vunpack.c.l.b16 %v408
  %v2350 = vunpack.c.l.b16 %v409
  %v2351 = vunpack.c.l.b16 %v410
  %v2352 = vunpack.c.l.b16 %v411
  %v2353 = vunpack.c.l.b16 %v412
  %v2354 = vunpack.c.l.b16 %v413
  %v2355 = vunpack.c.l.b16 %v414
  %v2356 = vunpack.c.l.b16 %v415
  %v2357 = vunpack.c.l.b16 %v416
  %v2358 = vunpack.c.l.b16 %v417
  %v2359 = vunpack.c.l.b16 %v418
  %v2360 = vunpack.c.l.b16 %v419
  %v2361 = vunpack.c.l.b16 %v420
  %v2362 = vunpack.c.l.b16 %v421
  %v2363 = vunpack.c.l.b16 %v422
  %v2364 = vunpack.c.l.b16 %v423
  %v2365 = vunpack.c.l.b16 %v424
  %v2366 = vunpack.c.l.b16 %v425
  %v2367 = vunpack.c.l.b16 %v426
  %v2368 = vunpack.c.l.b16 %v427
  %v2369 = vunpack.c.l.b16 %v428
  %v2370 = vunpack.c.l.b16 %v429
  %v2371 = vunpack.c.l.b16 %v430
  %v2372 = vunpack.c.l.b16 %v431
  %v2373 = vunpack.c.l.b16 %v432
  %v2374 = vunpack.c.l.b16 %v433
  %v2375 = vunpack.c.l.b16 %v434
  %v2376 = vunpack.c.l.b16 %v435
  %v2377 = vunpack.c.l.b16 %v436
  %v2378 = vunpack.c.l.b16 %v437
  %v2379 = vunpack.c.l.b16 %v438
  %v2380 = vunpack.c.l.b16 %v439
  %v2381 = vunpack.c.l.b16 %v440
  %v2382 = vunpack.c.l.b16 %v441
  %v2383 = vunpack.c.l.b16 %v442
  %v2384 = vunpack.c.l.b16 %v443
  %v2385 = vunpack.c.l.b16 %v444
  %v2386 = vunpack.c.l.b16 %v445
  %v2387 = vunpack.c.l.b16 %v446
  %v2388 = vunpack.c.l.b16 %v447
  %v2389 = vunpack.c.l.b16 %v448
  %v2390 = vunpack.c.l.b16 %v449
  %v2391 = vunpack.c.l.b16 %v450
  %v2392 = vunpack.c.l.b16 %v451
  %v2393 = vunpack.c.l.b16 %v452
  %v2394 = vunpack.c.l.b16 %v453
  %v2395 = vunpack.c.l.b16 %v454
  %v2396 = vunpack.c.l.b16 %v455
  %v2397 = vunpack.c.l.b16 %v456
  %v2398 = vunpack.c.l.b16 %v457
  %v2399 = vunpack.c.l.b16 %v458
  %v2400 = vunpack.c.l.b16 %v459
  %v2401 = vunpack.c.l.b16 %v460
  %v2402 = vunpack.c.l.b16 %v461
  %v2403 = vunpack.c.l.b16 %v462
  %v2404 = vunpack.c.l.b16 %v463
  %v2405 = vunpack.c.l.b16 %v464
  %v2406 = vunpack.c.l.b16 %v465
  %v2407 = vunpack.c.l.b16 %v466
  %v2408 = vunpack.c.l.b16 %v467
  %v2409 = vpack.c.b16 %v2266, %v2265
  %v2410 = vpack.c.b16 %v2268, %v2267
  %v2411 = vpack.c.b16 %v2270, %v2269
  %v2412 = vpack.c.b16 %v2272, %v2271
  %v2413 = vpack.c.b16 %v2274, %v2273
  %v2414 = vpack.c.b16 %v2276, %v2275
  %v2415 = vpack.c.b16 %v2278, %v2277
  %v2416 = vpack.c.b16 %v2280, %v2279
  %v2417 = vpack.c.b16 %v2282, %v2281
  %v2418 = vpack.c.b16 %v2284, %v2283
  %v2419 = vpack.c.b16 %v2286, %v2285
  %v2420 = vpack.c.b16 %v2288, %v2287
  %v2421 = vpack.c.b16 %v2290, %v2289
  %v2422 = vpack.c.b16 %v2292, %v2291
  %v2423 = vpack.c.b16 %v2294, %v2293
  %v2424 = vpack.c.b16 %v2296, %v2295
  %v2425 = vpack.c.b16 %v2298, %v2297
  %v2426 = vpack.c.b16 %v2300, %v2299
  %v2427 = vpack.c.b16 %v2302, %v2301
  %v2428 = vpack.c.b16 %v2304, %v2303
  %v2429 = vpack.c.b16 %v2306, %v2305
  %v2430 = vpack.c.b16 %v2308, %v2307
  %v2431 = vpack.c.b16 %v2310, %v2309
  %v2432 = vpack.c.b16 %v2312, %v2311
  %v2433 = vpack.c.b16 %v2314, %v2313
  %v2434 = vpack.c.b16 %v2316, %v2315
  %v2435 = vpack.c.b16 %v2318, %v2317
  %v2436 = vpack.c.b16 %v2320, %v2319
  %v2437 = vpack.c.b16 %v2322, %v2321
  %v2438 = vpack.c.b16 %v2324, %v2323
  %v2439 = vpack.c.b16 %v2326, %v2325
  %v2440 = vpack.c.b16 %v2328, %v2327
  %v2441 = vpack.c.b16 %v2330, %v2329
  %v2442 = vpack.c.b16 %v2332, %v2331
  %v2443 = vpack.c.b16 %v2334, %v2333
  %v2444 = vpack.c.b16 %v2336, %v2335
  %v2445 = vpack.c.b16 %v2338, %v2337
  %v2446 = vpack.c.b16 %v2340, %v2339
  %v2447 = vpack.c.b16 %v2342, %v2341
  %v2448 = vpack.c.b16 %v2344, %v2343
  %v2449 = vpack.c.b16 %v2346, %v2345
  %v2450 = vpack.c.b16 %v2348, %v2347
  %v2451 = vpack.c.b16 %v2350, %v2349
  %v2452 = vpack.c.b16 %v2352, %v2351
  %v2453 = vpack.c.b16 %v2354, %v2353
  %v2454 = vpack.c.b16 %v2356, %v2355
  %v2455 = vpack.c.b16 %v2358, %v2357
  %v2456 = vpack.c.b16 %v2360, %v2359
  %v2457 = vpack.c.b16 %v2362, %v2361
  %v2458 = vpack.c.b16 %v2364, %v2363
  %v2459 = vpack.c.b16 %v2366, %v2365
  %v2460 = vpack.c.b16 %v2368, %v2367
  %v2461 = vpack.c.b16 %v2370, %v2369
  %v2462 = vpack.c.b16 %v2372, %v2371
  %v2463 = vpack.c.b16 %v2374, %v2373
  %v2464 = vpack.c.b16 %v2376, %v2375
  %v2465 = vpack.c.b16 %v2378, %v2377
  %v2466 = vpack.c.b16 %v2380, %v2379
  %v2467 = vpack.c.b16 %v2382, %v2381
  %v2468 = vpack.c.b16 %v2384, %v2383
  %v2469 = vpack.c.b16 %v2386, %v2385
  %v2470 = vpack.c.b16 %v2388, %v2387
  %v2471 = vpack.c.b16 %v2390, %v2389
  %v2472 = vpack.c.b16 %v2392, %v2391
  %v2473 = vpack.c.b16 %v2394, %v2393
  %v2474 = vpack.c.b16 %v2396, %v2395
  %v2475 = vpack.c.b16 %v2398, %v2397
  %v2476 = vpack.c.b16 %v2400, %v2399
  %v2477 = vpack.c.b16 %v2402, %v2401
  %v2478 = vpack.c.b16 %v2404, %v2403
  %v2479 = vpack.c.b16 %v2406, %v2405
  %v2480 = vpack.c.b16 %v2408, %v2407
  %2553 = vmatprep.subr.bf16.mxu0 0
  %2554 = vmatpush1.bf16.msra.mxu0 %v2409
  %2555 = vmatprep.subr.bf16.mxu0 0
  %2556 = vmatpush1.bf16.msra.mxu0 %v2410
  %2557 = vmatprep.subr.bf16.mxu0 0
  %2558 = vmatpush1.bf16.msra.mxu0 %v2411
  %2559 = vmatprep.subr.bf16.mxu0 0
  %2560 = vmatpush1.bf16.msra.mxu0 %v2412
  %2561 = vmatprep.subr.bf16.mxu0 0
  %2562 = vmatpush1.bf16.msra.mxu0 %v2413
  %2563 = vmatprep.subr.bf16.mxu0 0
  %2564 = vmatpush1.bf16.msra.mxu0 %v2414
  %2565 = vmatprep.subr.bf16.mxu0 0
  %2566 = vmatpush1.bf16.msra.mxu0 %v2415
  %2567 = vmatprep.subr.bf16.mxu0 0
  %2568 = vmatpush1.bf16.msra.mxu0 %v2416
  %2569 = vmatprep.subr.bf16.mxu0 0
  %2570 = vmatpush1.bf16.msra.mxu0 %v2417
  %2571 = vmatprep.subr.bf16.mxu0 0
  %2572 = vmatpush1.bf16.msra.mxu0 %v2418
  %2573 = vmatprep.subr.bf16.mxu0 0
  %2574 = vmatpush1.bf16.msra.mxu0 %v2419
  %2575 = vmatprep.subr.bf16.mxu0 0
  %2576 = vmatpush1.bf16.msra.mxu0 %v2420
  %2577 = vmatprep.subr.bf16.mxu0 0
  %2578 = vmatpush1.bf16.msra.mxu0 %v2421
  %2579 = vmatprep.subr.bf16.mxu0 0
  %2580 = vmatpush1.bf16.msra.mxu0 %v2422
  %2581 = vmatprep.subr.bf16.mxu0 0
  %2582 = vmatpush1.bf16.msra.mxu0 %v2423
  %2583 = vmatprep.subr.bf16.mxu0 0
  %2584 = vmatpush1.bf16.msra.mxu0 %v2424
  %2585 = vmatprep.mubr.bf16.mxu0 %v1978
  %2586 = vmatmul.mubr.bf16.gmra.mrb[0].mxu0 %v1977
  %v2587 = vpop.f32.mrb[0].mxu0
  %v2588 = vadd.f32 0.0, %v2587
  %v2589 = vpop.f32.mrb[0].mxu0
  %v2590 = vpop.f32.mrb[0].mxu0
  %v2591 = vadd.f32 0.0, %v2590
  %v2592 = vpop.f32.mrb[0].mxu0
  %2593 = vmatprep.mubr.bf16.mxu0 %v1987
  %2594 = vmatmul.mubr.bf16.gmra.mrb[0].mxu0 %v1986
  %v2595 = vpop.f32.mrb[0].mxu0
  %v2596 = vadd.f32 0.0, %v2595
  %v2597 = vpop.f32.mrb[0].mxu0
  %v2598 = vpop.f32.mrb[0].mxu0
  %v2599 = vadd.f32 0.0, %v2598
  %v2600 = vpop.f32.mrb[0].mxu0
  %2601 = vmatprep.mubr.bf16.mxu0 %v1996
  %2602 = vmatmul.mubr.bf16.gmra.mrb[0].mxu0 %v1995
  %v2603 = vpop.f32.mrb[0].mxu0
  %v2604 = vadd.f32 0.0, %v2603
  %v2605 = vpop.f32.mrb[0].mxu0
  %v2606 = vpop.f32.mrb[0].mxu0
  %v2607 = vadd.f32 0.0, %v2606
  %v2608 = vpop.f32.mrb[0].mxu0
  %2609 = vmatprep.mubr.bf16.mxu0 %v2005
  %2610 = vmatmul.mubr.bf16.gmra.mrb[0].mxu0 %v2004
  %v2611 = vpop.f32.mrb[0].mxu0
  %v2612 = vadd.f32 0.0, %v2611
  %v2613 = vpop.f32.mrb[0].mxu0
  %v2614 = vpop.f32.mrb[0].mxu0
  %v2615 = vadd.f32 0.0, %v2614
  %v2616 = vpop.f32.mrb[0].mxu0
  %2617 = vmatprep.mubr.bf16.mxu0 %v2014
  %2618 = vmatmul.mubr.bf16.gmra.mrb[0].mxu0 %v2013
  %v2619 = vpop.f32.mrb[0].mxu0
  %v2620 = vadd.f32 0.0, %v2619
  %v2621 = vpop.f32.mrb[0].mxu0
  %v2622 = vpop.f32.mrb[0].mxu0
  %v2623 = vadd.f32 0.0, %v2622
  %v2624 = vpop.f32.mrb[0].mxu0
  %2625 = vmatprep.mubr.bf16.mxu0 %v2023
  %2626 = vmatmul.mubr.bf16.gmra.mrb[0].mxu0 %v2022
  %v2627 = vpop.f32.mrb[0].mxu0
  %v2628 = vadd.f32 0.0, %v2627
  %v2629 = vpop.f32.mrb[0].mxu0
  %v2630 = vpop.f32.mrb[0].mxu0
  %v2631 = vadd.f32 0.0, %v2630
  %v2632 = vpop.f32.mrb[0].mxu0
  %2633 = vmatprep.mubr.bf16.mxu0 %v2032
  %2634 = vmatmul.mubr.bf16.gmra.mrb[0].mxu0 %v2031
  %v2635 = vpop.f32.mrb[0].mxu0
  %v2636 = vadd.f32 0.0, %v2635
  %v2637 = vpop.f32.mrb[0].mxu0
  %v2638 = vpop.f32.mrb[0].mxu0
  %v2639 = vadd.f32 0.0, %v2638
  %v2640 = vpop.f32.mrb[0].mxu0
  %2641 = vmatprep.mubr.bf16.mxu0 %v2041
  %2642 = vmatmul.mubr.bf16.gmra.mrb[0].mxu0 %v2040
  %v2643 = vpop.f32.mrb[0].mxu0
  %v2644 = vadd.f32 0.0, %v2643
  %v2645 = vpop.f32.mrb[0].mxu0
  %v2646 = vpop.f32.mrb[0].mxu0
  %v2647 = vadd.f32 0.0, %v2646
  %v2648 = vpop.f32.mrb[0].mxu0
  %2649 = vdwg.mxu0
  %2650 = vmatprep.subr.bf16.mxu0 0
  %2651 = vmatpush1.bf16.msra.mxu0 %v2425
  %2652 = vmatprep.subr.bf16.mxu0 0
  %2653 = vmatpush1.bf16.msra.mxu0 %v2426
  %2654 = vmatprep.subr.bf16.mxu0 0
  %2655 = vmatpush1.bf16.msra.mxu0 %v2427
  %2656 = vmatprep.subr.bf16.mxu0 0
  %2657 = vmatpush1.bf16.msra.mxu0 %v2428
  %2658 = vmatprep.subr.bf16.mxu0 0
  %2659 = vmatpush1.bf16.msra.mxu0 %v2429
  %2660 = vmatprep.subr.bf16.mxu0 0
  %2661 = vmatpush1.bf16.msra.mxu0 %v2430
  %2662 = vmatprep.subr.bf16.mxu0 0
  %2663 = vmatpush1.bf16.msra.mxu0 %v2431
  %2664 = vmatprep.subr.bf16.mxu0 0
  %2665 = vmatpush1.bf16.msra.mxu0 %v2432
  %2666 = vmatprep.subr.bf16.mxu0 0
  %2667 = vmatpush1.bf16.msra.mxu0 %v2433
  %2668 = vmatprep.subr.bf16.mxu0 0
  %2669 = vmatpush1.bf16.msra.mxu0 %v2434
  %2670 = vmatprep.subr.bf16.mxu0 0
  %2671 = vmatpush1.bf16.msra.mxu0 %v2435
  %2672 = vmatprep.subr.bf16.mxu0 0
  %2673 = vmatpush1.bf16.msra.mxu0 %v2436
  %2674 = vmatprep.subr.bf16.mxu0 0
  %2675 = vmatpush1.bf16.msra.mxu0 %v2437
  %2676 = vmatprep.subr.bf16.mxu0 0
  %2677 = vmatpush1.bf16.msra.mxu0 %v2438
  %2678 = vmatprep.subr.bf16.mxu0 0
  %2679 = vmatpush1.bf16.msra.mxu0 %v2439
  %2680 = vmatprep.subr.bf16.mxu0 0
  %2681 = vmatpush1.bf16.msra.mxu0 %v2440
  %2682 = vmatprep.mubr.bf16.mxu0 %v1980
  %2683 = vmatmul.mubr.bf16.gmra.mrb[0].mxu0 %v1979
  %v2684 = vpop.f32.mrb[0].mxu0
  %v2685 = vadd.f32 %v2588, %v2684
  %v2686 = vpop.f32.mrb[0].mxu0
  %v2687 = vpop.f32.mrb[0].mxu0
  %v2688 = vadd.f32 %v2591, %v2687
  %v2689 = vpop.f32.mrb[0].mxu0
  %2690 = vmatprep.mubr.bf16.mxu0 %v1989
  %2691 = vmatmul.mubr.bf16.gmra.mrb[0].mxu0 %v1988
  %v2692 = vpop.f32.mrb[0].mxu0
  %v2693 = vadd.f32 %v2596, %v2692
  %v2694 = vpop.f32.mrb[0].mxu0
  %v2695 = vpop.f32.mrb[0].mxu0
  %v2696 = vadd.f32 %v2599, %v2695
  %v2697 = vpop.f32.mrb[0].mxu0
  %2698 = vmatprep.mubr.bf16.mxu0 %v1998
  %2699 = vmatmul.mubr.bf16.gmra.mrb[0].mxu0 %v1997
  %v2700 = vpop.f32.mrb[0].mxu0
  %v2701 = vadd.f32 %v2604, %v2700
  %v2702 = vpop.f32.mrb[0].mxu0
  %v2703 = vpop.f32.mrb[0].mxu0
  %v2704 = vadd.f32 %v2607, %v2703
  %v2705 = vpop.f32.mrb[0].mxu0
  %2706 = vmatprep.mubr.bf16.mxu0 %v2007
  %2707 = vmatmul.mubr.bf16.gmra.mrb[0].mxu0 %v2006
  %v2708 = vpop.f32.mrb[0].mxu0
  %v2709 = vadd.f32 %v2612, %v2708
  %v2710 = vpop.f32.mrb[0].mxu0
  %v2711 = vpop.f32.mrb[0].mxu0
  %v2712 = vadd.f32 %v2615, %v2711
  %v2713 = vpop.f32.mrb[0].mxu0
  %2714 = vmatprep.mubr.bf16.mxu0 %v2016
  %2715 = vmatmul.mubr.bf16.gmra.mrb[0].mxu0 %v2015
  %v2716 = vpop.f32.mrb[0].mxu0
  %v2717 = vadd.f32 %v2620, %v2716
  %v2718 = vpop.f32.mrb[0].mxu0
  %v2719 = vpop.f32.mrb[0].mxu0
  %v2720 = vadd.f32 %v2623, %v2719
  %v2721 = vpop.f32.mrb[0].mxu0
  %2722 = vmatprep.mubr.bf16.mxu0 %v2025
  %2723 = vmatmul.mubr.bf16.gmra.mrb[0].mxu0 %v2024
  %v2724 = vpop.f32.mrb[0].mxu0
  %v2725 = vadd.f32 %v2628, %v2724
  %v2726 = vpop.f32.mrb[0].mxu0
  %v2727 = vpop.f32.mrb[0].mxu0
  %v2728 = vadd.f32 %v2631, %v2727
  %v2729 = vpop.f32.mrb[0].mxu0
  %2730 = vmatprep.mubr.bf16.mxu0 %v2034
  %2731 = vmatmul.mubr.bf16.gmra.mrb[0].mxu0 %v2033
  %v2732 = vpop.f32.mrb[0].mxu0
  %v2733 = vadd.f32 %v2636, %v2732
  %v2734 = vpop.f32.mrb[0].mxu0
  %v2735 = vpop.f32.mrb[0].mxu0
  %v2736 = vadd.f32 %v2639, %v2735
  %v2737 = vpop.f32.mrb[0].mxu0
  %2738 = vmatprep.mubr.bf16.mxu0 %v2043
  %2739 = vmatmul.mubr.bf16.gmra.mrb[0].mxu0 %v2042
  %v2740 = vpop.f32.mrb[0].mxu0
  %v2741 = vadd.f32 %v2644, %v2740
  %v2742 = vpop.f32.mrb[0].mxu0
  %v2743 = vpop.f32.mrb[0].mxu0
  %v2744 = vadd.f32 %v2647, %v2743
  %v2745 = vpop.f32.mrb[0].mxu0
  %2746 = vdwg.mxu0
  %2747 = vmatprep.subr.bf16.mxu0 0
  %2748 = vmatpush1.bf16.msra.mxu0 %v2441
  %2749 = vmatprep.subr.bf16.mxu0 0
  %2750 = vmatpush1.bf16.msra.mxu0 %v2442
  %2751 = vmatprep.subr.bf16.mxu0 0
  %2752 = vmatpush1.bf16.msra.mxu0 %v2443
  %2753 = vmatprep.subr.bf16.mxu0 0
  %2754 = vmatpush1.bf16.msra.mxu0 %v2444
  %2755 = vmatprep.subr.bf16.mxu0 0
  %2756 = vmatpush1.bf16.msra.mxu0 %v2445
  %2757 = vmatprep.subr.bf16.mxu0 0
  %2758 = vmatpush1.bf16.msra.mxu0 %v2446
  %2759 = vmatprep.subr.bf16.mxu0 0
  %2760 = vmatpush1.bf16.msra.mxu0 %v2447
  %2761 = vmatprep.subr.bf16.mxu0 0
  %2762 = vmatpush1.bf16.msra.mxu0 %v2448
  %2763 = vmatprep.subr.bf16.mxu0 0
  %2764 = vmatpush1.bf16.msra.mxu0 %v2449
  %2765 = vmatprep.subr.bf16.mxu0 0
  %2766 = vmatpush1.bf16.msra.mxu0 %v2450
  %2767 = vmatprep.subr.bf16.mxu0 0
  %2768 = vmatpush1.bf16.msra.mxu0 %v2451
  %2769 = vmatprep.subr.bf16.mxu0 0
  %2770 = vmatpush1.bf16.msra.mxu0 %v2452
  %2771 = vmatprep.subr.bf16.mxu0 0
  %2772 = vmatpush1.bf16.msra.mxu0 %v2453
  %2773 = vmatprep.subr.bf16.mxu0 0
  %2774 = vmatpush1.bf16.msra.mxu0 %v2454
  %2775 = vmatprep.subr.bf16.mxu0 0
  %2776 = vmatpush1.bf16.msra.mxu0 %v2455
  %2777 = vmatprep.subr.bf16.mxu0 0
  %2778 = vmatpush1.bf16.msra.mxu0 %v2456
  %2779 = vmatprep.mubr.bf16.mxu0 %v1982
  %2780 = vmatmul.mubr.bf16.gmra.mrb[0].mxu0 %v1981
  %v2781 = vpop.f32.mrb[0].mxu0
  %v2782 = vadd.f32 %v2685, %v2781
  %v2783 = vpop.f32.mrb[0].mxu0
  %v2784 = vpop.f32.mrb[0].mxu0
  %v2785 = vadd.f32 %v2688, %v2784
  %v2786 = vpop.f32.mrb[0].mxu0
  %2787 = vmatprep.mubr.bf16.mxu0 %v1991
  %2788 = vmatmul.mubr.bf16.gmra.mrb[0].mxu0 %v1990
  %v2789 = vpop.f32.mrb[0].mxu0
  %v2790 = vadd.f32 %v2693, %v2789
  %v2791 = vpop.f32.mrb[0].mxu0
  %v2792 = vpop.f32.mrb[0].mxu0
  %v2793 = vadd.f32 %v2696, %v2792
  %v2794 = vpop.f32.mrb[0].mxu0
  %2795 = vmatprep.mubr.bf16.mxu0 %v2000
  %2796 = vmatmul.mubr.bf16.gmra.mrb[0].mxu0 %v1999
  %v2797 = vpop.f32.mrb[0].mxu0
  %v2798 = vadd.f32 %v2701, %v2797
  %v2799 = vpop.f32.mrb[0].mxu0
  %v2800 = vpop.f32.mrb[0].mxu0
  %v2801 = vadd.f32 %v2704, %v2800
  %v2802 = vpop.f32.mrb[0].mxu0
  %2803 = vmatprep.mubr.bf16.mxu0 %v2009
  %2804 = vmatmul.mubr.bf16.gmra.mrb[0].mxu0 %v2008
  %v2805 = vpop.f32.mrb[0].mxu0
  %v2806 = vadd.f32 %v2709, %v2805
  %v2807 = vpop.f32.mrb[0].mxu0
  %v2808 = vpop.f32.mrb[0].mxu0
  %v2809 = vadd.f32 %v2712, %v2808
  %v2810 = vpop.f32.mrb[0].mxu0
  %2811 = vmatprep.mubr.bf16.mxu0 %v2018
  %2812 = vmatmul.mubr.bf16.gmra.mrb[0].mxu0 %v2017
  %v2813 = vpop.f32.mrb[0].mxu0
  %v2814 = vadd.f32 %v2717, %v2813
  %v2815 = vpop.f32.mrb[0].mxu0
  %v2816 = vpop.f32.mrb[0].mxu0
  %v2817 = vadd.f32 %v2720, %v2816
  %v2818 = vpop.f32.mrb[0].mxu0
  %2819 = vmatprep.mubr.bf16.mxu0 %v2027
  %2820 = vmatmul.mubr.bf16.gmra.mrb[0].mxu0 %v2026
  %v2821 = vpop.f32.mrb[0].mxu0
  %v2822 = vadd.f32 %v2725, %v2821
  %v2823 = vpop.f32.mrb[0].mxu0
  %v2824 = vpop.f32.mrb[0].mxu0
  %v2825 = vadd.f32 %v2728, %v2824
  %v2826 = vpop.f32.mrb[0].mxu0
  %2827 = vmatprep.mubr.bf16.mxu0 %v2036
  %2828 = vmatmul.mubr.bf16.gmra.mrb[0].mxu0 %v2035
  %v2829 = vpop.f32.mrb[0].mxu0
  %v2830 = vadd.f32 %v2733, %v2829
  %v2831 = vpop.f32.mrb[0].mxu0
  %v2832 = vpop.f32.mrb[0].mxu0
  %v2833 = vadd.f32 %v2736, %v2832
  %v2834 = vpop.f32.mrb[0].mxu0
  %2835 = vmatprep.mubr.bf16.mxu0 %v2045
  %2836 = vmatmul.mubr.bf16.gmra.mrb[0].mxu0 %v2044
  %v2837 = vpop.f32.mrb[0].mxu0
  %v2838 = vadd.f32 %v2741, %v2837
  %v2839 = vpop.f32.mrb[0].mxu0
  %v2840 = vpop.f32.mrb[0].mxu0
  %v2841 = vadd.f32 %v2744, %v2840
  %v2842 = vpop.f32.mrb[0].mxu0
  %2843 = vdwg.mxu0
  %2844 = vmatprep.subr.bf16.mxu0 0
  %2845 = vmatpush1.bf16.msra.mxu0 %v2457
  %2846 = vmatprep.subr.bf16.mxu0 0
  %2847 = vmatpush1.bf16.msra.mxu0 %v2458
  %2848 = vmatprep.subr.bf16.mxu0 0
  %2849 = vmatpush1.bf16.msra.mxu0 %v2459
  %2850 = vmatprep.subr.bf16.mxu0 0
  %2851 = vmatpush1.bf16.msra.mxu0 %v2460
  %2852 = vmatprep.subr.bf16.mxu0 0
  %2853 = vmatpush1.bf16.msra.mxu0 %v2461
  %2854 = vmatprep.subr.bf16.mxu0 0
  %2855 = vmatpush1.bf16.msra.mxu0 %v2462
  %2856 = vmatprep.subr.bf16.mxu0 0
  %2857 = vmatpush1.bf16.msra.mxu0 %v2463
  %2858 = vmatprep.subr.bf16.mxu0 0
  %2859 = vmatpush1.bf16.msra.mxu0 %v2464
  %2860 = vmatprep.subr.bf16.mxu0 0
  %2861 = vmatpush1.bf16.msra.mxu0 %v2465
  %2862 = vmatprep.subr.bf16.mxu0 0
  %2863 = vmatpush1.bf16.msra.mxu0 %v2466
  %2864 = vmatprep.subr.bf16.mxu0 0
  %2865 = vmatpush1.bf16.msra.mxu0 %v2467
  %2866 = vmatprep.subr.bf16.mxu0 0
  %2867 = vmatpush1.bf16.msra.mxu0 %v2468
  %2868 = vmatprep.subr.bf16.mxu0 0
  %2869 = vmatpush1.bf16.msra.mxu0 %v2469
  %2870 = vmatprep.subr.bf16.mxu0 0
  %2871 = vmatpush1.bf16.msra.mxu0 %v2470
  %2872 = vmatprep.subr.bf16.mxu0 0
  %2873 = vmatpush1.bf16.msra.mxu0 %v2471
  %2874 = vmatprep.subr.bf16.mxu0 0
  %2875 = vmatpush1.bf16.msra.mxu0 %v2472
  %2876 = vmatprep.mubr.bf16.mxu0 %v1984
  %2877 = vmatmul.mubr.bf16.gmra.mrb[0].mxu0 %v1983
  %v2878 = vpop.f32.mrb[0].mxu0
  %v2879 = vadd.f32 %v2782, %v2878
  %v2880 = vpop.f32.mrb[0].mxu0
  %v2881 = vpop.f32.mrb[0].mxu0
  %v2882 = vadd.f32 %v2785, %v2881
  %v2883 = vpop.f32.mrb[0].mxu0
  %2884 = vmatprep.mubr.bf16.mxu0 %v1993
  %2885 = vmatmul.mubr.bf16.gmra.mrb[0].mxu0 %v1992
  %v2886 = vpop.f32.mrb[0].mxu0
  %v2887 = vadd.f32 %v2790, %v2886
  %v2888 = vpop.f32.mrb[0].mxu0
  %v2889 = vpop.f32.mrb[0].mxu0
  %v2890 = vadd.f32 %v2793, %v2889
  %v2891 = vpop.f32.mrb[0].mxu0
  %2892 = vmatprep.mubr.bf16.mxu0 %v2002
  %2893 = vmatmul.mubr.bf16.gmra.mrb[0].mxu0 %v2001
  %v2894 = vpop.f32.mrb[0].mxu0
  %v2895 = vadd.f32 %v2798, %v2894
  %v2896 = vpop.f32.mrb[0].mxu0
  %v2897 = vpop.f32.mrb[0].mxu0
  %v2898 = vadd.f32 %v2801, %v2897
  %v2899 = vpop.f32.mrb[0].mxu0
  %2900 = vmatprep.mubr.bf16.mxu0 %v2011
  %2901 = vmatmul.mubr.bf16.gmra.mrb[0].mxu0 %v2010
  %v2902 = vpop.f32.mrb[0].mxu0
  %v2903 = vadd.f32 %v2806, %v2902
  %v2904 = vpop.f32.mrb[0].mxu0
  %v2905 = vpop.f32.mrb[0].mxu0
  %v2906 = vadd.f32 %v2809, %v2905
  %v2907 = vpop.f32.mrb[0].mxu0
  %2908 = vmatprep.mubr.bf16.mxu0 %v2020
  %2909 = vmatmul.mubr.bf16.gmra.mrb[0].mxu0 %v2019
  %v2910 = vpop.f32.mrb[0].mxu0
  %v2911 = vadd.f32 %v2814, %v2910
  %v2912 = vpop.f32.mrb[0].mxu0
  %v2913 = vpop.f32.mrb[0].mxu0
  %v2914 = vadd.f32 %v2817, %v2913
  %v2915 = vpop.f32.mrb[0].mxu0
  %2916 = vmatprep.mubr.bf16.mxu0 %v2029
  %2917 = vmatmul.mubr.bf16.gmra.mrb[0].mxu0 %v2028
  %v2918 = vpop.f32.mrb[0].mxu0
  %v2919 = vadd.f32 %v2822, %v2918
  %v2920 = vpop.f32.mrb[0].mxu0
  %v2921 = vpop.f32.mrb[0].mxu0
  %v2922 = vadd.f32 %v2825, %v2921
  %v2923 = vpop.f32.mrb[0].mxu0
  %2924 = vmatprep.mubr.bf16.mxu0 %v2038
  %2925 = vmatmul.mubr.bf16.gmra.mrb[0].mxu0 %v2037
  %v2926 = vpop.f32.mrb[0].mxu0
  %v2927 = vadd.f32 %v2830, %v2926
  %v2928 = vpop.f32.mrb[0].mxu0
  %v2929 = vpop.f32.mrb[0].mxu0
  %v2930 = vadd.f32 %v2833, %v2929
  %v2931 = vpop.f32.mrb[0].mxu0
  %2932 = vmatprep.mubr.bf16.mxu0 %v2047
  %2933 = vmatmul.mubr.bf16.gmra.mrb[0].mxu0 %v2046
  %v2934 = vpop.f32.mrb[0].mxu0
  %v2935 = vadd.f32 %v2838, %v2934
  %v2936 = vpop.f32.mrb[0].mxu0
  %v2937 = vpop.f32.mrb[0].mxu0
  %v2938 = vadd.f32 %v2841, %v2937
  %v2939 = vpop.f32.mrb[0].mxu0
  %2940 = vdwg.mxu0
  %2941 = vmatprep.subr.bf16.mxu0 0
  %2942 = vmatpush1.bf16.msra.mxu0 %v2473
  %2943 = vmatprep.subr.bf16.mxu0 0
  %2944 = vmatpush1.bf16.msra.mxu0 %v2474
  %2945 = vmatprep.subr.bf16.mxu0 0
  %2946 = vmatpush1.bf16.msra.mxu0 %v2475
  %2947 = vmatprep.subr.bf16.mxu0 0
  %2948 = vmatpush1.bf16.msra.mxu0 %v2476
  %2949 = vmatprep.subr.bf16.mxu0 0
  %2950 = vmatpush1.bf16.msra.mxu0 %v2477
  %2951 = vmatprep.subr.bf16.mxu0 0
  %2952 = vmatpush1.bf16.msra.mxu0 %v2478
  %2953 = vmatprep.subr.bf16.mxu0 0
  %2954 = vmatpush1.bf16.msra.mxu0 %v2479
  %2955 = vmatprep.subr.bf16.mxu0 0
  %2956 = vmatpush1.bf16.msra.mxu0 %v2480
  %2957 = vmatprep.subr.bf16.mxu0 0
  %2958 = vmatpush1.bf16.msra.mxu0 0
  %2959 = vmatprep.subr.bf16.mxu0 0
  %2960 = vmatpush1.bf16.msra.mxu0 0
  %2961 = vmatprep.subr.bf16.mxu0 0
  %2962 = vmatpush1.bf16.msra.mxu0 0
  %2963 = vmatprep.subr.bf16.mxu0 0
  %2964 = vmatpush1.bf16.msra.mxu0 0
  %2965 = vmatprep.subr.bf16.mxu0 0
  %2966 = vmatpush1.bf16.msra.mxu0 0
  %2967 = vmatprep.subr.bf16.mxu0 0
  %2968 = vmatpush1.bf16.msra.mxu0 0
  %2969 = vmatprep.subr.bf16.mxu0 0
  %2970 = vmatpush1.bf16.msra.mxu0 0
  %2971 = vmatprep.subr.bf16.mxu0 0
  %2972 = vmatpush1.bf16.msra.mxu0 0
  %2973 = vmatprep.mubr.bf16.mxu0 0
  %2974 = vmatmul.mubr.bf16.gmra.mrb[0].mxu0 %v1985
  %v2975 = vpop.f32.mrb[0].mxu0
  %v2976 = vadd.f32 %v2879, %v2975
  %v2977 = vpop.f32.mrb[0].mxu0
  %v2978 = vpop.f32.mrb[0].mxu0
  %v2979 = vadd.f32 %v2882, %v2978
  %v2980 = vpop.f32.mrb[0].mxu0
  %2981 = vmatprep.mubr.bf16.mxu0 0
  %2982 = vmatmul.mubr.bf16.gmra.mrb[0].mxu0 %v1994
  %v2983 = vpop.f32.mrb[0].mxu0
  %v2984 = vadd.f32 %v2887, %v2983
  %v2985 = vpop.f32.mrb[0].mxu0
  %v2986 = vpop.f32.mrb[0].mxu0
  %v2987 = vadd.f32 %v2890, %v2986
  %v2988 = vpop.f32.mrb[0].mxu0
  %2989 = vmatprep.mubr.bf16.mxu0 0
  %2990 = vmatmul.mubr.bf16.gmra.mrb[0].mxu0 %v2003
  %v2991 = vpop.f32.mrb[0].mxu0
  %v2992 = vadd.f32 %v2895, %v2991
  %v2993 = vpop.f32.mrb[0].mxu0
  %v2994 = vpop.f32.mrb[0].mxu0
  %v2995 = vadd.f32 %v2898, %v2994
  %v2996 = vpop.f32.mrb[0].mxu0
  %2997 = vmatprep.mubr.bf16.mxu0 0
  %2998 = vmatmul.mubr.bf16.gmra.mrb[0].mxu0 %v2012
  %v2999 = vpop.f32.mrb[0].mxu0
  %v3000 = vadd.f32 %v2903, %v2999
  %v3001 = vpop.f32.mrb[0].mxu0
  %v3002 = vpop.f32.mrb[0].mxu0
  %v3003 = vadd.f32 %v2906, %v3002
  %v3004 = vpop.f32.mrb[0].mxu0
  %3005 = vmatprep.mubr.bf16.mxu0 0
  %3006 = vmatmul.mubr.bf16.gmra.mrb[0].mxu0 %v2021
  %v3007 = vpop.f32.mrb[0].mxu0
  %v3008 = vadd.f32 %v2911, %v3007
  %v3009 = vpop.f32.mrb[0].mxu0
  %v3010 = vpop.f32.mrb[0].mxu0
  %v3011 = vadd.f32 %v2914, %v3010
  %v3012 = vpop.f32.mrb[0].mxu0
  %3013 = vmatprep.mubr.bf16.mxu0 0
  %3014 = vmatmul.mubr.bf16.gmra.mrb[0].mxu0 %v2030
  %v3015 = vpop.f32.mrb[0].mxu0
  %v3016 = vadd.f32 %v2919, %v3015
  %v3017 = vpop.f32.mrb[0].mxu0
  %v3018 = vpop.f32.mrb[0].mxu0
  %v3019 = vadd.f32 %v2922, %v3018
  %v3020 = vpop.f32.mrb[0].mxu0
  %3021 = vmatprep.mubr.bf16.mxu0 0
  %3022 = vmatmul.mubr.bf16.gmra.mrb[0].mxu0 %v2039
  %v3023 = vpop.f32.mrb[0].mxu0
  %v3024 = vadd.f32 %v2927, %v3023
  %v3025 = vpop.f32.mrb[0].mxu0
  %v3026 = vpop.f32.mrb[0].mxu0
  %v3027 = vadd.f32 %v2930, %v3026
  %v3028 = vpop.f32.mrb[0].mxu0
  %3029 = vmatprep.mubr.bf16.mxu0 0
  %3030 = vmatmul.mubr.bf16.gmra.mrb[0].mxu0 %v2048
  %v3031 = vpop.f32.mrb[0].mxu0
  %v3032 = vadd.f32 %v2935, %v3031
  %v3033 = vpop.f32.mrb[0].mxu0
  %v3034 = vpop.f32.mrb[0].mxu0
  %v3035 = vadd.f32 %v2938, %v3034
  %v3036 = vpop.f32.mrb[0].mxu0
  %3037 = vdwg.mxu0
  %v3038 = vsub.f32 %v1691, %v2976
  %v3039 = vsub.f32 %v1694, %v2979
  %v3040 = vsub.f32 %v1699, %v2984
  %v3041 = vsub.f32 %v1702, %v2987
  %v3042 = vsub.f32 %v1707, %v2992
  %v3043 = vsub.f32 %v1710, %v2995
  %v3044 = vsub.f32 %v1715, %v3000
  %v3045 = vsub.f32 %v1718, %v3003
  %v3046 = vsub.f32 %v1723, %v3008
  %v3047 = vsub.f32 %v1726, %v3011
  %v3048 = vsub.f32 %v1731, %v3016
  %v3049 = vsub.f32 %v1734, %v3019
  %v3050 = vsub.f32 %v1739, %v3024
  %v3051 = vsub.f32 %v1742, %v3027
  %v3052 = vsub.f32 %v1747, %v3032
  %v3053 = vsub.f32 %v1750, %v3035
  %3054 = vmatprep.subr.bf16.mxu0 0
  %3055 = vmatpush1.bf16.msra.mxu0 %v2409
  %3056 = vmatprep.subr.bf16.mxu0 0
  %3057 = vmatpush1.bf16.msra.mxu0 %v2410
  %3058 = vmatprep.subr.bf16.mxu0 0
  %3059 = vmatpush1.bf16.msra.mxu0 %v2411
  %3060 = vmatprep.subr.bf16.mxu0 0
  %3061 = vmatpush1.bf16.msra.mxu0 %v2412
  %3062 = vmatprep.subr.bf16.mxu0 0
  %3063 = vmatpush1.bf16.msra.mxu0 %v2413
  %3064 = vmatprep.subr.bf16.mxu0 0
  %3065 = vmatpush1.bf16.msra.mxu0 %v2414
  %3066 = vmatprep.subr.bf16.mxu0 0
  %3067 = vmatpush1.bf16.msra.mxu0 %v2415
  %3068 = vmatprep.subr.bf16.mxu0 0
  %3069 = vmatpush1.bf16.msra.mxu0 %v2416
  %3070 = vmatprep.subr.bf16.mxu0 0
  %3071 = vmatpush1.bf16.msra.mxu0 %v2417
  %3072 = vmatprep.subr.bf16.mxu0 0
  %3073 = vmatpush1.bf16.msra.mxu0 %v2418
  %3074 = vmatprep.subr.bf16.mxu0 0
  %3075 = vmatpush1.bf16.msra.mxu0 %v2419
  %3076 = vmatprep.subr.bf16.mxu0 0
  %3077 = vmatpush1.bf16.msra.mxu0 %v2420
  %3078 = vmatprep.subr.bf16.mxu0 0
  %3079 = vmatpush1.bf16.msra.mxu0 %v2421
  %3080 = vmatprep.subr.bf16.mxu0 0
  %3081 = vmatpush1.bf16.msra.mxu0 %v2422
  %3082 = vmatprep.subr.bf16.mxu0 0
  %3083 = vmatpush1.bf16.msra.mxu0 %v2423
  %3084 = vmatprep.subr.bf16.mxu0 0
  %3085 = vmatpush1.bf16.msra.mxu0 %v2424
  %3086 = vmatprep.mubr.bf16.mxu0 %v693
  %3087 = vmatmul.mubr.bf16.gmra.mrb[0].mxu0 %v692
  %v3088 = vpop.f32.mrb[0].mxu0
  %v3089 = vadd.f32 0.0, %v3088
  %v3090 = vpop.f32.mrb[0].mxu0
  %v3091 = vpop.f32.mrb[0].mxu0
  %v3092 = vadd.f32 0.0, %v3091
  %v3093 = vpop.f32.mrb[0].mxu0
  %3094 = vmatprep.mubr.bf16.mxu0 %v702
  %3095 = vmatmul.mubr.bf16.gmra.mrb[0].mxu0 %v701
  %v3096 = vpop.f32.mrb[0].mxu0
  %v3097 = vadd.f32 0.0, %v3096
  %v3098 = vpop.f32.mrb[0].mxu0
  %v3099 = vpop.f32.mrb[0].mxu0
  %v3100 = vadd.f32 0.0, %v3099
  %v3101 = vpop.f32.mrb[0].mxu0
  %3102 = vmatprep.mubr.bf16.mxu0 %v711
  %3103 = vmatmul.mubr.bf16.gmra.mrb[0].mxu0 %v710
  %v3104 = vpop.f32.mrb[0].mxu0
  %v3105 = vadd.f32 0.0, %v3104
  %v3106 = vpop.f32.mrb[0].mxu0
  %v3107 = vpop.f32.mrb[0].mxu0
  %v3108 = vadd.f32 0.0, %v3107
  %v3109 = vpop.f32.mrb[0].mxu0
  %3110 = vmatprep.mubr.bf16.mxu0 %v720
  %3111 = vmatmul.mubr.bf16.gmra.mrb[0].mxu0 %v719
  %v3112 = vpop.f32.mrb[0].mxu0
  %v3113 = vadd.f32 0.0, %v3112
  %v3114 = vpop.f32.mrb[0].mxu0
  %v3115 = vpop.f32.mrb[0].mxu0
  %v3116 = vadd.f32 0.0, %v3115
  %v3117 = vpop.f32.mrb[0].mxu0
  %3118 = vmatprep.mubr.bf16.mxu0 %v729
  %3119 = vmatmul.mubr.bf16.gmra.mrb[0].mxu0 %v728
  %v3120 = vpop.f32.mrb[0].mxu0
  %v3121 = vadd.f32 0.0, %v3120
  %v3122 = vpop.f32.mrb[0].mxu0
  %v3123 = vpop.f32.mrb[0].mxu0
  %v3124 = vadd.f32 0.0, %v3123
  %v3125 = vpop.f32.mrb[0].mxu0
  %3126 = vmatprep.mubr.bf16.mxu0 %v738
  %3127 = vmatmul.mubr.bf16.gmra.mrb[0].mxu0 %v737
  %v3128 = vpop.f32.mrb[0].mxu0
  %v3129 = vadd.f32 0.0, %v3128
  %v3130 = vpop.f32.mrb[0].mxu0
  %v3131 = vpop.f32.mrb[0].mxu0
  %v3132 = vadd.f32 0.0, %v3131
  %v3133 = vpop.f32.mrb[0].mxu0
  %3134 = vmatprep.mubr.bf16.mxu0 %v747
  %3135 = vmatmul.mubr.bf16.gmra.mrb[0].mxu0 %v746
  %v3136 = vpop.f32.mrb[0].mxu0
  %v3137 = vadd.f32 0.0, %v3136
  %v3138 = vpop.f32.mrb[0].mxu0
  %v3139 = vpop.f32.mrb[0].mxu0
  %v3140 = vadd.f32 0.0, %v3139
  %v3141 = vpop.f32.mrb[0].mxu0
  %3142 = vmatprep.mubr.bf16.mxu0 %v756
  %3143 = vmatmul.mubr.bf16.gmra.mrb[0].mxu0 %v755
  %v3144 = vpop.f32.mrb[0].mxu0
  %v3145 = vadd.f32 0.0, %v3144
  %v3146 = vpop.f32.mrb[0].mxu0
  %v3147 = vpop.f32.mrb[0].mxu0
  %v3148 = vadd.f32 0.0, %v3147
  %v3149 = vpop.f32.mrb[0].mxu0
  %3150 = vdwg.mxu0
  %3151 = vmatprep.subr.bf16.mxu0 0
  %3152 = vmatpush1.bf16.msra.mxu0 %v2425
  %3153 = vmatprep.subr.bf16.mxu0 0
  %3154 = vmatpush1.bf16.msra.mxu0 %v2426
  %3155 = vmatprep.subr.bf16.mxu0 0
  %3156 = vmatpush1.bf16.msra.mxu0 %v2427
  %3157 = vmatprep.subr.bf16.mxu0 0
  %3158 = vmatpush1.bf16.msra.mxu0 %v2428
  %3159 = vmatprep.subr.bf16.mxu0 0
  %3160 = vmatpush1.bf16.msra.mxu0 %v2429
  %3161 = vmatprep.subr.bf16.mxu0 0
  %3162 = vmatpush1.bf16.msra.mxu0 %v2430
  %3163 = vmatprep.subr.bf16.mxu0 0
  %3164 = vmatpush1.bf16.msra.mxu0 %v2431
  %3165 = vmatprep.subr.bf16.mxu0 0
  %3166 = vmatpush1.bf16.msra.mxu0 %v2432
  %3167 = vmatprep.subr.bf16.mxu0 0
  %3168 = vmatpush1.bf16.msra.mxu0 %v2433
  %3169 = vmatprep.subr.bf16.mxu0 0
  %3170 = vmatpush1.bf16.msra.mxu0 %v2434
  %3171 = vmatprep.subr.bf16.mxu0 0
  %3172 = vmatpush1.bf16.msra.mxu0 %v2435
  %3173 = vmatprep.subr.bf16.mxu0 0
  %3174 = vmatpush1.bf16.msra.mxu0 %v2436
  %3175 = vmatprep.subr.bf16.mxu0 0
  %3176 = vmatpush1.bf16.msra.mxu0 %v2437
  %3177 = vmatprep.subr.bf16.mxu0 0
  %3178 = vmatpush1.bf16.msra.mxu0 %v2438
  %3179 = vmatprep.subr.bf16.mxu0 0
  %3180 = vmatpush1.bf16.msra.mxu0 %v2439
  %3181 = vmatprep.subr.bf16.mxu0 0
  %3182 = vmatpush1.bf16.msra.mxu0 %v2440
  %3183 = vmatprep.mubr.bf16.mxu0 %v695
  %3184 = vmatmul.mubr.bf16.gmra.mrb[0].mxu0 %v694
  %v3185 = vpop.f32.mrb[0].mxu0
  %v3186 = vadd.f32 %v3089, %v3185
  %v3187 = vpop.f32.mrb[0].mxu0
  %v3188 = vpop.f32.mrb[0].mxu0
  %v3189 = vadd.f32 %v3092, %v3188
  %v3190 = vpop.f32.mrb[0].mxu0
  %3191 = vmatprep.mubr.bf16.mxu0 %v704
  %3192 = vmatmul.mubr.bf16.gmra.mrb[0].mxu0 %v703
  %v3193 = vpop.f32.mrb[0].mxu0
  %v3194 = vadd.f32 %v3097, %v3193
  %v3195 = vpop.f32.mrb[0].mxu0
  %v3196 = vpop.f32.mrb[0].mxu0
  %v3197 = vadd.f32 %v3100, %v3196
  %v3198 = vpop.f32.mrb[0].mxu0
  %3199 = vmatprep.mubr.bf16.mxu0 %v713
  %3200 = vmatmul.mubr.bf16.gmra.mrb[0].mxu0 %v712
  %v3201 = vpop.f32.mrb[0].mxu0
  %v3202 = vadd.f32 %v3105, %v3201
  %v3203 = vpop.f32.mrb[0].mxu0
  %v3204 = vpop.f32.mrb[0].mxu0
  %v3205 = vadd.f32 %v3108, %v3204
  %v3206 = vpop.f32.mrb[0].mxu0
  %3207 = vmatprep.mubr.bf16.mxu0 %v722
  %3208 = vmatmul.mubr.bf16.gmra.mrb[0].mxu0 %v721
  %v3209 = vpop.f32.mrb[0].mxu0
  %v3210 = vadd.f32 %v3113, %v3209
  %v3211 = vpop.f32.mrb[0].mxu0
  %v3212 = vpop.f32.mrb[0].mxu0
  %v3213 = vadd.f32 %v3116, %v3212
  %v3214 = vpop.f32.mrb[0].mxu0
  %3215 = vmatprep.mubr.bf16.mxu0 %v731
  %3216 = vmatmul.mubr.bf16.gmra.mrb[0].mxu0 %v730
  %v3217 = vpop.f32.mrb[0].mxu0
  %v3218 = vadd.f32 %v3121, %v3217
  %v3219 = vpop.f32.mrb[0].mxu0
  %v3220 = vpop.f32.mrb[0].mxu0
  %v3221 = vadd.f32 %v3124, %v3220
  %v3222 = vpop.f32.mrb[0].mxu0
  %3223 = vmatprep.mubr.bf16.mxu0 %v740
  %3224 = vmatmul.mubr.bf16.gmra.mrb[0].mxu0 %v739
  %v3225 = vpop.f32.mrb[0].mxu0
  %v3226 = vadd.f32 %v3129, %v3225
  %v3227 = vpop.f32.mrb[0].mxu0
  %v3228 = vpop.f32.mrb[0].mxu0
  %v3229 = vadd.f32 %v3132, %v3228
  %v3230 = vpop.f32.mrb[0].mxu0
  %3231 = vmatprep.mubr.bf16.mxu0 %v749
  %3232 = vmatmul.mubr.bf16.gmra.mrb[0].mxu0 %v748
  %v3233 = vpop.f32.mrb[0].mxu0
  %v3234 = vadd.f32 %v3137, %v3233
  %v3235 = vpop.f32.mrb[0].mxu0
  %v3236 = vpop.f32.mrb[0].mxu0
  %v3237 = vadd.f32 %v3140, %v3236
  %v3238 = vpop.f32.mrb[0].mxu0
  %3239 = vmatprep.mubr.bf16.mxu0 %v758
  %3240 = vmatmul.mubr.bf16.gmra.mrb[0].mxu0 %v757
  %v3241 = vpop.f32.mrb[0].mxu0
  %v3242 = vadd.f32 %v3145, %v3241
  %v3243 = vpop.f32.mrb[0].mxu0
  %v3244 = vpop.f32.mrb[0].mxu0
  %v3245 = vadd.f32 %v3148, %v3244
  %v3246 = vpop.f32.mrb[0].mxu0
  %3247 = vdwg.mxu0
  %3248 = vmatprep.subr.bf16.mxu0 0
  %3249 = vmatpush1.bf16.msra.mxu0 %v2441
  %3250 = vmatprep.subr.bf16.mxu0 0
  %3251 = vmatpush1.bf16.msra.mxu0 %v2442
  %3252 = vmatprep.subr.bf16.mxu0 0
  %3253 = vmatpush1.bf16.msra.mxu0 %v2443
  %3254 = vmatprep.subr.bf16.mxu0 0
  %3255 = vmatpush1.bf16.msra.mxu0 %v2444
  %3256 = vmatprep.subr.bf16.mxu0 0
  %3257 = vmatpush1.bf16.msra.mxu0 %v2445
  %3258 = vmatprep.subr.bf16.mxu0 0
  %3259 = vmatpush1.bf16.msra.mxu0 %v2446
  %3260 = vmatprep.subr.bf16.mxu0 0
  %3261 = vmatpush1.bf16.msra.mxu0 %v2447
  %3262 = vmatprep.subr.bf16.mxu0 0
  %3263 = vmatpush1.bf16.msra.mxu0 %v2448
  %3264 = vmatprep.subr.bf16.mxu0 0
  %3265 = vmatpush1.bf16.msra.mxu0 %v2449
  %3266 = vmatprep.subr.bf16.mxu0 0
  %3267 = vmatpush1.bf16.msra.mxu0 %v2450
  %3268 = vmatprep.subr.bf16.mxu0 0
  %3269 = vmatpush1.bf16.msra.mxu0 %v2451
  %3270 = vmatprep.subr.bf16.mxu0 0
  %3271 = vmatpush1.bf16.msra.mxu0 %v2452
  %3272 = vmatprep.subr.bf16.mxu0 0
  %3273 = vmatpush1.bf16.msra.mxu0 %v2453
  %3274 = vmatprep.subr.bf16.mxu0 0
  %3275 = vmatpush1.bf16.msra.mxu0 %v2454
  %3276 = vmatprep.subr.bf16.mxu0 0
  %3277 = vmatpush1.bf16.msra.mxu0 %v2455
  %3278 = vmatprep.subr.bf16.mxu0 0
  %3279 = vmatpush1.bf16.msra.mxu0 %v2456
  %3280 = vmatprep.mubr.bf16.mxu0 %v697
  %3281 = vmatmul.mubr.bf16.gmra.mrb[0].mxu0 %v696
  %v3282 = vpop.f32.mrb[0].mxu0
  %v3283 = vadd.f32 %v3186, %v3282
  %v3284 = vpop.f32.mrb[0].mxu0
  %v3285 = vpop.f32.mrb[0].mxu0
  %v3286 = vadd.f32 %v3189, %v3285
  %v3287 = vpop.f32.mrb[0].mxu0
  %3288 = vmatprep.mubr.bf16.mxu0 %v706
  %3289 = vmatmul.mubr.bf16.gmra.mrb[0].mxu0 %v705
  %v3290 = vpop.f32.mrb[0].mxu0
  %v3291 = vadd.f32 %v3194, %v3290
  %v3292 = vpop.f32.mrb[0].mxu0
  %v3293 = vpop.f32.mrb[0].mxu0
  %v3294 = vadd.f32 %v3197, %v3293
  %v3295 = vpop.f32.mrb[0].mxu0
  %3296 = vmatprep.mubr.bf16.mxu0 %v715
  %3297 = vmatmul.mubr.bf16.gmra.mrb[0].mxu0 %v714
  %v3298 = vpop.f32.mrb[0].mxu0
  %v3299 = vadd.f32 %v3202, %v3298
  %v3300 = vpop.f32.mrb[0].mxu0
  %v3301 = vpop.f32.mrb[0].mxu0
  %v3302 = vadd.f32 %v3205, %v3301
  %v3303 = vpop.f32.mrb[0].mxu0
  %3304 = vmatprep.mubr.bf16.mxu0 %v724
  %3305 = vmatmul.mubr.bf16.gmra.mrb[0].mxu0 %v723
  %v3306 = vpop.f32.mrb[0].mxu0
  %v3307 = vadd.f32 %v3210, %v3306
  %v3308 = vpop.f32.mrb[0].mxu0
  %v3309 = vpop.f32.mrb[0].mxu0
  %v3310 = vadd.f32 %v3213, %v3309
  %v3311 = vpop.f32.mrb[0].mxu0
  %3312 = vmatprep.mubr.bf16.mxu0 %v733
  %3313 = vmatmul.mubr.bf16.gmra.mrb[0].mxu0 %v732
  %v3314 = vpop.f32.mrb[0].mxu0
  %v3315 = vadd.f32 %v3218, %v3314
  %v3316 = vpop.f32.mrb[0].mxu0
  %v3317 = vpop.f32.mrb[0].mxu0
  %v3318 = vadd.f32 %v3221, %v3317
  %v3319 = vpop.f32.mrb[0].mxu0
  %3320 = vmatprep.mubr.bf16.mxu0 %v742
  %3321 = vmatmul.mubr.bf16.gmra.mrb[0].mxu0 %v741
  %v3322 = vpop.f32.mrb[0].mxu0
  %v3323 = vadd.f32 %v3226, %v3322
  %v3324 = vpop.f32.mrb[0].mxu0
  %v3325 = vpop.f32.mrb[0].mxu0
  %v3326 = vadd.f32 %v3229, %v3325
  %v3327 = vpop.f32.mrb[0].mxu0
  %3328 = vmatprep.mubr.bf16.mxu0 %v751
  %3329 = vmatmul.mubr.bf16.gmra.mrb[0].mxu0 %v750
  %v3330 = vpop.f32.mrb[0].mxu0
  %v3331 = vadd.f32 %v3234, %v3330
  %v3332 = vpop.f32.mrb[0].mxu0
  %v3333 = vpop.f32.mrb[0].mxu0
  %v3334 = vadd.f32 %v3237, %v3333
  %v3335 = vpop.f32.mrb[0].mxu0
  %3336 = vmatprep.mubr.bf16.mxu0 %v760
  %3337 = vmatmul.mubr.bf16.gmra.mrb[0].mxu0 %v759
  %v3338 = vpop.f32.mrb[0].mxu0
  %v3339 = vadd.f32 %v3242, %v3338
  %v3340 = vpop.f32.mrb[0].mxu0
  %v3341 = vpop.f32.mrb[0].mxu0
  %v3342 = vadd.f32 %v3245, %v3341
  %v3343 = vpop.f32.mrb[0].mxu0
  %3344 = vdwg.mxu0
  %3345 = vmatprep.subr.bf16.mxu0 0
  %3346 = vmatpush1.bf16.msra.mxu0 %v2457
  %3347 = vmatprep.subr.bf16.mxu0 0
  %3348 = vmatpush1.bf16.msra.mxu0 %v2458
  %3349 = vmatprep.subr.bf16.mxu0 0
  %3350 = vmatpush1.bf16.msra.mxu0 %v2459
  %3351 = vmatprep.subr.bf16.mxu0 0
  %3352 = vmatpush1.bf16.msra.mxu0 %v2460
  %3353 = vmatprep.subr.bf16.mxu0 0
  %3354 = vmatpush1.bf16.msra.mxu0 %v2461
  %3355 = vmatprep.subr.bf16.mxu0 0
  %3356 = vmatpush1.bf16.msra.mxu0 %v2462
  %3357 = vmatprep.subr.bf16.mxu0 0
  %3358 = vmatpush1.bf16.msra.mxu0 %v2463
  %3359 = vmatprep.subr.bf16.mxu0 0
  %3360 = vmatpush1.bf16.msra.mxu0 %v2464
  %3361 = vmatprep.subr.bf16.mxu0 0
  %3362 = vmatpush1.bf16.msra.mxu0 %v2465
  %3363 = vmatprep.subr.bf16.mxu0 0
  %3364 = vmatpush1.bf16.msra.mxu0 %v2466
  %3365 = vmatprep.subr.bf16.mxu0 0
  %3366 = vmatpush1.bf16.msra.mxu0 %v2467
  %3367 = vmatprep.subr.bf16.mxu0 0
  %3368 = vmatpush1.bf16.msra.mxu0 %v2468
  %3369 = vmatprep.subr.bf16.mxu0 0
  %3370 = vmatpush1.bf16.msra.mxu0 %v2469
  %3371 = vmatprep.subr.bf16.mxu0 0
  %3372 = vmatpush1.bf16.msra.mxu0 %v2470
  %3373 = vmatprep.subr.bf16.mxu0 0
  %3374 = vmatpush1.bf16.msra.mxu0 %v2471
  %3375 = vmatprep.subr.bf16.mxu0 0
  %3376 = vmatpush1.bf16.msra.mxu0 %v2472
  %3377 = vmatprep.mubr.bf16.mxu0 %v699
  %3378 = vmatmul.mubr.bf16.gmra.mrb[0].mxu0 %v698
  %v3379 = vpop.f32.mrb[0].mxu0
  %v3380 = vadd.f32 %v3283, %v3379
  %v3381 = vpop.f32.mrb[0].mxu0
  %v3382 = vpop.f32.mrb[0].mxu0
  %v3383 = vadd.f32 %v3286, %v3382
  %v3384 = vpop.f32.mrb[0].mxu0
  %3385 = vmatprep.mubr.bf16.mxu0 %v708
  %3386 = vmatmul.mubr.bf16.gmra.mrb[0].mxu0 %v707
  %v3387 = vpop.f32.mrb[0].mxu0
  %v3388 = vadd.f32 %v3291, %v3387
  %v3389 = vpop.f32.mrb[0].mxu0
  %v3390 = vpop.f32.mrb[0].mxu0
  %v3391 = vadd.f32 %v3294, %v3390
  %v3392 = vpop.f32.mrb[0].mxu0
  %3393 = vmatprep.mubr.bf16.mxu0 %v717
  %3394 = vmatmul.mubr.bf16.gmra.mrb[0].mxu0 %v716
  %v3395 = vpop.f32.mrb[0].mxu0
  %v3396 = vadd.f32 %v3299, %v3395
  %v3397 = vpop.f32.mrb[0].mxu0
  %v3398 = vpop.f32.mrb[0].mxu0
  %v3399 = vadd.f32 %v3302, %v3398
  %v3400 = vpop.f32.mrb[0].mxu0
  %3401 = vmatprep.mubr.bf16.mxu0 %v726
  %3402 = vmatmul.mubr.bf16.gmra.mrb[0].mxu0 %v725
  %v3403 = vpop.f32.mrb[0].mxu0
  %v3404 = vadd.f32 %v3307, %v3403
  %v3405 = vpop.f32.mrb[0].mxu0
  %v3406 = vpop.f32.mrb[0].mxu0
  %v3407 = vadd.f32 %v3310, %v3406
  %v3408 = vpop.f32.mrb[0].mxu0
  %3409 = vmatprep.mubr.bf16.mxu0 %v735
  %3410 = vmatmul.mubr.bf16.gmra.mrb[0].mxu0 %v734
  %v3411 = vpop.f32.mrb[0].mxu0
  %v3412 = vadd.f32 %v3315, %v3411
  %v3413 = vpop.f32.mrb[0].mxu0
  %v3414 = vpop.f32.mrb[0].mxu0
  %v3415 = vadd.f32 %v3318, %v3414
  %v3416 = vpop.f32.mrb[0].mxu0
  %3417 = vmatprep.mubr.bf16.mxu0 %v744
  %3418 = vmatmul.mubr.bf16.gmra.mrb[0].mxu0 %v743
  %v3419 = vpop.f32.mrb[0].mxu0
  %v3420 = vadd.f32 %v3323, %v3419
  %v3421 = vpop.f32.mrb[0].mxu0
  %v3422 = vpop.f32.mrb[0].mxu0
  %v3423 = vadd.f32 %v3326, %v3422
  %v3424 = vpop.f32.mrb[0].mxu0
  %3425 = vmatprep.mubr.bf16.mxu0 %v753
  %3426 = vmatmul.mubr.bf16.gmra.mrb[0].mxu0 %v752
  %v3427 = vpop.f32.mrb[0].mxu0
  %v3428 = vadd.f32 %v3331, %v3427
  %v3429 = vpop.f32.mrb[0].mxu0
  %v3430 = vpop.f32.mrb[0].mxu0
  %v3431 = vadd.f32 %v3334, %v3430
  %v3432 = vpop.f32.mrb[0].mxu0
  %3433 = vmatprep.mubr.bf16.mxu0 %v762
  %3434 = vmatmul.mubr.bf16.gmra.mrb[0].mxu0 %v761
  %v3435 = vpop.f32.mrb[0].mxu0
  %v3436 = vadd.f32 %v3339, %v3435
  %v3437 = vpop.f32.mrb[0].mxu0
  %v3438 = vpop.f32.mrb[0].mxu0
  %v3439 = vadd.f32 %v3342, %v3438
  %v3440 = vpop.f32.mrb[0].mxu0
  %3441 = vdwg.mxu0
  %3442 = vmatprep.subr.bf16.mxu0 0
  %3443 = vmatpush1.bf16.msra.mxu0 %v2473
  %3444 = vmatprep.subr.bf16.mxu0 0
  %3445 = vmatpush1.bf16.msra.mxu0 %v2474
  %3446 = vmatprep.subr.bf16.mxu0 0
  %3447 = vmatpush1.bf16.msra.mxu0 %v2475
  %3448 = vmatprep.subr.bf16.mxu0 0
  %3449 = vmatpush1.bf16.msra.mxu0 %v2476
  %3450 = vmatprep.subr.bf16.mxu0 0
  %3451 = vmatpush1.bf16.msra.mxu0 %v2477
  %3452 = vmatprep.subr.bf16.mxu0 0
  %3453 = vmatpush1.bf16.msra.mxu0 %v2478
  %3454 = vmatprep.subr.bf16.mxu0 0
  %3455 = vmatpush1.bf16.msra.mxu0 %v2479
  %3456 = vmatprep.subr.bf16.mxu0 0
  %3457 = vmatpush1.bf16.msra.mxu0 %v2480
  %3458 = vmatprep.subr.bf16.mxu0 0
  %3459 = vmatpush1.bf16.msra.mxu0 0
  %3460 = vmatprep.subr.bf16.mxu0 0
  %3461 = vmatpush1.bf16.msra.mxu0 0
  %3462 = vmatprep.subr.bf16.mxu0 0
  %3463 = vmatpush1.bf16.msra.mxu0 0
  %3464 = vmatprep.subr.bf16.mxu0 0
  %3465 = vmatpush1.bf16.msra.mxu0 0
  %3466 = vmatprep.subr.bf16.mxu0 0
  %3467 = vmatpush1.bf16.msra.mxu0 0
  %3468 = vmatprep.subr.bf16.mxu0 0
  %3469 = vmatpush1.bf16.msra.mxu0 0
  %3470 = vmatprep.subr.bf16.mxu0 0
  %3471 = vmatpush1.bf16.msra.mxu0 0
  %3472 = vmatprep.subr.bf16.mxu0 0
  %3473 = vmatpush1.bf16.msra.mxu0 0
  %3474 = vmatprep.mubr.bf16.mxu0 0
  %3475 = vmatmul.mubr.bf16.gmra.mrb[0].mxu0 %v700
  %v3476 = vpop.f32.mrb[0].mxu0
  %v3477 = vadd.f32 %v3380, %v3476
  %v3478 = vpop.f32.mrb[0].mxu0
  %v3479 = vpop.f32.mrb[0].mxu0
  %v3480 = vadd.f32 %v3383, %v3479
  %v3481 = vpop.f32.mrb[0].mxu0
  %3482 = vmatprep.mubr.bf16.mxu0 0
  %3483 = vmatmul.mubr.bf16.gmra.mrb[0].mxu0 %v709
  %v3484 = vpop.f32.mrb[0].mxu0
  %v3485 = vadd.f32 %v3388, %v3484
  %v3486 = vpop.f32.mrb[0].mxu0
  %v3487 = vpop.f32.mrb[0].mxu0
  %v3488 = vadd.f32 %v3391, %v3487
  %v3489 = vpop.f32.mrb[0].mxu0
  %3490 = vmatprep.mubr.bf16.mxu0 0
  %3491 = vmatmul.mubr.bf16.gmra.mrb[0].mxu0 %v718
  %v3492 = vpop.f32.mrb[0].mxu0
  %v3493 = vadd.f32 %v3396, %v3492
  %v3494 = vpop.f32.mrb[0].mxu0
  %v3495 = vpop.f32.mrb[0].mxu0
  %v3496 = vadd.f32 %v3399, %v3495
  %v3497 = vpop.f32.mrb[0].mxu0
  %3498 = vmatprep.mubr.bf16.mxu0 0
  %3499 = vmatmul.mubr.bf16.gmra.mrb[0].mxu0 %v727
  %v3500 = vpop.f32.mrb[0].mxu0
  %v3501 = vadd.f32 %v3404, %v3500
  %v3502 = vpop.f32.mrb[0].mxu0
  %v3503 = vpop.f32.mrb[0].mxu0
  %v3504 = vadd.f32 %v3407, %v3503
  %v3505 = vpop.f32.mrb[0].mxu0
  %3506 = vmatprep.mubr.bf16.mxu0 0
  %3507 = vmatmul.mubr.bf16.gmra.mrb[0].mxu0 %v736
  %v3508 = vpop.f32.mrb[0].mxu0
  %v3509 = vadd.f32 %v3412, %v3508
  %v3510 = vpop.f32.mrb[0].mxu0
  %v3511 = vpop.f32.mrb[0].mxu0
  %v3512 = vadd.f32 %v3415, %v3511
  %v3513 = vpop.f32.mrb[0].mxu0
  %3514 = vmatprep.mubr.bf16.mxu0 0
  %3515 = vmatmul.mubr.bf16.gmra.mrb[0].mxu0 %v745
  %v3516 = vpop.f32.mrb[0].mxu0
  %v3517 = vadd.f32 %v3420, %v3516
  %v3518 = vpop.f32.mrb[0].mxu0
  %v3519 = vpop.f32.mrb[0].mxu0
  %v3520 = vadd.f32 %v3423, %v3519
  %v3521 = vpop.f32.mrb[0].mxu0
  %3522 = vmatprep.mubr.bf16.mxu0 0
  %3523 = vmatmul.mubr.bf16.gmra.mrb[0].mxu0 %v754
  %v3524 = vpop.f32.mrb[0].mxu0
  %v3525 = vadd.f32 %v3428, %v3524
  %v3526 = vpop.f32.mrb[0].mxu0
  %v3527 = vpop.f32.mrb[0].mxu0
  %v3528 = vadd.f32 %v3431, %v3527
  %v3529 = vpop.f32.mrb[0].mxu0
  %3530 = vmatprep.mubr.bf16.mxu0 0
  %3531 = vmatmul.mubr.bf16.gmra.mrb[0].mxu0 %v763
  %v3532 = vpop.f32.mrb[0].mxu0
  %v3533 = vadd.f32 %v3436, %v3532
  %v3534 = vpop.f32.mrb[0].mxu0
  %v3535 = vpop.f32.mrb[0].mxu0
  %v3536 = vadd.f32 %v3439, %v3535
  %v3537 = vpop.f32.mrb[0].mxu0
  %3538 = vdwg.mxu0
  %3539 = vmatprep.subr.bf16.mxu0 0
  %3540 = vmatpush1.bf16.msra.mxu0 %v1124
  %3541 = vmatprep.subr.bf16.mxu0 0
  %3542 = vmatpush1.bf16.msra.mxu0 %v1125
  %3543 = vmatprep.subr.bf16.mxu0 0
  %3544 = vmatpush1.bf16.msra.mxu0 %v1126
  %3545 = vmatprep.subr.bf16.mxu0 0
  %3546 = vmatpush1.bf16.msra.mxu0 %v1127
  %3547 = vmatprep.subr.bf16.mxu0 0
  %3548 = vmatpush1.bf16.msra.mxu0 %v1128
  %3549 = vmatprep.subr.bf16.mxu0 0
  %3550 = vmatpush1.bf16.msra.mxu0 %v1129
  %3551 = vmatprep.subr.bf16.mxu0 0
  %3552 = vmatpush1.bf16.msra.mxu0 %v1130
  %3553 = vmatprep.subr.bf16.mxu0 0
  %3554 = vmatpush1.bf16.msra.mxu0 %v1131
  %3555 = vmatprep.subr.bf16.mxu0 0
  %3556 = vmatpush1.bf16.msra.mxu0 %v1132
  %3557 = vmatprep.subr.bf16.mxu0 0
  %3558 = vmatpush1.bf16.msra.mxu0 %v1133
  %3559 = vmatprep.subr.bf16.mxu0 0
  %3560 = vmatpush1.bf16.msra.mxu0 %v1134
  %3561 = vmatprep.subr.bf16.mxu0 0
  %3562 = vmatpush1.bf16.msra.mxu0 %v1135
  %3563 = vmatprep.subr.bf16.mxu0 0
  %3564 = vmatpush1.bf16.msra.mxu0 %v1136
  %3565 = vmatprep.subr.bf16.mxu0 0
  %3566 = vmatpush1.bf16.msra.mxu0 %v1137
  %3567 = vmatprep.subr.bf16.mxu0 0
  %3568 = vmatpush1.bf16.msra.mxu0 %v1138
  %3569 = vmatprep.subr.bf16.mxu0 0
  %3570 = vmatpush1.bf16.msra.mxu0 %v1139
  %3571 = vmatprep.mubr.bf16.mxu0 %v1978
  %3572 = vmatmul.mubr.bf16.gmra.mrb[0].mxu0 %v1977
  %v3573 = vpop.f32.mrb[0].mxu0
  %v3574 = vadd.f32 %v3477, %v3573
  %v3575 = vpop.f32.mrb[0].mxu0
  %v3576 = vpop.f32.mrb[0].mxu0
  %v3577 = vadd.f32 %v3480, %v3576
  %v3578 = vpop.f32.mrb[0].mxu0
  %3579 = vmatprep.mubr.bf16.mxu0 %v1987
  %3580 = vmatmul.mubr.bf16.gmra.mrb[0].mxu0 %v1986
  %v3581 = vpop.f32.mrb[0].mxu0
  %v3582 = vadd.f32 %v3485, %v3581
  %v3583 = vpop.f32.mrb[0].mxu0
  %v3584 = vpop.f32.mrb[0].mxu0
  %v3585 = vadd.f32 %v3488, %v3584
  %v3586 = vpop.f32.mrb[0].mxu0
  %3587 = vmatprep.mubr.bf16.mxu0 %v1996
  %3588 = vmatmul.mubr.bf16.gmra.mrb[0].mxu0 %v1995
  %v3589 = vpop.f32.mrb[0].mxu0
  %v3590 = vadd.f32 %v3493, %v3589
  %v3591 = vpop.f32.mrb[0].mxu0
  %v3592 = vpop.f32.mrb[0].mxu0
  %v3593 = vadd.f32 %v3496, %v3592
  %v3594 = vpop.f32.mrb[0].mxu0
  %3595 = vmatprep.mubr.bf16.mxu0 %v2005
  %3596 = vmatmul.mubr.bf16.gmra.mrb[0].mxu0 %v2004
  %v3597 = vpop.f32.mrb[0].mxu0
  %v3598 = vadd.f32 %v3501, %v3597
  %v3599 = vpop.f32.mrb[0].mxu0
  %v3600 = vpop.f32.mrb[0].mxu0
  %v3601 = vadd.f32 %v3504, %v3600
  %v3602 = vpop.f32.mrb[0].mxu0
  %3603 = vmatprep.mubr.bf16.mxu0 %v2014
  %3604 = vmatmul.mubr.bf16.gmra.mrb[0].mxu0 %v2013
  %v3605 = vpop.f32.mrb[0].mxu0
  %v3606 = vadd.f32 %v3509, %v3605
  %v3607 = vpop.f32.mrb[0].mxu0
  %v3608 = vpop.f32.mrb[0].mxu0
  %v3609 = vadd.f32 %v3512, %v3608
  %v3610 = vpop.f32.mrb[0].mxu0
  %3611 = vmatprep.mubr.bf16.mxu0 %v2023
  %3612 = vmatmul.mubr.bf16.gmra.mrb[0].mxu0 %v2022
  %v3613 = vpop.f32.mrb[0].mxu0
  %v3614 = vadd.f32 %v3517, %v3613
  %v3615 = vpop.f32.mrb[0].mxu0
  %v3616 = vpop.f32.mrb[0].mxu0
  %v3617 = vadd.f32 %v3520, %v3616
  %v3618 = vpop.f32.mrb[0].mxu0
  %3619 = vmatprep.mubr.bf16.mxu0 %v2032
  %3620 = vmatmul.mubr.bf16.gmra.mrb[0].mxu0 %v2031
  %v3621 = vpop.f32.mrb[0].mxu0
  %v3622 = vadd.f32 %v3525, %v3621
  %v3623 = vpop.f32.mrb[0].mxu0
  %v3624 = vpop.f32.mrb[0].mxu0
  %v3625 = vadd.f32 %v3528, %v3624
  %v3626 = vpop.f32.mrb[0].mxu0
  %3627 = vmatprep.mubr.bf16.mxu0 %v2041
  %3628 = vmatmul.mubr.bf16.gmra.mrb[0].mxu0 %v2040
  %v3629 = vpop.f32.mrb[0].mxu0
  %v3630 = vadd.f32 %v3533, %v3629
  %v3631 = vpop.f32.mrb[0].mxu0
  %v3632 = vpop.f32.mrb[0].mxu0
  %v3633 = vadd.f32 %v3536, %v3632
  %v3634 = vpop.f32.mrb[0].mxu0
  %3635 = vdwg.mxu0
  %3636 = vmatprep.subr.bf16.mxu0 0
  %3637 = vmatpush1.bf16.msra.mxu0 %v1140
  %3638 = vmatprep.subr.bf16.mxu0 0
  %3639 = vmatpush1.bf16.msra.mxu0 %v1141
  %3640 = vmatprep.subr.bf16.mxu0 0
  %3641 = vmatpush1.bf16.msra.mxu0 %v1142
  %3642 = vmatprep.subr.bf16.mxu0 0
  %3643 = vmatpush1.bf16.msra.mxu0 %v1143
  %3644 = vmatprep.subr.bf16.mxu0 0
  %3645 = vmatpush1.bf16.msra.mxu0 %v1144
  %3646 = vmatprep.subr.bf16.mxu0 0
  %3647 = vmatpush1.bf16.msra.mxu0 %v1145
  %3648 = vmatprep.subr.bf16.mxu0 0
  %3649 = vmatpush1.bf16.msra.mxu0 %v1146
  %3650 = vmatprep.subr.bf16.mxu0 0
  %3651 = vmatpush1.bf16.msra.mxu0 %v1147
  %3652 = vmatprep.subr.bf16.mxu0 0
  %3653 = vmatpush1.bf16.msra.mxu0 %v1148
  %3654 = vmatprep.subr.bf16.mxu0 0
  %3655 = vmatpush1.bf16.msra.mxu0 %v1149
  %3656 = vmatprep.subr.bf16.mxu0 0
  %3657 = vmatpush1.bf16.msra.mxu0 %v1150
  %3658 = vmatprep.subr.bf16.mxu0 0
  %3659 = vmatpush1.bf16.msra.mxu0 %v1151
  %3660 = vmatprep.subr.bf16.mxu0 0
  %3661 = vmatpush1.bf16.msra.mxu0 %v1152
  %3662 = vmatprep.subr.bf16.mxu0 0
  %3663 = vmatpush1.bf16.msra.mxu0 %v1153
  %3664 = vmatprep.subr.bf16.mxu0 0
  %3665 = vmatpush1.bf16.msra.mxu0 %v1154
  %3666 = vmatprep.subr.bf16.mxu0 0
  %3667 = vmatpush1.bf16.msra.mxu0 %v1155
  %3668 = vmatprep.mubr.bf16.mxu0 %v1980
  %3669 = vmatmul.mubr.bf16.gmra.mrb[0].mxu0 %v1979
  %v3670 = vpop.f32.mrb[0].mxu0
  %v3671 = vadd.f32 %v3574, %v3670
  %v3672 = vpop.f32.mrb[0].mxu0
  %v3673 = vpop.f32.mrb[0].mxu0
  %v3674 = vadd.f32 %v3577, %v3673
  %v3675 = vpop.f32.mrb[0].mxu0
  %3676 = vmatprep.mubr.bf16.mxu0 %v1989
  %3677 = vmatmul.mubr.bf16.gmra.mrb[0].mxu0 %v1988
  %v3678 = vpop.f32.mrb[0].mxu0
  %v3679 = vadd.f32 %v3582, %v3678
  %v3680 = vpop.f32.mrb[0].mxu0
  %v3681 = vpop.f32.mrb[0].mxu0
  %v3682 = vadd.f32 %v3585, %v3681
  %v3683 = vpop.f32.mrb[0].mxu0
  %3684 = vmatprep.mubr.bf16.mxu0 %v1998
  %3685 = vmatmul.mubr.bf16.gmra.mrb[0].mxu0 %v1997
  %v3686 = vpop.f32.mrb[0].mxu0
  %v3687 = vadd.f32 %v3590, %v3686
  %v3688 = vpop.f32.mrb[0].mxu0
  %v3689 = vpop.f32.mrb[0].mxu0
  %v3690 = vadd.f32 %v3593, %v3689
  %v3691 = vpop.f32.mrb[0].mxu0
  %3692 = vmatprep.mubr.bf16.mxu0 %v2007
  %3693 = vmatmul.mubr.bf16.gmra.mrb[0].mxu0 %v2006
  %v3694 = vpop.f32.mrb[0].mxu0
  %v3695 = vadd.f32 %v3598, %v3694
  %v3696 = vpop.f32.mrb[0].mxu0
  %v3697 = vpop.f32.mrb[0].mxu0
  %v3698 = vadd.f32 %v3601, %v3697
  %v3699 = vpop.f32.mrb[0].mxu0
  %3700 = vmatprep.mubr.bf16.mxu0 %v2016
  %3701 = vmatmul.mubr.bf16.gmra.mrb[0].mxu0 %v2015
  %v3702 = vpop.f32.mrb[0].mxu0
  %v3703 = vadd.f32 %v3606, %v3702
  %v3704 = vpop.f32.mrb[0].mxu0
  %v3705 = vpop.f32.mrb[0].mxu0
  %v3706 = vadd.f32 %v3609, %v3705
  %v3707 = vpop.f32.mrb[0].mxu0
  %3708 = vmatprep.mubr.bf16.mxu0 %v2025
  %3709 = vmatmul.mubr.bf16.gmra.mrb[0].mxu0 %v2024
  %v3710 = vpop.f32.mrb[0].mxu0
  %v3711 = vadd.f32 %v3614, %v3710
  %v3712 = vpop.f32.mrb[0].mxu0
  %v3713 = vpop.f32.mrb[0].mxu0
  %v3714 = vadd.f32 %v3617, %v3713
  %v3715 = vpop.f32.mrb[0].mxu0
  %3716 = vmatprep.mubr.bf16.mxu0 %v2034
  %3717 = vmatmul.mubr.bf16.gmra.mrb[0].mxu0 %v2033
  %v3718 = vpop.f32.mrb[0].mxu0
  %v3719 = vadd.f32 %v3622, %v3718
  %v3720 = vpop.f32.mrb[0].mxu0
  %v3721 = vpop.f32.mrb[0].mxu0
  %v3722 = vadd.f32 %v3625, %v3721
  %v3723 = vpop.f32.mrb[0].mxu0
  %3724 = vmatprep.mubr.bf16.mxu0 %v2043
  %3725 = vmatmul.mubr.bf16.gmra.mrb[0].mxu0 %v2042
  %v3726 = vpop.f32.mrb[0].mxu0
  %v3727 = vadd.f32 %v3630, %v3726
  %v3728 = vpop.f32.mrb[0].mxu0
  %v3729 = vpop.f32.mrb[0].mxu0
  %v3730 = vadd.f32 %v3633, %v3729
  %v3731 = vpop.f32.mrb[0].mxu0
  %3732 = vdwg.mxu0
  %3733 = vmatprep.subr.bf16.mxu0 0
  %3734 = vmatpush1.bf16.msra.mxu0 %v1156
  %3735 = vmatprep.subr.bf16.mxu0 0
  %3736 = vmatpush1.bf16.msra.mxu0 %v1157
  %3737 = vmatprep.subr.bf16.mxu0 0
  %3738 = vmatpush1.bf16.msra.mxu0 %v1158
  %3739 = vmatprep.subr.bf16.mxu0 0
  %3740 = vmatpush1.bf16.msra.mxu0 %v1159
  %3741 = vmatprep.subr.bf16.mxu0 0
  %3742 = vmatpush1.bf16.msra.mxu0 %v1160
  %3743 = vmatprep.subr.bf16.mxu0 0
  %3744 = vmatpush1.bf16.msra.mxu0 %v1161
  %3745 = vmatprep.subr.bf16.mxu0 0
  %3746 = vmatpush1.bf16.msra.mxu0 %v1162
  %3747 = vmatprep.subr.bf16.mxu0 0
  %3748 = vmatpush1.bf16.msra.mxu0 %v1163
  %3749 = vmatprep.subr.bf16.mxu0 0
  %3750 = vmatpush1.bf16.msra.mxu0 %v1164
  %3751 = vmatprep.subr.bf16.mxu0 0
  %3752 = vmatpush1.bf16.msra.mxu0 %v1165
  %3753 = vmatprep.subr.bf16.mxu0 0
  %3754 = vmatpush1.bf16.msra.mxu0 %v1166
  %3755 = vmatprep.subr.bf16.mxu0 0
  %3756 = vmatpush1.bf16.msra.mxu0 %v1167
  %3757 = vmatprep.subr.bf16.mxu0 0
  %3758 = vmatpush1.bf16.msra.mxu0 %v1168
  %3759 = vmatprep.subr.bf16.mxu0 0
  %3760 = vmatpush1.bf16.msra.mxu0 %v1169
  %3761 = vmatprep.subr.bf16.mxu0 0
  %3762 = vmatpush1.bf16.msra.mxu0 %v1170
  %3763 = vmatprep.subr.bf16.mxu0 0
  %3764 = vmatpush1.bf16.msra.mxu0 %v1171
  %3765 = vmatprep.mubr.bf16.mxu0 %v1982
  %3766 = vmatmul.mubr.bf16.gmra.mrb[0].mxu0 %v1981
  %v3767 = vpop.f32.mrb[0].mxu0
  %v3768 = vadd.f32 %v3671, %v3767
  %v3769 = vpop.f32.mrb[0].mxu0
  %v3770 = vpop.f32.mrb[0].mxu0
  %v3771 = vadd.f32 %v3674, %v3770
  %v3772 = vpop.f32.mrb[0].mxu0
  %3773 = vmatprep.mubr.bf16.mxu0 %v1991
  %3774 = vmatmul.mubr.bf16.gmra.mrb[0].mxu0 %v1990
  %v3775 = vpop.f32.mrb[0].mxu0
  %v3776 = vadd.f32 %v3679, %v3775
  %v3777 = vpop.f32.mrb[0].mxu0
  %v3778 = vpop.f32.mrb[0].mxu0
  %v3779 = vadd.f32 %v3682, %v3778
  %v3780 = vpop.f32.mrb[0].mxu0
  %3781 = vmatprep.mubr.bf16.mxu0 %v2000
  %3782 = vmatmul.mubr.bf16.gmra.mrb[0].mxu0 %v1999
  %v3783 = vpop.f32.mrb[0].mxu0
  %v3784 = vadd.f32 %v3687, %v3783
  %v3785 = vpop.f32.mrb[0].mxu0
  %v3786 = vpop.f32.mrb[0].mxu0
  %v3787 = vadd.f32 %v3690, %v3786
  %v3788 = vpop.f32.mrb[0].mxu0
  %3789 = vmatprep.mubr.bf16.mxu0 %v2009
  %3790 = vmatmul.mubr.bf16.gmra.mrb[0].mxu0 %v2008
  %v3791 = vpop.f32.mrb[0].mxu0
  %v3792 = vadd.f32 %v3695, %v3791
  %v3793 = vpop.f32.mrb[0].mxu0
  %v3794 = vpop.f32.mrb[0].mxu0
  %v3795 = vadd.f32 %v3698, %v3794
  %v3796 = vpop.f32.mrb[0].mxu0
  %3797 = vmatprep.mubr.bf16.mxu0 %v2018
  %3798 = vmatmul.mubr.bf16.gmra.mrb[0].mxu0 %v2017
  %v3799 = vpop.f32.mrb[0].mxu0
  %v3800 = vadd.f32 %v3703, %v3799
  %v3801 = vpop.f32.mrb[0].mxu0
  %v3802 = vpop.f32.mrb[0].mxu0
  %v3803 = vadd.f32 %v3706, %v3802
  %v3804 = vpop.f32.mrb[0].mxu0
  %3805 = vmatprep.mubr.bf16.mxu0 %v2027
  %3806 = vmatmul.mubr.bf16.gmra.mrb[0].mxu0 %v2026
  %v3807 = vpop.f32.mrb[0].mxu0
  %v3808 = vadd.f32 %v3711, %v3807
  %v3809 = vpop.f32.mrb[0].mxu0
  %v3810 = vpop.f32.mrb[0].mxu0
  %v3811 = vadd.f32 %v3714, %v3810
  %v3812 = vpop.f32.mrb[0].mxu0
  %3813 = vmatprep.mubr.bf16.mxu0 %v2036
  %3814 = vmatmul.mubr.bf16.gmra.mrb[0].mxu0 %v2035
  %v3815 = vpop.f32.mrb[0].mxu0
  %v3816 = vadd.f32 %v3719, %v3815
  %v3817 = vpop.f32.mrb[0].mxu0
  %v3818 = vpop.f32.mrb[0].mxu0
  %v3819 = vadd.f32 %v3722, %v3818
  %v3820 = vpop.f32.mrb[0].mxu0
  %3821 = vmatprep.mubr.bf16.mxu0 %v2045
  %3822 = vmatmul.mubr.bf16.gmra.mrb[0].mxu0 %v2044
  %v3823 = vpop.f32.mrb[0].mxu0
  %v3824 = vadd.f32 %v3727, %v3823
  %v3825 = vpop.f32.mrb[0].mxu0
  %v3826 = vpop.f32.mrb[0].mxu0
  %v3827 = vadd.f32 %v3730, %v3826
  %v3828 = vpop.f32.mrb[0].mxu0
  %3829 = vdwg.mxu0
  %3830 = vmatprep.subr.bf16.mxu0 0
  %3831 = vmatpush1.bf16.msra.mxu0 %v1172
  %3832 = vmatprep.subr.bf16.mxu0 0
  %3833 = vmatpush1.bf16.msra.mxu0 %v1173
  %3834 = vmatprep.subr.bf16.mxu0 0
  %3835 = vmatpush1.bf16.msra.mxu0 %v1174
  %3836 = vmatprep.subr.bf16.mxu0 0
  %3837 = vmatpush1.bf16.msra.mxu0 %v1175
  %3838 = vmatprep.subr.bf16.mxu0 0
  %3839 = vmatpush1.bf16.msra.mxu0 %v1176
  %3840 = vmatprep.subr.bf16.mxu0 0
  %3841 = vmatpush1.bf16.msra.mxu0 %v1177
  %3842 = vmatprep.subr.bf16.mxu0 0
  %3843 = vmatpush1.bf16.msra.mxu0 %v1178
  %3844 = vmatprep.subr.bf16.mxu0 0
  %3845 = vmatpush1.bf16.msra.mxu0 %v1179
  %3846 = vmatprep.subr.bf16.mxu0 0
  %3847 = vmatpush1.bf16.msra.mxu0 %v1180
  %3848 = vmatprep.subr.bf16.mxu0 0
  %3849 = vmatpush1.bf16.msra.mxu0 %v1181
  %3850 = vmatprep.subr.bf16.mxu0 0
  %3851 = vmatpush1.bf16.msra.mxu0 %v1182
  %3852 = vmatprep.subr.bf16.mxu0 0
  %3853 = vmatpush1.bf16.msra.mxu0 %v1183
  %3854 = vmatprep.subr.bf16.mxu0 0
  %3855 = vmatpush1.bf16.msra.mxu0 %v1184
  %3856 = vmatprep.subr.bf16.mxu0 0
  %3857 = vmatpush1.bf16.msra.mxu0 %v1185
  %3858 = vmatprep.subr.bf16.mxu0 0
  %3859 = vmatpush1.bf16.msra.mxu0 %v1186
  %3860 = vmatprep.subr.bf16.mxu0 0
  %3861 = vmatpush1.bf16.msra.mxu0 %v1187
  %3862 = vmatprep.mubr.bf16.mxu0 %v1984
  %3863 = vmatmul.mubr.bf16.gmra.mrb[0].mxu0 %v1983
  %v3864 = vpop.f32.mrb[0].mxu0
  %v3865 = vadd.f32 %v3768, %v3864
  %v3866 = vpop.f32.mrb[0].mxu0
  %v3867 = vpop.f32.mrb[0].mxu0
  %v3868 = vadd.f32 %v3771, %v3867
  %v3869 = vpop.f32.mrb[0].mxu0
  %3870 = vmatprep.mubr.bf16.mxu0 %v1993
  %3871 = vmatmul.mubr.bf16.gmra.mrb[0].mxu0 %v1992
  %v3872 = vpop.f32.mrb[0].mxu0
  %v3873 = vadd.f32 %v3776, %v3872
  %v3874 = vpop.f32.mrb[0].mxu0
  %v3875 = vpop.f32.mrb[0].mxu0
  %v3876 = vadd.f32 %v3779, %v3875
  %v3877 = vpop.f32.mrb[0].mxu0
  %3878 = vmatprep.mubr.bf16.mxu0 %v2002
  %3879 = vmatmul.mubr.bf16.gmra.mrb[0].mxu0 %v2001
  %v3880 = vpop.f32.mrb[0].mxu0
  %v3881 = vadd.f32 %v3784, %v3880
  %v3882 = vpop.f32.mrb[0].mxu0
  %v3883 = vpop.f32.mrb[0].mxu0
  %v3884 = vadd.f32 %v3787, %v3883
  %v3885 = vpop.f32.mrb[0].mxu0
  %3886 = vmatprep.mubr.bf16.mxu0 %v2011
  %3887 = vmatmul.mubr.bf16.gmra.mrb[0].mxu0 %v2010
  %v3888 = vpop.f32.mrb[0].mxu0
  %v3889 = vadd.f32 %v3792, %v3888
  %v3890 = vpop.f32.mrb[0].mxu0
  %v3891 = vpop.f32.mrb[0].mxu0
  %v3892 = vadd.f32 %v3795, %v3891
  %v3893 = vpop.f32.mrb[0].mxu0
  %3894 = vmatprep.mubr.bf16.mxu0 %v2020
  %3895 = vmatmul.mubr.bf16.gmra.mrb[0].mxu0 %v2019
  %v3896 = vpop.f32.mrb[0].mxu0
  %v3897 = vadd.f32 %v3800, %v3896
  %v3898 = vpop.f32.mrb[0].mxu0
  %v3899 = vpop.f32.mrb[0].mxu0
  %v3900 = vadd.f32 %v3803, %v3899
  %v3901 = vpop.f32.mrb[0].mxu0
  %3902 = vmatprep.mubr.bf16.mxu0 %v2029
  %3903 = vmatmul.mubr.bf16.gmra.mrb[0].mxu0 %v2028
  %v3904 = vpop.f32.mrb[0].mxu0
  %v3905 = vadd.f32 %v3808, %v3904
  %v3906 = vpop.f32.mrb[0].mxu0
  %v3907 = vpop.f32.mrb[0].mxu0
  %v3908 = vadd.f32 %v3811, %v3907
  %v3909 = vpop.f32.mrb[0].mxu0
  %3910 = vmatprep.mubr.bf16.mxu0 %v2038
  %3911 = vmatmul.mubr.bf16.gmra.mrb[0].mxu0 %v2037
  %v3912 = vpop.f32.mrb[0].mxu0
  %v3913 = vadd.f32 %v3816, %v3912
  %v3914 = vpop.f32.mrb[0].mxu0
  %v3915 = vpop.f32.mrb[0].mxu0
  %v3916 = vadd.f32 %v3819, %v3915
  %v3917 = vpop.f32.mrb[0].mxu0
  %3918 = vmatprep.mubr.bf16.mxu0 %v2047
  %3919 = vmatmul.mubr.bf16.gmra.mrb[0].mxu0 %v2046
  %v3920 = vpop.f32.mrb[0].mxu0
  %v3921 = vadd.f32 %v3824, %v3920
  %v3922 = vpop.f32.mrb[0].mxu0
  %v3923 = vpop.f32.mrb[0].mxu0
  %v3924 = vadd.f32 %v3827, %v3923
  %v3925 = vpop.f32.mrb[0].mxu0
  %3926 = vdwg.mxu0
  %3927 = vmatprep.subr.bf16.mxu0 0
  %3928 = vmatpush1.bf16.msra.mxu0 %v1188
  %3929 = vmatprep.subr.bf16.mxu0 0
  %3930 = vmatpush1.bf16.msra.mxu0 %v1189
  %3931 = vmatprep.subr.bf16.mxu0 0
  %3932 = vmatpush1.bf16.msra.mxu0 %v1190
  %3933 = vmatprep.subr.bf16.mxu0 0
  %3934 = vmatpush1.bf16.msra.mxu0 %v1191
  %3935 = vmatprep.subr.bf16.mxu0 0
  %3936 = vmatpush1.bf16.msra.mxu0 %v1192
  %3937 = vmatprep.subr.bf16.mxu0 0
  %3938 = vmatpush1.bf16.msra.mxu0 %v1193
  %3939 = vmatprep.subr.bf16.mxu0 0
  %3940 = vmatpush1.bf16.msra.mxu0 %v1194
  %3941 = vmatprep.subr.bf16.mxu0 0
  %3942 = vmatpush1.bf16.msra.mxu0 %v1195
  %3943 = vmatprep.subr.bf16.mxu0 0
  %3944 = vmatpush1.bf16.msra.mxu0 0
  %3945 = vmatprep.subr.bf16.mxu0 0
  %3946 = vmatpush1.bf16.msra.mxu0 0
  %3947 = vmatprep.subr.bf16.mxu0 0
  %3948 = vmatpush1.bf16.msra.mxu0 0
  %3949 = vmatprep.subr.bf16.mxu0 0
  %3950 = vmatpush1.bf16.msra.mxu0 0
  %3951 = vmatprep.subr.bf16.mxu0 0
  %3952 = vmatpush1.bf16.msra.mxu0 0
  %3953 = vmatprep.subr.bf16.mxu0 0
  %3954 = vmatpush1.bf16.msra.mxu0 0
  %3955 = vmatprep.subr.bf16.mxu0 0
  %3956 = vmatpush1.bf16.msra.mxu0 0
  %3957 = vmatprep.subr.bf16.mxu0 0
  %3958 = vmatpush1.bf16.msra.mxu0 0
  %3959 = vmatprep.mubr.bf16.mxu0 0
  %3960 = vmatmul.mubr.bf16.gmra.mrb[0].mxu0 %v1985
  %v3961 = vpop.f32.mrb[0].mxu0
  %v3962 = vadd.f32 %v3865, %v3961
  %v3963 = vpop.f32.mrb[0].mxu0
  %v3964 = vpop.f32.mrb[0].mxu0
  %v3965 = vadd.f32 %v3868, %v3964
  %v3966 = vpop.f32.mrb[0].mxu0
  %3967 = vmatprep.mubr.bf16.mxu0 0
  %3968 = vmatmul.mubr.bf16.gmra.mrb[0].mxu0 %v1994
  %v3969 = vpop.f32.mrb[0].mxu0
  %v3970 = vadd.f32 %v3873, %v3969
  %v3971 = vpop.f32.mrb[0].mxu0
  %v3972 = vpop.f32.mrb[0].mxu0
  %v3973 = vadd.f32 %v3876, %v3972
  %v3974 = vpop.f32.mrb[0].mxu0
  %3975 = vmatprep.mubr.bf16.mxu0 0
  %3976 = vmatmul.mubr.bf16.gmra.mrb[0].mxu0 %v2003
  %v3977 = vpop.f32.mrb[0].mxu0
  %v3978 = vadd.f32 %v3881, %v3977
  %v3979 = vpop.f32.mrb[0].mxu0
  %v3980 = vpop.f32.mrb[0].mxu0
  %v3981 = vadd.f32 %v3884, %v3980
  %v3982 = vpop.f32.mrb[0].mxu0
  %3983 = vmatprep.mubr.bf16.mxu0 0
  %3984 = vmatmul.mubr.bf16.gmra.mrb[0].mxu0 %v2012
  %v3985 = vpop.f32.mrb[0].mxu0
  %v3986 = vadd.f32 %v3889, %v3985
  %v3987 = vpop.f32.mrb[0].mxu0
  %v3988 = vpop.f32.mrb[0].mxu0
  %v3989 = vadd.f32 %v3892, %v3988
  %v3990 = vpop.f32.mrb[0].mxu0
  %3991 = vmatprep.mubr.bf16.mxu0 0
  %3992 = vmatmul.mubr.bf16.gmra.mrb[0].mxu0 %v2021
  %v3993 = vpop.f32.mrb[0].mxu0
  %v3994 = vadd.f32 %v3897, %v3993
  %v3995 = vpop.f32.mrb[0].mxu0
  %v3996 = vpop.f32.mrb[0].mxu0
  %v3997 = vadd.f32 %v3900, %v3996
  %v3998 = vpop.f32.mrb[0].mxu0
  %3999 = vmatprep.mubr.bf16.mxu0 0
  %4000 = vmatmul.mubr.bf16.gmra.mrb[0].mxu0 %v2030
  %v4001 = vpop.f32.mrb[0].mxu0
  %v4002 = vadd.f32 %v3905, %v4001
  %v4003 = vpop.f32.mrb[0].mxu0
  %v4004 = vpop.f32.mrb[0].mxu0
  %v4005 = vadd.f32 %v3908, %v4004
  %v4006 = vpop.f32.mrb[0].mxu0
  %4007 = vmatprep.mubr.bf16.mxu0 0
  %4008 = vmatmul.mubr.bf16.gmra.mrb[0].mxu0 %v2039
  %v4009 = vpop.f32.mrb[0].mxu0
  %v4010 = vadd.f32 %v3913, %v4009
  %v4011 = vpop.f32.mrb[0].mxu0
  %v4012 = vpop.f32.mrb[0].mxu0
  %v4013 = vadd.f32 %v3916, %v4012
  %v4014 = vpop.f32.mrb[0].mxu0
  %4015 = vmatprep.mubr.bf16.mxu0 0
  %4016 = vmatmul.mubr.bf16.gmra.mrb[0].mxu0 %v2048
  %v4017 = vpop.f32.mrb[0].mxu0
  %v4018 = vadd.f32 %v3921, %v4017
  %v4019 = vpop.f32.mrb[0].mxu0
  %v4020 = vpop.f32.mrb[0].mxu0
  %v4021 = vadd.f32 %v3924, %v4020
  %v4022 = vpop.f32.mrb[0].mxu0
  %4023 = vdwg.mxu0
  %4024 = vst [vmem:[%s4] sm:$0xff] %v3038
  %4025 = vst [vmem:[%s4 + $0x10] sm:$0xff] %v3039
  %4026 = vst [vmem:[%s4 + $0x20] sm:$0xff] %v3040
  %4027 = vst [vmem:[%s4 + $0x30] sm:$0xff] %v3041
  %4028 = vst [vmem:[%s4 + $0x40] sm:$0xff] %v3042
  %4029 = vst [vmem:[%s4 + $0x50] sm:$0xff] %v3043
  %4030 = vst [vmem:[%s4 + $0x60] sm:$0xff] %v3044
  %4031 = vst [vmem:[%s4 + $0x70] sm:$0xff] %v3045
  %4032 = vst [vmem:[%s4 + $0x80] sm:$0xff] %v3046
  %4033 = vst [vmem:[%s4 + $0x90] sm:$0xff] %v3047
  %4034 = vst [vmem:[%s4 + $0xa0] sm:$0xff] %v3048
  %4035 = vst [vmem:[%s4 + $0xb0] sm:$0xff] %v3049
  %4036 = vst [vmem:[%s4 + $0xc0] sm:$0xff] %v3050
  %4037 = vst [vmem:[%s4 + $0xd0] sm:$0xff] %v3051
  %4038 = vst [vmem:[%s4 + $0xe0] sm:$0xff] %v3052
  %4039 = vst [vmem:[%s4 + $0xf0] sm:$0xff] %v3053
  %4040 = vst [vmem:[%s4 + $0x8] sm:$0xff] %v3962
  %4041 = vst [vmem:[%s4 + $0x18] sm:$0xff] %v3965
  %4042 = vst [vmem:[%s4 + $0x28] sm:$0xff] %v3970
  %4043 = vst [vmem:[%s4 + $0x38] sm:$0xff] %v3973
  %4044 = vst [vmem:[%s4 + $0x48] sm:$0xff] %v3978
  %4045 = vst [vmem:[%s4 + $0x58] sm:$0xff] %v3981
  %4046 = vst [vmem:[%s4 + $0x68] sm:$0xff] %v3986
  %4047 = vst [vmem:[%s4 + $0x78] sm:$0xff] %v3989
  %4048 = vst [vmem:[%s4 + $0x88] sm:$0xff] %v3994
  %4049 = vst [vmem:[%s4 + $0x98] sm:$0xff] %v3997
  %4050 = vst [vmem:[%s4 + $0xa8] sm:$0xff] %v4002
  %4051 = vst [vmem:[%s4 + $0xb8] sm:$0xff] %v4005
  %4052 = vst [vmem:[%s4 + $0xc8] sm:$0xff] %v4010
  %4053 = vst [vmem:[%s4 + $0xd8] sm:$0xff] %v4013
  %4054 = vst [vmem:[%s4 + $0xe8] sm:$0xff] %v4018
  %4055 = vst [vmem:[%s4 + $0xf8] sm:$0xff] %v4021
  %v4056 = vlaneseq
  %v4057 = vshrl.u32 %v4056, 7
  %v4058 = vadd.f32 %v3038, %v3039
  %v4059 = vadd.f32 %v4058, %v3040
  %v4060 = vadd.f32 %v4059, %v3041
  %v4061 = vadd.f32 %v4060, %v3042
  %v4062 = vadd.f32 %v4061, %v3043
  %v4063 = vadd.f32 %v4062, %v3044
  %v4064 = vadd.f32 %v4063, %v3045
  %v4065 = vadd.f32 %v4064, %v3046
  %v4066 = vadd.f32 %v4065, %v3047
  %v4067 = vadd.f32 %v4066, %v3048
  %v4068 = vadd.f32 %v4067, %v3049
  %v4069 = vadd.f32 %v4068, %v3050
  %v4070 = vadd.f32 %v4069, %v3051
  %v4071 = vadd.f32 %v4070, %v3052
  %v4072 = vadd.f32 %v4071, %v3053
  %v4073 = vrot.slane %v4072, 4
  %v4074 = vadd.f32 %v4072, %v4073
  %v4075 = vrot.slane %v4074, 2
  %v4076 = vadd.f32 %v4074, %v4075
  %v4077 = vrot.slane %v4076, 1
  %v4078 = vadd.f32 %v4076, %v4077
  %v4079 = vmul.f32 %v3038, %v3038
  %v4080 = vmul.f32 %v3039, %v3039
  %v4081 = vmul.f32 %v3040, %v3040
  %v4082 = vmul.f32 %v3041, %v3041
  %v4083 = vmul.f32 %v3042, %v3042
  %v4084 = vmul.f32 %v3043, %v3043
  %v4085 = vmul.f32 %v3044, %v3044
  %v4086 = vmul.f32 %v3045, %v3045
  %v4087 = vmul.f32 %v3046, %v3046
  %v4088 = vmul.f32 %v3047, %v3047
  %v4089 = vmul.f32 %v3048, %v3048
  %v4090 = vmul.f32 %v3049, %v3049
  %v4091 = vmul.f32 %v3050, %v3050
  %v4092 = vmul.f32 %v3051, %v3051
  %v4093 = vmul.f32 %v3052, %v3052
  %v4094 = vmul.f32 %v3053, %v3053
  %v4095 = vadd.f32 %v4079, %v4080
  %v4096 = vadd.f32 %v4095, %v4081
  %v4097 = vadd.f32 %v4096, %v4082
  %v4098 = vadd.f32 %v4097, %v4083
  %v4099 = vadd.f32 %v4098, %v4084
  %v4100 = vadd.f32 %v4099, %v4085
  %v4101 = vadd.f32 %v4100, %v4086
  %v4102 = vadd.f32 %v4101, %v4087
  %v4103 = vadd.f32 %v4102, %v4088
  %v4104 = vadd.f32 %v4103, %v4089
  %v4105 = vadd.f32 %v4104, %v4090
  %v4106 = vadd.f32 %v4105, %v4091
  %v4107 = vadd.f32 %v4106, %v4092
  %v4108 = vadd.f32 %v4107, %v4093
  %v4109 = vadd.f32 %v4108, %v4094
  %v4110 = vrot.slane %v4109, 4
  %v4111 = vadd.f32 %v4109, %v4110
  %v4112 = vrot.slane %v4111, 2
  %v4113 = vadd.f32 %v4111, %v4112
  %v4114 = vrot.slane %v4113, 1
  %v4115 = vadd.f32 %v4113, %v4114
  %vm4116 = vcmp.eq.s32.totalorder %v4057, 0
  %vm4117 = vcmp.eq.s32.totalorder %v4057, 1
  %v4118 = vsel %vm4117, %v4115, 0.0
  %v4119 = vsel %vm4116, %v4078, %v4118
  %4120 = vst [vmem:[%s5] sm:$0xff] %v4119
  %v4121 = vadd.f32 %v3962, %v3965
  %v4122 = vadd.f32 %v4121, %v3970
  %v4123 = vadd.f32 %v4122, %v3973
  %v4124 = vadd.f32 %v4123, %v3978
  %v4125 = vadd.f32 %v4124, %v3981
  %v4126 = vadd.f32 %v4125, %v3986
  %v4127 = vadd.f32 %v4126, %v3989
  %v4128 = vadd.f32 %v4127, %v3994
  %v4129 = vadd.f32 %v4128, %v3997
  %v4130 = vadd.f32 %v4129, %v4002
  %v4131 = vadd.f32 %v4130, %v4005
  %v4132 = vadd.f32 %v4131, %v4010
  %v4133 = vadd.f32 %v4132, %v4013
  %v4134 = vadd.f32 %v4133, %v4018
  %v4135 = vadd.f32 %v4134, %v4021
  %v4136 = vrot.slane %v4135, 4
  %v4137 = vadd.f32 %v4135, %v4136
  %v4138 = vrot.slane %v4137, 2
  %v4139 = vadd.f32 %v4137, %v4138
  %v4140 = vrot.slane %v4139, 1
  %v4141 = vadd.f32 %v4139, %v4140
  %v4142 = vmul.f32 %v3962, %v3962
  %v4143 = vmul.f32 %v3965, %v3965
  %v4144 = vmul.f32 %v3970, %v3970
  %v4145 = vmul.f32 %v3973, %v3973
  %v4146 = vmul.f32 %v3978, %v3978
  %v4147 = vmul.f32 %v3981, %v3981
  %v4148 = vmul.f32 %v3986, %v3986
  %v4149 = vmul.f32 %v3989, %v3989
  %v4150 = vmul.f32 %v3994, %v3994
  %v4151 = vmul.f32 %v3997, %v3997
  %v4152 = vmul.f32 %v4002, %v4002
  %v4153 = vmul.f32 %v4005, %v4005
  %v4154 = vmul.f32 %v4010, %v4010
  %v4155 = vmul.f32 %v4013, %v4013
  %v4156 = vmul.f32 %v4018, %v4018
  %v4157 = vmul.f32 %v4021, %v4021
  %v4158 = vadd.f32 %v4142, %v4143
  %v4159 = vadd.f32 %v4158, %v4144
  %v4160 = vadd.f32 %v4159, %v4145
  %v4161 = vadd.f32 %v4160, %v4146
  %v4162 = vadd.f32 %v4161, %v4147
  %v4163 = vadd.f32 %v4162, %v4148
  %v4164 = vadd.f32 %v4163, %v4149
  %v4165 = vadd.f32 %v4164, %v4150
  %v4166 = vadd.f32 %v4165, %v4151
  %v4167 = vadd.f32 %v4166, %v4152
  %v4168 = vadd.f32 %v4167, %v4153
  %v4169 = vadd.f32 %v4168, %v4154
  %v4170 = vadd.f32 %v4169, %v4155
  %v4171 = vadd.f32 %v4170, %v4156
  %v4172 = vadd.f32 %v4171, %v4157
  %v4173 = vrot.slane %v4172, 4
  %v4174 = vadd.f32 %v4172, %v4173
  %v4175 = vrot.slane %v4174, 2
  %v4176 = vadd.f32 %v4174, %v4175
  %v4177 = vrot.slane %v4176, 1
  %v4178 = vadd.f32 %v4176, %v4177
  %v4179 = vsel %vm4117, %v4178, 0.0
  %v4180 = vsel %vm4116, %v4141, %v4179
  %4181 = vst [vmem:[%s5 + $0x8] sm:$0xff] %v4180
  // Predicated region
  $region18: #{bottleneck_forward.8} parent=0 // pred_check
    _
  $region19: #{bottleneck_forward.8} parent=0 // pred_check_branch
    %4183 = sbr.rel (0) target = $region21
  $region20: #{bottleneck_forward.8} parent=0 // pred_region
    _
  $region21: #{bottleneck_forward.8} parent=0 // pred_fallthru
    _
  // Predicated region
  $region22: #{bottleneck_forward.8} parent=0 // pred_check
    _
  $region23: #{bottleneck_forward.8} parent=0 // pred_check_branch
    %4185 = sbr.rel (0) target = $region25
  $region24: #{bottleneck_forward.8} parent=0 // pred_region
    _
  $region25: #{bottleneck_forward.8} parent=0 // pred_fallthru
    _
  // Predicated region
  $region26: #{bottleneck_forward.8} parent=0 // pred_check
    _
  $region27: #{bottleneck_forward.8} parent=0 // pred_check_branch
    %4187 = sbr.rel (0) target = $region29
  $region28: #{bottleneck_forward.8} parent=0 // pred_region
    _
  $region29: #{bottleneck_forward.8} parent=0 // pred_fallthru
    _
  // Predicated region
  $region30: #{bottleneck_forward.8} parent=0 // pred_check
    _
  $region31: #{bottleneck_forward.8} parent=0 // pred_check_branch
    %4189 = sbr.rel (0) target = $region33
  $region32: #{bottleneck_forward.8} parent=0 // pred_region
    _
  $region33: #{bottleneck_forward.8} parent=0 // pred_fallthru
    _

</llo_original>
